<compile_context>
chip_gen: v7x
topology: tpu7x:2x2x1
jax: 0.10.0
libtpu: 0.0.40
codegen_flags: <defaults>
</compile_context>

<pallas_src>
import jax
import jax.numpy as jnp
from jax.experimental import pallas as pl
from jax.experimental.pallas import tpu as pltpu

T_STEPS = 10          # T_pos == T_neg == 10 in the reference forward
V_THRESHOLD = 1.0     # spikingjelly IFNode defaults
V_RESET = 0.0


def _if_rate(drive):
    """Mean spike rate of an IF neuron under constant drive for T_STEPS steps.

    Bit-exact reformulation of the step simulation: hard reset to exactly 0.0
    restarts the identical f32 accumulation sequence, so the spike train is
    periodic with period p = first step where the running sum >= threshold and
    the spike count is floor(T / p)  (0 if the sum never crosses).
    """
    s = jnp.zeros_like(drive)
    below = jnp.zeros_like(drive)       # how many of the T running sums stay < threshold
    for _ in range(T_STEPS):            # tiny fixed trip count -> unrolled at trace time
        s = s + drive
        below = below + (s < V_THRESHOLD).astype(drive.dtype)
    period = below + 1.0                # first-crossing step (T+1 if it never crosses)
    # period is an exact integer in [1, 11]; the integer quotients (10/1, 10/2,
    # 10/5, 10/10) are exactly representable in f32, so the divide+floor is exact.
    # (On hardware, T_STEPS * pl.reciprocal(period, approx=True) + eps would move
    #  the divide to the otherwise-idle EUP slot; kept as the exact VALU divide
    #  here so the script also runs under TPU interpret mode.)
    spikes = jnp.floor(T_STEPS / period)
    return spikes * (1.0 / T_STEPS)


def _ff_kernel(x_ref, w1t_ref, w3t_ref, w2t_ref, out_ref):
    k = pl.program_id(1)

    @pl.when(k == 0)
    def _init():
        out_ref[...] = jnp.zeros_like(out_ref)

    cdt = w1t_ref.dtype                              # bf16 compute dtype for the MXU
    x = x_ref[...]                                   # f32 [TM, dim]
    x_pos = jnp.maximum(x, 0.0).astype(cdt)          # cast after ReLU (exact)
    x_neg = jnp.maximum(-x, 0.0).astype(cdt)

    w1_t = w1t_ref[...]                              # bf16 [dim, TH]
    w3_t = w3t_ref[...]                              # bf16 [dim, TH]

    # Three up-projection dots; the w3 tile stays RHS-resident for both branches.
    h1_pos = jnp.dot(x_pos, w1_t, preferred_element_type=jnp.float32)   # f32 [TM, TH]
    h3_pos = jnp.dot(x_pos, w3_t, preferred_element_type=jnp.float32)
    h3_neg = jnp.dot(x_neg, w3_t, preferred_element_type=jnp.float32)

    # IF spike-rate gating, elementwise in f32.
    gate = _if_rate(h1_pos) * (_if_rate(h3_pos) - _if_rate(h3_neg))     # f32 [TM, TH]

    # Down-projection partial product accumulated directly into the k-invariant,
    # VMEM-resident f32 output block (no scratch accumulator).
    out_ref[...] += jnp.dot(gate.astype(w2t_ref.dtype), w2t_ref[...],
                            preferred_element_type=jnp.float32)


def prepare_ffn_weights(w1, w2, w3, dtype=jnp.bfloat16):
    """One-time setup (keep out of the per-call hot path): transpose nn.Linear
    [out,in] weights to [in,out] and cast to bf16. Kept as three separate arrays
    so each gets its own correctly-tiled BlockSpec."""
    return w1.T.astype(dtype), w3.T.astype(dtype), w2.T.astype(dtype)


def _default_vmem_limit_bytes(tm, th, dim):
    bf16, f32 = 2, 4
    streams = 2 * (tm * dim * f32            # x block (double-buffered)
                   + 2 * dim * th * bf16     # w1^T + w3^T tiles
                   + th * dim * bf16)        # w2^T tile
    out_blk = 2 * tm * dim * f32             # resident f32 output block
    temps = 8 * tm * th * f32                # drives + IF state + gate temporaries
    est = int(1.25 * (streams + out_blk + temps))
    # Cap at 56 MiB: leaves headroom on v7x (64 MiB physical). For v5e/v6e
    # (128 MiB VMEM) pass vmem_limit_bytes explicitly together with tm=512.
    return min(max(est, 32 * 1024 * 1024), 56 * 1024 * 1024)


def feed_forward(x, w1t, w3t, w2t, *, tm=256, th=512, vmem_limit_bytes=None):
    """x: [N, dim] float32; w1t/w3t: [dim, hidden] bf16; w2t: [hidden, dim] bf16.

    Per-generation tile guidance: v7x tm=256/th=512 (keep grid[0] >= 2 so the
    'parallel' token axis splits across the 2 TensorCores); v6e/v5e tm=512 (or
    larger) with a ~96 MiB vmem limit to amortize weight re-streaming.
    """
    n, dim = x.shape
    hidden = w2t.shape[0]
    assert w1t.shape == (dim, hidden) and w3t.shape == (dim, hidden)
    assert w2t.shape == (hidden, dim)

    tm = min(tm, n)
    th = min(th, hidden)
    assert n % tm == 0 and tm % 16 == 0, \
        "token tile must divide N and be a multiple of 16 (128+ recommended)"
    assert hidden % th == 0 and th % 128 == 0, \
        "hidden tile must divide hidden and be a multiple of 128 (256+ on v6e/v7x)"
    grid = (n // tm, hidden // th)    # token tiles (parallel), hidden tiles (reduction, last)

    x = x.astype(jnp.float32)         # no wrapper bf16 cast pass; cast happens in-kernel

    if vmem_limit_bytes is None:
        vmem_limit_bytes = _default_vmem_limit_bytes(tm, th, dim)

    flops = 8 * n * dim * hidden      # 3 up-projection matmuls + 1 down-projection
    weight_bytes = (w1t.size + w3t.size + w2t.size) * w1t.dtype.itemsize
    bytes_accessed = x.size * 4 + grid[0] * weight_bytes + n * dim * 4

    return pl.pallas_call(
        _ff_kernel,
        out_shape=jax.ShapeDtypeStruct((n, dim), jnp.float32),
        grid_spec=pltpu.PrefetchScalarGridSpec(
            num_scalar_prefetch=0,
            grid=grid,
            in_specs=[
                pl.BlockSpec((tm, dim), lambda i, k: (i, 0)),   # x: invariant along hidden axis
                pl.BlockSpec((dim, th), lambda i, k: (0, k)),   # w1^T: token-invariant
                pl.BlockSpec((dim, th), lambda i, k: (0, k)),   # w3^T: token-invariant
                pl.BlockSpec((th, dim), lambda i, k: (k, 0)),   # w2^T: token-invariant
            ],
            out_specs=pl.BlockSpec((tm, dim), lambda i, k: (i, 0)),  # revisited along k (accumulator)
        ),
        compiler_params=pltpu.CompilerParams(
            dimension_semantics=("parallel", "arbitrary"),
            vmem_limit_bytes=vmem_limit_bytes,
        ),
        cost_estimate=pl.CostEstimate(flops=flops, transcendentals=0,
                                      bytes_accessed=int(bytes_accessed)),
    )(x, w1t, w3t, w2t)


# ----------------------------- pure-JAX reference -----------------------------

def _if_rate_steps(drive):
    """Literal T-step IF simulation (mirrors spikingjelly IFNode, step_mode='m')."""
    v = jnp.zeros_like(drive)
    cnt = jnp.zeros_like(drive)
    for _ in range(T_STEPS):
        v = v + drive
        spike = v >= V_THRESHOLD
        cnt = cnt + spike.astype(drive.dtype)
        v = jnp.where(spike, V_RESET, v)      # hard reset
    return cnt * (1.0 / T_STEPS)


def feed_forward_ref(x, w1, w2, w3, dtype=jnp.bfloat16):
    """Reference mirroring the PyTorch forward with the same bf16 operands as the kernel."""
    x_pos = jnp.maximum(x, 0.0).astype(dtype)
    x_neg = jnp.maximum(-x, 0.0).astype(dtype)
    w1t = w1.T.astype(dtype)
    w2t = w2.T.astype(dtype)
    w3t = w3.T.astype(dtype)
    h1p = jnp.dot(x_pos, w1t, preferred_element_type=jnp.float32)
    h3p = jnp.dot(x_pos, w3t, preferred_element_type=jnp.float32)
    h3n = jnp.dot(x_neg, w3t, preferred_element_type=jnp.float32)
    gate = _if_rate_steps(h1p) * (_if_rate_steps(h3p) - _if_rate_steps(h3n))
    return jnp.dot(gate.astype(dtype), w2t, preferred_element_type=jnp.float32)


if __name__ == "__main__":
    # Small FFN-like shapes that still exercise a real (2, 2) grid of tiles.
    N, DIM, HIDDEN = 256, 128, 512
    TM, TH = 128, 256

    key = jax.random.PRNGKey(0)
    kx, k1, k2, k3 = jax.random.split(key, 4)

    x = jax.random.normal(kx, (N, DIM), dtype=jnp.float32)

    # deterministic nn.Linear-style init: U(-1/sqrt(fan_in), 1/sqrt(fan_in))
    def linear_init(k, out_f, in_f):
        bound = 1.0 / (in_f ** 0.5)
        return jax.random.uniform(k, (out_f, in_f), jnp.float32, -bound, bound)

    w1 = linear_init(k1, HIDDEN, DIM)   # args.dim -> args.hidden_dim
    w2 = linear_init(k2, DIM, HIDDEN)   # args.hidden_dim -> args.dim
    w3 = linear_init(k3, HIDDEN, DIM)   # args.dim -> args.hidden_dim

    # one-time transpose + bf16 cast (outside the per-call hot path)
    w1t, w3t, w2t = prepare_ffn_weights(w1, w2, w3)

    out = feed_forward(x, w1t, w3t, w2t, tm=TM, th=TH)
    out = jax.block_until_ready(out)

    ref = feed_forward_ref(x, w1, w2, w3)
    assert out.shape == (N, DIM)
    # Tolerance covers f32 accumulation-order differences of the tiled
    # down-projection plus a possible last-bit matmul difference that flips a
    # single IF threshold crossing (rate step of 0.1 * |w2| ~ a few 1e-3).
    max_err = float(jnp.max(jnp.abs(out - ref)))
    assert jnp.allclose(out, ref, atol=1e-2, rtol=1e-2), \
        f"mismatch vs reference, max abs err {max_err}"

    print("KERNEL_OK")
</pallas_src>

<mosaic_0001>
module attributes {stable_mosaic.version = 11 : i64} {
  func.func @_ff_kernel(%arg0: i32, %arg1: i32, %arg2: memref<128x128xf32, #tpu.memory_space<vmem>>, %arg3: memref<128x256xbf16, #tpu.memory_space<vmem>>, %arg4: memref<128x256xbf16, #tpu.memory_space<vmem>>, %arg5: memref<256x128xbf16, #tpu.memory_space<vmem>>, %arg6: memref<128x128xf32, #tpu.memory_space<vmem>>) attributes {dimension_semantics = [#tpu.dimension_semantics<parallel>, #tpu.dimension_semantics<arbitrary>], iteration_bounds = array<i64: 2, 2>, scalar_prefetch = 0 : i64, scratch_operands = 0 : i64, tpu.core_type = #tpu.core_type<tc>, window_params = [{transform_indices = @transform_0, window_bounds = array<i64: 128, 128>}, {transform_indices = @transform_1, window_bounds = array<i64: 128, 256>}, {transform_indices = @transform_2, window_bounds = array<i64: 128, 256>}, {transform_indices = @transform_3, window_bounds = array<i64: 256, 128>}, {transform_indices = @transform_4, window_bounds = array<i64: 128, 128>}]} {
    %c0_i32 = arith.constant 0 : i32
    %0 = arith.cmpi eq, %arg1, %c0_i32 : i32
    %1 = arith.extui %0 : i1 to i32
    %c0_i32_0 = arith.constant 0 : i32
    %2 = arith.cmpi ne, %1, %c0_i32_0 : i32
    scf.if %2 {
      %cst_63 = arith.constant 0.000000e+00 : f32
      %232 = vector.broadcast %cst_63 : f32 to vector<128x128xf32>
      %c0_64 = arith.constant 0 : index
      %c0_65 = arith.constant 0 : index
      %233 = vector.load %arg6[%c0_64, %c0_65] : memref<128x128xf32, #tpu.memory_space<vmem>>, vector<128x128xf32>
      tpu.vector_store %arg6[%c0_64, %c0_65], %232 {strides = array<i32>} : memref<128x128xf32, #tpu.memory_space<vmem>>, vector<128x128xf32>,
    } else {
    }
    %c0 = arith.constant 0 : index
    %c0_1 = arith.constant 0 : index
    %3 = vector.load %arg2[%c0, %c0_1] : memref<128x128xf32, #tpu.memory_space<vmem>>, vector<128x128xf32>
    %cst = arith.constant 0.000000e+00 : f32
    %4 = vector.broadcast %cst : f32 to vector<128x128xf32>
    %5 = arith.maximumf %3, %4 : vector<128x128xf32>
    %6 = arith.truncf %5 : vector<128x128xf32> to vector<128x128xbf16>
    %cst_2 = arith.constant 0.000000e+00 : f32
    %7 = vector.broadcast %cst_2 : f32 to vector<128x128xf32>
    %8 = arith.subf %7, %3 : vector<128x128xf32>
    %cst_3 = arith.constant 0.000000e+00 : f32
    %9 = vector.broadcast %cst_3 : f32 to vector<128x128xf32>
    %10 = arith.maximumf %8, %9 : vector<128x128xf32>
    %11 = arith.truncf %10 : vector<128x128xf32> to vector<128x128xbf16>
    %c0_4 = arith.constant 0 : index
    %c0_5 = arith.constant 0 : index
    %12 = vector.load %arg3[%c0_4, %c0_5] : memref<128x256xbf16, #tpu.memory_space<vmem>>, vector<128x256xbf16>
    %c0_6 = arith.constant 0 : index
    %c0_7 = arith.constant 0 : index
    %13 = vector.load %arg4[%c0_6, %c0_7] : memref<128x256xbf16, #tpu.memory_space<vmem>>, vector<128x256xbf16>
    %cst_8 = arith.constant dense<0.000000e+00> : vector<128x256xf32>
    %14 = tpu.matmul %6, %12, %cst_8 {dimension_numbers = #tpu.dot_dimension_numbers<[1], [0], [0], [1], [0, 0, 1, 1], [], []>} : vector<128x128xbf16>, vector<128x256xbf16>, vector<128x256xf32> -> vector<128x256xf32>
    %cst_9 = arith.constant dense<0.000000e+00> : vector<128x256xf32>
    %15 = tpu.matmul %6, %13, %cst_9 {dimension_numbers = #tpu.dot_dimension_numbers<[1], [0], [0], [1], [0, 0, 1, 1], [], []>} : vector<128x128xbf16>, vector<128x256xbf16>, vector<128x256xf32> -> vector<128x256xf32>
    %cst_10 = arith.constant dense<0.000000e+00> : vector<128x256xf32>
    %16 = tpu.matmul %11, %13, %cst_10 {dimension_numbers = #tpu.dot_dimension_numbers<[1], [0], [0], [1], [0, 0, 1, 1], [], []>} : vector<128x128xbf16>, vector<128x256xbf16>, vector<128x256xf32> -> vector<128x256xf32>
    %cst_11 = arith.constant 0.000000e+00 : f32
    %17 = vector.broadcast %cst_11 : f32 to vector<128x256xf32>
    %cst_12 = arith.constant 0.000000e+00 : f32
    %18 = vector.broadcast %cst_12 : f32 to vector<128x256xf32>
    %19 = arith.addf %17, %14 : vector<128x256xf32>
    %cst_13 = arith.constant 1.000000e+00 : f32
    %20 = vector.broadcast %cst_13 : f32 to vector<128x256xf32>
    %21 = arith.cmpf olt, %19, %20 : vector<128x256xf32>
    %22 = arith.extui %21 : vector<128x256xi1> to vector<128x256xi32>
    %23 = arith.sitofp %22 : vector<128x256xi32> to vector<128x256xf32>
    %24 = arith.addf %18, %23 : vector<128x256xf32>
    %25 = arith.addf %19, %14 : vector<128x256xf32>
    %cst_14 = arith.constant 1.000000e+00 : f32
    %26 = vector.broadcast %cst_14 : f32 to vector<128x256xf32>
    %27 = arith.cmpf olt, %25, %26 : vector<128x256xf32>
    %28 = arith.extui %27 : vector<128x256xi1> to vector<128x256xi32>
    %29 = arith.sitofp %28 : vector<128x256xi32> to vector<128x256xf32>
    %30 = arith.addf %24, %29 : vector<128x256xf32>
    %31 = arith.addf %25, %14 : vector<128x256xf32>
    %cst_15 = arith.constant 1.000000e+00 : f32
    %32 = vector.broadcast %cst_15 : f32 to vector<128x256xf32>
    %33 = arith.cmpf olt, %31, %32 : vector<128x256xf32>
    %34 = arith.extui %33 : vector<128x256xi1> to vector<128x256xi32>
    %35 = arith.sitofp %34 : vector<128x256xi32> to vector<128x256xf32>
    %36 = arith.addf %30, %35 : vector<128x256xf32>
    %37 = arith.addf %31, %14 : vector<128x256xf32>
    %cst_16 = arith.constant 1.000000e+00 : f32
    %38 = vector.broadcast %cst_16 : f32 to vector<128x256xf32>
    %39 = arith.cmpf olt, %37, %38 : vector<128x256xf32>
    %40 = arith.extui %39 : vector<128x256xi1> to vector<128x256xi32>
    %41 = arith.sitofp %40 : vector<128x256xi32> to vector<128x256xf32>
    %42 = arith.addf %36, %41 : vector<128x256xf32>
    %43 = arith.addf %37, %14 : vector<128x256xf32>
    %cst_17 = arith.constant 1.000000e+00 : f32
    %44 = vector.broadcast %cst_17 : f32 to vector<128x256xf32>
    %45 = arith.cmpf olt, %43, %44 : vector<128x256xf32>
    %46 = arith.extui %45 : vector<128x256xi1> to vector<128x256xi32>
    %47 = arith.sitofp %46 : vector<128x256xi32> to vector<128x256xf32>
    %48 = arith.addf %42, %47 : vector<128x256xf32>
    %49 = arith.addf %43, %14 : vector<128x256xf32>
    %cst_18 = arith.constant 1.000000e+00 : f32
    %50 = vector.broadcast %cst_18 : f32 to vector<128x256xf32>
    %51 = arith.cmpf olt, %49, %50 : vector<128x256xf32>
    %52 = arith.extui %51 : vector<128x256xi1> to vector<128x256xi32>
    %53 = arith.sitofp %52 : vector<128x256xi32> to vector<128x256xf32>
    %54 = arith.addf %48, %53 : vector<128x256xf32>
    %55 = arith.addf %49, %14 : vector<128x256xf32>
    %cst_19 = arith.constant 1.000000e+00 : f32
    %56 = vector.broadcast %cst_19 : f32 to vector<128x256xf32>
    %57 = arith.cmpf olt, %55, %56 : vector<128x256xf32>
    %58 = arith.extui %57 : vector<128x256xi1> to vector<128x256xi32>
    %59 = arith.sitofp %58 : vector<128x256xi32> to vector<128x256xf32>
    %60 = arith.addf %54, %59 : vector<128x256xf32>
    %61 = arith.addf %55, %14 : vector<128x256xf32>
    %cst_20 = arith.constant 1.000000e+00 : f32
    %62 = vector.broadcast %cst_20 : f32 to vector<128x256xf32>
    %63 = arith.cmpf olt, %61, %62 : vector<128x256xf32>
    %64 = arith.extui %63 : vector<128x256xi1> to vector<128x256xi32>
    %65 = arith.sitofp %64 : vector<128x256xi32> to vector<128x256xf32>
    %66 = arith.addf %60, %65 : vector<128x256xf32>
    %67 = arith.addf %61, %14 : vector<128x256xf32>
    %cst_21 = arith.constant 1.000000e+00 : f32
    %68 = vector.broadcast %cst_21 : f32 to vector<128x256xf32>
    %69 = arith.cmpf olt, %67, %68 : vector<128x256xf32>
    %70 = arith.extui %69 : vector<128x256xi1> to vector<128x256xi32>
    %71 = arith.sitofp %70 : vector<128x256xi32> to vector<128x256xf32>
    %72 = arith.addf %66, %71 : vector<128x256xf32>
    %73 = arith.addf %67, %14 : vector<128x256xf32>
    %cst_22 = arith.constant 1.000000e+00 : f32
    %74 = vector.broadcast %cst_22 : f32 to vector<128x256xf32>
    %75 = arith.cmpf olt, %73, %74 : vector<128x256xf32>
    %76 = arith.extui %75 : vector<128x256xi1> to vector<128x256xi32>
    %77 = arith.sitofp %76 : vector<128x256xi32> to vector<128x256xf32>
    %78 = arith.addf %72, %77 : vector<128x256xf32>
    %cst_23 = arith.constant 1.000000e+00 : f32
    %79 = vector.broadcast %cst_23 : f32 to vector<128x256xf32>
    %80 = arith.addf %78, %79 : vector<128x256xf32>
    %cst_24 = arith.constant 1.000000e+01 : f32
    %81 = vector.broadcast %cst_24 : f32 to vector<128x256xf32>
    %82 = arith.divf %81, %80 : vector<128x256xf32>
    %83 = math.floor %82 : vector<128x256xf32>
    %cst_25 = arith.constant 1.000000e-01 : f32
    %84 = vector.broadcast %cst_25 : f32 to vector<128x256xf32>
    %85 = arith.mulf %83, %84 : vector<128x256xf32>
    %cst_26 = arith.constant 0.000000e+00 : f32
    %86 = vector.broadcast %cst_26 : f32 to vector<128x256xf32>
    %cst_27 = arith.constant 0.000000e+00 : f32
    %87 = vector.broadcast %cst_27 : f32 to vector<128x256xf32>
    %88 = arith.addf %86, %15 : vector<128x256xf32>
    %cst_28 = arith.constant 1.000000e+00 : f32
    %89 = vector.broadcast %cst_28 : f32 to vector<128x256xf32>
    %90 = arith.cmpf olt, %88, %89 : vector<128x256xf32>
    %91 = arith.extui %90 : vector<128x256xi1> to vector<128x256xi32>
    %92 = arith.sitofp %91 : vector<128x256xi32> to vector<128x256xf32>
    %93 = arith.addf %87, %92 : vector<128x256xf32>
    %94 = arith.addf %88, %15 : vector<128x256xf32>
    %cst_29 = arith.constant 1.000000e+00 : f32
    %95 = vector.broadcast %cst_29 : f32 to vector<128x256xf32>
    %96 = arith.cmpf olt, %94, %95 : vector<128x256xf32>
    %97 = arith.extui %96 : vector<128x256xi1> to vector<128x256xi32>
    %98 = arith.sitofp %97 : vector<128x256xi32> to vector<128x256xf32>
    %99 = arith.addf %93, %98 : vector<128x256xf32>
    %100 = arith.addf %94, %15 : vector<128x256xf32>
    %cst_30 = arith.constant 1.000000e+00 : f32
    %101 = vector.broadcast %cst_30 : f32 to vector<128x256xf32>
    %102 = arith.cmpf olt, %100, %101 : vector<128x256xf32>
    %103 = arith.extui %102 : vector<128x256xi1> to vector<128x256xi32>
    %104 = arith.sitofp %103 : vector<128x256xi32> to vector<128x256xf32>
    %105 = arith.addf %99, %104 : vector<128x256xf32>
    %106 = arith.addf %100, %15 : vector<128x256xf32>
    %cst_31 = arith.constant 1.000000e+00 : f32
    %107 = vector.broadcast %cst_31 : f32 to vector<128x256xf32>
    %108 = arith.cmpf olt, %106, %107 : vector<128x256xf32>
    %109 = arith.extui %108 : vector<128x256xi1> to vector<128x256xi32>
    %110 = arith.sitofp %109 : vector<128x256xi32> to vector<128x256xf32>
    %111 = arith.addf %105, %110 : vector<128x256xf32>
    %112 = arith.addf %106, %15 : vector<128x256xf32>
    %cst_32 = arith.constant 1.000000e+00 : f32
    %113 = vector.broadcast %cst_32 : f32 to vector<128x256xf32>
    %114 = arith.cmpf olt, %112, %113 : vector<128x256xf32>
    %115 = arith.extui %114 : vector<128x256xi1> to vector<128x256xi32>
    %116 = arith.sitofp %115 : vector<128x256xi32> to vector<128x256xf32>
    %117 = arith.addf %111, %116 : vector<128x256xf32>
    %118 = arith.addf %112, %15 : vector<128x256xf32>
    %cst_33 = arith.constant 1.000000e+00 : f32
    %119 = vector.broadcast %cst_33 : f32 to vector<128x256xf32>
    %120 = arith.cmpf olt, %118, %119 : vector<128x256xf32>
    %121 = arith.extui %120 : vector<128x256xi1> to vector<128x256xi32>
    %122 = arith.sitofp %121 : vector<128x256xi32> to vector<128x256xf32>
    %123 = arith.addf %117, %122 : vector<128x256xf32>
    %124 = arith.addf %118, %15 : vector<128x256xf32>
    %cst_34 = arith.constant 1.000000e+00 : f32
    %125 = vector.broadcast %cst_34 : f32 to vector<128x256xf32>
    %126 = arith.cmpf olt, %124, %125 : vector<128x256xf32>
    %127 = arith.extui %126 : vector<128x256xi1> to vector<128x256xi32>
    %128 = arith.sitofp %127 : vector<128x256xi32> to vector<128x256xf32>
    %129 = arith.addf %123, %128 : vector<128x256xf32>
    %130 = arith.addf %124, %15 : vector<128x256xf32>
    %cst_35 = arith.constant 1.000000e+00 : f32
    %131 = vector.broadcast %cst_35 : f32 to vector<128x256xf32>
    %132 = arith.cmpf olt, %130, %131 : vector<128x256xf32>
    %133 = arith.extui %132 : vector<128x256xi1> to vector<128x256xi32>
    %134 = arith.sitofp %133 : vector<128x256xi32> to vector<128x256xf32>
    %135 = arith.addf %129, %134 : vector<128x256xf32>
    %136 = arith.addf %130, %15 : vector<128x256xf32>
    %cst_36 = arith.constant 1.000000e+00 : f32
    %137 = vector.broadcast %cst_36 : f32 to vector<128x256xf32>
    %138 = arith.cmpf olt, %136, %137 : vector<128x256xf32>
    %139 = arith.extui %138 : vector<128x256xi1> to vector<128x256xi32>
    %140 = arith.sitofp %139 : vector<128x256xi32> to vector<128x256xf32>
    %141 = arith.addf %135, %140 : vector<128x256xf32>
    %142 = arith.addf %136, %15 : vector<128x256xf32>
    %cst_37 = arith.constant 1.000000e+00 : f32
    %143 = vector.broadcast %cst_37 : f32 to vector<128x256xf32>
    %144 = arith.cmpf olt, %142, %143 : vector<128x256xf32>
    %145 = arith.extui %144 : vector<128x256xi1> to vector<128x256xi32>
    %146 = arith.sitofp %145 : vector<128x256xi32> to vector<128x256xf32>
    %147 = arith.addf %141, %146 : vector<128x256xf32>
    %cst_38 = arith.constant 1.000000e+00 : f32
    %148 = vector.broadcast %cst_38 : f32 to vector<128x256xf32>
    %149 = arith.addf %147, %148 : vector<128x256xf32>
    %cst_39 = arith.constant 1.000000e+01 : f32
    %150 = vector.broadcast %cst_39 : f32 to vector<128x256xf32>
    %151 = arith.divf %150, %149 : vector<128x256xf32>
    %152 = math.floor %151 : vector<128x256xf32>
    %cst_40 = arith.constant 1.000000e-01 : f32
    %153 = vector.broadcast %cst_40 : f32 to vector<128x256xf32>
    %154 = arith.mulf %152, %153 : vector<128x256xf32>
    %cst_41 = arith.constant 0.000000e+00 : f32
    %155 = vector.broadcast %cst_41 : f32 to vector<128x256xf32>
    %cst_42 = arith.constant 0.000000e+00 : f32
    %156 = vector.broadcast %cst_42 : f32 to vector<128x256xf32>
    %157 = arith.addf %155, %16 : vector<128x256xf32>
    %cst_43 = arith.constant 1.000000e+00 : f32
    %158 = vector.broadcast %cst_43 : f32 to vector<128x256xf32>
    %159 = arith.cmpf olt, %157, %158 : vector<128x256xf32>
    %160 = arith.extui %159 : vector<128x256xi1> to vector<128x256xi32>
    %161 = arith.sitofp %160 : vector<128x256xi32> to vector<128x256xf32>
    %162 = arith.addf %156, %161 : vector<128x256xf32>
    %163 = arith.addf %157, %16 : vector<128x256xf32>
    %cst_44 = arith.constant 1.000000e+00 : f32
    %164 = vector.broadcast %cst_44 : f32 to vector<128x256xf32>
    %165 = arith.cmpf olt, %163, %164 : vector<128x256xf32>
    %166 = arith.extui %165 : vector<128x256xi1> to vector<128x256xi32>
    %167 = arith.sitofp %166 : vector<128x256xi32> to vector<128x256xf32>
    %168 = arith.addf %162, %167 : vector<128x256xf32>
    %169 = arith.addf %163, %16 : vector<128x256xf32>
    %cst_45 = arith.constant 1.000000e+00 : f32
    %170 = vector.broadcast %cst_45 : f32 to vector<128x256xf32>
    %171 = arith.cmpf olt, %169, %170 : vector<128x256xf32>
    %172 = arith.extui %171 : vector<128x256xi1> to vector<128x256xi32>
    %173 = arith.sitofp %172 : vector<128x256xi32> to vector<128x256xf32>
    %174 = arith.addf %168, %173 : vector<128x256xf32>
    %175 = arith.addf %169, %16 : vector<128x256xf32>
    %cst_46 = arith.constant 1.000000e+00 : f32
    %176 = vector.broadcast %cst_46 : f32 to vector<128x256xf32>
    %177 = arith.cmpf olt, %175, %176 : vector<128x256xf32>
    %178 = arith.extui %177 : vector<128x256xi1> to vector<128x256xi32>
    %179 = arith.sitofp %178 : vector<128x256xi32> to vector<128x256xf32>
    %180 = arith.addf %174, %179 : vector<128x256xf32>
    %181 = arith.addf %175, %16 : vector<128x256xf32>
    %cst_47 = arith.constant 1.000000e+00 : f32
    %182 = vector.broadcast %cst_47 : f32 to vector<128x256xf32>
    %183 = arith.cmpf olt, %181, %182 : vector<128x256xf32>
    %184 = arith.extui %183 : vector<128x256xi1> to vector<128x256xi32>
    %185 = arith.sitofp %184 : vector<128x256xi32> to vector<128x256xf32>
    %186 = arith.addf %180, %185 : vector<128x256xf32>
    %187 = arith.addf %181, %16 : vector<128x256xf32>
    %cst_48 = arith.constant 1.000000e+00 : f32
    %188 = vector.broadcast %cst_48 : f32 to vector<128x256xf32>
    %189 = arith.cmpf olt, %187, %188 : vector<128x256xf32>
    %190 = arith.extui %189 : vector<128x256xi1> to vector<128x256xi32>
    %191 = arith.sitofp %190 : vector<128x256xi32> to vector<128x256xf32>
    %192 = arith.addf %186, %191 : vector<128x256xf32>
    %193 = arith.addf %187, %16 : vector<128x256xf32>
    %cst_49 = arith.constant 1.000000e+00 : f32
    %194 = vector.broadcast %cst_49 : f32 to vector<128x256xf32>
    %195 = arith.cmpf olt, %193, %194 : vector<128x256xf32>
    %196 = arith.extui %195 : vector<128x256xi1> to vector<128x256xi32>
    %197 = arith.sitofp %196 : vector<128x256xi32> to vector<128x256xf32>
    %198 = arith.addf %192, %197 : vector<128x256xf32>
    %199 = arith.addf %193, %16 : vector<128x256xf32>
    %cst_50 = arith.constant 1.000000e+00 : f32
    %200 = vector.broadcast %cst_50 : f32 to vector<128x256xf32>
    %201 = arith.cmpf olt, %199, %200 : vector<128x256xf32>
    %202 = arith.extui %201 : vector<128x256xi1> to vector<128x256xi32>
    %203 = arith.sitofp %202 : vector<128x256xi32> to vector<128x256xf32>
    %204 = arith.addf %198, %203 : vector<128x256xf32>
    %205 = arith.addf %199, %16 : vector<128x256xf32>
    %cst_51 = arith.constant 1.000000e+00 : f32
    %206 = vector.broadcast %cst_51 : f32 to vector<128x256xf32>
    %207 = arith.cmpf olt, %205, %206 : vector<128x256xf32>
    %208 = arith.extui %207 : vector<128x256xi1> to vector<128x256xi32>
    %209 = arith.sitofp %208 : vector<128x256xi32> to vector<128x256xf32>
    %210 = arith.addf %204, %209 : vector<128x256xf32>
    %211 = arith.addf %205, %16 : vector<128x256xf32>
    %cst_52 = arith.constant 1.000000e+00 : f32
    %212 = vector.broadcast %cst_52 : f32 to vector<128x256xf32>
    %213 = arith.cmpf olt, %211, %212 : vector<128x256xf32>
    %214 = arith.extui %213 : vector<128x256xi1> to vector<128x256xi32>
    %215 = arith.sitofp %214 : vector<128x256xi32> to vector<128x256xf32>
    %216 = arith.addf %210, %215 : vector<128x256xf32>
    %cst_53 = arith.constant 1.000000e+00 : f32
    %217 = vector.broadcast %cst_53 : f32 to vector<128x256xf32>
    %218 = arith.addf %216, %217 : vector<128x256xf32>
    %cst_54 = arith.constant 1.000000e+01 : f32
    %219 = vector.broadcast %cst_54 : f32 to vector<128x256xf32>
    %220 = arith.divf %219, %218 : vector<128x256xf32>
    %221 = math.floor %220 : vector<128x256xf32>
    %cst_55 = arith.constant 1.000000e-01 : f32
    %222 = vector.broadcast %cst_55 : f32 to vector<128x256xf32>
    %223 = arith.mulf %221, %222 : vector<128x256xf32>
    %224 = arith.subf %154, %223 : vector<128x256xf32>
    %225 = arith.mulf %85, %224 : vector<128x256xf32>
    %c0_56 = arith.constant 0 : index
    %c0_57 = arith.constant 0 : index
    %226 = vector.load %arg6[%c0_56, %c0_57] : memref<128x128xf32, #tpu.memory_space<vmem>>, vector<128x128xf32>
    %227 = arith.truncf %225 : vector<128x256xf32> to vector<128x256xbf16>
    %c0_58 = arith.constant 0 : index
    %c0_59 = arith.constant 0 : index
    %228 = vector.load %arg5[%c0_58, %c0_59] : memref<256x128xbf16, #tpu.memory_space<vmem>>, vector<256x128xbf16>
    %cst_60 = arith.constant dense<0.000000e+00> : vector<128x128xf32>
    %229 = tpu.matmul %227, %228, %cst_60 {dimension_numbers = #tpu.dot_dimension_numbers<[1], [0], [0], [1], [0, 0, 1, 1], [], []>} : vector<128x256xbf16>, vector<256x128xbf16>, vector<128x128xf32> -> vector<128x128xf32>
    %230 = arith.addf %226, %229 : vector<128x128xf32>
    %c0_61 = arith.constant 0 : index
    %c0_62 = arith.constant 0 : index
    %231 = vector.load %arg6[%c0_61, %c0_62] : memref<128x128xf32, #tpu.memory_space<vmem>>, vector<128x128xf32>
    tpu.vector_store %arg6[%c0_61, %c0_62], %230 {strides = array<i32>} : memref<128x128xf32, #tpu.memory_space<vmem>>, vector<128x128xf32>,
    return
  }
  func.func @transform_0(%arg0: i32, %arg1: i32) -> (i32, i32) {
    %c0_i32 = arith.constant 0 : i32
    %c0_i32_0 = arith.constant 0 : i32
    return %arg0, %c0_i32 : i32, i32
  }
  func.func @transform_1(%arg0: i32, %arg1: i32) -> (i32, i32) {
    %c0_i32 = arith.constant 0 : i32
    %c0_i32_0 = arith.constant 0 : i32
    return %c0_i32, %arg1 : i32, i32
  }
  func.func @transform_2(%arg0: i32, %arg1: i32) -> (i32, i32) {
    %c0_i32 = arith.constant 0 : i32
    %c0_i32_0 = arith.constant 0 : i32
    return %c0_i32, %arg1 : i32, i32
  }
  func.func @transform_3(%arg0: i32, %arg1: i32) -> (i32, i32) {
    %c0_i32 = arith.constant 0 : i32
    %c0_i32_0 = arith.constant 0 : i32
    return %arg1, %c0_i32 : i32, i32
  }
  func.func @transform_4(%arg0: i32, %arg1: i32) -> (i32, i32) {
    %c0_i32 = arith.constant 0 : i32
    %c0_i32_0 = arith.constant 0 : i32
    return %arg0, %c0_i32 : i32, i32
  }
}

</mosaic_0001>

<llo_original>
// kernel: tpu_custom_call.1
$region0: #{tpu_custom_call.1}
  #allocation0 [shape = 'u32[]', space=smem, size = 0x4, offset = 0x4, fixed_abs, tag = 'smem constant byte address 0x4 - core index']
  #allocation1 [shape = 'u32[144,128]{1,0:T(1,128)}', space=vmem, size = 0x12000, scoped, tag = 'internal scratch']
  %s0 = inlined_call_operand.hbm [shape: f32[256,128], index: 0, kind: input, shape index: {}]
  %s1 = inlined_call_operand.hbm [shape: bf16[128,512], index: 1, kind: input, shape index: {}]
  %s2 = inlined_call_operand.hbm [shape: bf16[128,512], index: 2, kind: input, shape index: {}]
  %s3 = inlined_call_operand.hbm [shape: bf16[512,128], index: 3, kind: input, shape index: {}]
  %s4 = inlined_call_operand.hbm [shape: f32[256,128], index: 4, kind: output, shape index: {}]
  %s5 = sld [smem:[#allocation0]]
  $region69: #{tpu_custom_call.1} parent=0
    _
  %s7 = ssub.s32 1, %s5
  %s8 = scalar_select 0, %s7, %s5
  $region1: #{tpu_custom_call.1} parent=0
    #allocation2 [shape = 'u8[131072]{0}', space=vmem, size = 0x20000, scoped, tag = 'input window, operand 0']
    #allocation3 [shape = 's32[2]{0}', space=sflag, size = 0x8, scoped, tag = 'scoped memory for tpu_custom_call.1']
    #allocation4 [shape = 's32[2]{0}', space=sflag, size = 0x8, scoped, tag = 'scoped memory for tpu_custom_call.1']
    #allocation5 [shape = 'u8[131072]{0}', space=vmem, size = 0x20000, scoped, tag = 'input window, operand 1']
    #allocation6 [shape = 's32[2]{0}', space=sflag, size = 0x8, scoped, tag = 'scoped memory for tpu_custom_call.1']
    #allocation7 [shape = 'u8[131072]{0}', space=vmem, size = 0x20000, scoped, tag = 'input window, operand 2']
    #allocation8 [shape = 'u8[131072]{0}', space=vmem, size = 0x20000, scoped, tag = 'input window, operand 3']
    #allocation9 [shape = 's32[2]{0}', space=sflag, size = 0x8, scoped, tag = 'scoped memory for tpu_custom_call.1']
    #allocation10 [shape = 'u8[131072]{0}', space=vmem, size = 0x20000, scoped, tag = 'output window, operand 0']
    %9 = vsyncpa [#allocation3], 0
    %s10 = scalar_lea.sflag [#allocation3], 1
    %11 = vsyncpa %s10, 0
    %12 = vsyncpa [#allocation6], 0
    %s13 = scalar_lea.sflag [#allocation6], 1
    %14 = vsyncpa %s13, 0
    %15 = vsyncpa [#allocation9], 0
    %s16 = scalar_lea.sflag [#allocation9], 1
    %17 = vsyncpa %s16, 0
    %18 = vsyncpa [#allocation4], 0
    %s19 = scalar_lea.sflag [#allocation4], 1
    %20 = vsyncpa %s19, 0
    loop: start=0, step=1, limit=6
    $region2: #{tpu_custom_call.1} parent=1 // loop_pre_header
      _
    $region3: #{tpu_custom_call.1} parent=1 // loop_header
      %s22 = sphi 0, %s26
      %p23 = scmp.ge.s32.totalorder %s22, 6
      %s29 = sphi 0, %s41
      %s30 = sphi 0, %s37
      %s31 = sphi 0, %s29
      %s32 = sphi 0, %s30
      %s33 = sphi 0, %s31
      %s34 = sphi 0, %s32
      %s44 = sphi 0, %s46
      %s47 = sphi 0, %s44
      %s48 = sphi 0, %s47
      %s64 = sphi 0, %s48
      %s70 = sphi 0, %s72
      %s73 = sphi 0, %s70
      %s74 = sphi 0, %s73
      %s90 = sphi 0, %s74
      %s96 = sphi 0, %s98
      %s99 = sphi 0, %s96
      %s100 = sphi 0, %s99
      %s116 = sphi 0, %s100
      %s122 = sphi 0, %s124
      %s125 = sphi 0, %s122
      %s126 = sphi 0, %s125
      %s142 = sphi 0, %s126
      %s148 = sphi 0, %s150
      %s151 = sphi 0, %s148
      %s152 = sphi 0, %s151
      %s168 = sphi 0, %s152
    $region4: #{tpu_custom_call.1} parent=1 // loop_header_branch
      %25 = sbr.rel (%p23) target = $region8
    $region5: #{tpu_custom_call.1} parent=1 // loop_body
      %s27 = ssub.s32 %s22, 1
      %s28 = ssub.s32 %s22, 2
      %s35 = sadd.s32 1, %s30
      %p36 = scmp.ge.s32.totalorder %s35, 2
      %s37 = scalar_select %p36, 0, %s35
      %s38 = sadd.s32 1, %s29
      %s39 = scalar_select %p36, %s38, %s29
      %p40 = scmp.ge.s32.totalorder %s39, 2
      %s41 = scalar_select %p40, 0, %s39
      %s42 = ssub.s32 %s29, %s41
      %p43 = scmp.eq.s32.totalorder %s42, 0
      %s45 = sadd.s32 %s44, 1
      %s46 = scalar_select %p43, %s44, %s45
      %p49 = pneg %p43
      %p50 = scmp.eq.s32.totalorder %s22, 3
      %p51 = por %p49, %p50
      %p52 = scmp.ne.s32.totalorder %s44, %s47
      %p53 = scmp.eq.s32.totalorder %s22, 0
      %p54 = por %p52, %p53
      %p55 = scmp.ne.s32.totalorder %s44, %s47
      %p56 = scmp.eq.s32.totalorder %s27, 3
      %p57 = por %p55, %p56
      %p58 = scmp.ne.s32.totalorder %s47, %s48
      %p59 = scmp.eq.s32.totalorder %s27, 0
      %p60 = por %p58, %p59
      %p61 = scmp.ne.s32.totalorder %s47, %s48
      %p62 = scmp.eq.s32.totalorder %s28, 3
      %p63 = por %p61, %p62
      %p65 = scmp.ne.s32.totalorder %s48, %s64
      %p66 = scmp.eq.s32.totalorder %s28, 0
      %p67 = por %p65, %p66
      %s68 = ssub.s32 %s30, %s37
      %p69 = scmp.eq.s32.totalorder %s68, 0
      %s71 = sadd.s32 %s70, 1
      %s72 = scalar_select %p69, %s70, %s71
      %p75 = pneg %p69
      %p76 = scmp.eq.s32.totalorder %s22, 3
      %p77 = por %p75, %p76
      %p78 = scmp.ne.s32.totalorder %s70, %s73
      %p79 = scmp.eq.s32.totalorder %s22, 0
      %p80 = por %p78, %p79
      %p81 = scmp.ne.s32.totalorder %s70, %s73
      %p82 = scmp.eq.s32.totalorder %s27, 3
      %p83 = por %p81, %p82
      %p84 = scmp.ne.s32.totalorder %s73, %s74
      %p85 = scmp.eq.s32.totalorder %s27, 0
      %p86 = por %p84, %p85
      %p87 = scmp.ne.s32.totalorder %s73, %s74
      %p88 = scmp.eq.s32.totalorder %s28, 3
      %p89 = por %p87, %p88
      %p91 = scmp.ne.s32.totalorder %s74, %s90
      %p92 = scmp.eq.s32.totalorder %s28, 0
      %p93 = por %p91, %p92
      %s94 = ssub.s32 %s30, %s37
      %p95 = scmp.eq.s32.totalorder %s94, 0
      %s97 = sadd.s32 %s96, 1
      %s98 = scalar_select %p95, %s96, %s97
      %p101 = pneg %p95
      %p102 = scmp.eq.s32.totalorder %s22, 3
      %p103 = por %p101, %p102
      %p104 = scmp.ne.s32.totalorder %s96, %s99
      %p105 = scmp.eq.s32.totalorder %s22, 0
      %p106 = por %p104, %p105
      %p107 = scmp.ne.s32.totalorder %s96, %s99
      %p108 = scmp.eq.s32.totalorder %s27, 3
      %p109 = por %p107, %p108
      %p110 = scmp.ne.s32.totalorder %s99, %s100
      %p111 = scmp.eq.s32.totalorder %s27, 0
      %p112 = por %p110, %p111
      %p113 = scmp.ne.s32.totalorder %s99, %s100
      %p114 = scmp.eq.s32.totalorder %s28, 3
      %p115 = por %p113, %p114
      %p117 = scmp.ne.s32.totalorder %s100, %s116
      %p118 = scmp.eq.s32.totalorder %s28, 0
      %p119 = por %p117, %p118
      %s120 = ssub.s32 %s30, %s37
      %p121 = scmp.eq.s32.totalorder %s120, 0
      %s123 = sadd.s32 %s122, 1
      %s124 = scalar_select %p121, %s122, %s123
      %p127 = pneg %p121
      %p128 = scmp.eq.s32.totalorder %s22, 3
      %p129 = por %p127, %p128
      %p130 = scmp.ne.s32.totalorder %s122, %s125
      %p131 = scmp.eq.s32.totalorder %s22, 0
      %p132 = por %p130, %p131
      %p133 = scmp.ne.s32.totalorder %s122, %s125
      %p134 = scmp.eq.s32.totalorder %s27, 3
      %p135 = por %p133, %p134
      %p136 = scmp.ne.s32.totalorder %s125, %s126
      %p137 = scmp.eq.s32.totalorder %s27, 0
      %p138 = por %p136, %p137
      %p139 = scmp.ne.s32.totalorder %s125, %s126
      %p140 = scmp.eq.s32.totalorder %s28, 3
      %p141 = por %p139, %p140
      %p143 = scmp.ne.s32.totalorder %s126, %s142
      %p144 = scmp.eq.s32.totalorder %s28, 0
      %p145 = por %p143, %p144
      %s146 = ssub.s32 %s29, %s41
      %p147 = scmp.eq.s32.totalorder %s146, 0
      %s149 = sadd.s32 %s148, 1
      %s150 = scalar_select %p147, %s148, %s149
      %p153 = pneg %p147
      %p154 = scmp.eq.s32.totalorder %s22, 3
      %p155 = por %p153, %p154
      %p156 = scmp.ne.s32.totalorder %s148, %s151
      %p157 = scmp.eq.s32.totalorder %s22, 0
      %p158 = por %p156, %p157
      %p159 = scmp.ne.s32.totalorder %s148, %s151
      %p160 = scmp.eq.s32.totalorder %s27, 3
      %p161 = por %p159, %p160
      %p162 = scmp.ne.s32.totalorder %s151, %s152
      %p163 = scmp.eq.s32.totalorder %s27, 0
      %p164 = por %p162, %p163
      %p165 = scmp.ne.s32.totalorder %s151, %s152
      %p166 = scmp.eq.s32.totalorder %s28, 3
      %p167 = por %p165, %p166
      %p169 = scmp.ne.s32.totalorder %s152, %s168
      %p170 = scmp.eq.s32.totalorder %s28, 0
      %p171 = por %p169, %p170
      %p172 = scmp.le.s32.totalorder 1, %s22
      %p173 = scmp.lt.s32.totalorder %s22, 5
      %p174 = pnand %p172, %p173
      %p175 = pneg %p174
      // Predicated region
      $region9: #{tpu_custom_call.1} parent=5 // pred_check
        _
      $region10: #{tpu_custom_call.1} parent=5 // pred_check_branch
        %177 = sbr.rel (%p174) target = $region12
      $region11: #{tpu_custom_call.1} parent=5 // pred_region
        %s178 = ssub.s32 %s22, 1
      $region12: #{tpu_custom_call.1} parent=5 // pred_fallthru
        _
      %p179 = scmp.lt.s32.totalorder %s22, 4
      // Predicated region
      $region13: #{tpu_custom_call.1} parent=5 // pred_check
        %p180 = pneg %p179
      $region14: #{tpu_custom_call.1} parent=5 // pred_check_branch
        %182 = sbr.rel (%p180) target = $region16
      $region15: #{tpu_custom_call.1} parent=5 // pred_region
        // Predicated region
        $region17: #{tpu_custom_call.1} parent=15 // pred_check
          %p183 = pneg %p54
        $region18: #{tpu_custom_call.1} parent=15 // pred_check_branch
          %185 = sbr.rel (%p183) target = $region20
        $region19: #{tpu_custom_call.1} parent=15 // pred_region
          %s186 = sand.u32 %s44, 1
          %s187 = scalar_lea.sflag [#allocation3], %s186
          %s188 = sand.u32 %s44, 1
          %s189 = smul.addr %s188, 128
          %s190 = scalar_lea.vmem [#allocation2], %s189
          %s191 = smul.u32 16, %s29
          %s193 = ssub.s32 2048, 2048
          %194 = vsyncadd %s187, %s193
          %s195 = smul.addr %s191, 128
          %s196 = scalar_lea.hbm %s0, %s195
          %s197 = sshll.u32 %s190, 4
          %s198 = int_to_ptr.vmem [resolvable:$true] %s197
          %203 = dma.hbm_to_vmem [thread:$0]  %s196, 2048, %s198, %s187, 128, 128, 8
        $region20: #{tpu_custom_call.1} parent=15 // pred_fallthru
          _
        // Predicated region
        $region21: #{tpu_custom_call.1} parent=15 // pred_check
          %p204 = pneg %p80
        $region22: #{tpu_custom_call.1} parent=15 // pred_check_branch
          %206 = sbr.rel (%p204) target = $region24
        $region23: #{tpu_custom_call.1} parent=15 // pred_region
          %s207 = sand.u32 %s22, 1
          %s208 = scalar_lea.sflag [#allocation6], %s207
          %s209 = sand.u32 %s70, 1
          %s210 = smul.addr %s209, 128
          %s211 = scalar_lea.vmem [#allocation5], %s210
          %s212 = smul.u32 2, %s30
          %s214 = ssub.s32 2048, 2048
          %215 = vsyncadd %s208, %s214
          %s216 = smul.addr %s212, 64
          %s217 = scalar_lea.hbm %s1, %s216
          %s218 = sshll.u32 %s211, 4
          %s219 = int_to_ptr.vmem [resolvable:$true] %s218
          %224 = dma.hbm_to_vmem [thread:$0]  %s217, 2048, %s219, %s208, 256, 128, 8
        $region24: #{tpu_custom_call.1} parent=15 // pred_fallthru
          _
        // Predicated region
        $region25: #{tpu_custom_call.1} parent=15 // pred_check
          %p225 = pneg %p106
        $region26: #{tpu_custom_call.1} parent=15 // pred_check_branch
          %227 = sbr.rel (%p225) target = $region28
        $region27: #{tpu_custom_call.1} parent=15 // pred_region
          %s228 = sand.u32 %s22, 1
          %s229 = scalar_lea.sflag [#allocation6], %s228
          %s230 = sand.u32 %s96, 1
          %s231 = smul.addr %s230, 128
          %s232 = scalar_lea.vmem [#allocation7], %s231
          %s233 = smul.u32 2, %s30
          %s235 = ssub.s32 2048, 2048
          %236 = vsyncadd %s229, %s235
          %s237 = smul.addr %s233, 64
          %s238 = scalar_lea.hbm %s2, %s237
          %s239 = sshll.u32 %s232, 4
          %s240 = int_to_ptr.vmem [resolvable:$true] %s239
          %245 = dma.hbm_to_vmem [thread:$0]  %s238, 2048, %s240, %s229, 256, 128, 8
        $region28: #{tpu_custom_call.1} parent=15 // pred_fallthru
          _
        // Predicated region
        $region29: #{tpu_custom_call.1} parent=15 // pred_check
          %p246 = pneg %p132
        $region30: #{tpu_custom_call.1} parent=15 // pred_check_branch
          %248 = sbr.rel (%p246) target = $region32
        $region31: #{tpu_custom_call.1} parent=15 // pred_region
          %s249 = sand.u32 %s122, 1
          %s250 = scalar_lea.sflag [#allocation9], %s249
          %s251 = sand.u32 %s122, 1
          %s252 = smul.addr %s251, 128
          %s253 = scalar_lea.vmem [#allocation8], %s252
          %s254 = smul.u32 32, %s30
          %s256 = ssub.s32 2048, 2048
          %257 = vsyncadd %s250, %s256
          %s258 = smul.addr %s254, 64
          %s259 = scalar_lea.hbm %s3, %s258
          %s260 = sshll.u32 %s253, 4
          %s261 = int_to_ptr.vmem [resolvable:$true] %s260
          %266 = dma.hbm_to_vmem [thread:$0]  %s259, 2048, %s261, %s250, 64, 64, 4
        $region32: #{tpu_custom_call.1} parent=15 // pred_fallthru
          _
      $region16: #{tpu_custom_call.1} parent=5 // pred_fallthru
        _
      %p267 = scmp.le.s32.totalorder 1, %s22
      %p268 = scmp.lt.s32.totalorder %s22, 5
      %p269 = pnand %p267, %p268
      %p270 = pneg %p269
      // Predicated region
      $region33: #{tpu_custom_call.1} parent=5 // pred_check
        _
      $region34: #{tpu_custom_call.1} parent=5 // pred_check_branch
        %272 = sbr.rel (%p269) target = $region36
      $region35: #{tpu_custom_call.1} parent=5 // pred_region
        %s273 = ssub.s32 %s22, 1
        %s274 = sand.u32 %s47, 1
        %s275 = scalar_lea.sflag [#allocation3], %s274
        %s276 = sand.u32 %s47, 1
        %s277 = smul.addr %s276, 128
        %s278 = scalar_lea.vmem [#allocation2], %s277
        // Predicated region
        $region37: #{tpu_custom_call.1} parent=35 // pred_check
          %p279 = pneg %p60
        $region38: #{tpu_custom_call.1} parent=35 // pred_check_branch
          %281 = sbr.rel (%p279) target = $region40
        $region39: #{tpu_custom_call.1} parent=35 // pred_region
          %282 = dma.done %s275, 2048
        $region40: #{tpu_custom_call.1} parent=35 // pred_fallthru
          _
        %s283 = sand.u32 %s27, 1
        %s284 = scalar_lea.sflag [#allocation6], %s283
        %s285 = sand.u32 %s73, 1
        %s286 = smul.addr %s285, 128
        %s287 = scalar_lea.vmem [#allocation5], %s286
        // Predicated region
        $region41: #{tpu_custom_call.1} parent=35 // pred_check
          %p288 = pneg %p86
        $region42: #{tpu_custom_call.1} parent=35 // pred_check_branch
          %290 = sbr.rel (%p288) target = $region44
        $region43: #{tpu_custom_call.1} parent=35 // pred_region
          %291 = dma.done %s284, 2048
        $region44: #{tpu_custom_call.1} parent=35 // pred_fallthru
          _
        %s292 = sand.u32 %s27, 1
        %s293 = scalar_lea.sflag [#allocation6], %s292
        %s294 = sand.u32 %s99, 1
        %s295 = smul.addr %s294, 128
        %s296 = scalar_lea.vmem [#allocation7], %s295
        // Predicated region
        $region45: #{tpu_custom_call.1} parent=35 // pred_check
          %p297 = pneg %p112
        $region46: #{tpu_custom_call.1} parent=35 // pred_check_branch
          %299 = sbr.rel (%p297) target = $region48
        $region47: #{tpu_custom_call.1} parent=35 // pred_region
          %300 = dma.done %s293, 2048
        $region48: #{tpu_custom_call.1} parent=35 // pred_fallthru
          _
        %s301 = sand.u32 %s125, 1
        %s302 = scalar_lea.sflag [#allocation9], %s301
        %s303 = sand.u32 %s125, 1
        %s304 = smul.addr %s303, 128
        %s305 = scalar_lea.vmem [#allocation8], %s304
        // Predicated region
        $region49: #{tpu_custom_call.1} parent=35 // pred_check
          %p306 = pneg %p138
        $region50: #{tpu_custom_call.1} parent=35 // pred_check_branch
          %308 = sbr.rel (%p306) target = $region52
        $region51: #{tpu_custom_call.1} parent=35 // pred_region
          %309 = dma.done %s302, 2048
        $region52: #{tpu_custom_call.1} parent=35 // pred_fallthru
          _
        %s310 = sand.u32 %s47, 1
        %s311 = scalar_lea.sflag [#allocation3], %s310
        %s312 = sand.u32 %s47, 1
        %s313 = smul.addr %s312, 128
        %s314 = scalar_lea.vmem [#allocation2], %s313
        %p315 = pneg %p60
        %p316 = pneg %p57
        %s317 = sand.u32 %s27, 1
        %s318 = scalar_lea.sflag [#allocation6], %s317
        %s319 = sand.u32 %s73, 1
        %s320 = smul.addr %s319, 128
        %s321 = scalar_lea.vmem [#allocation5], %s320
        %p322 = pneg %p86
        %p323 = pneg %p83
        %s324 = sand.u32 %s27, 1
        %s325 = scalar_lea.sflag [#allocation6], %s324
        %s326 = sand.u32 %s99, 1
        %s327 = smul.addr %s326, 128
        %s328 = scalar_lea.vmem [#allocation7], %s327
        %p329 = pneg %p112
        %p330 = pneg %p109
        %s331 = sand.u32 %s125, 1
        %s332 = scalar_lea.sflag [#allocation9], %s331
        %s333 = sand.u32 %s125, 1
        %s334 = smul.addr %s333, 128
        %s335 = scalar_lea.vmem [#allocation8], %s334
        %p336 = pneg %p138
        %p337 = pneg %p135
        %p338 = pneg %p164
        %p339 = pneg %p161
        %s340 = sand.u32 %s151, 1
        %s341 = scalar_lea.sflag [#allocation4], %s340
        %s342 = sand.u32 %s151, 1
        %s343 = smul.addr %s342, 128
        %s344 = scalar_lea.vmem [#allocation10], %s343
        %s345 = smul.u32 16, %s31
        %s346 = smul.u32 2, %s32
        %s347 = smul.u32 2, %s32
        %s348 = smul.u32 32, %s32
        %s349 = smul.u32 16, %s31
        %p351 = scmp.eq.s32.totalorder %s32, 0
        // Predicated region
        $region53: #{tpu_custom_call.1} parent=35 // pred_check
          %p352 = pneg %p351
        $region54: #{tpu_custom_call.1} parent=35 // pred_check_branch
          %354 = sbr.rel (%p352) target = $region56
        $region55: #{tpu_custom_call.1} parent=35 // pred_region
          %355 = vst [vmem:[%s344] sm:$0xff] 0.0
          %356 = vst [vmem:[%s344 + $0x8] sm:$0xff] 0.0
          %357 = vst [vmem:[%s344 + $0x10] sm:$0xff] 0.0
          %358 = vst [vmem:[%s344 + $0x18] sm:$0xff] 0.0
          %359 = vst [vmem:[%s344 + $0x20] sm:$0xff] 0.0
          %360 = vst [vmem:[%s344 + $0x28] sm:$0xff] 0.0
          %361 = vst [vmem:[%s344 + $0x30] sm:$0xff] 0.0
          %362 = vst [vmem:[%s344 + $0x38] sm:$0xff] 0.0
          %363 = vst [vmem:[%s344 + $0x40] sm:$0xff] 0.0
          %364 = vst [vmem:[%s344 + $0x48] sm:$0xff] 0.0
          %365 = vst [vmem:[%s344 + $0x50] sm:$0xff] 0.0
          %366 = vst [vmem:[%s344 + $0x58] sm:$0xff] 0.0
          %367 = vst [vmem:[%s344 + $0x60] sm:$0xff] 0.0
          %368 = vst [vmem:[%s344 + $0x68] sm:$0xff] 0.0
          %369 = vst [vmem:[%s344 + $0x70] sm:$0xff] 0.0
          %370 = vst [vmem:[%s344 + $0x78] sm:$0xff] 0.0
        $region56: #{tpu_custom_call.1} parent=35 // pred_fallthru
          _
        %v371 = vld [vmem:[%s278] sm:$0xff]
        %v372 = vld [vmem:[%s278 + $0x8] sm:$0xff]
        %v373 = vld [vmem:[%s278 + $0x10] sm:$0xff]
        %v374 = vld [vmem:[%s278 + $0x18] sm:$0xff]
        %v375 = vld [vmem:[%s278 + $0x20] sm:$0xff]
        %v376 = vld [vmem:[%s278 + $0x28] sm:$0xff]
        %v377 = vld [vmem:[%s278 + $0x30] sm:$0xff]
        %v378 = vld [vmem:[%s278 + $0x38] sm:$0xff]
        %v379 = vld [vmem:[%s278 + $0x40] sm:$0xff]
        %v380 = vld [vmem:[%s278 + $0x48] sm:$0xff]
        %v381 = vld [vmem:[%s278 + $0x50] sm:$0xff]
        %v382 = vld [vmem:[%s278 + $0x58] sm:$0xff]
        %v383 = vld [vmem:[%s278 + $0x60] sm:$0xff]
        %v384 = vld [vmem:[%s278 + $0x68] sm:$0xff]
        %v385 = vld [vmem:[%s278 + $0x70] sm:$0xff]
        %v386 = vld [vmem:[%s278 + $0x78] sm:$0xff]
        %v387 = vmax.f32 %v371, 0.0
        %v388 = vmax.f32 %v372, 0.0
        %v389 = vmax.f32 %v373, 0.0
        %v390 = vmax.f32 %v374, 0.0
        %v391 = vmax.f32 %v375, 0.0
        %v392 = vmax.f32 %v376, 0.0
        %v393 = vmax.f32 %v377, 0.0
        %v394 = vmax.f32 %v378, 0.0
        %v395 = vmax.f32 %v379, 0.0
        %v396 = vmax.f32 %v380, 0.0
        %v397 = vmax.f32 %v381, 0.0
        %v398 = vmax.f32 %v382, 0.0
        %v399 = vmax.f32 %v383, 0.0
        %v400 = vmax.f32 %v384, 0.0
        %v401 = vmax.f32 %v385, 0.0
        %v402 = vmax.f32 %v386, 0.0
        %v403 = vpack.c.bf16 %v388, %v387
        %v404 = vpack.c.bf16 %v390, %v389
        %v405 = vpack.c.bf16 %v392, %v391
        %v406 = vpack.c.bf16 %v394, %v393
        %v407 = vpack.c.bf16 %v396, %v395
        %v408 = vpack.c.bf16 %v398, %v397
        %v409 = vpack.c.bf16 %v400, %v399
        %v410 = vpack.c.bf16 %v402, %v401
        %v411 = vsub.f32 0.0, %v371
        %v412 = vsub.f32 0.0, %v372
        %v413 = vsub.f32 0.0, %v373
        %v414 = vsub.f32 0.0, %v374
        %v415 = vsub.f32 0.0, %v375
        %v416 = vsub.f32 0.0, %v376
        %v417 = vsub.f32 0.0, %v377
        %v418 = vsub.f32 0.0, %v378
        %v419 = vsub.f32 0.0, %v379
        %v420 = vsub.f32 0.0, %v380
        %v421 = vsub.f32 0.0, %v381
        %v422 = vsub.f32 0.0, %v382
        %v423 = vsub.f32 0.0, %v383
        %v424 = vsub.f32 0.0, %v384
        %v425 = vsub.f32 0.0, %v385
        %v426 = vsub.f32 0.0, %v386
        %v427 = vmax.f32 %v411, 0.0
        %v428 = vmax.f32 %v412, 0.0
        %v429 = vmax.f32 %v413, 0.0
        %v430 = vmax.f32 %v414, 0.0
        %v431 = vmax.f32 %v415, 0.0
        %v432 = vmax.f32 %v416, 0.0
        %v433 = vmax.f32 %v417, 0.0
        %v434 = vmax.f32 %v418, 0.0
        %v435 = vmax.f32 %v419, 0.0
        %v436 = vmax.f32 %v420, 0.0
        %v437 = vmax.f32 %v421, 0.0
        %v438 = vmax.f32 %v422, 0.0
        %v439 = vmax.f32 %v423, 0.0
        %v440 = vmax.f32 %v424, 0.0
        %v441 = vmax.f32 %v425, 0.0
        %v442 = vmax.f32 %v426, 0.0
        %v443 = vpack.c.bf16 %v428, %v427
        %v444 = vpack.c.bf16 %v430, %v429
        %v445 = vpack.c.bf16 %v432, %v431
        %v446 = vpack.c.bf16 %v434, %v433
        %v447 = vpack.c.bf16 %v436, %v435
        %v448 = vpack.c.bf16 %v438, %v437
        %v449 = vpack.c.bf16 %v440, %v439
        %v450 = vpack.c.bf16 %v442, %v441
        %v451 = vld [vmem:[%s287] sm:$0xff]
        %v452 = vld [vmem:[%s287 + $0x8] sm:$0xff]
        %v453 = vld [vmem:[%s287 + $0x10] sm:$0xff]
        %v454 = vld [vmem:[%s287 + $0x18] sm:$0xff]
        %v455 = vld [vmem:[%s287 + $0x20] sm:$0xff]
        %v456 = vld [vmem:[%s287 + $0x28] sm:$0xff]
        %v457 = vld [vmem:[%s287 + $0x30] sm:$0xff]
        %v458 = vld [vmem:[%s287 + $0x38] sm:$0xff]
        %v459 = vld [vmem:[%s287 + $0x40] sm:$0xff]
        %v460 = vld [vmem:[%s287 + $0x48] sm:$0xff]
        %v461 = vld [vmem:[%s287 + $0x50] sm:$0xff]
        %v462 = vld [vmem:[%s287 + $0x58] sm:$0xff]
        %v463 = vld [vmem:[%s287 + $0x60] sm:$0xff]
        %v464 = vld [vmem:[%s287 + $0x68] sm:$0xff]
        %v465 = vld [vmem:[%s287 + $0x70] sm:$0xff]
        %v466 = vld [vmem:[%s287 + $0x78] sm:$0xff]
        %v467 = vld [vmem:[%s296] sm:$0xff]
        %v468 = vld [vmem:[%s296 + $0x8] sm:$0xff]
        %v469 = vld [vmem:[%s296 + $0x10] sm:$0xff]
        %v470 = vld [vmem:[%s296 + $0x18] sm:$0xff]
        %v471 = vld [vmem:[%s296 + $0x20] sm:$0xff]
        %v472 = vld [vmem:[%s296 + $0x28] sm:$0xff]
        %v473 = vld [vmem:[%s296 + $0x30] sm:$0xff]
        %v474 = vld [vmem:[%s296 + $0x38] sm:$0xff]
        %v475 = vld [vmem:[%s296 + $0x40] sm:$0xff]
        %v476 = vld [vmem:[%s296 + $0x48] sm:$0xff]
        %v477 = vld [vmem:[%s296 + $0x50] sm:$0xff]
        %v478 = vld [vmem:[%s296 + $0x58] sm:$0xff]
        %v479 = vld [vmem:[%s296 + $0x60] sm:$0xff]
        %v480 = vld [vmem:[%s296 + $0x68] sm:$0xff]
        %v481 = vld [vmem:[%s296 + $0x70] sm:$0xff]
        %v482 = vld [vmem:[%s296 + $0x78] sm:$0xff]
        %v499 = vunpack.c.l.b16 %v451
        %v500 = vunpack.c.h.b16 %v451
        %v501 = vunpack.c.l.b16 %v452
        %v502 = vunpack.c.h.b16 %v452
        %v503 = vunpack.c.l.b16 %v453
        %v504 = vunpack.c.h.b16 %v453
        %v505 = vunpack.c.l.b16 %v454
        %v506 = vunpack.c.h.b16 %v454
        %v507 = vunpack.c.l.b16 %v455
        %v508 = vunpack.c.h.b16 %v455
        %v509 = vunpack.c.l.b16 %v456
        %v510 = vunpack.c.h.b16 %v456
        %v511 = vunpack.c.l.b16 %v457
        %v512 = vunpack.c.h.b16 %v457
        %v513 = vunpack.c.l.b16 %v458
        %v514 = vunpack.c.h.b16 %v458
        %v515 = vunpack.c.l.b16 %v459
        %v516 = vunpack.c.h.b16 %v459
        %v517 = vunpack.c.l.b16 %v460
        %v518 = vunpack.c.h.b16 %v460
        %v519 = vunpack.c.l.b16 %v461
        %v520 = vunpack.c.h.b16 %v461
        %v521 = vunpack.c.l.b16 %v462
        %v522 = vunpack.c.h.b16 %v462
        %v523 = vunpack.c.l.b16 %v463
        %v524 = vunpack.c.h.b16 %v463
        %v525 = vunpack.c.l.b16 %v464
        %v526 = vunpack.c.h.b16 %v464
        %v527 = vunpack.c.l.b16 %v465
        %v528 = vunpack.c.h.b16 %v465
        %v529 = vunpack.c.l.b16 %v466
        %v530 = vunpack.c.h.b16 %v466
        %v531 = vpack.c.b16 %v501, %v499
        %v532 = vpack.c.b16 %v502, %v500
        %v533 = vpack.c.b16 %v505, %v503
        %v534 = vpack.c.b16 %v506, %v504
        %v535 = vpack.c.b16 %v509, %v507
        %v536 = vpack.c.b16 %v510, %v508
        %v537 = vpack.c.b16 %v513, %v511
        %v538 = vpack.c.b16 %v514, %v512
        %v539 = vpack.c.b16 %v517, %v515
        %v540 = vpack.c.b16 %v518, %v516
        %v541 = vpack.c.b16 %v521, %v519
        %v542 = vpack.c.b16 %v522, %v520
        %v543 = vpack.c.b16 %v525, %v523
        %v544 = vpack.c.b16 %v526, %v524
        %v545 = vpack.c.b16 %v529, %v527
        %v546 = vpack.c.b16 %v530, %v528
        %563 = vmatprep.subr.bf16.mxu0 %v532
        %564 = vmatpush1.bf16.msra.mxu0 %v531
        %565 = vmatprep.subr.bf16.mxu0 %v534
        %566 = vmatpush1.bf16.msra.mxu0 %v533
        %567 = vmatprep.subr.bf16.mxu0 %v536
        %568 = vmatpush1.bf16.msra.mxu0 %v535
        %569 = vmatprep.subr.bf16.mxu0 %v538
        %570 = vmatpush1.bf16.msra.mxu0 %v537
        %571 = vmatprep.subr.bf16.mxu0 %v540
        %572 = vmatpush1.bf16.msra.mxu0 %v539
        %573 = vmatprep.subr.bf16.mxu0 %v542
        %574 = vmatpush1.bf16.msra.mxu0 %v541
        %575 = vmatprep.subr.bf16.mxu0 %v544
        %576 = vmatpush1.bf16.msra.mxu0 %v543
        %577 = vmatprep.subr.bf16.mxu0 %v546
        %578 = vmatpush1.bf16.msra.mxu0 %v545
        %579 = vmatprep.subr.bf16.mxu0 0
        %580 = vmatpush1.bf16.msra.mxu0 0
        %581 = vmatprep.subr.bf16.mxu0 0
        %582 = vmatpush1.bf16.msra.mxu0 0
        %583 = vmatprep.subr.bf16.mxu0 0
        %584 = vmatpush1.bf16.msra.mxu0 0
        %585 = vmatprep.subr.bf16.mxu0 0
        %586 = vmatpush1.bf16.msra.mxu0 0
        %587 = vmatprep.subr.bf16.mxu0 0
        %588 = vmatpush1.bf16.msra.mxu0 0
        %589 = vmatprep.subr.bf16.mxu0 0
        %590 = vmatpush1.bf16.msra.mxu0 0
        %591 = vmatprep.subr.bf16.mxu0 0
        %592 = vmatpush1.bf16.msra.mxu0 0
        %593 = vmatprep.subr.bf16.mxu0 0
        %594 = vmatpush1.bf16.msra.mxu0 0
        %595 = vmatprep.mubr.bf16.mxu0 0
        %596 = vmatmul.mubr.bf16.gmra.mrb[0].mxu0 %v403
        %v597 = vpop.f32.mrb[0].mxu0
        %v598 = vadd.f32 0.0, %v597
        %v599 = vpop.f32.mrb[0].mxu0
        %v600 = vadd.f32 0.0, %v599
        %v601 = vpop.f32.mrb[0].mxu0
        %v602 = vadd.f32 0.0, %v601
        %v603 = vpop.f32.mrb[0].mxu0
        %v604 = vadd.f32 0.0, %v603
        %605 = vmatprep.mubr.bf16.mxu0 0
        %606 = vmatmul.mubr.bf16.gmra.mrb[0].mxu0 %v404
        %v607 = vpop.f32.mrb[0].mxu0
        %v608 = vadd.f32 0.0, %v607
        %v609 = vpop.f32.mrb[0].mxu0
        %v610 = vadd.f32 0.0, %v609
        %v611 = vpop.f32.mrb[0].mxu0
        %v612 = vadd.f32 0.0, %v611
        %v613 = vpop.f32.mrb[0].mxu0
        %v614 = vadd.f32 0.0, %v613
        %615 = vmatprep.mubr.bf16.mxu0 0
        %616 = vmatmul.mubr.bf16.gmra.mrb[0].mxu0 %v405
        %v617 = vpop.f32.mrb[0].mxu0
        %v618 = vadd.f32 0.0, %v617
        %v619 = vpop.f32.mrb[0].mxu0
        %v620 = vadd.f32 0.0, %v619
        %v621 = vpop.f32.mrb[0].mxu0
        %v622 = vadd.f32 0.0, %v621
        %v623 = vpop.f32.mrb[0].mxu0
        %v624 = vadd.f32 0.0, %v623
        %625 = vmatprep.mubr.bf16.mxu0 0
        %626 = vmatmul.mubr.bf16.gmra.mrb[0].mxu0 %v406
        %v627 = vpop.f32.mrb[0].mxu0
        %v628 = vadd.f32 0.0, %v627
        %v629 = vpop.f32.mrb[0].mxu0
        %v630 = vadd.f32 0.0, %v629
        %v631 = vpop.f32.mrb[0].mxu0
        %v632 = vadd.f32 0.0, %v631
        %v633 = vpop.f32.mrb[0].mxu0
        %v634 = vadd.f32 0.0, %v633
        %635 = vmatprep.mubr.bf16.mxu0 0
        %636 = vmatmul.mubr.bf16.gmra.mrb[0].mxu0 %v407
        %v637 = vpop.f32.mrb[0].mxu0
        %v638 = vadd.f32 0.0, %v637
        %v639 = vpop.f32.mrb[0].mxu0
        %v640 = vadd.f32 0.0, %v639
        %v641 = vpop.f32.mrb[0].mxu0
        %v642 = vadd.f32 0.0, %v641
        %v643 = vpop.f32.mrb[0].mxu0
        %v644 = vadd.f32 0.0, %v643
        %645 = vmatprep.mubr.bf16.mxu0 0
        %646 = vmatmul.mubr.bf16.gmra.mrb[0].mxu0 %v408
        %v647 = vpop.f32.mrb[0].mxu0
        %v648 = vadd.f32 0.0, %v647
        %v649 = vpop.f32.mrb[0].mxu0
        %v650 = vadd.f32 0.0, %v649
        %v651 = vpop.f32.mrb[0].mxu0
        %v652 = vadd.f32 0.0, %v651
        %v653 = vpop.f32.mrb[0].mxu0
        %v654 = vadd.f32 0.0, %v653
        %655 = vmatprep.mubr.bf16.mxu0 0
        %656 = vmatmul.mubr.bf16.gmra.mrb[0].mxu0 %v409
        %v657 = vpop.f32.mrb[0].mxu0
        %v658 = vadd.f32 0.0, %v657
        %v659 = vpop.f32.mrb[0].mxu0
        %v660 = vadd.f32 0.0, %v659
        %v661 = vpop.f32.mrb[0].mxu0
        %v662 = vadd.f32 0.0, %v661
        %v663 = vpop.f32.mrb[0].mxu0
        %v664 = vadd.f32 0.0, %v663
        %665 = vmatprep.mubr.bf16.mxu0 0
        %666 = vmatmul.mubr.bf16.gmra.mrb[0].mxu0 %v410
        %v667 = vpop.f32.mrb[0].mxu0
        %v668 = vadd.f32 0.0, %v667
        %v669 = vpop.f32.mrb[0].mxu0
        %v670 = vadd.f32 0.0, %v669
        %v671 = vpop.f32.mrb[0].mxu0
        %v672 = vadd.f32 0.0, %v671
        %v673 = vpop.f32.mrb[0].mxu0
        %v674 = vadd.f32 0.0, %v673
        %675 = vdwg.mxu0
        %v692 = vunpack.c.l.b16 %v467
        %v693 = vunpack.c.h.b16 %v467
        %v694 = vunpack.c.l.b16 %v468
        %v695 = vunpack.c.h.b16 %v468
        %v696 = vunpack.c.l.b16 %v469
        %v697 = vunpack.c.h.b16 %v469
        %v698 = vunpack.c.l.b16 %v470
        %v699 = vunpack.c.h.b16 %v470
        %v700 = vunpack.c.l.b16 %v471
        %v701 = vunpack.c.h.b16 %v471
        %v702 = vunpack.c.l.b16 %v472
        %v703 = vunpack.c.h.b16 %v472
        %v704 = vunpack.c.l.b16 %v473
        %v705 = vunpack.c.h.b16 %v473
        %v706 = vunpack.c.l.b16 %v474
        %v707 = vunpack.c.h.b16 %v474
        %v708 = vunpack.c.l.b16 %v475
        %v709 = vunpack.c.h.b16 %v475
        %v710 = vunpack.c.l.b16 %v476
        %v711 = vunpack.c.h.b16 %v476
        %v712 = vunpack.c.l.b16 %v477
        %v713 = vunpack.c.h.b16 %v477
        %v714 = vunpack.c.l.b16 %v478
        %v715 = vunpack.c.h.b16 %v478
        %v716 = vunpack.c.l.b16 %v479
        %v717 = vunpack.c.h.b16 %v479
        %v718 = vunpack.c.l.b16 %v480
        %v719 = vunpack.c.h.b16 %v480
        %v720 = vunpack.c.l.b16 %v481
        %v721 = vunpack.c.h.b16 %v481
        %v722 = vunpack.c.l.b16 %v482
        %v723 = vunpack.c.h.b16 %v482
        %v724 = vpack.c.b16 %v694, %v692
        %v725 = vpack.c.b16 %v695, %v693
        %v726 = vpack.c.b16 %v698, %v696
        %v727 = vpack.c.b16 %v699, %v697
        %v728 = vpack.c.b16 %v702, %v700
        %v729 = vpack.c.b16 %v703, %v701
        %v730 = vpack.c.b16 %v706, %v704
        %v731 = vpack.c.b16 %v707, %v705
        %v732 = vpack.c.b16 %v710, %v708
        %v733 = vpack.c.b16 %v711, %v709
        %v734 = vpack.c.b16 %v714, %v712
        %v735 = vpack.c.b16 %v715, %v713
        %v736 = vpack.c.b16 %v718, %v716
        %v737 = vpack.c.b16 %v719, %v717
        %v738 = vpack.c.b16 %v722, %v720
        %v739 = vpack.c.b16 %v723, %v721
        %756 = vmatprep.subr.bf16.mxu0 %v725
        %757 = vmatpush1.bf16.msra.mxu0 %v724
        %758 = vmatprep.subr.bf16.mxu0 %v727
        %759 = vmatpush1.bf16.msra.mxu0 %v726
        %760 = vmatprep.subr.bf16.mxu0 %v729
        %761 = vmatpush1.bf16.msra.mxu0 %v728
        %762 = vmatprep.subr.bf16.mxu0 %v731
        %763 = vmatpush1.bf16.msra.mxu0 %v730
        %764 = vmatprep.subr.bf16.mxu0 %v733
        %765 = vmatpush1.bf16.msra.mxu0 %v732
        %766 = vmatprep.subr.bf16.mxu0 %v735
        %767 = vmatpush1.bf16.msra.mxu0 %v734
        %768 = vmatprep.subr.bf16.mxu0 %v737
        %769 = vmatpush1.bf16.msra.mxu0 %v736
        %770 = vmatprep.subr.bf16.mxu0 %v739
        %771 = vmatpush1.bf16.msra.mxu0 %v738
        %772 = vmatprep.subr.bf16.mxu0 0
        %773 = vmatpush1.bf16.msra.mxu0 0
        %774 = vmatprep.subr.bf16.mxu0 0
        %775 = vmatpush1.bf16.msra.mxu0 0
        %776 = vmatprep.subr.bf16.mxu0 0
        %777 = vmatpush1.bf16.msra.mxu0 0
        %778 = vmatprep.subr.bf16.mxu0 0
        %779 = vmatpush1.bf16.msra.mxu0 0
        %780 = vmatprep.subr.bf16.mxu0 0
        %781 = vmatpush1.bf16.msra.mxu0 0
        %782 = vmatprep.subr.bf16.mxu0 0
        %783 = vmatpush1.bf16.msra.mxu0 0
        %784 = vmatprep.subr.bf16.mxu0 0
        %785 = vmatpush1.bf16.msra.mxu0 0
        %786 = vmatprep.subr.bf16.mxu0 0
        %787 = vmatpush1.bf16.msra.mxu0 0
        %788 = vmatprep.mubr.bf16.mxu0 0
        %789 = vmatmul.mubr.bf16.gmra.mrb[0].mxu0 %v403
        %v790 = vpop.f32.mrb[0].mxu0
        %v791 = vadd.f32 0.0, %v790
        %v792 = vpop.f32.mrb[0].mxu0
        %v793 = vadd.f32 0.0, %v792
        %v794 = vpop.f32.mrb[0].mxu0
        %v795 = vadd.f32 0.0, %v794
        %v796 = vpop.f32.mrb[0].mxu0
        %v797 = vadd.f32 0.0, %v796
        %798 = vmatprep.mubr.bf16.mxu0 0
        %799 = vmatmul.mubr.bf16.gmra.mrb[0].mxu0 %v404
        %v800 = vpop.f32.mrb[0].mxu0
        %v801 = vadd.f32 0.0, %v800
        %v802 = vpop.f32.mrb[0].mxu0
        %v803 = vadd.f32 0.0, %v802
        %v804 = vpop.f32.mrb[0].mxu0
        %v805 = vadd.f32 0.0, %v804
        %v806 = vpop.f32.mrb[0].mxu0
        %v807 = vadd.f32 0.0, %v806
        %808 = vmatprep.mubr.bf16.mxu0 0
        %809 = vmatmul.mubr.bf16.gmra.mrb[0].mxu0 %v405
        %v810 = vpop.f32.mrb[0].mxu0
        %v811 = vadd.f32 0.0, %v810
        %v812 = vpop.f32.mrb[0].mxu0
        %v813 = vadd.f32 0.0, %v812
        %v814 = vpop.f32.mrb[0].mxu0
        %v815 = vadd.f32 0.0, %v814
        %v816 = vpop.f32.mrb[0].mxu0
        %v817 = vadd.f32 0.0, %v816
        %818 = vmatprep.mubr.bf16.mxu0 0
        %819 = vmatmul.mubr.bf16.gmra.mrb[0].mxu0 %v406
        %v820 = vpop.f32.mrb[0].mxu0
        %v821 = vadd.f32 0.0, %v820
        %v822 = vpop.f32.mrb[0].mxu0
        %v823 = vadd.f32 0.0, %v822
        %v824 = vpop.f32.mrb[0].mxu0
        %v825 = vadd.f32 0.0, %v824
        %v826 = vpop.f32.mrb[0].mxu0
        %v827 = vadd.f32 0.0, %v826
        %828 = vmatprep.mubr.bf16.mxu0 0
        %829 = vmatmul.mubr.bf16.gmra.mrb[0].mxu0 %v407
        %v830 = vpop.f32.mrb[0].mxu0
        %v831 = vadd.f32 0.0, %v830
        %v832 = vpop.f32.mrb[0].mxu0
        %v833 = vadd.f32 0.0, %v832
        %v834 = vpop.f32.mrb[0].mxu0
        %v835 = vadd.f32 0.0, %v834
        %v836 = vpop.f32.mrb[0].mxu0
        %v837 = vadd.f32 0.0, %v836
        %838 = vmatprep.mubr.bf16.mxu0 0
        %839 = vmatmul.mubr.bf16.gmra.mrb[0].mxu0 %v408
        %v840 = vpop.f32.mrb[0].mxu0
        %v841 = vadd.f32 0.0, %v840
        %v842 = vpop.f32.mrb[0].mxu0
        %v843 = vadd.f32 0.0, %v842
        %v844 = vpop.f32.mrb[0].mxu0
        %v845 = vadd.f32 0.0, %v844
        %v846 = vpop.f32.mrb[0].mxu0
        %v847 = vadd.f32 0.0, %v846
        %848 = vmatprep.mubr.bf16.mxu0 0
        %849 = vmatmul.mubr.bf16.gmra.mrb[0].mxu0 %v409
        %v850 = vpop.f32.mrb[0].mxu0
        %v851 = vadd.f32 0.0, %v850
        %v852 = vpop.f32.mrb[0].mxu0
        %v853 = vadd.f32 0.0, %v852
        %v854 = vpop.f32.mrb[0].mxu0
        %v855 = vadd.f32 0.0, %v854
        %v856 = vpop.f32.mrb[0].mxu0
        %v857 = vadd.f32 0.0, %v856
        %858 = vmatprep.mubr.bf16.mxu0 0
        %859 = vmatmul.mubr.bf16.gmra.mrb[0].mxu0 %v410
        %v860 = vpop.f32.mrb[0].mxu0
        %v861 = vadd.f32 0.0, %v860
        %v862 = vpop.f32.mrb[0].mxu0
        %v863 = vadd.f32 0.0, %v862
        %v864 = vpop.f32.mrb[0].mxu0
        %v865 = vadd.f32 0.0, %v864
        %v866 = vpop.f32.mrb[0].mxu0
        %v867 = vadd.f32 0.0, %v866
        %868 = vdwg.mxu0
        %869 = vmatprep.subr.bf16.mxu0 %v725
        %870 = vmatpush1.bf16.msra.mxu0 %v724
        %871 = vmatprep.subr.bf16.mxu0 %v727
        %872 = vmatpush1.bf16.msra.mxu0 %v726
        %873 = vmatprep.subr.bf16.mxu0 %v729
        %874 = vmatpush1.bf16.msra.mxu0 %v728
        %875 = vmatprep.subr.bf16.mxu0 %v731
        %876 = vmatpush1.bf16.msra.mxu0 %v730
        %877 = vmatprep.subr.bf16.mxu0 %v733
        %878 = vmatpush1.bf16.msra.mxu0 %v732
        %879 = vmatprep.subr.bf16.mxu0 %v735
        %880 = vmatpush1.bf16.msra.mxu0 %v734
        %881 = vmatprep.subr.bf16.mxu0 %v737
        %882 = vmatpush1.bf16.msra.mxu0 %v736
        %883 = vmatprep.subr.bf16.mxu0 %v739
        %884 = vmatpush1.bf16.msra.mxu0 %v738
        %885 = vmatprep.subr.bf16.mxu0 0
        %886 = vmatpush1.bf16.msra.mxu0 0
        %887 = vmatprep.subr.bf16.mxu0 0
        %888 = vmatpush1.bf16.msra.mxu0 0
        %889 = vmatprep.subr.bf16.mxu0 0
        %890 = vmatpush1.bf16.msra.mxu0 0
        %891 = vmatprep.subr.bf16.mxu0 0
        %892 = vmatpush1.bf16.msra.mxu0 0
        %893 = vmatprep.subr.bf16.mxu0 0
        %894 = vmatpush1.bf16.msra.mxu0 0
        %895 = vmatprep.subr.bf16.mxu0 0
        %896 = vmatpush1.bf16.msra.mxu0 0
        %897 = vmatprep.subr.bf16.mxu0 0
        %898 = vmatpush1.bf16.msra.mxu0 0
        %899 = vmatprep.subr.bf16.mxu0 0
        %900 = vmatpush1.bf16.msra.mxu0 0
        %901 = vmatprep.mubr.bf16.mxu0 0
        %902 = vmatmul.mubr.bf16.gmra.mrb[0].mxu0 %v443
        %v903 = vpop.f32.mrb[0].mxu0
        %v904 = vadd.f32 0.0, %v903
        %v905 = vpop.f32.mrb[0].mxu0
        %v906 = vadd.f32 0.0, %v905
        %v907 = vpop.f32.mrb[0].mxu0
        %v908 = vadd.f32 0.0, %v907
        %v909 = vpop.f32.mrb[0].mxu0
        %v910 = vadd.f32 0.0, %v909
        %911 = vmatprep.mubr.bf16.mxu0 0
        %912 = vmatmul.mubr.bf16.gmra.mrb[0].mxu0 %v444
        %v913 = vpop.f32.mrb[0].mxu0
        %v914 = vadd.f32 0.0, %v913
        %v915 = vpop.f32.mrb[0].mxu0
        %v916 = vadd.f32 0.0, %v915
        %v917 = vpop.f32.mrb[0].mxu0
        %v918 = vadd.f32 0.0, %v917
        %v919 = vpop.f32.mrb[0].mxu0
        %v920 = vadd.f32 0.0, %v919
        %921 = vmatprep.mubr.bf16.mxu0 0
        %922 = vmatmul.mubr.bf16.gmra.mrb[0].mxu0 %v445
        %v923 = vpop.f32.mrb[0].mxu0
        %v924 = vadd.f32 0.0, %v923
        %v925 = vpop.f32.mrb[0].mxu0
        %v926 = vadd.f32 0.0, %v925
        %v927 = vpop.f32.mrb[0].mxu0
        %v928 = vadd.f32 0.0, %v927
        %v929 = vpop.f32.mrb[0].mxu0
        %v930 = vadd.f32 0.0, %v929
        %931 = vmatprep.mubr.bf16.mxu0 0
        %932 = vmatmul.mubr.bf16.gmra.mrb[0].mxu0 %v446
        %v933 = vpop.f32.mrb[0].mxu0
        %v934 = vadd.f32 0.0, %v933
        %v935 = vpop.f32.mrb[0].mxu0
        %v936 = vadd.f32 0.0, %v935
        %v937 = vpop.f32.mrb[0].mxu0
        %v938 = vadd.f32 0.0, %v937
        %v939 = vpop.f32.mrb[0].mxu0
        %v940 = vadd.f32 0.0, %v939
        %941 = vmatprep.mubr.bf16.mxu0 0
        %942 = vmatmul.mubr.bf16.gmra.mrb[0].mxu0 %v447
        %v943 = vpop.f32.mrb[0].mxu0
        %v944 = vadd.f32 0.0, %v943
        %v945 = vpop.f32.mrb[0].mxu0
        %v946 = vadd.f32 0.0, %v945
        %v947 = vpop.f32.mrb[0].mxu0
        %v948 = vadd.f32 0.0, %v947
        %v949 = vpop.f32.mrb[0].mxu0
        %v950 = vadd.f32 0.0, %v949
        %951 = vmatprep.mubr.bf16.mxu0 0
        %952 = vmatmul.mubr.bf16.gmra.mrb[0].mxu0 %v448
        %v953 = vpop.f32.mrb[0].mxu0
        %v954 = vadd.f32 0.0, %v953
        %v955 = vpop.f32.mrb[0].mxu0
        %v956 = vadd.f32 0.0, %v955
        %v957 = vpop.f32.mrb[0].mxu0
        %v958 = vadd.f32 0.0, %v957
        %v959 = vpop.f32.mrb[0].mxu0
        %v960 = vadd.f32 0.0, %v959
        %961 = vmatprep.mubr.bf16.mxu0 0
        %962 = vmatmul.mubr.bf16.gmra.mrb[0].mxu0 %v449
        %v963 = vpop.f32.mrb[0].mxu0
        %v964 = vadd.f32 0.0, %v963
        %v965 = vpop.f32.mrb[0].mxu0
        %v966 = vadd.f32 0.0, %v965
        %v967 = vpop.f32.mrb[0].mxu0
        %v968 = vadd.f32 0.0, %v967
        %v969 = vpop.f32.mrb[0].mxu0
        %v970 = vadd.f32 0.0, %v969
        %971 = vmatprep.mubr.bf16.mxu0 0
        %972 = vmatmul.mubr.bf16.gmra.mrb[0].mxu0 %v450
        %v973 = vpop.f32.mrb[0].mxu0
        %v974 = vadd.f32 0.0, %v973
        %v975 = vpop.f32.mrb[0].mxu0
        %v976 = vadd.f32 0.0, %v975
        %v977 = vpop.f32.mrb[0].mxu0
        %v978 = vadd.f32 0.0, %v977
        %v979 = vpop.f32.mrb[0].mxu0
        %v980 = vadd.f32 0.0, %v979
        %981 = vdwg.mxu0
        %v982 = vadd.f32 %v598, 0.0
        %v983 = vadd.f32 %v600, 0.0
        %v984 = vadd.f32 %v602, 0.0
        %v985 = vadd.f32 %v604, 0.0
        %v986 = vadd.f32 %v608, 0.0
        %v987 = vadd.f32 %v610, 0.0
        %v988 = vadd.f32 %v612, 0.0
        %v989 = vadd.f32 %v614, 0.0
        %v990 = vadd.f32 %v618, 0.0
        %v991 = vadd.f32 %v620, 0.0
        %v992 = vadd.f32 %v622, 0.0
        %v993 = vadd.f32 %v624, 0.0
        %v994 = vadd.f32 %v628, 0.0
        %v995 = vadd.f32 %v630, 0.0
        %v996 = vadd.f32 %v632, 0.0
        %v997 = vadd.f32 %v634, 0.0
        %v998 = vadd.f32 %v638, 0.0
        %v999 = vadd.f32 %v640, 0.0
        %v1000 = vadd.f32 %v642, 0.0
        %v1001 = vadd.f32 %v644, 0.0
        %v1002 = vadd.f32 %v648, 0.0
        %v1003 = vadd.f32 %v650, 0.0
        %v1004 = vadd.f32 %v652, 0.0
        %v1005 = vadd.f32 %v654, 0.0
        %v1006 = vadd.f32 %v658, 0.0
        %v1007 = vadd.f32 %v660, 0.0
        %v1008 = vadd.f32 %v662, 0.0
        %v1009 = vadd.f32 %v664, 0.0
        %v1010 = vadd.f32 %v668, 0.0
        %v1011 = vadd.f32 %v670, 0.0
        %v1012 = vadd.f32 %v672, 0.0
        %v1013 = vadd.f32 %v674, 0.0
        %vm1014 = vcmp.lt.f32.partialorder %v982, 1.0
        %vm1015 = vcmp.lt.f32.partialorder %v983, 1.0
        %vm1016 = vcmp.lt.f32.partialorder %v984, 1.0
        %vm1017 = vcmp.lt.f32.partialorder %v985, 1.0
        %vm1018 = vcmp.lt.f32.partialorder %v986, 1.0
        %vm1019 = vcmp.lt.f32.partialorder %v987, 1.0
        %vm1020 = vcmp.lt.f32.partialorder %v988, 1.0
        %vm1021 = vcmp.lt.f32.partialorder %v989, 1.0
        %vm1022 = vcmp.lt.f32.partialorder %v990, 1.0
        %vm1023 = vcmp.lt.f32.partialorder %v991, 1.0
        %vm1024 = vcmp.lt.f32.partialorder %v992, 1.0
        %vm1025 = vcmp.lt.f32.partialorder %v993, 1.0
        %vm1026 = vcmp.lt.f32.partialorder %v994, 1.0
        %vm1027 = vcmp.lt.f32.partialorder %v995, 1.0
        %vm1028 = vcmp.lt.f32.partialorder %v996, 1.0
        %vm1029 = vcmp.lt.f32.partialorder %v997, 1.0
        %vm1030 = vcmp.lt.f32.partialorder %v998, 1.0
        %vm1031 = vcmp.lt.f32.partialorder %v999, 1.0
        %vm1032 = vcmp.lt.f32.partialorder %v1000, 1.0
        %vm1033 = vcmp.lt.f32.partialorder %v1001, 1.0
        %vm1034 = vcmp.lt.f32.partialorder %v1002, 1.0
        %vm1035 = vcmp.lt.f32.partialorder %v1003, 1.0
        %vm1036 = vcmp.lt.f32.partialorder %v1004, 1.0
        %vm1037 = vcmp.lt.f32.partialorder %v1005, 1.0
        %vm1038 = vcmp.lt.f32.partialorder %v1006, 1.0
        %vm1039 = vcmp.lt.f32.partialorder %v1007, 1.0
        %vm1040 = vcmp.lt.f32.partialorder %v1008, 1.0
        %vm1041 = vcmp.lt.f32.partialorder %v1009, 1.0
        %vm1042 = vcmp.lt.f32.partialorder %v1010, 1.0
        %vm1043 = vcmp.lt.f32.partialorder %v1011, 1.0
        %vm1044 = vcmp.lt.f32.partialorder %v1012, 1.0
        %vm1045 = vcmp.lt.f32.partialorder %v1013, 1.0
        %v1046 = vsel %vm1014, 1, 0
        %v1047 = vsel %vm1015, 1, 0
        %v1048 = vsel %vm1016, 1, 0
        %v1049 = vsel %vm1017, 1, 0
        %v1050 = vsel %vm1018, 1, 0
        %v1051 = vsel %vm1019, 1, 0
        %v1052 = vsel %vm1020, 1, 0
        %v1053 = vsel %vm1021, 1, 0
        %v1054 = vsel %vm1022, 1, 0
        %v1055 = vsel %vm1023, 1, 0
        %v1056 = vsel %vm1024, 1, 0
        %v1057 = vsel %vm1025, 1, 0
        %v1058 = vsel %vm1026, 1, 0
        %v1059 = vsel %vm1027, 1, 0
        %v1060 = vsel %vm1028, 1, 0
        %v1061 = vsel %vm1029, 1, 0
        %v1062 = vsel %vm1030, 1, 0
        %v1063 = vsel %vm1031, 1, 0
        %v1064 = vsel %vm1032, 1, 0
        %v1065 = vsel %vm1033, 1, 0
        %v1066 = vsel %vm1034, 1, 0
        %v1067 = vsel %vm1035, 1, 0
        %v1068 = vsel %vm1036, 1, 0
        %v1069 = vsel %vm1037, 1, 0
        %v1070 = vsel %vm1038, 1, 0
        %v1071 = vsel %vm1039, 1, 0
        %v1072 = vsel %vm1040, 1, 0
        %v1073 = vsel %vm1041, 1, 0
        %v1074 = vsel %vm1042, 1, 0
        %v1075 = vsel %vm1043, 1, 0
        %v1076 = vsel %vm1044, 1, 0
        %v1077 = vsel %vm1045, 1, 0
        %v1078 = vcvt.s32.f32 %v1046
        %v1079 = vcvt.s32.f32 %v1047
        %v1080 = vcvt.s32.f32 %v1048
        %v1081 = vcvt.s32.f32 %v1049
        %v1082 = vcvt.s32.f32 %v1050
        %v1083 = vcvt.s32.f32 %v1051
        %v1084 = vcvt.s32.f32 %v1052
        %v1085 = vcvt.s32.f32 %v1053
        %v1086 = vcvt.s32.f32 %v1054
        %v1087 = vcvt.s32.f32 %v1055
        %v1088 = vcvt.s32.f32 %v1056
        %v1089 = vcvt.s32.f32 %v1057
        %v1090 = vcvt.s32.f32 %v1058
        %v1091 = vcvt.s32.f32 %v1059
        %v1092 = vcvt.s32.f32 %v1060
        %v1093 = vcvt.s32.f32 %v1061
        %v1094 = vcvt.s32.f32 %v1062
        %v1095 = vcvt.s32.f32 %v1063
        %v1096 = vcvt.s32.f32 %v1064
        %v1097 = vcvt.s32.f32 %v1065
        %v1098 = vcvt.s32.f32 %v1066
        %v1099 = vcvt.s32.f32 %v1067
        %v1100 = vcvt.s32.f32 %v1068
        %v1101 = vcvt.s32.f32 %v1069
        %v1102 = vcvt.s32.f32 %v1070
        %v1103 = vcvt.s32.f32 %v1071
        %v1104 = vcvt.s32.f32 %v1072
        %v1105 = vcvt.s32.f32 %v1073
        %v1106 = vcvt.s32.f32 %v1074
        %v1107 = vcvt.s32.f32 %v1075
        %v1108 = vcvt.s32.f32 %v1076
        %v1109 = vcvt.s32.f32 %v1077
        %v1110 = vadd.f32 %v1078, 0.0
        %v1111 = vadd.f32 %v1079, 0.0
        %v1112 = vadd.f32 %v1080, 0.0
        %v1113 = vadd.f32 %v1081, 0.0
        %v1114 = vadd.f32 %v1082, 0.0
        %v1115 = vadd.f32 %v1083, 0.0
        %v1116 = vadd.f32 %v1084, 0.0
        %v1117 = vadd.f32 %v1085, 0.0
        %v1118 = vadd.f32 %v1086, 0.0
        %v1119 = vadd.f32 %v1087, 0.0
        %v1120 = vadd.f32 %v1088, 0.0
        %v1121 = vadd.f32 %v1089, 0.0
        %v1122 = vadd.f32 %v1090, 0.0
        %v1123 = vadd.f32 %v1091, 0.0
        %v1124 = vadd.f32 %v1092, 0.0
        %v1125 = vadd.f32 %v1093, 0.0
        %v1126 = vadd.f32 %v1094, 0.0
        %v1127 = vadd.f32 %v1095, 0.0
        %v1128 = vadd.f32 %v1096, 0.0
        %v1129 = vadd.f32 %v1097, 0.0
        %v1130 = vadd.f32 %v1098, 0.0
        %v1131 = vadd.f32 %v1099, 0.0
        %v1132 = vadd.f32 %v1100, 0.0
        %v1133 = vadd.f32 %v1101, 0.0
        %v1134 = vadd.f32 %v1102, 0.0
        %v1135 = vadd.f32 %v1103, 0.0
        %v1136 = vadd.f32 %v1104, 0.0
        %v1137 = vadd.f32 %v1105, 0.0
        %v1138 = vadd.f32 %v1106, 0.0
        %v1139 = vadd.f32 %v1107, 0.0
        %v1140 = vadd.f32 %v1108, 0.0
        %v1141 = vadd.f32 %v1109, 0.0
        %v1142 = vadd.f32 %v982, %v598
        %v1143 = vadd.f32 %v983, %v600
        %v1144 = vadd.f32 %v984, %v602
        %v1145 = vadd.f32 %v985, %v604
        %v1146 = vadd.f32 %v986, %v608
        %v1147 = vadd.f32 %v987, %v610
        %v1148 = vadd.f32 %v988, %v612
        %v1149 = vadd.f32 %v989, %v614
        %v1150 = vadd.f32 %v990, %v618
        %v1151 = vadd.f32 %v991, %v620
        %v1152 = vadd.f32 %v992, %v622
        %v1153 = vadd.f32 %v993, %v624
        %v1154 = vadd.f32 %v994, %v628
        %v1155 = vadd.f32 %v995, %v630
        %v1156 = vadd.f32 %v996, %v632
        %v1157 = vadd.f32 %v997, %v634
        %v1158 = vadd.f32 %v998, %v638
        %v1159 = vadd.f32 %v999, %v640
        %v1160 = vadd.f32 %v1000, %v642
        %v1161 = vadd.f32 %v1001, %v644
        %v1162 = vadd.f32 %v1002, %v648
        %v1163 = vadd.f32 %v1003, %v650
        %v1164 = vadd.f32 %v1004, %v652
        %v1165 = vadd.f32 %v1005, %v654
        %v1166 = vadd.f32 %v1006, %v658
        %v1167 = vadd.f32 %v1007, %v660
        %v1168 = vadd.f32 %v1008, %v662
        %v1169 = vadd.f32 %v1009, %v664
        %v1170 = vadd.f32 %v1010, %v668
        %v1171 = vadd.f32 %v1011, %v670
        %v1172 = vadd.f32 %v1012, %v672
        %v1173 = vadd.f32 %v1013, %v674
        %vm1174 = vcmp.lt.f32.partialorder %v1142, 1.0
        %vm1175 = vcmp.lt.f32.partialorder %v1143, 1.0
        %vm1176 = vcmp.lt.f32.partialorder %v1144, 1.0
        %vm1177 = vcmp.lt.f32.partialorder %v1145, 1.0
        %vm1178 = vcmp.lt.f32.partialorder %v1146, 1.0
        %vm1179 = vcmp.lt.f32.partialorder %v1147, 1.0
        %vm1180 = vcmp.lt.f32.partialorder %v1148, 1.0
        %vm1181 = vcmp.lt.f32.partialorder %v1149, 1.0
        %vm1182 = vcmp.lt.f32.partialorder %v1150, 1.0
        %vm1183 = vcmp.lt.f32.partialorder %v1151, 1.0
        %vm1184 = vcmp.lt.f32.partialorder %v1152, 1.0
        %vm1185 = vcmp.lt.f32.partialorder %v1153, 1.0
        %vm1186 = vcmp.lt.f32.partialorder %v1154, 1.0
        %vm1187 = vcmp.lt.f32.partialorder %v1155, 1.0
        %vm1188 = vcmp.lt.f32.partialorder %v1156, 1.0
        %vm1189 = vcmp.lt.f32.partialorder %v1157, 1.0
        %vm1190 = vcmp.lt.f32.partialorder %v1158, 1.0
        %vm1191 = vcmp.lt.f32.partialorder %v1159, 1.0
        %vm1192 = vcmp.lt.f32.partialorder %v1160, 1.0
        %vm1193 = vcmp.lt.f32.partialorder %v1161, 1.0
        %vm1194 = vcmp.lt.f32.partialorder %v1162, 1.0
        %vm1195 = vcmp.lt.f32.partialorder %v1163, 1.0
        %vm1196 = vcmp.lt.f32.partialorder %v1164, 1.0
        %vm1197 = vcmp.lt.f32.partialorder %v1165, 1.0
        %vm1198 = vcmp.lt.f32.partialorder %v1166, 1.0
        %vm1199 = vcmp.lt.f32.partialorder %v1167, 1.0
        %vm1200 = vcmp.lt.f32.partialorder %v1168, 1.0
        %vm1201 = vcmp.lt.f32.partialorder %v1169, 1.0
        %vm1202 = vcmp.lt.f32.partialorder %v1170, 1.0
        %vm1203 = vcmp.lt.f32.partialorder %v1171, 1.0
        %vm1204 = vcmp.lt.f32.partialorder %v1172, 1.0
        %vm1205 = vcmp.lt.f32.partialorder %v1173, 1.0
        %v1206 = vsel %vm1174, 1, 0
        %v1207 = vsel %vm1175, 1, 0
        %v1208 = vsel %vm1176, 1, 0
        %v1209 = vsel %vm1177, 1, 0
        %v1210 = vsel %vm1178, 1, 0
        %v1211 = vsel %vm1179, 1, 0
        %v1212 = vsel %vm1180, 1, 0
        %v1213 = vsel %vm1181, 1, 0
        %v1214 = vsel %vm1182, 1, 0
        %v1215 = vsel %vm1183, 1, 0
        %v1216 = vsel %vm1184, 1, 0
        %v1217 = vsel %vm1185, 1, 0
        %v1218 = vsel %vm1186, 1, 0
        %v1219 = vsel %vm1187, 1, 0
        %v1220 = vsel %vm1188, 1, 0
        %v1221 = vsel %vm1189, 1, 0
        %v1222 = vsel %vm1190, 1, 0
        %v1223 = vsel %vm1191, 1, 0
        %v1224 = vsel %vm1192, 1, 0
        %v1225 = vsel %vm1193, 1, 0
        %v1226 = vsel %vm1194, 1, 0
        %v1227 = vsel %vm1195, 1, 0
        %v1228 = vsel %vm1196, 1, 0
        %v1229 = vsel %vm1197, 1, 0
        %v1230 = vsel %vm1198, 1, 0
        %v1231 = vsel %vm1199, 1, 0
        %v1232 = vsel %vm1200, 1, 0
        %v1233 = vsel %vm1201, 1, 0
        %v1234 = vsel %vm1202, 1, 0
        %v1235 = vsel %vm1203, 1, 0
        %v1236 = vsel %vm1204, 1, 0
        %v1237 = vsel %vm1205, 1, 0
        %v1238 = vcvt.s32.f32 %v1206
        %v1239 = vcvt.s32.f32 %v1207
        %v1240 = vcvt.s32.f32 %v1208
        %v1241 = vcvt.s32.f32 %v1209
        %v1242 = vcvt.s32.f32 %v1210
        %v1243 = vcvt.s32.f32 %v1211
        %v1244 = vcvt.s32.f32 %v1212
        %v1245 = vcvt.s32.f32 %v1213
        %v1246 = vcvt.s32.f32 %v1214
        %v1247 = vcvt.s32.f32 %v1215
        %v1248 = vcvt.s32.f32 %v1216
        %v1249 = vcvt.s32.f32 %v1217
        %v1250 = vcvt.s32.f32 %v1218
        %v1251 = vcvt.s32.f32 %v1219
        %v1252 = vcvt.s32.f32 %v1220
        %v1253 = vcvt.s32.f32 %v1221
        %v1254 = vcvt.s32.f32 %v1222
        %v1255 = vcvt.s32.f32 %v1223
        %v1256 = vcvt.s32.f32 %v1224
        %v1257 = vcvt.s32.f32 %v1225
        %v1258 = vcvt.s32.f32 %v1226
        %v1259 = vcvt.s32.f32 %v1227
        %v1260 = vcvt.s32.f32 %v1228
        %v1261 = vcvt.s32.f32 %v1229
        %v1262 = vcvt.s32.f32 %v1230
        %v1263 = vcvt.s32.f32 %v1231
        %v1264 = vcvt.s32.f32 %v1232
        %v1265 = vcvt.s32.f32 %v1233
        %v1266 = vcvt.s32.f32 %v1234
        %v1267 = vcvt.s32.f32 %v1235
        %v1268 = vcvt.s32.f32 %v1236
        %v1269 = vcvt.s32.f32 %v1237
        %v1270 = vadd.f32 %v1110, %v1238
        %v1271 = vadd.f32 %v1111, %v1239
        %v1272 = vadd.f32 %v1112, %v1240
        %v1273 = vadd.f32 %v1113, %v1241
        %v1274 = vadd.f32 %v1114, %v1242
        %v1275 = vadd.f32 %v1115, %v1243
        %v1276 = vadd.f32 %v1116, %v1244
        %v1277 = vadd.f32 %v1117, %v1245
        %v1278 = vadd.f32 %v1118, %v1246
        %v1279 = vadd.f32 %v1119, %v1247
        %v1280 = vadd.f32 %v1120, %v1248
        %v1281 = vadd.f32 %v1121, %v1249
        %v1282 = vadd.f32 %v1122, %v1250
        %v1283 = vadd.f32 %v1123, %v1251
        %v1284 = vadd.f32 %v1124, %v1252
        %v1285 = vadd.f32 %v1125, %v1253
        %v1286 = vadd.f32 %v1126, %v1254
        %v1287 = vadd.f32 %v1127, %v1255
        %v1288 = vadd.f32 %v1128, %v1256
        %v1289 = vadd.f32 %v1129, %v1257
        %v1290 = vadd.f32 %v1130, %v1258
        %v1291 = vadd.f32 %v1131, %v1259
        %v1292 = vadd.f32 %v1132, %v1260
        %v1293 = vadd.f32 %v1133, %v1261
        %v1294 = vadd.f32 %v1134, %v1262
        %v1295 = vadd.f32 %v1135, %v1263
        %v1296 = vadd.f32 %v1136, %v1264
        %v1297 = vadd.f32 %v1137, %v1265
        %v1298 = vadd.f32 %v1138, %v1266
        %v1299 = vadd.f32 %v1139, %v1267
        %v1300 = vadd.f32 %v1140, %v1268
        %v1301 = vadd.f32 %v1141, %v1269
        %v1302 = vadd.f32 %v1142, %v598
        %v1303 = vadd.f32 %v1143, %v600
        %v1304 = vadd.f32 %v1144, %v602
        %v1305 = vadd.f32 %v1145, %v604
        %v1306 = vadd.f32 %v1146, %v608
        %v1307 = vadd.f32 %v1147, %v610
        %v1308 = vadd.f32 %v1148, %v612
        %v1309 = vadd.f32 %v1149, %v614
        %v1310 = vadd.f32 %v1150, %v618
        %v1311 = vadd.f32 %v1151, %v620
        %v1312 = vadd.f32 %v1152, %v622
        %v1313 = vadd.f32 %v1153, %v624
        %v1314 = vadd.f32 %v1154, %v628
        %v1315 = vadd.f32 %v1155, %v630
        %v1316 = vadd.f32 %v1156, %v632
        %v1317 = vadd.f32 %v1157, %v634
        %v1318 = vadd.f32 %v1158, %v638
        %v1319 = vadd.f32 %v1159, %v640
        %v1320 = vadd.f32 %v1160, %v642
        %v1321 = vadd.f32 %v1161, %v644
        %v1322 = vadd.f32 %v1162, %v648
        %v1323 = vadd.f32 %v1163, %v650
        %v1324 = vadd.f32 %v1164, %v652
        %v1325 = vadd.f32 %v1165, %v654
        %v1326 = vadd.f32 %v1166, %v658
        %v1327 = vadd.f32 %v1167, %v660
        %v1328 = vadd.f32 %v1168, %v662
        %v1329 = vadd.f32 %v1169, %v664
        %v1330 = vadd.f32 %v1170, %v668
        %v1331 = vadd.f32 %v1171, %v670
        %v1332 = vadd.f32 %v1172, %v672
        %v1333 = vadd.f32 %v1173, %v674
        %vm1334 = vcmp.lt.f32.partialorder %v1302, 1.0
        %vm1335 = vcmp.lt.f32.partialorder %v1303, 1.0
        %vm1336 = vcmp.lt.f32.partialorder %v1304, 1.0
        %vm1337 = vcmp.lt.f32.partialorder %v1305, 1.0
        %vm1338 = vcmp.lt.f32.partialorder %v1306, 1.0
        %vm1339 = vcmp.lt.f32.partialorder %v1307, 1.0
        %vm1340 = vcmp.lt.f32.partialorder %v1308, 1.0
        %vm1341 = vcmp.lt.f32.partialorder %v1309, 1.0
        %vm1342 = vcmp.lt.f32.partialorder %v1310, 1.0
        %vm1343 = vcmp.lt.f32.partialorder %v1311, 1.0
        %vm1344 = vcmp.lt.f32.partialorder %v1312, 1.0
        %vm1345 = vcmp.lt.f32.partialorder %v1313, 1.0
        %vm1346 = vcmp.lt.f32.partialorder %v1314, 1.0
        %vm1347 = vcmp.lt.f32.partialorder %v1315, 1.0
        %vm1348 = vcmp.lt.f32.partialorder %v1316, 1.0
        %vm1349 = vcmp.lt.f32.partialorder %v1317, 1.0
        %vm1350 = vcmp.lt.f32.partialorder %v1318, 1.0
        %vm1351 = vcmp.lt.f32.partialorder %v1319, 1.0
        %vm1352 = vcmp.lt.f32.partialorder %v1320, 1.0
        %vm1353 = vcmp.lt.f32.partialorder %v1321, 1.0
        %vm1354 = vcmp.lt.f32.partialorder %v1322, 1.0
        %vm1355 = vcmp.lt.f32.partialorder %v1323, 1.0
        %vm1356 = vcmp.lt.f32.partialorder %v1324, 1.0
        %vm1357 = vcmp.lt.f32.partialorder %v1325, 1.0
        %vm1358 = vcmp.lt.f32.partialorder %v1326, 1.0
        %vm1359 = vcmp.lt.f32.partialorder %v1327, 1.0
        %vm1360 = vcmp.lt.f32.partialorder %v1328, 1.0
        %vm1361 = vcmp.lt.f32.partialorder %v1329, 1.0
        %vm1362 = vcmp.lt.f32.partialorder %v1330, 1.0
        %vm1363 = vcmp.lt.f32.partialorder %v1331, 1.0
        %vm1364 = vcmp.lt.f32.partialorder %v1332, 1.0
        %vm1365 = vcmp.lt.f32.partialorder %v1333, 1.0
        %v1366 = vsel %vm1334, 1, 0
        %v1367 = vsel %vm1335, 1, 0
        %v1368 = vsel %vm1336, 1, 0
        %v1369 = vsel %vm1337, 1, 0
        %v1370 = vsel %vm1338, 1, 0
        %v1371 = vsel %vm1339, 1, 0
        %v1372 = vsel %vm1340, 1, 0
        %v1373 = vsel %vm1341, 1, 0
        %v1374 = vsel %vm1342, 1, 0
        %v1375 = vsel %vm1343, 1, 0
        %v1376 = vsel %vm1344, 1, 0
        %v1377 = vsel %vm1345, 1, 0
        %v1378 = vsel %vm1346, 1, 0
        %v1379 = vsel %vm1347, 1, 0
        %v1380 = vsel %vm1348, 1, 0
        %v1381 = vsel %vm1349, 1, 0
        %v1382 = vsel %vm1350, 1, 0
        %v1383 = vsel %vm1351, 1, 0
        %v1384 = vsel %vm1352, 1, 0
        %v1385 = vsel %vm1353, 1, 0
        %v1386 = vsel %vm1354, 1, 0
        %v1387 = vsel %vm1355, 1, 0
        %v1388 = vsel %vm1356, 1, 0
        %v1389 = vsel %vm1357, 1, 0
        %v1390 = vsel %vm1358, 1, 0
        %v1391 = vsel %vm1359, 1, 0
        %v1392 = vsel %vm1360, 1, 0
        %v1393 = vsel %vm1361, 1, 0
        %v1394 = vsel %vm1362, 1, 0
        %v1395 = vsel %vm1363, 1, 0
        %v1396 = vsel %vm1364, 1, 0
        %v1397 = vsel %vm1365, 1, 0
        %v1398 = vcvt.s32.f32 %v1366
        %v1399 = vcvt.s32.f32 %v1367
        %v1400 = vcvt.s32.f32 %v1368
        %v1401 = vcvt.s32.f32 %v1369
        %v1402 = vcvt.s32.f32 %v1370
        %v1403 = vcvt.s32.f32 %v1371
        %v1404 = vcvt.s32.f32 %v1372
        %v1405 = vcvt.s32.f32 %v1373
        %v1406 = vcvt.s32.f32 %v1374
        %v1407 = vcvt.s32.f32 %v1375
        %v1408 = vcvt.s32.f32 %v1376
        %v1409 = vcvt.s32.f32 %v1377
        %v1410 = vcvt.s32.f32 %v1378
        %v1411 = vcvt.s32.f32 %v1379
        %v1412 = vcvt.s32.f32 %v1380
        %v1413 = vcvt.s32.f32 %v1381
        %v1414 = vcvt.s32.f32 %v1382
        %v1415 = vcvt.s32.f32 %v1383
        %v1416 = vcvt.s32.f32 %v1384
        %v1417 = vcvt.s32.f32 %v1385
        %v1418 = vcvt.s32.f32 %v1386
        %v1419 = vcvt.s32.f32 %v1387
        %v1420 = vcvt.s32.f32 %v1388
        %v1421 = vcvt.s32.f32 %v1389
        %v1422 = vcvt.s32.f32 %v1390
        %v1423 = vcvt.s32.f32 %v1391
        %v1424 = vcvt.s32.f32 %v1392
        %v1425 = vcvt.s32.f32 %v1393
        %v1426 = vcvt.s32.f32 %v1394
        %v1427 = vcvt.s32.f32 %v1395
        %v1428 = vcvt.s32.f32 %v1396
        %v1429 = vcvt.s32.f32 %v1397
        %v1430 = vadd.f32 %v1270, %v1398
        %v1431 = vadd.f32 %v1271, %v1399
        %v1432 = vadd.f32 %v1272, %v1400
        %v1433 = vadd.f32 %v1273, %v1401
        %v1434 = vadd.f32 %v1274, %v1402
        %v1435 = vadd.f32 %v1275, %v1403
        %v1436 = vadd.f32 %v1276, %v1404
        %v1437 = vadd.f32 %v1277, %v1405
        %v1438 = vadd.f32 %v1278, %v1406
        %v1439 = vadd.f32 %v1279, %v1407
        %v1440 = vadd.f32 %v1280, %v1408
        %v1441 = vadd.f32 %v1281, %v1409
        %v1442 = vadd.f32 %v1282, %v1410
        %v1443 = vadd.f32 %v1283, %v1411
        %v1444 = vadd.f32 %v1284, %v1412
        %v1445 = vadd.f32 %v1285, %v1413
        %v1446 = vadd.f32 %v1286, %v1414
        %v1447 = vadd.f32 %v1287, %v1415
        %v1448 = vadd.f32 %v1288, %v1416
        %v1449 = vadd.f32 %v1289, %v1417
        %v1450 = vadd.f32 %v1290, %v1418
        %v1451 = vadd.f32 %v1291, %v1419
        %v1452 = vadd.f32 %v1292, %v1420
        %v1453 = vadd.f32 %v1293, %v1421
        %v1454 = vadd.f32 %v1294, %v1422
        %v1455 = vadd.f32 %v1295, %v1423
        %v1456 = vadd.f32 %v1296, %v1424
        %v1457 = vadd.f32 %v1297, %v1425
        %v1458 = vadd.f32 %v1298, %v1426
        %v1459 = vadd.f32 %v1299, %v1427
        %v1460 = vadd.f32 %v1300, %v1428
        %v1461 = vadd.f32 %v1301, %v1429
        %v1462 = vadd.f32 %v1302, %v598
        %v1463 = vadd.f32 %v1303, %v600
        %v1464 = vadd.f32 %v1304, %v602
        %v1465 = vadd.f32 %v1305, %v604
        %v1466 = vadd.f32 %v1306, %v608
        %v1467 = vadd.f32 %v1307, %v610
        %v1468 = vadd.f32 %v1308, %v612
        %v1469 = vadd.f32 %v1309, %v614
        %v1470 = vadd.f32 %v1310, %v618
        %v1471 = vadd.f32 %v1311, %v620
        %v1472 = vadd.f32 %v1312, %v622
        %v1473 = vadd.f32 %v1313, %v624
        %v1474 = vadd.f32 %v1314, %v628
        %v1475 = vadd.f32 %v1315, %v630
        %v1476 = vadd.f32 %v1316, %v632
        %v1477 = vadd.f32 %v1317, %v634
        %v1478 = vadd.f32 %v1318, %v638
        %v1479 = vadd.f32 %v1319, %v640
        %v1480 = vadd.f32 %v1320, %v642
        %v1481 = vadd.f32 %v1321, %v644
        %v1482 = vadd.f32 %v1322, %v648
        %v1483 = vadd.f32 %v1323, %v650
        %v1484 = vadd.f32 %v1324, %v652
        %v1485 = vadd.f32 %v1325, %v654
        %v1486 = vadd.f32 %v1326, %v658
        %v1487 = vadd.f32 %v1327, %v660
        %v1488 = vadd.f32 %v1328, %v662
        %v1489 = vadd.f32 %v1329, %v664
        %v1490 = vadd.f32 %v1330, %v668
        %v1491 = vadd.f32 %v1331, %v670
        %v1492 = vadd.f32 %v1332, %v672
        %v1493 = vadd.f32 %v1333, %v674
        %vm1494 = vcmp.lt.f32.partialorder %v1462, 1.0
        %vm1495 = vcmp.lt.f32.partialorder %v1463, 1.0
        %vm1496 = vcmp.lt.f32.partialorder %v1464, 1.0
        %vm1497 = vcmp.lt.f32.partialorder %v1465, 1.0
        %vm1498 = vcmp.lt.f32.partialorder %v1466, 1.0
        %vm1499 = vcmp.lt.f32.partialorder %v1467, 1.0
        %vm1500 = vcmp.lt.f32.partialorder %v1468, 1.0
        %vm1501 = vcmp.lt.f32.partialorder %v1469, 1.0
        %vm1502 = vcmp.lt.f32.partialorder %v1470, 1.0
        %vm1503 = vcmp.lt.f32.partialorder %v1471, 1.0
        %vm1504 = vcmp.lt.f32.partialorder %v1472, 1.0
        %vm1505 = vcmp.lt.f32.partialorder %v1473, 1.0
        %vm1506 = vcmp.lt.f32.partialorder %v1474, 1.0
        %vm1507 = vcmp.lt.f32.partialorder %v1475, 1.0
        %vm1508 = vcmp.lt.f32.partialorder %v1476, 1.0
        %vm1509 = vcmp.lt.f32.partialorder %v1477, 1.0
        %vm1510 = vcmp.lt.f32.partialorder %v1478, 1.0
        %vm1511 = vcmp.lt.f32.partialorder %v1479, 1.0
        %vm1512 = vcmp.lt.f32.partialorder %v1480, 1.0
        %vm1513 = vcmp.lt.f32.partialorder %v1481, 1.0
        %vm1514 = vcmp.lt.f32.partialorder %v1482, 1.0
        %vm1515 = vcmp.lt.f32.partialorder %v1483, 1.0
        %vm1516 = vcmp.lt.f32.partialorder %v1484, 1.0
        %vm1517 = vcmp.lt.f32.partialorder %v1485, 1.0
        %vm1518 = vcmp.lt.f32.partialorder %v1486, 1.0
        %vm1519 = vcmp.lt.f32.partialorder %v1487, 1.0
        %vm1520 = vcmp.lt.f32.partialorder %v1488, 1.0
        %vm1521 = vcmp.lt.f32.partialorder %v1489, 1.0
        %vm1522 = vcmp.lt.f32.partialorder %v1490, 1.0
        %vm1523 = vcmp.lt.f32.partialorder %v1491, 1.0
        %vm1524 = vcmp.lt.f32.partialorder %v1492, 1.0
        %vm1525 = vcmp.lt.f32.partialorder %v1493, 1.0
        %v1526 = vsel %vm1494, 1, 0
        %v1527 = vsel %vm1495, 1, 0
        %v1528 = vsel %vm1496, 1, 0
        %v1529 = vsel %vm1497, 1, 0
        %v1530 = vsel %vm1498, 1, 0
        %v1531 = vsel %vm1499, 1, 0
        %v1532 = vsel %vm1500, 1, 0
        %v1533 = vsel %vm1501, 1, 0
        %v1534 = vsel %vm1502, 1, 0
        %v1535 = vsel %vm1503, 1, 0
        %v1536 = vsel %vm1504, 1, 0
        %v1537 = vsel %vm1505, 1, 0
        %v1538 = vsel %vm1506, 1, 0
        %v1539 = vsel %vm1507, 1, 0
        %v1540 = vsel %vm1508, 1, 0
        %v1541 = vsel %vm1509, 1, 0
        %v1542 = vsel %vm1510, 1, 0
        %v1543 = vsel %vm1511, 1, 0
        %v1544 = vsel %vm1512, 1, 0
        %v1545 = vsel %vm1513, 1, 0
        %v1546 = vsel %vm1514, 1, 0
        %v1547 = vsel %vm1515, 1, 0
        %v1548 = vsel %vm1516, 1, 0
        %v1549 = vsel %vm1517, 1, 0
        %v1550 = vsel %vm1518, 1, 0
        %v1551 = vsel %vm1519, 1, 0
        %v1552 = vsel %vm1520, 1, 0
        %v1553 = vsel %vm1521, 1, 0
        %v1554 = vsel %vm1522, 1, 0
        %v1555 = vsel %vm1523, 1, 0
        %v1556 = vsel %vm1524, 1, 0
        %v1557 = vsel %vm1525, 1, 0
        %v1558 = vcvt.s32.f32 %v1526
        %v1559 = vcvt.s32.f32 %v1527
        %v1560 = vcvt.s32.f32 %v1528
        %v1561 = vcvt.s32.f32 %v1529
        %v1562 = vcvt.s32.f32 %v1530
        %v1563 = vcvt.s32.f32 %v1531
        %v1564 = vcvt.s32.f32 %v1532
        %v1565 = vcvt.s32.f32 %v1533
        %v1566 = vcvt.s32.f32 %v1534
        %v1567 = vcvt.s32.f32 %v1535
        %v1568 = vcvt.s32.f32 %v1536
        %v1569 = vcvt.s32.f32 %v1537
        %v1570 = vcvt.s32.f32 %v1538
        %v1571 = vcvt.s32.f32 %v1539
        %v1572 = vcvt.s32.f32 %v1540
        %v1573 = vcvt.s32.f32 %v1541
        %v1574 = vcvt.s32.f32 %v1542
        %v1575 = vcvt.s32.f32 %v1543
        %v1576 = vcvt.s32.f32 %v1544
        %v1577 = vcvt.s32.f32 %v1545
        %v1578 = vcvt.s32.f32 %v1546
        %v1579 = vcvt.s32.f32 %v1547
        %v1580 = vcvt.s32.f32 %v1548
        %v1581 = vcvt.s32.f32 %v1549
        %v1582 = vcvt.s32.f32 %v1550
        %v1583 = vcvt.s32.f32 %v1551
        %v1584 = vcvt.s32.f32 %v1552
        %v1585 = vcvt.s32.f32 %v1553
        %v1586 = vcvt.s32.f32 %v1554
        %v1587 = vcvt.s32.f32 %v1555
        %v1588 = vcvt.s32.f32 %v1556
        %v1589 = vcvt.s32.f32 %v1557
        %v1590 = vadd.f32 %v1430, %v1558
        %v1591 = vadd.f32 %v1431, %v1559
        %v1592 = vadd.f32 %v1432, %v1560
        %v1593 = vadd.f32 %v1433, %v1561
        %v1594 = vadd.f32 %v1434, %v1562
        %v1595 = vadd.f32 %v1435, %v1563
        %v1596 = vadd.f32 %v1436, %v1564
        %v1597 = vadd.f32 %v1437, %v1565
        %v1598 = vadd.f32 %v1438, %v1566
        %v1599 = vadd.f32 %v1439, %v1567
        %v1600 = vadd.f32 %v1440, %v1568
        %v1601 = vadd.f32 %v1441, %v1569
        %v1602 = vadd.f32 %v1442, %v1570
        %v1603 = vadd.f32 %v1443, %v1571
        %v1604 = vadd.f32 %v1444, %v1572
        %v1605 = vadd.f32 %v1445, %v1573
        %v1606 = vadd.f32 %v1446, %v1574
        %v1607 = vadd.f32 %v1447, %v1575
        %v1608 = vadd.f32 %v1448, %v1576
        %v1609 = vadd.f32 %v1449, %v1577
        %v1610 = vadd.f32 %v1450, %v1578
        %v1611 = vadd.f32 %v1451, %v1579
        %v1612 = vadd.f32 %v1452, %v1580
        %v1613 = vadd.f32 %v1453, %v1581
        %v1614 = vadd.f32 %v1454, %v1582
        %v1615 = vadd.f32 %v1455, %v1583
        %v1616 = vadd.f32 %v1456, %v1584
        %v1617 = vadd.f32 %v1457, %v1585
        %v1618 = vadd.f32 %v1458, %v1586
        %v1619 = vadd.f32 %v1459, %v1587
        %v1620 = vadd.f32 %v1460, %v1588
        %v1621 = vadd.f32 %v1461, %v1589
        %v1622 = vadd.f32 %v1462, %v598
        %v1623 = vadd.f32 %v1463, %v600
        %v1624 = vadd.f32 %v1464, %v602
        %v1625 = vadd.f32 %v1465, %v604
        %v1626 = vadd.f32 %v1466, %v608
        %v1627 = vadd.f32 %v1467, %v610
        %v1628 = vadd.f32 %v1468, %v612
        %v1629 = vadd.f32 %v1469, %v614
        %v1630 = vadd.f32 %v1470, %v618
        %v1631 = vadd.f32 %v1471, %v620
        %v1632 = vadd.f32 %v1472, %v622
        %v1633 = vadd.f32 %v1473, %v624
        %v1634 = vadd.f32 %v1474, %v628
        %v1635 = vadd.f32 %v1475, %v630
        %v1636 = vadd.f32 %v1476, %v632
        %v1637 = vadd.f32 %v1477, %v634
        %v1638 = vadd.f32 %v1478, %v638
        %v1639 = vadd.f32 %v1479, %v640
        %v1640 = vadd.f32 %v1480, %v642
        %v1641 = vadd.f32 %v1481, %v644
        %v1642 = vadd.f32 %v1482, %v648
        %v1643 = vadd.f32 %v1483, %v650
        %v1644 = vadd.f32 %v1484, %v652
        %v1645 = vadd.f32 %v1485, %v654
        %v1646 = vadd.f32 %v1486, %v658
        %v1647 = vadd.f32 %v1487, %v660
        %v1648 = vadd.f32 %v1488, %v662
        %v1649 = vadd.f32 %v1489, %v664
        %v1650 = vadd.f32 %v1490, %v668
        %v1651 = vadd.f32 %v1491, %v670
        %v1652 = vadd.f32 %v1492, %v672
        %v1653 = vadd.f32 %v1493, %v674
        %vm1654 = vcmp.lt.f32.partialorder %v1622, 1.0
        %vm1655 = vcmp.lt.f32.partialorder %v1623, 1.0
        %vm1656 = vcmp.lt.f32.partialorder %v1624, 1.0
        %vm1657 = vcmp.lt.f32.partialorder %v1625, 1.0
        %vm1658 = vcmp.lt.f32.partialorder %v1626, 1.0
        %vm1659 = vcmp.lt.f32.partialorder %v1627, 1.0
        %vm1660 = vcmp.lt.f32.partialorder %v1628, 1.0
        %vm1661 = vcmp.lt.f32.partialorder %v1629, 1.0
        %vm1662 = vcmp.lt.f32.partialorder %v1630, 1.0
        %vm1663 = vcmp.lt.f32.partialorder %v1631, 1.0
        %vm1664 = vcmp.lt.f32.partialorder %v1632, 1.0
        %vm1665 = vcmp.lt.f32.partialorder %v1633, 1.0
        %vm1666 = vcmp.lt.f32.partialorder %v1634, 1.0
        %vm1667 = vcmp.lt.f32.partialorder %v1635, 1.0
        %vm1668 = vcmp.lt.f32.partialorder %v1636, 1.0
        %vm1669 = vcmp.lt.f32.partialorder %v1637, 1.0
        %vm1670 = vcmp.lt.f32.partialorder %v1638, 1.0
        %vm1671 = vcmp.lt.f32.partialorder %v1639, 1.0
        %vm1672 = vcmp.lt.f32.partialorder %v1640, 1.0
        %vm1673 = vcmp.lt.f32.partialorder %v1641, 1.0
        %vm1674 = vcmp.lt.f32.partialorder %v1642, 1.0
        %vm1675 = vcmp.lt.f32.partialorder %v1643, 1.0
        %vm1676 = vcmp.lt.f32.partialorder %v1644, 1.0
        %vm1677 = vcmp.lt.f32.partialorder %v1645, 1.0
        %vm1678 = vcmp.lt.f32.partialorder %v1646, 1.0
        %vm1679 = vcmp.lt.f32.partialorder %v1647, 1.0
        %vm1680 = vcmp.lt.f32.partialorder %v1648, 1.0
        %vm1681 = vcmp.lt.f32.partialorder %v1649, 1.0
        %vm1682 = vcmp.lt.f32.partialorder %v1650, 1.0
        %vm1683 = vcmp.lt.f32.partialorder %v1651, 1.0
        %vm1684 = vcmp.lt.f32.partialorder %v1652, 1.0
        %vm1685 = vcmp.lt.f32.partialorder %v1653, 1.0
        %v1686 = vsel %vm1654, 1, 0
        %v1687 = vsel %vm1655, 1, 0
        %v1688 = vsel %vm1656, 1, 0
        %v1689 = vsel %vm1657, 1, 0
        %v1690 = vsel %vm1658, 1, 0
        %v1691 = vsel %vm1659, 1, 0
        %v1692 = vsel %vm1660, 1, 0
        %v1693 = vsel %vm1661, 1, 0
        %v1694 = vsel %vm1662, 1, 0
        %v1695 = vsel %vm1663, 1, 0
        %v1696 = vsel %vm1664, 1, 0
        %v1697 = vsel %vm1665, 1, 0
        %v1698 = vsel %vm1666, 1, 0
        %v1699 = vsel %vm1667, 1, 0
        %v1700 = vsel %vm1668, 1, 0
        %v1701 = vsel %vm1669, 1, 0
        %v1702 = vsel %vm1670, 1, 0
        %v1703 = vsel %vm1671, 1, 0
        %v1704 = vsel %vm1672, 1, 0
        %v1705 = vsel %vm1673, 1, 0
        %v1706 = vsel %vm1674, 1, 0
        %v1707 = vsel %vm1675, 1, 0
        %v1708 = vsel %vm1676, 1, 0
        %v1709 = vsel %vm1677, 1, 0
        %v1710 = vsel %vm1678, 1, 0
        %v1711 = vsel %vm1679, 1, 0
        %v1712 = vsel %vm1680, 1, 0
        %v1713 = vsel %vm1681, 1, 0
        %v1714 = vsel %vm1682, 1, 0
        %v1715 = vsel %vm1683, 1, 0
        %v1716 = vsel %vm1684, 1, 0
        %v1717 = vsel %vm1685, 1, 0
        %v1718 = vcvt.s32.f32 %v1686
        %v1719 = vcvt.s32.f32 %v1687
        %v1720 = vcvt.s32.f32 %v1688
        %v1721 = vcvt.s32.f32 %v1689
        %v1722 = vcvt.s32.f32 %v1690
        %v1723 = vcvt.s32.f32 %v1691
        %v1724 = vcvt.s32.f32 %v1692
        %v1725 = vcvt.s32.f32 %v1693
        %v1726 = vcvt.s32.f32 %v1694
        %v1727 = vcvt.s32.f32 %v1695
        %v1728 = vcvt.s32.f32 %v1696
        %v1729 = vcvt.s32.f32 %v1697
        %v1730 = vcvt.s32.f32 %v1698
        %v1731 = vcvt.s32.f32 %v1699
        %v1732 = vcvt.s32.f32 %v1700
        %v1733 = vcvt.s32.f32 %v1701
        %v1734 = vcvt.s32.f32 %v1702
        %v1735 = vcvt.s32.f32 %v1703
        %v1736 = vcvt.s32.f32 %v1704
        %v1737 = vcvt.s32.f32 %v1705
        %v1738 = vcvt.s32.f32 %v1706
        %v1739 = vcvt.s32.f32 %v1707
        %v1740 = vcvt.s32.f32 %v1708
        %v1741 = vcvt.s32.f32 %v1709
        %v1742 = vcvt.s32.f32 %v1710
        %v1743 = vcvt.s32.f32 %v1711
        %v1744 = vcvt.s32.f32 %v1712
        %v1745 = vcvt.s32.f32 %v1713
        %v1746 = vcvt.s32.f32 %v1714
        %v1747 = vcvt.s32.f32 %v1715
        %v1748 = vcvt.s32.f32 %v1716
        %v1749 = vcvt.s32.f32 %v1717
        %v1750 = vadd.f32 %v1590, %v1718
        %v1751 = vadd.f32 %v1591, %v1719
        %v1752 = vadd.f32 %v1592, %v1720
        %v1753 = vadd.f32 %v1593, %v1721
        %v1754 = vadd.f32 %v1594, %v1722
        %v1755 = vadd.f32 %v1595, %v1723
        %v1756 = vadd.f32 %v1596, %v1724
        %v1757 = vadd.f32 %v1597, %v1725
        %v1758 = vadd.f32 %v1598, %v1726
        %v1759 = vadd.f32 %v1599, %v1727
        %v1760 = vadd.f32 %v1600, %v1728
        %v1761 = vadd.f32 %v1601, %v1729
        %v1762 = vadd.f32 %v1602, %v1730
        %v1763 = vadd.f32 %v1603, %v1731
        %v1764 = vadd.f32 %v1604, %v1732
        %v1765 = vadd.f32 %v1605, %v1733
        %v1766 = vadd.f32 %v1606, %v1734
        %v1767 = vadd.f32 %v1607, %v1735
        %v1768 = vadd.f32 %v1608, %v1736
        %v1769 = vadd.f32 %v1609, %v1737
        %v1770 = vadd.f32 %v1610, %v1738
        %v1771 = vadd.f32 %v1611, %v1739
        %v1772 = vadd.f32 %v1612, %v1740
        %v1773 = vadd.f32 %v1613, %v1741
        %v1774 = vadd.f32 %v1614, %v1742
        %v1775 = vadd.f32 %v1615, %v1743
        %v1776 = vadd.f32 %v1616, %v1744
        %v1777 = vadd.f32 %v1617, %v1745
        %v1778 = vadd.f32 %v1618, %v1746
        %v1779 = vadd.f32 %v1619, %v1747
        %v1780 = vadd.f32 %v1620, %v1748
        %v1781 = vadd.f32 %v1621, %v1749
        %v1782 = vadd.f32 %v1622, %v598
        %v1783 = vadd.f32 %v1623, %v600
        %v1784 = vadd.f32 %v1624, %v602
        %v1785 = vadd.f32 %v1625, %v604
        %v1786 = vadd.f32 %v1626, %v608
        %v1787 = vadd.f32 %v1627, %v610
        %v1788 = vadd.f32 %v1628, %v612
        %v1789 = vadd.f32 %v1629, %v614
        %v1790 = vadd.f32 %v1630, %v618
        %v1791 = vadd.f32 %v1631, %v620
        %v1792 = vadd.f32 %v1632, %v622
        %v1793 = vadd.f32 %v1633, %v624
        %v1794 = vadd.f32 %v1634, %v628
        %v1795 = vadd.f32 %v1635, %v630
        %v1796 = vadd.f32 %v1636, %v632
        %v1797 = vadd.f32 %v1637, %v634
        %v1798 = vadd.f32 %v1638, %v638
        %v1799 = vadd.f32 %v1639, %v640
        %v1800 = vadd.f32 %v1640, %v642
        %v1801 = vadd.f32 %v1641, %v644
        %v1802 = vadd.f32 %v1642, %v648
        %v1803 = vadd.f32 %v1643, %v650
        %v1804 = vadd.f32 %v1644, %v652
        %v1805 = vadd.f32 %v1645, %v654
        %v1806 = vadd.f32 %v1646, %v658
        %v1807 = vadd.f32 %v1647, %v660
        %v1808 = vadd.f32 %v1648, %v662
        %v1809 = vadd.f32 %v1649, %v664
        %v1810 = vadd.f32 %v1650, %v668
        %v1811 = vadd.f32 %v1651, %v670
        %v1812 = vadd.f32 %v1652, %v672
        %v1813 = vadd.f32 %v1653, %v674
        %vm1814 = vcmp.lt.f32.partialorder %v1782, 1.0
        %vm1815 = vcmp.lt.f32.partialorder %v1783, 1.0
        %vm1816 = vcmp.lt.f32.partialorder %v1784, 1.0
        %vm1817 = vcmp.lt.f32.partialorder %v1785, 1.0
        %vm1818 = vcmp.lt.f32.partialorder %v1786, 1.0
        %vm1819 = vcmp.lt.f32.partialorder %v1787, 1.0
        %vm1820 = vcmp.lt.f32.partialorder %v1788, 1.0
        %vm1821 = vcmp.lt.f32.partialorder %v1789, 1.0
        %vm1822 = vcmp.lt.f32.partialorder %v1790, 1.0
        %vm1823 = vcmp.lt.f32.partialorder %v1791, 1.0
        %vm1824 = vcmp.lt.f32.partialorder %v1792, 1.0
        %vm1825 = vcmp.lt.f32.partialorder %v1793, 1.0
        %vm1826 = vcmp.lt.f32.partialorder %v1794, 1.0
        %vm1827 = vcmp.lt.f32.partialorder %v1795, 1.0
        %vm1828 = vcmp.lt.f32.partialorder %v1796, 1.0
        %vm1829 = vcmp.lt.f32.partialorder %v1797, 1.0
        %vm1830 = vcmp.lt.f32.partialorder %v1798, 1.0
        %vm1831 = vcmp.lt.f32.partialorder %v1799, 1.0
        %vm1832 = vcmp.lt.f32.partialorder %v1800, 1.0
        %vm1833 = vcmp.lt.f32.partialorder %v1801, 1.0
        %vm1834 = vcmp.lt.f32.partialorder %v1802, 1.0
        %vm1835 = vcmp.lt.f32.partialorder %v1803, 1.0
        %vm1836 = vcmp.lt.f32.partialorder %v1804, 1.0
        %vm1837 = vcmp.lt.f32.partialorder %v1805, 1.0
        %vm1838 = vcmp.lt.f32.partialorder %v1806, 1.0
        %vm1839 = vcmp.lt.f32.partialorder %v1807, 1.0
        %vm1840 = vcmp.lt.f32.partialorder %v1808, 1.0
        %vm1841 = vcmp.lt.f32.partialorder %v1809, 1.0
        %vm1842 = vcmp.lt.f32.partialorder %v1810, 1.0
        %vm1843 = vcmp.lt.f32.partialorder %v1811, 1.0
        %vm1844 = vcmp.lt.f32.partialorder %v1812, 1.0
        %vm1845 = vcmp.lt.f32.partialorder %v1813, 1.0
        %v1846 = vsel %vm1814, 1, 0
        %v1847 = vsel %vm1815, 1, 0
        %v1848 = vsel %vm1816, 1, 0
        %v1849 = vsel %vm1817, 1, 0
        %v1850 = vsel %vm1818, 1, 0
        %v1851 = vsel %vm1819, 1, 0
        %v1852 = vsel %vm1820, 1, 0
        %v1853 = vsel %vm1821, 1, 0
        %v1854 = vsel %vm1822, 1, 0
        %v1855 = vsel %vm1823, 1, 0
        %v1856 = vsel %vm1824, 1, 0
        %v1857 = vsel %vm1825, 1, 0
        %v1858 = vsel %vm1826, 1, 0
        %v1859 = vsel %vm1827, 1, 0
        %v1860 = vsel %vm1828, 1, 0
        %v1861 = vsel %vm1829, 1, 0
        %v1862 = vsel %vm1830, 1, 0
        %v1863 = vsel %vm1831, 1, 0
        %v1864 = vsel %vm1832, 1, 0
        %v1865 = vsel %vm1833, 1, 0
        %v1866 = vsel %vm1834, 1, 0
        %v1867 = vsel %vm1835, 1, 0
        %v1868 = vsel %vm1836, 1, 0
        %v1869 = vsel %vm1837, 1, 0
        %v1870 = vsel %vm1838, 1, 0
        %v1871 = vsel %vm1839, 1, 0
        %v1872 = vsel %vm1840, 1, 0
        %v1873 = vsel %vm1841, 1, 0
        %v1874 = vsel %vm1842, 1, 0
        %v1875 = vsel %vm1843, 1, 0
        %v1876 = vsel %vm1844, 1, 0
        %v1877 = vsel %vm1845, 1, 0
        %v1878 = vcvt.s32.f32 %v1846
        %v1879 = vcvt.s32.f32 %v1847
        %v1880 = vcvt.s32.f32 %v1848
        %v1881 = vcvt.s32.f32 %v1849
        %v1882 = vcvt.s32.f32 %v1850
        %v1883 = vcvt.s32.f32 %v1851
        %v1884 = vcvt.s32.f32 %v1852
        %v1885 = vcvt.s32.f32 %v1853
        %v1886 = vcvt.s32.f32 %v1854
        %v1887 = vcvt.s32.f32 %v1855
        %v1888 = vcvt.s32.f32 %v1856
        %v1889 = vcvt.s32.f32 %v1857
        %v1890 = vcvt.s32.f32 %v1858
        %v1891 = vcvt.s32.f32 %v1859
        %v1892 = vcvt.s32.f32 %v1860
        %v1893 = vcvt.s32.f32 %v1861
        %v1894 = vcvt.s32.f32 %v1862
        %v1895 = vcvt.s32.f32 %v1863
        %v1896 = vcvt.s32.f32 %v1864
        %v1897 = vcvt.s32.f32 %v1865
        %v1898 = vcvt.s32.f32 %v1866
        %v1899 = vcvt.s32.f32 %v1867
        %v1900 = vcvt.s32.f32 %v1868
        %v1901 = vcvt.s32.f32 %v1869
        %v1902 = vcvt.s32.f32 %v1870
        %v1903 = vcvt.s32.f32 %v1871
        %v1904 = vcvt.s32.f32 %v1872
        %v1905 = vcvt.s32.f32 %v1873
        %v1906 = vcvt.s32.f32 %v1874
        %v1907 = vcvt.s32.f32 %v1875
        %v1908 = vcvt.s32.f32 %v1876
        %v1909 = vcvt.s32.f32 %v1877
        %v1910 = vadd.f32 %v1750, %v1878
        %v1911 = vadd.f32 %v1751, %v1879
        %v1912 = vadd.f32 %v1752, %v1880
        %v1913 = vadd.f32 %v1753, %v1881
        %v1914 = vadd.f32 %v1754, %v1882
        %v1915 = vadd.f32 %v1755, %v1883
        %v1916 = vadd.f32 %v1756, %v1884
        %v1917 = vadd.f32 %v1757, %v1885
        %v1918 = vadd.f32 %v1758, %v1886
        %v1919 = vadd.f32 %v1759, %v1887
        %v1920 = vadd.f32 %v1760, %v1888
        %v1921 = vadd.f32 %v1761, %v1889
        %v1922 = vadd.f32 %v1762, %v1890
        %v1923 = vadd.f32 %v1763, %v1891
        %v1924 = vadd.f32 %v1764, %v1892
        %v1925 = vadd.f32 %v1765, %v1893
        %v1926 = vadd.f32 %v1766, %v1894
        %v1927 = vadd.f32 %v1767, %v1895
        %v1928 = vadd.f32 %v1768, %v1896
        %v1929 = vadd.f32 %v1769, %v1897
        %v1930 = vadd.f32 %v1770, %v1898
        %v1931 = vadd.f32 %v1771, %v1899
        %v1932 = vadd.f32 %v1772, %v1900
        %v1933 = vadd.f32 %v1773, %v1901
        %v1934 = vadd.f32 %v1774, %v1902
        %v1935 = vadd.f32 %v1775, %v1903
        %v1936 = vadd.f32 %v1776, %v1904
        %v1937 = vadd.f32 %v1777, %v1905
        %v1938 = vadd.f32 %v1778, %v1906
        %v1939 = vadd.f32 %v1779, %v1907
        %v1940 = vadd.f32 %v1780, %v1908
        %v1941 = vadd.f32 %v1781, %v1909
        %v1942 = vadd.f32 %v1782, %v598
        %v1943 = vadd.f32 %v1783, %v600
        %v1944 = vadd.f32 %v1784, %v602
        %v1945 = vadd.f32 %v1785, %v604
        %v1946 = vadd.f32 %v1786, %v608
        %v1947 = vadd.f32 %v1787, %v610
        %v1948 = vadd.f32 %v1788, %v612
        %v1949 = vadd.f32 %v1789, %v614
        %v1950 = vadd.f32 %v1790, %v618
        %v1951 = vadd.f32 %v1791, %v620
        %v1952 = vadd.f32 %v1792, %v622
        %v1953 = vadd.f32 %v1793, %v624
        %v1954 = vadd.f32 %v1794, %v628
        %v1955 = vadd.f32 %v1795, %v630
        %v1956 = vadd.f32 %v1796, %v632
        %v1957 = vadd.f32 %v1797, %v634
        %v1958 = vadd.f32 %v1798, %v638
        %v1959 = vadd.f32 %v1799, %v640
        %v1960 = vadd.f32 %v1800, %v642
        %v1961 = vadd.f32 %v1801, %v644
        %v1962 = vadd.f32 %v1802, %v648
        %v1963 = vadd.f32 %v1803, %v650
        %v1964 = vadd.f32 %v1804, %v652
        %v1965 = vadd.f32 %v1805, %v654
        %v1966 = vadd.f32 %v1806, %v658
        %v1967 = vadd.f32 %v1807, %v660
        %v1968 = vadd.f32 %v1808, %v662
        %v1969 = vadd.f32 %v1809, %v664
        %v1970 = vadd.f32 %v1810, %v668
        %v1971 = vadd.f32 %v1811, %v670
        %v1972 = vadd.f32 %v1812, %v672
        %v1973 = vadd.f32 %v1813, %v674
        %vm1974 = vcmp.lt.f32.partialorder %v1942, 1.0
        %vm1975 = vcmp.lt.f32.partialorder %v1943, 1.0
        %vm1976 = vcmp.lt.f32.partialorder %v1944, 1.0
        %vm1977 = vcmp.lt.f32.partialorder %v1945, 1.0
        %vm1978 = vcmp.lt.f32.partialorder %v1946, 1.0
        %vm1979 = vcmp.lt.f32.partialorder %v1947, 1.0
        %vm1980 = vcmp.lt.f32.partialorder %v1948, 1.0
        %vm1981 = vcmp.lt.f32.partialorder %v1949, 1.0
        %vm1982 = vcmp.lt.f32.partialorder %v1950, 1.0
        %vm1983 = vcmp.lt.f32.partialorder %v1951, 1.0
        %vm1984 = vcmp.lt.f32.partialorder %v1952, 1.0
        %vm1985 = vcmp.lt.f32.partialorder %v1953, 1.0
        %vm1986 = vcmp.lt.f32.partialorder %v1954, 1.0
        %vm1987 = vcmp.lt.f32.partialorder %v1955, 1.0
        %vm1988 = vcmp.lt.f32.partialorder %v1956, 1.0
        %vm1989 = vcmp.lt.f32.partialorder %v1957, 1.0
        %vm1990 = vcmp.lt.f32.partialorder %v1958, 1.0
        %vm1991 = vcmp.lt.f32.partialorder %v1959, 1.0
        %vm1992 = vcmp.lt.f32.partialorder %v1960, 1.0
        %vm1993 = vcmp.lt.f32.partialorder %v1961, 1.0
        %vm1994 = vcmp.lt.f32.partialorder %v1962, 1.0
        %vm1995 = vcmp.lt.f32.partialorder %v1963, 1.0
        %vm1996 = vcmp.lt.f32.partialorder %v1964, 1.0
        %vm1997 = vcmp.lt.f32.partialorder %v1965, 1.0
        %vm1998 = vcmp.lt.f32.partialorder %v1966, 1.0
        %vm1999 = vcmp.lt.f32.partialorder %v1967, 1.0
        %vm2000 = vcmp.lt.f32.partialorder %v1968, 1.0
        %vm2001 = vcmp.lt.f32.partialorder %v1969, 1.0
        %vm2002 = vcmp.lt.f32.partialorder %v1970, 1.0
        %vm2003 = vcmp.lt.f32.partialorder %v1971, 1.0
        %vm2004 = vcmp.lt.f32.partialorder %v1972, 1.0
        %vm2005 = vcmp.lt.f32.partialorder %v1973, 1.0
        %v2006 = vsel %vm1974, 1, 0
        %v2007 = vsel %vm1975, 1, 0
        %v2008 = vsel %vm1976, 1, 0
        %v2009 = vsel %vm1977, 1, 0
        %v2010 = vsel %vm1978, 1, 0
        %v2011 = vsel %vm1979, 1, 0
        %v2012 = vsel %vm1980, 1, 0
        %v2013 = vsel %vm1981, 1, 0
        %v2014 = vsel %vm1982, 1, 0
        %v2015 = vsel %vm1983, 1, 0
        %v2016 = vsel %vm1984, 1, 0
        %v2017 = vsel %vm1985, 1, 0
        %v2018 = vsel %vm1986, 1, 0
        %v2019 = vsel %vm1987, 1, 0
        %v2020 = vsel %vm1988, 1, 0
        %v2021 = vsel %vm1989, 1, 0
        %v2022 = vsel %vm1990, 1, 0
        %v2023 = vsel %vm1991, 1, 0
        %v2024 = vsel %vm1992, 1, 0
        %v2025 = vsel %vm1993, 1, 0
        %v2026 = vsel %vm1994, 1, 0
        %v2027 = vsel %vm1995, 1, 0
        %v2028 = vsel %vm1996, 1, 0
        %v2029 = vsel %vm1997, 1, 0
        %v2030 = vsel %vm1998, 1, 0
        %v2031 = vsel %vm1999, 1, 0
        %v2032 = vsel %vm2000, 1, 0
        %v2033 = vsel %vm2001, 1, 0
        %v2034 = vsel %vm2002, 1, 0
        %v2035 = vsel %vm2003, 1, 0
        %v2036 = vsel %vm2004, 1, 0
        %v2037 = vsel %vm2005, 1, 0
        %v2038 = vcvt.s32.f32 %v2006
        %v2039 = vcvt.s32.f32 %v2007
        %v2040 = vcvt.s32.f32 %v2008
        %v2041 = vcvt.s32.f32 %v2009
        %v2042 = vcvt.s32.f32 %v2010
        %v2043 = vcvt.s32.f32 %v2011
        %v2044 = vcvt.s32.f32 %v2012
        %v2045 = vcvt.s32.f32 %v2013
        %v2046 = vcvt.s32.f32 %v2014
        %v2047 = vcvt.s32.f32 %v2015
        %v2048 = vcvt.s32.f32 %v2016
        %v2049 = vcvt.s32.f32 %v2017
        %v2050 = vcvt.s32.f32 %v2018
        %v2051 = vcvt.s32.f32 %v2019
        %v2052 = vcvt.s32.f32 %v2020
        %v2053 = vcvt.s32.f32 %v2021
        %v2054 = vcvt.s32.f32 %v2022
        %v2055 = vcvt.s32.f32 %v2023
        %v2056 = vcvt.s32.f32 %v2024
        %v2057 = vcvt.s32.f32 %v2025
        %v2058 = vcvt.s32.f32 %v2026
        %v2059 = vcvt.s32.f32 %v2027
        %v2060 = vcvt.s32.f32 %v2028
        %v2061 = vcvt.s32.f32 %v2029
        %v2062 = vcvt.s32.f32 %v2030
        %v2063 = vcvt.s32.f32 %v2031
        %v2064 = vcvt.s32.f32 %v2032
        %v2065 = vcvt.s32.f32 %v2033
        %v2066 = vcvt.s32.f32 %v2034
        %v2067 = vcvt.s32.f32 %v2035
        %v2068 = vcvt.s32.f32 %v2036
        %v2069 = vcvt.s32.f32 %v2037
        %v2070 = vadd.f32 %v1910, %v2038
        %v2071 = vadd.f32 %v1911, %v2039
        %v2072 = vadd.f32 %v1912, %v2040
        %v2073 = vadd.f32 %v1913, %v2041
        %v2074 = vadd.f32 %v1914, %v2042
        %v2075 = vadd.f32 %v1915, %v2043
        %v2076 = vadd.f32 %v1916, %v2044
        %v2077 = vadd.f32 %v1917, %v2045
        %v2078 = vadd.f32 %v1918, %v2046
        %v2079 = vadd.f32 %v1919, %v2047
        %v2080 = vadd.f32 %v1920, %v2048
        %v2081 = vadd.f32 %v1921, %v2049
        %v2082 = vadd.f32 %v1922, %v2050
        %v2083 = vadd.f32 %v1923, %v2051
        %v2084 = vadd.f32 %v1924, %v2052
        %v2085 = vadd.f32 %v1925, %v2053
        %v2086 = vadd.f32 %v1926, %v2054
        %v2087 = vadd.f32 %v1927, %v2055
        %v2088 = vadd.f32 %v1928, %v2056
        %v2089 = vadd.f32 %v1929, %v2057
        %v2090 = vadd.f32 %v1930, %v2058
        %v2091 = vadd.f32 %v1931, %v2059
        %v2092 = vadd.f32 %v1932, %v2060
        %v2093 = vadd.f32 %v1933, %v2061
        %v2094 = vadd.f32 %v1934, %v2062
        %v2095 = vadd.f32 %v1935, %v2063
        %v2096 = vadd.f32 %v1936, %v2064
        %v2097 = vadd.f32 %v1937, %v2065
        %v2098 = vadd.f32 %v1938, %v2066
        %v2099 = vadd.f32 %v1939, %v2067
        %v2100 = vadd.f32 %v1940, %v2068
        %v2101 = vadd.f32 %v1941, %v2069
        %v2102 = vadd.f32 %v1942, %v598
        %v2103 = vadd.f32 %v1943, %v600
        %v2104 = vadd.f32 %v1944, %v602
        %v2105 = vadd.f32 %v1945, %v604
        %v2106 = vadd.f32 %v1946, %v608
        %v2107 = vadd.f32 %v1947, %v610
        %v2108 = vadd.f32 %v1948, %v612
        %v2109 = vadd.f32 %v1949, %v614
        %v2110 = vadd.f32 %v1950, %v618
        %v2111 = vadd.f32 %v1951, %v620
        %v2112 = vadd.f32 %v1952, %v622
        %v2113 = vadd.f32 %v1953, %v624
        %v2114 = vadd.f32 %v1954, %v628
        %v2115 = vadd.f32 %v1955, %v630
        %v2116 = vadd.f32 %v1956, %v632
        %v2117 = vadd.f32 %v1957, %v634
        %v2118 = vadd.f32 %v1958, %v638
        %v2119 = vadd.f32 %v1959, %v640
        %v2120 = vadd.f32 %v1960, %v642
        %v2121 = vadd.f32 %v1961, %v644
        %v2122 = vadd.f32 %v1962, %v648
        %v2123 = vadd.f32 %v1963, %v650
        %v2124 = vadd.f32 %v1964, %v652
        %v2125 = vadd.f32 %v1965, %v654
        %v2126 = vadd.f32 %v1966, %v658
        %v2127 = vadd.f32 %v1967, %v660
        %v2128 = vadd.f32 %v1968, %v662
        %v2129 = vadd.f32 %v1969, %v664
        %v2130 = vadd.f32 %v1970, %v668
        %v2131 = vadd.f32 %v1971, %v670
        %v2132 = vadd.f32 %v1972, %v672
        %v2133 = vadd.f32 %v1973, %v674
        %vm2134 = vcmp.lt.f32.partialorder %v2102, 1.0
        %vm2135 = vcmp.lt.f32.partialorder %v2103, 1.0
        %vm2136 = vcmp.lt.f32.partialorder %v2104, 1.0
        %vm2137 = vcmp.lt.f32.partialorder %v2105, 1.0
        %vm2138 = vcmp.lt.f32.partialorder %v2106, 1.0
        %vm2139 = vcmp.lt.f32.partialorder %v2107, 1.0
        %vm2140 = vcmp.lt.f32.partialorder %v2108, 1.0
        %vm2141 = vcmp.lt.f32.partialorder %v2109, 1.0
        %vm2142 = vcmp.lt.f32.partialorder %v2110, 1.0
        %vm2143 = vcmp.lt.f32.partialorder %v2111, 1.0
        %vm2144 = vcmp.lt.f32.partialorder %v2112, 1.0
        %vm2145 = vcmp.lt.f32.partialorder %v2113, 1.0
        %vm2146 = vcmp.lt.f32.partialorder %v2114, 1.0
        %vm2147 = vcmp.lt.f32.partialorder %v2115, 1.0
        %vm2148 = vcmp.lt.f32.partialorder %v2116, 1.0
        %vm2149 = vcmp.lt.f32.partialorder %v2117, 1.0
        %vm2150 = vcmp.lt.f32.partialorder %v2118, 1.0
        %vm2151 = vcmp.lt.f32.partialorder %v2119, 1.0
        %vm2152 = vcmp.lt.f32.partialorder %v2120, 1.0
        %vm2153 = vcmp.lt.f32.partialorder %v2121, 1.0
        %vm2154 = vcmp.lt.f32.partialorder %v2122, 1.0
        %vm2155 = vcmp.lt.f32.partialorder %v2123, 1.0
        %vm2156 = vcmp.lt.f32.partialorder %v2124, 1.0
        %vm2157 = vcmp.lt.f32.partialorder %v2125, 1.0
        %vm2158 = vcmp.lt.f32.partialorder %v2126, 1.0
        %vm2159 = vcmp.lt.f32.partialorder %v2127, 1.0
        %vm2160 = vcmp.lt.f32.partialorder %v2128, 1.0
        %vm2161 = vcmp.lt.f32.partialorder %v2129, 1.0
        %vm2162 = vcmp.lt.f32.partialorder %v2130, 1.0
        %vm2163 = vcmp.lt.f32.partialorder %v2131, 1.0
        %vm2164 = vcmp.lt.f32.partialorder %v2132, 1.0
        %vm2165 = vcmp.lt.f32.partialorder %v2133, 1.0
        %v2166 = vsel %vm2134, 1, 0
        %v2167 = vsel %vm2135, 1, 0
        %v2168 = vsel %vm2136, 1, 0
        %v2169 = vsel %vm2137, 1, 0
        %v2170 = vsel %vm2138, 1, 0
        %v2171 = vsel %vm2139, 1, 0
        %v2172 = vsel %vm2140, 1, 0
        %v2173 = vsel %vm2141, 1, 0
        %v2174 = vsel %vm2142, 1, 0
        %v2175 = vsel %vm2143, 1, 0
        %v2176 = vsel %vm2144, 1, 0
        %v2177 = vsel %vm2145, 1, 0
        %v2178 = vsel %vm2146, 1, 0
        %v2179 = vsel %vm2147, 1, 0
        %v2180 = vsel %vm2148, 1, 0
        %v2181 = vsel %vm2149, 1, 0
        %v2182 = vsel %vm2150, 1, 0
        %v2183 = vsel %vm2151, 1, 0
        %v2184 = vsel %vm2152, 1, 0
        %v2185 = vsel %vm2153, 1, 0
        %v2186 = vsel %vm2154, 1, 0
        %v2187 = vsel %vm2155, 1, 0
        %v2188 = vsel %vm2156, 1, 0
        %v2189 = vsel %vm2157, 1, 0
        %v2190 = vsel %vm2158, 1, 0
        %v2191 = vsel %vm2159, 1, 0
        %v2192 = vsel %vm2160, 1, 0
        %v2193 = vsel %vm2161, 1, 0
        %v2194 = vsel %vm2162, 1, 0
        %v2195 = vsel %vm2163, 1, 0
        %v2196 = vsel %vm2164, 1, 0
        %v2197 = vsel %vm2165, 1, 0
        %v2198 = vcvt.s32.f32 %v2166
        %v2199 = vcvt.s32.f32 %v2167
        %v2200 = vcvt.s32.f32 %v2168
        %v2201 = vcvt.s32.f32 %v2169
        %v2202 = vcvt.s32.f32 %v2170
        %v2203 = vcvt.s32.f32 %v2171
        %v2204 = vcvt.s32.f32 %v2172
        %v2205 = vcvt.s32.f32 %v2173
        %v2206 = vcvt.s32.f32 %v2174
        %v2207 = vcvt.s32.f32 %v2175
        %v2208 = vcvt.s32.f32 %v2176
        %v2209 = vcvt.s32.f32 %v2177
        %v2210 = vcvt.s32.f32 %v2178
        %v2211 = vcvt.s32.f32 %v2179
        %v2212 = vcvt.s32.f32 %v2180
        %v2213 = vcvt.s32.f32 %v2181
        %v2214 = vcvt.s32.f32 %v2182
        %v2215 = vcvt.s32.f32 %v2183
        %v2216 = vcvt.s32.f32 %v2184
        %v2217 = vcvt.s32.f32 %v2185
        %v2218 = vcvt.s32.f32 %v2186
        %v2219 = vcvt.s32.f32 %v2187
        %v2220 = vcvt.s32.f32 %v2188
        %v2221 = vcvt.s32.f32 %v2189
        %v2222 = vcvt.s32.f32 %v2190
        %v2223 = vcvt.s32.f32 %v2191
        %v2224 = vcvt.s32.f32 %v2192
        %v2225 = vcvt.s32.f32 %v2193
        %v2226 = vcvt.s32.f32 %v2194
        %v2227 = vcvt.s32.f32 %v2195
        %v2228 = vcvt.s32.f32 %v2196
        %v2229 = vcvt.s32.f32 %v2197
        %v2230 = vadd.f32 %v2070, %v2198
        %v2231 = vadd.f32 %v2071, %v2199
        %v2232 = vadd.f32 %v2072, %v2200
        %v2233 = vadd.f32 %v2073, %v2201
        %v2234 = vadd.f32 %v2074, %v2202
        %v2235 = vadd.f32 %v2075, %v2203
        %v2236 = vadd.f32 %v2076, %v2204
        %v2237 = vadd.f32 %v2077, %v2205
        %v2238 = vadd.f32 %v2078, %v2206
        %v2239 = vadd.f32 %v2079, %v2207
        %v2240 = vadd.f32 %v2080, %v2208
        %v2241 = vadd.f32 %v2081, %v2209
        %v2242 = vadd.f32 %v2082, %v2210
        %v2243 = vadd.f32 %v2083, %v2211
        %v2244 = vadd.f32 %v2084, %v2212
        %v2245 = vadd.f32 %v2085, %v2213
        %v2246 = vadd.f32 %v2086, %v2214
        %v2247 = vadd.f32 %v2087, %v2215
        %v2248 = vadd.f32 %v2088, %v2216
        %v2249 = vadd.f32 %v2089, %v2217
        %v2250 = vadd.f32 %v2090, %v2218
        %v2251 = vadd.f32 %v2091, %v2219
        %v2252 = vadd.f32 %v2092, %v2220
        %v2253 = vadd.f32 %v2093, %v2221
        %v2254 = vadd.f32 %v2094, %v2222
        %v2255 = vadd.f32 %v2095, %v2223
        %v2256 = vadd.f32 %v2096, %v2224
        %v2257 = vadd.f32 %v2097, %v2225
        %v2258 = vadd.f32 %v2098, %v2226
        %v2259 = vadd.f32 %v2099, %v2227
        %v2260 = vadd.f32 %v2100, %v2228
        %v2261 = vadd.f32 %v2101, %v2229
        %v2262 = vadd.f32 %v2102, %v598
        %v2263 = vadd.f32 %v2103, %v600
        %v2264 = vadd.f32 %v2104, %v602
        %v2265 = vadd.f32 %v2105, %v604
        %v2266 = vadd.f32 %v2106, %v608
        %v2267 = vadd.f32 %v2107, %v610
        %v2268 = vadd.f32 %v2108, %v612
        %v2269 = vadd.f32 %v2109, %v614
        %v2270 = vadd.f32 %v2110, %v618
        %v2271 = vadd.f32 %v2111, %v620
        %v2272 = vadd.f32 %v2112, %v622
        %v2273 = vadd.f32 %v2113, %v624
        %v2274 = vadd.f32 %v2114, %v628
        %v2275 = vadd.f32 %v2115, %v630
        %v2276 = vadd.f32 %v2116, %v632
        %v2277 = vadd.f32 %v2117, %v634
        %v2278 = vadd.f32 %v2118, %v638
        %v2279 = vadd.f32 %v2119, %v640
        %v2280 = vadd.f32 %v2120, %v642
        %v2281 = vadd.f32 %v2121, %v644
        %v2282 = vadd.f32 %v2122, %v648
        %v2283 = vadd.f32 %v2123, %v650
        %v2284 = vadd.f32 %v2124, %v652
        %v2285 = vadd.f32 %v2125, %v654
        %v2286 = vadd.f32 %v2126, %v658
        %v2287 = vadd.f32 %v2127, %v660
        %v2288 = vadd.f32 %v2128, %v662
        %v2289 = vadd.f32 %v2129, %v664
        %v2290 = vadd.f32 %v2130, %v668
        %v2291 = vadd.f32 %v2131, %v670
        %v2292 = vadd.f32 %v2132, %v672
        %v2293 = vadd.f32 %v2133, %v674
        %vm2294 = vcmp.lt.f32.partialorder %v2262, 1.0
        %vm2295 = vcmp.lt.f32.partialorder %v2263, 1.0
        %vm2296 = vcmp.lt.f32.partialorder %v2264, 1.0
        %vm2297 = vcmp.lt.f32.partialorder %v2265, 1.0
        %vm2298 = vcmp.lt.f32.partialorder %v2266, 1.0
        %vm2299 = vcmp.lt.f32.partialorder %v2267, 1.0
        %vm2300 = vcmp.lt.f32.partialorder %v2268, 1.0
        %vm2301 = vcmp.lt.f32.partialorder %v2269, 1.0
        %vm2302 = vcmp.lt.f32.partialorder %v2270, 1.0
        %vm2303 = vcmp.lt.f32.partialorder %v2271, 1.0
        %vm2304 = vcmp.lt.f32.partialorder %v2272, 1.0
        %vm2305 = vcmp.lt.f32.partialorder %v2273, 1.0
        %vm2306 = vcmp.lt.f32.partialorder %v2274, 1.0
        %vm2307 = vcmp.lt.f32.partialorder %v2275, 1.0
        %vm2308 = vcmp.lt.f32.partialorder %v2276, 1.0
        %vm2309 = vcmp.lt.f32.partialorder %v2277, 1.0
        %vm2310 = vcmp.lt.f32.partialorder %v2278, 1.0
        %vm2311 = vcmp.lt.f32.partialorder %v2279, 1.0
        %vm2312 = vcmp.lt.f32.partialorder %v2280, 1.0
        %vm2313 = vcmp.lt.f32.partialorder %v2281, 1.0
        %vm2314 = vcmp.lt.f32.partialorder %v2282, 1.0
        %vm2315 = vcmp.lt.f32.partialorder %v2283, 1.0
        %vm2316 = vcmp.lt.f32.partialorder %v2284, 1.0
        %vm2317 = vcmp.lt.f32.partialorder %v2285, 1.0
        %vm2318 = vcmp.lt.f32.partialorder %v2286, 1.0
        %vm2319 = vcmp.lt.f32.partialorder %v2287, 1.0
        %vm2320 = vcmp.lt.f32.partialorder %v2288, 1.0
        %vm2321 = vcmp.lt.f32.partialorder %v2289, 1.0
        %vm2322 = vcmp.lt.f32.partialorder %v2290, 1.0
        %vm2323 = vcmp.lt.f32.partialorder %v2291, 1.0
        %vm2324 = vcmp.lt.f32.partialorder %v2292, 1.0
        %vm2325 = vcmp.lt.f32.partialorder %v2293, 1.0
        %v2326 = vsel %vm2294, 1, 0
        %v2327 = vsel %vm2295, 1, 0
        %v2328 = vsel %vm2296, 1, 0
        %v2329 = vsel %vm2297, 1, 0
        %v2330 = vsel %vm2298, 1, 0
        %v2331 = vsel %vm2299, 1, 0
        %v2332 = vsel %vm2300, 1, 0
        %v2333 = vsel %vm2301, 1, 0
        %v2334 = vsel %vm2302, 1, 0
        %v2335 = vsel %vm2303, 1, 0
        %v2336 = vsel %vm2304, 1, 0
        %v2337 = vsel %vm2305, 1, 0
        %v2338 = vsel %vm2306, 1, 0
        %v2339 = vsel %vm2307, 1, 0
        %v2340 = vsel %vm2308, 1, 0
        %v2341 = vsel %vm2309, 1, 0
        %v2342 = vsel %vm2310, 1, 0
        %v2343 = vsel %vm2311, 1, 0
        %v2344 = vsel %vm2312, 1, 0
        %v2345 = vsel %vm2313, 1, 0
        %v2346 = vsel %vm2314, 1, 0
        %v2347 = vsel %vm2315, 1, 0
        %v2348 = vsel %vm2316, 1, 0
        %v2349 = vsel %vm2317, 1, 0
        %v2350 = vsel %vm2318, 1, 0
        %v2351 = vsel %vm2319, 1, 0
        %v2352 = vsel %vm2320, 1, 0
        %v2353 = vsel %vm2321, 1, 0
        %v2354 = vsel %vm2322, 1, 0
        %v2355 = vsel %vm2323, 1, 0
        %v2356 = vsel %vm2324, 1, 0
        %v2357 = vsel %vm2325, 1, 0
        %v2358 = vcvt.s32.f32 %v2326
        %v2359 = vcvt.s32.f32 %v2327
        %v2360 = vcvt.s32.f32 %v2328
        %v2361 = vcvt.s32.f32 %v2329
        %v2362 = vcvt.s32.f32 %v2330
        %v2363 = vcvt.s32.f32 %v2331
        %v2364 = vcvt.s32.f32 %v2332
        %v2365 = vcvt.s32.f32 %v2333
        %v2366 = vcvt.s32.f32 %v2334
        %v2367 = vcvt.s32.f32 %v2335
        %v2368 = vcvt.s32.f32 %v2336
        %v2369 = vcvt.s32.f32 %v2337
        %v2370 = vcvt.s32.f32 %v2338
        %v2371 = vcvt.s32.f32 %v2339
        %v2372 = vcvt.s32.f32 %v2340
        %v2373 = vcvt.s32.f32 %v2341
        %v2374 = vcvt.s32.f32 %v2342
        %v2375 = vcvt.s32.f32 %v2343
        %v2376 = vcvt.s32.f32 %v2344
        %v2377 = vcvt.s32.f32 %v2345
        %v2378 = vcvt.s32.f32 %v2346
        %v2379 = vcvt.s32.f32 %v2347
        %v2380 = vcvt.s32.f32 %v2348
        %v2381 = vcvt.s32.f32 %v2349
        %v2382 = vcvt.s32.f32 %v2350
        %v2383 = vcvt.s32.f32 %v2351
        %v2384 = vcvt.s32.f32 %v2352
        %v2385 = vcvt.s32.f32 %v2353
        %v2386 = vcvt.s32.f32 %v2354
        %v2387 = vcvt.s32.f32 %v2355
        %v2388 = vcvt.s32.f32 %v2356
        %v2389 = vcvt.s32.f32 %v2357
        %v2390 = vadd.f32 %v2230, %v2358
        %v2391 = vadd.f32 %v2231, %v2359
        %v2392 = vadd.f32 %v2232, %v2360
        %v2393 = vadd.f32 %v2233, %v2361
        %v2394 = vadd.f32 %v2234, %v2362
        %v2395 = vadd.f32 %v2235, %v2363
        %v2396 = vadd.f32 %v2236, %v2364
        %v2397 = vadd.f32 %v2237, %v2365
        %v2398 = vadd.f32 %v2238, %v2366
        %v2399 = vadd.f32 %v2239, %v2367
        %v2400 = vadd.f32 %v2240, %v2368
        %v2401 = vadd.f32 %v2241, %v2369
        %v2402 = vadd.f32 %v2242, %v2370
        %v2403 = vadd.f32 %v2243, %v2371
        %v2404 = vadd.f32 %v2244, %v2372
        %v2405 = vadd.f32 %v2245, %v2373
        %v2406 = vadd.f32 %v2246, %v2374
        %v2407 = vadd.f32 %v2247, %v2375
        %v2408 = vadd.f32 %v2248, %v2376
        %v2409 = vadd.f32 %v2249, %v2377
        %v2410 = vadd.f32 %v2250, %v2378
        %v2411 = vadd.f32 %v2251, %v2379
        %v2412 = vadd.f32 %v2252, %v2380
        %v2413 = vadd.f32 %v2253, %v2381
        %v2414 = vadd.f32 %v2254, %v2382
        %v2415 = vadd.f32 %v2255, %v2383
        %v2416 = vadd.f32 %v2256, %v2384
        %v2417 = vadd.f32 %v2257, %v2385
        %v2418 = vadd.f32 %v2258, %v2386
        %v2419 = vadd.f32 %v2259, %v2387
        %v2420 = vadd.f32 %v2260, %v2388
        %v2421 = vadd.f32 %v2261, %v2389
        %v2422 = vadd.f32 %v2262, %v598
        %v2423 = vadd.f32 %v2263, %v600
        %v2424 = vadd.f32 %v2264, %v602
        %v2425 = vadd.f32 %v2265, %v604
        %v2426 = vadd.f32 %v2266, %v608
        %v2427 = vadd.f32 %v2267, %v610
        %v2428 = vadd.f32 %v2268, %v612
        %v2429 = vadd.f32 %v2269, %v614
        %v2430 = vadd.f32 %v2270, %v618
        %v2431 = vadd.f32 %v2271, %v620
        %v2432 = vadd.f32 %v2272, %v622
        %v2433 = vadd.f32 %v2273, %v624
        %v2434 = vadd.f32 %v2274, %v628
        %v2435 = vadd.f32 %v2275, %v630
        %v2436 = vadd.f32 %v2276, %v632
        %v2437 = vadd.f32 %v2277, %v634
        %v2438 = vadd.f32 %v2278, %v638
        %v2439 = vadd.f32 %v2279, %v640
        %v2440 = vadd.f32 %v2280, %v642
        %v2441 = vadd.f32 %v2281, %v644
        %v2442 = vadd.f32 %v2282, %v648
        %v2443 = vadd.f32 %v2283, %v650
        %v2444 = vadd.f32 %v2284, %v652
        %v2445 = vadd.f32 %v2285, %v654
        %v2446 = vadd.f32 %v2286, %v658
        %v2447 = vadd.f32 %v2287, %v660
        %v2448 = vadd.f32 %v2288, %v662
        %v2449 = vadd.f32 %v2289, %v664
        %v2450 = vadd.f32 %v2290, %v668
        %v2451 = vadd.f32 %v2291, %v670
        %v2452 = vadd.f32 %v2292, %v672
        %v2453 = vadd.f32 %v2293, %v674
        %vm2454 = vcmp.lt.f32.partialorder %v2422, 1.0
        %vm2455 = vcmp.lt.f32.partialorder %v2423, 1.0
        %vm2456 = vcmp.lt.f32.partialorder %v2424, 1.0
        %vm2457 = vcmp.lt.f32.partialorder %v2425, 1.0
        %vm2458 = vcmp.lt.f32.partialorder %v2426, 1.0
        %vm2459 = vcmp.lt.f32.partialorder %v2427, 1.0
        %vm2460 = vcmp.lt.f32.partialorder %v2428, 1.0
        %vm2461 = vcmp.lt.f32.partialorder %v2429, 1.0
        %vm2462 = vcmp.lt.f32.partialorder %v2430, 1.0
        %vm2463 = vcmp.lt.f32.partialorder %v2431, 1.0
        %vm2464 = vcmp.lt.f32.partialorder %v2432, 1.0
        %vm2465 = vcmp.lt.f32.partialorder %v2433, 1.0
        %vm2466 = vcmp.lt.f32.partialorder %v2434, 1.0
        %vm2467 = vcmp.lt.f32.partialorder %v2435, 1.0
        %vm2468 = vcmp.lt.f32.partialorder %v2436, 1.0
        %vm2469 = vcmp.lt.f32.partialorder %v2437, 1.0
        %vm2470 = vcmp.lt.f32.partialorder %v2438, 1.0
        %vm2471 = vcmp.lt.f32.partialorder %v2439, 1.0
        %vm2472 = vcmp.lt.f32.partialorder %v2440, 1.0
        %vm2473 = vcmp.lt.f32.partialorder %v2441, 1.0
        %vm2474 = vcmp.lt.f32.partialorder %v2442, 1.0
        %vm2475 = vcmp.lt.f32.partialorder %v2443, 1.0
        %vm2476 = vcmp.lt.f32.partialorder %v2444, 1.0
        %vm2477 = vcmp.lt.f32.partialorder %v2445, 1.0
        %vm2478 = vcmp.lt.f32.partialorder %v2446, 1.0
        %vm2479 = vcmp.lt.f32.partialorder %v2447, 1.0
        %vm2480 = vcmp.lt.f32.partialorder %v2448, 1.0
        %vm2481 = vcmp.lt.f32.partialorder %v2449, 1.0
        %vm2482 = vcmp.lt.f32.partialorder %v2450, 1.0
        %vm2483 = vcmp.lt.f32.partialorder %v2451, 1.0
        %vm2484 = vcmp.lt.f32.partialorder %v2452, 1.0
        %vm2485 = vcmp.lt.f32.partialorder %v2453, 1.0
        %v2486 = vsel %vm2454, 1, 0
        %v2487 = vsel %vm2455, 1, 0
        %v2488 = vsel %vm2456, 1, 0
        %v2489 = vsel %vm2457, 1, 0
        %v2490 = vsel %vm2458, 1, 0
        %v2491 = vsel %vm2459, 1, 0
        %v2492 = vsel %vm2460, 1, 0
        %v2493 = vsel %vm2461, 1, 0
        %v2494 = vsel %vm2462, 1, 0
        %v2495 = vsel %vm2463, 1, 0
        %v2496 = vsel %vm2464, 1, 0
        %v2497 = vsel %vm2465, 1, 0
        %v2498 = vsel %vm2466, 1, 0
        %v2499 = vsel %vm2467, 1, 0
        %v2500 = vsel %vm2468, 1, 0
        %v2501 = vsel %vm2469, 1, 0
        %v2502 = vsel %vm2470, 1, 0
        %v2503 = vsel %vm2471, 1, 0
        %v2504 = vsel %vm2472, 1, 0
        %v2505 = vsel %vm2473, 1, 0
        %v2506 = vsel %vm2474, 1, 0
        %v2507 = vsel %vm2475, 1, 0
        %v2508 = vsel %vm2476, 1, 0
        %v2509 = vsel %vm2477, 1, 0
        %v2510 = vsel %vm2478, 1, 0
        %v2511 = vsel %vm2479, 1, 0
        %v2512 = vsel %vm2480, 1, 0
        %v2513 = vsel %vm2481, 1, 0
        %v2514 = vsel %vm2482, 1, 0
        %v2515 = vsel %vm2483, 1, 0
        %v2516 = vsel %vm2484, 1, 0
        %v2517 = vsel %vm2485, 1, 0
        %v2518 = vcvt.s32.f32 %v2486
        %v2519 = vcvt.s32.f32 %v2487
        %v2520 = vcvt.s32.f32 %v2488
        %v2521 = vcvt.s32.f32 %v2489
        %v2522 = vcvt.s32.f32 %v2490
        %v2523 = vcvt.s32.f32 %v2491
        %v2524 = vcvt.s32.f32 %v2492
        %v2525 = vcvt.s32.f32 %v2493
        %v2526 = vcvt.s32.f32 %v2494
        %v2527 = vcvt.s32.f32 %v2495
        %v2528 = vcvt.s32.f32 %v2496
        %v2529 = vcvt.s32.f32 %v2497
        %v2530 = vcvt.s32.f32 %v2498
        %v2531 = vcvt.s32.f32 %v2499
        %v2532 = vcvt.s32.f32 %v2500
        %v2533 = vcvt.s32.f32 %v2501
        %v2534 = vcvt.s32.f32 %v2502
        %v2535 = vcvt.s32.f32 %v2503
        %v2536 = vcvt.s32.f32 %v2504
        %v2537 = vcvt.s32.f32 %v2505
        %v2538 = vcvt.s32.f32 %v2506
        %v2539 = vcvt.s32.f32 %v2507
        %v2540 = vcvt.s32.f32 %v2508
        %v2541 = vcvt.s32.f32 %v2509
        %v2542 = vcvt.s32.f32 %v2510
        %v2543 = vcvt.s32.f32 %v2511
        %v2544 = vcvt.s32.f32 %v2512
        %v2545 = vcvt.s32.f32 %v2513
        %v2546 = vcvt.s32.f32 %v2514
        %v2547 = vcvt.s32.f32 %v2515
        %v2548 = vcvt.s32.f32 %v2516
        %v2549 = vcvt.s32.f32 %v2517
        %v2550 = vadd.f32 %v2390, %v2518
        %v2551 = vadd.f32 %v2391, %v2519
        %v2552 = vadd.f32 %v2392, %v2520
        %v2553 = vadd.f32 %v2393, %v2521
        %v2554 = vadd.f32 %v2394, %v2522
        %v2555 = vadd.f32 %v2395, %v2523
        %v2556 = vadd.f32 %v2396, %v2524
        %v2557 = vadd.f32 %v2397, %v2525
        %v2558 = vadd.f32 %v2398, %v2526
        %v2559 = vadd.f32 %v2399, %v2527
        %v2560 = vadd.f32 %v2400, %v2528
        %v2561 = vadd.f32 %v2401, %v2529
        %v2562 = vadd.f32 %v2402, %v2530
        %v2563 = vadd.f32 %v2403, %v2531
        %v2564 = vadd.f32 %v2404, %v2532
        %v2565 = vadd.f32 %v2405, %v2533
        %v2566 = vadd.f32 %v2406, %v2534
        %v2567 = vadd.f32 %v2407, %v2535
        %v2568 = vadd.f32 %v2408, %v2536
        %v2569 = vadd.f32 %v2409, %v2537
        %v2570 = vadd.f32 %v2410, %v2538
        %v2571 = vadd.f32 %v2411, %v2539
        %v2572 = vadd.f32 %v2412, %v2540
        %v2573 = vadd.f32 %v2413, %v2541
        %v2574 = vadd.f32 %v2414, %v2542
        %v2575 = vadd.f32 %v2415, %v2543
        %v2576 = vadd.f32 %v2416, %v2544
        %v2577 = vadd.f32 %v2417, %v2545
        %v2578 = vadd.f32 %v2418, %v2546
        %v2579 = vadd.f32 %v2419, %v2547
        %v2580 = vadd.f32 %v2420, %v2548
        %v2581 = vadd.f32 %v2421, %v2549
        %v2582 = vadd.f32 %v2550, 1.0
        %v2583 = vadd.f32 %v2551, 1.0
        %v2584 = vadd.f32 %v2552, 1.0
        %v2585 = vadd.f32 %v2553, 1.0
        %v2586 = vadd.f32 %v2554, 1.0
        %v2587 = vadd.f32 %v2555, 1.0
        %v2588 = vadd.f32 %v2556, 1.0
        %v2589 = vadd.f32 %v2557, 1.0
        %v2590 = vadd.f32 %v2558, 1.0
        %v2591 = vadd.f32 %v2559, 1.0
        %v2592 = vadd.f32 %v2560, 1.0
        %v2593 = vadd.f32 %v2561, 1.0
        %v2594 = vadd.f32 %v2562, 1.0
        %v2595 = vadd.f32 %v2563, 1.0
        %v2596 = vadd.f32 %v2564, 1.0
        %v2597 = vadd.f32 %v2565, 1.0
        %v2598 = vadd.f32 %v2566, 1.0
        %v2599 = vadd.f32 %v2567, 1.0
        %v2600 = vadd.f32 %v2568, 1.0
        %v2601 = vadd.f32 %v2569, 1.0
        %v2602 = vadd.f32 %v2570, 1.0
        %v2603 = vadd.f32 %v2571, 1.0
        %v2604 = vadd.f32 %v2572, 1.0
        %v2605 = vadd.f32 %v2573, 1.0
        %v2606 = vadd.f32 %v2574, 1.0
        %v2607 = vadd.f32 %v2575, 1.0
        %v2608 = vadd.f32 %v2576, 1.0
        %v2609 = vadd.f32 %v2577, 1.0
        %v2610 = vadd.f32 %v2578, 1.0
        %v2611 = vadd.f32 %v2579, 1.0
        %v2612 = vadd.f32 %v2580, 1.0
        %v2613 = vadd.f32 %v2581, 1.0
        %v2614 = vrcp.pop %v2582
        %v2615 = vmul.f32 10.0, %v2614
        %v2616 = vrcp.pop %v2583
        %v2617 = vmul.f32 10.0, %v2616
        %v2618 = vrcp.pop %v2584
        %v2619 = vmul.f32 10.0, %v2618
        %v2620 = vrcp.pop %v2585
        %v2621 = vmul.f32 10.0, %v2620
        %v2622 = vrcp.pop %v2586
        %v2623 = vmul.f32 10.0, %v2622
        %v2624 = vrcp.pop %v2587
        %v2625 = vmul.f32 10.0, %v2624
        %v2626 = vrcp.pop %v2588
        %v2627 = vmul.f32 10.0, %v2626
        %v2628 = vrcp.pop %v2589
        %v2629 = vmul.f32 10.0, %v2628
        %v2630 = vrcp.pop %v2590
        %v2631 = vmul.f32 10.0, %v2630
        %v2632 = vrcp.pop %v2591
        %v2633 = vmul.f32 10.0, %v2632
        %v2634 = vrcp.pop %v2592
        %v2635 = vmul.f32 10.0, %v2634
        %v2636 = vrcp.pop %v2593
        %v2637 = vmul.f32 10.0, %v2636
        %v2638 = vrcp.pop %v2594
        %v2639 = vmul.f32 10.0, %v2638
        %v2640 = vrcp.pop %v2595
        %v2641 = vmul.f32 10.0, %v2640
        %v2642 = vrcp.pop %v2596
        %v2643 = vmul.f32 10.0, %v2642
        %v2644 = vrcp.pop %v2597
        %v2645 = vmul.f32 10.0, %v2644
        %v2646 = vrcp.pop %v2598
        %v2647 = vmul.f32 10.0, %v2646
        %v2648 = vrcp.pop %v2599
        %v2649 = vmul.f32 10.0, %v2648
        %v2650 = vrcp.pop %v2600
        %v2651 = vmul.f32 10.0, %v2650
        %v2652 = vrcp.pop %v2601
        %v2653 = vmul.f32 10.0, %v2652
        %v2654 = vrcp.pop %v2602
        %v2655 = vmul.f32 10.0, %v2654
        %v2656 = vrcp.pop %v2603
        %v2657 = vmul.f32 10.0, %v2656
        %v2658 = vrcp.pop %v2604
        %v2659 = vmul.f32 10.0, %v2658
        %v2660 = vrcp.pop %v2605
        %v2661 = vmul.f32 10.0, %v2660
        %v2662 = vrcp.pop %v2606
        %v2663 = vmul.f32 10.0, %v2662
        %v2664 = vrcp.pop %v2607
        %v2665 = vmul.f32 10.0, %v2664
        %v2666 = vrcp.pop %v2608
        %v2667 = vmul.f32 10.0, %v2666
        %v2668 = vrcp.pop %v2609
        %v2669 = vmul.f32 10.0, %v2668
        %v2670 = vrcp.pop %v2610
        %v2671 = vmul.f32 10.0, %v2670
        %v2672 = vrcp.pop %v2611
        %v2673 = vmul.f32 10.0, %v2672
        %v2674 = vrcp.pop %v2612
        %v2675 = vmul.f32 10.0, %v2674
        %v2676 = vrcp.pop %v2613
        %v2677 = vmul.f32 10.0, %v2676
        %v2678 = vfloor.f32 %v2615
        %v2679 = vfloor.f32 %v2617
        %v2680 = vfloor.f32 %v2619
        %v2681 = vfloor.f32 %v2621
        %v2682 = vfloor.f32 %v2623
        %v2683 = vfloor.f32 %v2625
        %v2684 = vfloor.f32 %v2627
        %v2685 = vfloor.f32 %v2629
        %v2686 = vfloor.f32 %v2631
        %v2687 = vfloor.f32 %v2633
        %v2688 = vfloor.f32 %v2635
        %v2689 = vfloor.f32 %v2637
        %v2690 = vfloor.f32 %v2639
        %v2691 = vfloor.f32 %v2641
        %v2692 = vfloor.f32 %v2643
        %v2693 = vfloor.f32 %v2645
        %v2694 = vfloor.f32 %v2647
        %v2695 = vfloor.f32 %v2649
        %v2696 = vfloor.f32 %v2651
        %v2697 = vfloor.f32 %v2653
        %v2698 = vfloor.f32 %v2655
        %v2699 = vfloor.f32 %v2657
        %v2700 = vfloor.f32 %v2659
        %v2701 = vfloor.f32 %v2661
        %v2702 = vfloor.f32 %v2663
        %v2703 = vfloor.f32 %v2665
        %v2704 = vfloor.f32 %v2667
        %v2705 = vfloor.f32 %v2669
        %v2706 = vfloor.f32 %v2671
        %v2707 = vfloor.f32 %v2673
        %v2708 = vfloor.f32 %v2675
        %v2709 = vfloor.f32 %v2677
        %v2710 = vmul.f32 %v2678, 0.1
        %v2711 = vmul.f32 %v2679, 0.1
        %v2712 = vmul.f32 %v2680, 0.1
        %v2713 = vmul.f32 %v2681, 0.1
        %v2714 = vmul.f32 %v2682, 0.1
        %v2715 = vmul.f32 %v2683, 0.1
        %v2716 = vmul.f32 %v2684, 0.1
        %v2717 = vmul.f32 %v2685, 0.1
        %v2718 = vmul.f32 %v2686, 0.1
        %v2719 = vmul.f32 %v2687, 0.1
        %v2720 = vmul.f32 %v2688, 0.1
        %v2721 = vmul.f32 %v2689, 0.1
        %v2722 = vmul.f32 %v2690, 0.1
        %v2723 = vmul.f32 %v2691, 0.1
        %v2724 = vmul.f32 %v2692, 0.1
        %v2725 = vmul.f32 %v2693, 0.1
        %v2726 = vmul.f32 %v2694, 0.1
        %v2727 = vmul.f32 %v2695, 0.1
        %v2728 = vmul.f32 %v2696, 0.1
        %v2729 = vmul.f32 %v2697, 0.1
        %v2730 = vmul.f32 %v2698, 0.1
        %v2731 = vmul.f32 %v2699, 0.1
        %v2732 = vmul.f32 %v2700, 0.1
        %v2733 = vmul.f32 %v2701, 0.1
        %v2734 = vmul.f32 %v2702, 0.1
        %v2735 = vmul.f32 %v2703, 0.1
        %v2736 = vmul.f32 %v2704, 0.1
        %v2737 = vmul.f32 %v2705, 0.1
        %v2738 = vmul.f32 %v2706, 0.1
        %v2739 = vmul.f32 %v2707, 0.1
        %v2740 = vmul.f32 %v2708, 0.1
        %v2741 = vmul.f32 %v2709, 0.1
        %v2742 = vadd.f32 %v791, 0.0
        %v2743 = vadd.f32 %v793, 0.0
        %v2744 = vadd.f32 %v795, 0.0
        %v2745 = vadd.f32 %v797, 0.0
        %v2746 = vadd.f32 %v801, 0.0
        %v2747 = vadd.f32 %v803, 0.0
        %v2748 = vadd.f32 %v805, 0.0
        %v2749 = vadd.f32 %v807, 0.0
        %v2750 = vadd.f32 %v811, 0.0
        %v2751 = vadd.f32 %v813, 0.0
        %v2752 = vadd.f32 %v815, 0.0
        %v2753 = vadd.f32 %v817, 0.0
        %v2754 = vadd.f32 %v821, 0.0
        %v2755 = vadd.f32 %v823, 0.0
        %v2756 = vadd.f32 %v825, 0.0
        %v2757 = vadd.f32 %v827, 0.0
        %v2758 = vadd.f32 %v831, 0.0
        %v2759 = vadd.f32 %v833, 0.0
        %v2760 = vadd.f32 %v835, 0.0
        %v2761 = vadd.f32 %v837, 0.0
        %v2762 = vadd.f32 %v841, 0.0
        %v2763 = vadd.f32 %v843, 0.0
        %v2764 = vadd.f32 %v845, 0.0
        %v2765 = vadd.f32 %v847, 0.0
        %v2766 = vadd.f32 %v851, 0.0
        %v2767 = vadd.f32 %v853, 0.0
        %v2768 = vadd.f32 %v855, 0.0
        %v2769 = vadd.f32 %v857, 0.0
        %v2770 = vadd.f32 %v861, 0.0
        %v2771 = vadd.f32 %v863, 0.0
        %v2772 = vadd.f32 %v865, 0.0
        %v2773 = vadd.f32 %v867, 0.0
        %vm2774 = vcmp.lt.f32.partialorder %v2742, 1.0
        %vm2775 = vcmp.lt.f32.partialorder %v2743, 1.0
        %vm2776 = vcmp.lt.f32.partialorder %v2744, 1.0
        %vm2777 = vcmp.lt.f32.partialorder %v2745, 1.0
        %vm2778 = vcmp.lt.f32.partialorder %v2746, 1.0
        %vm2779 = vcmp.lt.f32.partialorder %v2747, 1.0
        %vm2780 = vcmp.lt.f32.partialorder %v2748, 1.0
        %vm2781 = vcmp.lt.f32.partialorder %v2749, 1.0
        %vm2782 = vcmp.lt.f32.partialorder %v2750, 1.0
        %vm2783 = vcmp.lt.f32.partialorder %v2751, 1.0
        %vm2784 = vcmp.lt.f32.partialorder %v2752, 1.0
        %vm2785 = vcmp.lt.f32.partialorder %v2753, 1.0
        %vm2786 = vcmp.lt.f32.partialorder %v2754, 1.0
        %vm2787 = vcmp.lt.f32.partialorder %v2755, 1.0
        %vm2788 = vcmp.lt.f32.partialorder %v2756, 1.0
        %vm2789 = vcmp.lt.f32.partialorder %v2757, 1.0
        %vm2790 = vcmp.lt.f32.partialorder %v2758, 1.0
        %vm2791 = vcmp.lt.f32.partialorder %v2759, 1.0
        %vm2792 = vcmp.lt.f32.partialorder %v2760, 1.0
        %vm2793 = vcmp.lt.f32.partialorder %v2761, 1.0
        %vm2794 = vcmp.lt.f32.partialorder %v2762, 1.0
        %vm2795 = vcmp.lt.f32.partialorder %v2763, 1.0
        %vm2796 = vcmp.lt.f32.partialorder %v2764, 1.0
        %vm2797 = vcmp.lt.f32.partialorder %v2765, 1.0
        %vm2798 = vcmp.lt.f32.partialorder %v2766, 1.0
        %vm2799 = vcmp.lt.f32.partialorder %v2767, 1.0
        %vm2800 = vcmp.lt.f32.partialorder %v2768, 1.0
        %vm2801 = vcmp.lt.f32.partialorder %v2769, 1.0
        %vm2802 = vcmp.lt.f32.partialorder %v2770, 1.0
        %vm2803 = vcmp.lt.f32.partialorder %v2771, 1.0
        %vm2804 = vcmp.lt.f32.partialorder %v2772, 1.0
        %vm2805 = vcmp.lt.f32.partialorder %v2773, 1.0
        %v2806 = vsel %vm2774, 1, 0
        %v2807 = vsel %vm2775, 1, 0
        %v2808 = vsel %vm2776, 1, 0
        %v2809 = vsel %vm2777, 1, 0
        %v2810 = vsel %vm2778, 1, 0
        %v2811 = vsel %vm2779, 1, 0
        %v2812 = vsel %vm2780, 1, 0
        %v2813 = vsel %vm2781, 1, 0
        %v2814 = vsel %vm2782, 1, 0
        %v2815 = vsel %vm2783, 1, 0
        %v2816 = vsel %vm2784, 1, 0
        %v2817 = vsel %vm2785, 1, 0
        %v2818 = vsel %vm2786, 1, 0
        %v2819 = vsel %vm2787, 1, 0
        %v2820 = vsel %vm2788, 1, 0
        %v2821 = vsel %vm2789, 1, 0
        %v2822 = vsel %vm2790, 1, 0
        %v2823 = vsel %vm2791, 1, 0
        %v2824 = vsel %vm2792, 1, 0
        %v2825 = vsel %vm2793, 1, 0
        %v2826 = vsel %vm2794, 1, 0
        %v2827 = vsel %vm2795, 1, 0
        %v2828 = vsel %vm2796, 1, 0
        %v2829 = vsel %vm2797, 1, 0
        %v2830 = vsel %vm2798, 1, 0
        %v2831 = vsel %vm2799, 1, 0
        %v2832 = vsel %vm2800, 1, 0
        %v2833 = vsel %vm2801, 1, 0
        %v2834 = vsel %vm2802, 1, 0
        %v2835 = vsel %vm2803, 1, 0
        %v2836 = vsel %vm2804, 1, 0
        %v2837 = vsel %vm2805, 1, 0
        %v2838 = vcvt.s32.f32 %v2806
        %v2839 = vcvt.s32.f32 %v2807
        %v2840 = vcvt.s32.f32 %v2808
        %v2841 = vcvt.s32.f32 %v2809
        %v2842 = vcvt.s32.f32 %v2810
        %v2843 = vcvt.s32.f32 %v2811
        %v2844 = vcvt.s32.f32 %v2812
        %v2845 = vcvt.s32.f32 %v2813
        %v2846 = vcvt.s32.f32 %v2814
        %v2847 = vcvt.s32.f32 %v2815
        %v2848 = vcvt.s32.f32 %v2816
        %v2849 = vcvt.s32.f32 %v2817
        %v2850 = vcvt.s32.f32 %v2818
        %v2851 = vcvt.s32.f32 %v2819
        %v2852 = vcvt.s32.f32 %v2820
        %v2853 = vcvt.s32.f32 %v2821
        %v2854 = vcvt.s32.f32 %v2822
        %v2855 = vcvt.s32.f32 %v2823
        %v2856 = vcvt.s32.f32 %v2824
        %v2857 = vcvt.s32.f32 %v2825
        %v2858 = vcvt.s32.f32 %v2826
        %v2859 = vcvt.s32.f32 %v2827
        %v2860 = vcvt.s32.f32 %v2828
        %v2861 = vcvt.s32.f32 %v2829
        %v2862 = vcvt.s32.f32 %v2830
        %v2863 = vcvt.s32.f32 %v2831
        %v2864 = vcvt.s32.f32 %v2832
        %v2865 = vcvt.s32.f32 %v2833
        %v2866 = vcvt.s32.f32 %v2834
        %v2867 = vcvt.s32.f32 %v2835
        %v2868 = vcvt.s32.f32 %v2836
        %v2869 = vcvt.s32.f32 %v2837
        %v2870 = vadd.f32 %v2838, 0.0
        %v2871 = vadd.f32 %v2839, 0.0
        %v2872 = vadd.f32 %v2840, 0.0
        %v2873 = vadd.f32 %v2841, 0.0
        %v2874 = vadd.f32 %v2842, 0.0
        %v2875 = vadd.f32 %v2843, 0.0
        %v2876 = vadd.f32 %v2844, 0.0
        %v2877 = vadd.f32 %v2845, 0.0
        %v2878 = vadd.f32 %v2846, 0.0
        %v2879 = vadd.f32 %v2847, 0.0
        %v2880 = vadd.f32 %v2848, 0.0
        %v2881 = vadd.f32 %v2849, 0.0
        %v2882 = vadd.f32 %v2850, 0.0
        %v2883 = vadd.f32 %v2851, 0.0
        %v2884 = vadd.f32 %v2852, 0.0
        %v2885 = vadd.f32 %v2853, 0.0
        %v2886 = vadd.f32 %v2854, 0.0
        %v2887 = vadd.f32 %v2855, 0.0
        %v2888 = vadd.f32 %v2856, 0.0
        %v2889 = vadd.f32 %v2857, 0.0
        %v2890 = vadd.f32 %v2858, 0.0
        %v2891 = vadd.f32 %v2859, 0.0
        %v2892 = vadd.f32 %v2860, 0.0
        %v2893 = vadd.f32 %v2861, 0.0
        %v2894 = vadd.f32 %v2862, 0.0
        %v2895 = vadd.f32 %v2863, 0.0
        %v2896 = vadd.f32 %v2864, 0.0
        %v2897 = vadd.f32 %v2865, 0.0
        %v2898 = vadd.f32 %v2866, 0.0
        %v2899 = vadd.f32 %v2867, 0.0
        %v2900 = vadd.f32 %v2868, 0.0
        %v2901 = vadd.f32 %v2869, 0.0
        %v2902 = vadd.f32 %v2742, %v791
        %v2903 = vadd.f32 %v2743, %v793
        %v2904 = vadd.f32 %v2744, %v795
        %v2905 = vadd.f32 %v2745, %v797
        %v2906 = vadd.f32 %v2746, %v801
        %v2907 = vadd.f32 %v2747, %v803
        %v2908 = vadd.f32 %v2748, %v805
        %v2909 = vadd.f32 %v2749, %v807
        %v2910 = vadd.f32 %v2750, %v811
        %v2911 = vadd.f32 %v2751, %v813
        %v2912 = vadd.f32 %v2752, %v815
        %v2913 = vadd.f32 %v2753, %v817
        %v2914 = vadd.f32 %v2754, %v821
        %v2915 = vadd.f32 %v2755, %v823
        %v2916 = vadd.f32 %v2756, %v825
        %v2917 = vadd.f32 %v2757, %v827
        %v2918 = vadd.f32 %v2758, %v831
        %v2919 = vadd.f32 %v2759, %v833
        %v2920 = vadd.f32 %v2760, %v835
        %v2921 = vadd.f32 %v2761, %v837
        %v2922 = vadd.f32 %v2762, %v841
        %v2923 = vadd.f32 %v2763, %v843
        %v2924 = vadd.f32 %v2764, %v845
        %v2925 = vadd.f32 %v2765, %v847
        %v2926 = vadd.f32 %v2766, %v851
        %v2927 = vadd.f32 %v2767, %v853
        %v2928 = vadd.f32 %v2768, %v855
        %v2929 = vadd.f32 %v2769, %v857
        %v2930 = vadd.f32 %v2770, %v861
        %v2931 = vadd.f32 %v2771, %v863
        %v2932 = vadd.f32 %v2772, %v865
        %v2933 = vadd.f32 %v2773, %v867
        %vm2934 = vcmp.lt.f32.partialorder %v2902, 1.0
        %vm2935 = vcmp.lt.f32.partialorder %v2903, 1.0
        %vm2936 = vcmp.lt.f32.partialorder %v2904, 1.0
        %vm2937 = vcmp.lt.f32.partialorder %v2905, 1.0
        %vm2938 = vcmp.lt.f32.partialorder %v2906, 1.0
        %vm2939 = vcmp.lt.f32.partialorder %v2907, 1.0
        %vm2940 = vcmp.lt.f32.partialorder %v2908, 1.0
        %vm2941 = vcmp.lt.f32.partialorder %v2909, 1.0
        %vm2942 = vcmp.lt.f32.partialorder %v2910, 1.0
        %vm2943 = vcmp.lt.f32.partialorder %v2911, 1.0
        %vm2944 = vcmp.lt.f32.partialorder %v2912, 1.0
        %vm2945 = vcmp.lt.f32.partialorder %v2913, 1.0
        %vm2946 = vcmp.lt.f32.partialorder %v2914, 1.0
        %vm2947 = vcmp.lt.f32.partialorder %v2915, 1.0
        %vm2948 = vcmp.lt.f32.partialorder %v2916, 1.0
        %vm2949 = vcmp.lt.f32.partialorder %v2917, 1.0
        %vm2950 = vcmp.lt.f32.partialorder %v2918, 1.0
        %vm2951 = vcmp.lt.f32.partialorder %v2919, 1.0
        %vm2952 = vcmp.lt.f32.partialorder %v2920, 1.0
        %vm2953 = vcmp.lt.f32.partialorder %v2921, 1.0
        %vm2954 = vcmp.lt.f32.partialorder %v2922, 1.0
        %vm2955 = vcmp.lt.f32.partialorder %v2923, 1.0
        %vm2956 = vcmp.lt.f32.partialorder %v2924, 1.0
        %vm2957 = vcmp.lt.f32.partialorder %v2925, 1.0
        %vm2958 = vcmp.lt.f32.partialorder %v2926, 1.0
        %vm2959 = vcmp.lt.f32.partialorder %v2927, 1.0
        %vm2960 = vcmp.lt.f32.partialorder %v2928, 1.0
        %vm2961 = vcmp.lt.f32.partialorder %v2929, 1.0
        %vm2962 = vcmp.lt.f32.partialorder %v2930, 1.0
        %vm2963 = vcmp.lt.f32.partialorder %v2931, 1.0
        %vm2964 = vcmp.lt.f32.partialorder %v2932, 1.0
        %vm2965 = vcmp.lt.f32.partialorder %v2933, 1.0
        %v2966 = vsel %vm2934, 1, 0
        %v2967 = vsel %vm2935, 1, 0
        %v2968 = vsel %vm2936, 1, 0
        %v2969 = vsel %vm2937, 1, 0
        %v2970 = vsel %vm2938, 1, 0
        %v2971 = vsel %vm2939, 1, 0
        %v2972 = vsel %vm2940, 1, 0
        %v2973 = vsel %vm2941, 1, 0
        %v2974 = vsel %vm2942, 1, 0
        %v2975 = vsel %vm2943, 1, 0
        %v2976 = vsel %vm2944, 1, 0
        %v2977 = vsel %vm2945, 1, 0
        %v2978 = vsel %vm2946, 1, 0
        %v2979 = vsel %vm2947, 1, 0
        %v2980 = vsel %vm2948, 1, 0
        %v2981 = vsel %vm2949, 1, 0
        %v2982 = vsel %vm2950, 1, 0
        %v2983 = vsel %vm2951, 1, 0
        %v2984 = vsel %vm2952, 1, 0
        %v2985 = vsel %vm2953, 1, 0
        %v2986 = vsel %vm2954, 1, 0
        %v2987 = vsel %vm2955, 1, 0
        %v2988 = vsel %vm2956, 1, 0
        %v2989 = vsel %vm2957, 1, 0
        %v2990 = vsel %vm2958, 1, 0
        %v2991 = vsel %vm2959, 1, 0
        %v2992 = vsel %vm2960, 1, 0
        %v2993 = vsel %vm2961, 1, 0
        %v2994 = vsel %vm2962, 1, 0
        %v2995 = vsel %vm2963, 1, 0
        %v2996 = vsel %vm2964, 1, 0
        %v2997 = vsel %vm2965, 1, 0
        %v2998 = vcvt.s32.f32 %v2966
        %v2999 = vcvt.s32.f32 %v2967
        %v3000 = vcvt.s32.f32 %v2968
        %v3001 = vcvt.s32.f32 %v2969
        %v3002 = vcvt.s32.f32 %v2970
        %v3003 = vcvt.s32.f32 %v2971
        %v3004 = vcvt.s32.f32 %v2972
        %v3005 = vcvt.s32.f32 %v2973
        %v3006 = vcvt.s32.f32 %v2974
        %v3007 = vcvt.s32.f32 %v2975
        %v3008 = vcvt.s32.f32 %v2976
        %v3009 = vcvt.s32.f32 %v2977
        %v3010 = vcvt.s32.f32 %v2978
        %v3011 = vcvt.s32.f32 %v2979
        %v3012 = vcvt.s32.f32 %v2980
        %v3013 = vcvt.s32.f32 %v2981
        %v3014 = vcvt.s32.f32 %v2982
        %v3015 = vcvt.s32.f32 %v2983
        %v3016 = vcvt.s32.f32 %v2984
        %v3017 = vcvt.s32.f32 %v2985
        %v3018 = vcvt.s32.f32 %v2986
        %v3019 = vcvt.s32.f32 %v2987
        %v3020 = vcvt.s32.f32 %v2988
        %v3021 = vcvt.s32.f32 %v2989
        %v3022 = vcvt.s32.f32 %v2990
        %v3023 = vcvt.s32.f32 %v2991
        %v3024 = vcvt.s32.f32 %v2992
        %v3025 = vcvt.s32.f32 %v2993
        %v3026 = vcvt.s32.f32 %v2994
        %v3027 = vcvt.s32.f32 %v2995
        %v3028 = vcvt.s32.f32 %v2996
        %v3029 = vcvt.s32.f32 %v2997
        %v3030 = vadd.f32 %v2870, %v2998
        %v3031 = vadd.f32 %v2871, %v2999
        %v3032 = vadd.f32 %v2872, %v3000
        %v3033 = vadd.f32 %v2873, %v3001
        %v3034 = vadd.f32 %v2874, %v3002
        %v3035 = vadd.f32 %v2875, %v3003
        %v3036 = vadd.f32 %v2876, %v3004
        %v3037 = vadd.f32 %v2877, %v3005
        %v3038 = vadd.f32 %v2878, %v3006
        %v3039 = vadd.f32 %v2879, %v3007
        %v3040 = vadd.f32 %v2880, %v3008
        %v3041 = vadd.f32 %v2881, %v3009
        %v3042 = vadd.f32 %v2882, %v3010
        %v3043 = vadd.f32 %v2883, %v3011
        %v3044 = vadd.f32 %v2884, %v3012
        %v3045 = vadd.f32 %v2885, %v3013
        %v3046 = vadd.f32 %v2886, %v3014
        %v3047 = vadd.f32 %v2887, %v3015
        %v3048 = vadd.f32 %v2888, %v3016
        %v3049 = vadd.f32 %v2889, %v3017
        %v3050 = vadd.f32 %v2890, %v3018
        %v3051 = vadd.f32 %v2891, %v3019
        %v3052 = vadd.f32 %v2892, %v3020
        %v3053 = vadd.f32 %v2893, %v3021
        %v3054 = vadd.f32 %v2894, %v3022
        %v3055 = vadd.f32 %v2895, %v3023
        %v3056 = vadd.f32 %v2896, %v3024
        %v3057 = vadd.f32 %v2897, %v3025
        %v3058 = vadd.f32 %v2898, %v3026
        %v3059 = vadd.f32 %v2899, %v3027
        %v3060 = vadd.f32 %v2900, %v3028
        %v3061 = vadd.f32 %v2901, %v3029
        %v3062 = vadd.f32 %v2902, %v791
        %v3063 = vadd.f32 %v2903, %v793
        %v3064 = vadd.f32 %v2904, %v795
        %v3065 = vadd.f32 %v2905, %v797
        %v3066 = vadd.f32 %v2906, %v801
        %v3067 = vadd.f32 %v2907, %v803
        %v3068 = vadd.f32 %v2908, %v805
        %v3069 = vadd.f32 %v2909, %v807
        %v3070 = vadd.f32 %v2910, %v811
        %v3071 = vadd.f32 %v2911, %v813
        %v3072 = vadd.f32 %v2912, %v815
        %v3073 = vadd.f32 %v2913, %v817
        %v3074 = vadd.f32 %v2914, %v821
        %v3075 = vadd.f32 %v2915, %v823
        %v3076 = vadd.f32 %v2916, %v825
        %v3077 = vadd.f32 %v2917, %v827
        %v3078 = vadd.f32 %v2918, %v831
        %v3079 = vadd.f32 %v2919, %v833
        %v3080 = vadd.f32 %v2920, %v835
        %v3081 = vadd.f32 %v2921, %v837
        %v3082 = vadd.f32 %v2922, %v841
        %v3083 = vadd.f32 %v2923, %v843
        %v3084 = vadd.f32 %v2924, %v845
        %v3085 = vadd.f32 %v2925, %v847
        %v3086 = vadd.f32 %v2926, %v851
        %v3087 = vadd.f32 %v2927, %v853
        %v3088 = vadd.f32 %v2928, %v855
        %v3089 = vadd.f32 %v2929, %v857
        %v3090 = vadd.f32 %v2930, %v861
        %v3091 = vadd.f32 %v2931, %v863
        %v3092 = vadd.f32 %v2932, %v865
        %v3093 = vadd.f32 %v2933, %v867
        %vm3094 = vcmp.lt.f32.partialorder %v3062, 1.0
        %vm3095 = vcmp.lt.f32.partialorder %v3063, 1.0
        %vm3096 = vcmp.lt.f32.partialorder %v3064, 1.0
        %vm3097 = vcmp.lt.f32.partialorder %v3065, 1.0
        %vm3098 = vcmp.lt.f32.partialorder %v3066, 1.0
        %vm3099 = vcmp.lt.f32.partialorder %v3067, 1.0
        %vm3100 = vcmp.lt.f32.partialorder %v3068, 1.0
        %vm3101 = vcmp.lt.f32.partialorder %v3069, 1.0
        %vm3102 = vcmp.lt.f32.partialorder %v3070, 1.0
        %vm3103 = vcmp.lt.f32.partialorder %v3071, 1.0
        %vm3104 = vcmp.lt.f32.partialorder %v3072, 1.0
        %vm3105 = vcmp.lt.f32.partialorder %v3073, 1.0
        %vm3106 = vcmp.lt.f32.partialorder %v3074, 1.0
        %vm3107 = vcmp.lt.f32.partialorder %v3075, 1.0
        %vm3108 = vcmp.lt.f32.partialorder %v3076, 1.0
        %vm3109 = vcmp.lt.f32.partialorder %v3077, 1.0
        %vm3110 = vcmp.lt.f32.partialorder %v3078, 1.0
        %vm3111 = vcmp.lt.f32.partialorder %v3079, 1.0
        %vm3112 = vcmp.lt.f32.partialorder %v3080, 1.0
        %vm3113 = vcmp.lt.f32.partialorder %v3081, 1.0
        %vm3114 = vcmp.lt.f32.partialorder %v3082, 1.0
        %vm3115 = vcmp.lt.f32.partialorder %v3083, 1.0
        %vm3116 = vcmp.lt.f32.partialorder %v3084, 1.0
        %vm3117 = vcmp.lt.f32.partialorder %v3085, 1.0
        %vm3118 = vcmp.lt.f32.partialorder %v3086, 1.0
        %vm3119 = vcmp.lt.f32.partialorder %v3087, 1.0
        %vm3120 = vcmp.lt.f32.partialorder %v3088, 1.0
        %vm3121 = vcmp.lt.f32.partialorder %v3089, 1.0
        %vm3122 = vcmp.lt.f32.partialorder %v3090, 1.0
        %vm3123 = vcmp.lt.f32.partialorder %v3091, 1.0
        %vm3124 = vcmp.lt.f32.partialorder %v3092, 1.0
        %vm3125 = vcmp.lt.f32.partialorder %v3093, 1.0
        %v3126 = vsel %vm3094, 1, 0
        %v3127 = vsel %vm3095, 1, 0
        %v3128 = vsel %vm3096, 1, 0
        %v3129 = vsel %vm3097, 1, 0
        %v3130 = vsel %vm3098, 1, 0
        %v3131 = vsel %vm3099, 1, 0
        %v3132 = vsel %vm3100, 1, 0
        %v3133 = vsel %vm3101, 1, 0
        %v3134 = vsel %vm3102, 1, 0
        %v3135 = vsel %vm3103, 1, 0
        %v3136 = vsel %vm3104, 1, 0
        %v3137 = vsel %vm3105, 1, 0
        %v3138 = vsel %vm3106, 1, 0
        %v3139 = vsel %vm3107, 1, 0
        %v3140 = vsel %vm3108, 1, 0
        %v3141 = vsel %vm3109, 1, 0
        %v3142 = vsel %vm3110, 1, 0
        %v3143 = vsel %vm3111, 1, 0
        %v3144 = vsel %vm3112, 1, 0
        %v3145 = vsel %vm3113, 1, 0
        %v3146 = vsel %vm3114, 1, 0
        %v3147 = vsel %vm3115, 1, 0
        %v3148 = vsel %vm3116, 1, 0
        %v3149 = vsel %vm3117, 1, 0
        %v3150 = vsel %vm3118, 1, 0
        %v3151 = vsel %vm3119, 1, 0
        %v3152 = vsel %vm3120, 1, 0
        %v3153 = vsel %vm3121, 1, 0
        %v3154 = vsel %vm3122, 1, 0
        %v3155 = vsel %vm3123, 1, 0
        %v3156 = vsel %vm3124, 1, 0
        %v3157 = vsel %vm3125, 1, 0
        %v3158 = vcvt.s32.f32 %v3126
        %v3159 = vcvt.s32.f32 %v3127
        %v3160 = vcvt.s32.f32 %v3128
        %v3161 = vcvt.s32.f32 %v3129
        %v3162 = vcvt.s32.f32 %v3130
        %v3163 = vcvt.s32.f32 %v3131
        %v3164 = vcvt.s32.f32 %v3132
        %v3165 = vcvt.s32.f32 %v3133
        %v3166 = vcvt.s32.f32 %v3134
        %v3167 = vcvt.s32.f32 %v3135
        %v3168 = vcvt.s32.f32 %v3136
        %v3169 = vcvt.s32.f32 %v3137
        %v3170 = vcvt.s32.f32 %v3138
        %v3171 = vcvt.s32.f32 %v3139
        %v3172 = vcvt.s32.f32 %v3140
        %v3173 = vcvt.s32.f32 %v3141
        %v3174 = vcvt.s32.f32 %v3142
        %v3175 = vcvt.s32.f32 %v3143
        %v3176 = vcvt.s32.f32 %v3144
        %v3177 = vcvt.s32.f32 %v3145
        %v3178 = vcvt.s32.f32 %v3146
        %v3179 = vcvt.s32.f32 %v3147
        %v3180 = vcvt.s32.f32 %v3148
        %v3181 = vcvt.s32.f32 %v3149
        %v3182 = vcvt.s32.f32 %v3150
        %v3183 = vcvt.s32.f32 %v3151
        %v3184 = vcvt.s32.f32 %v3152
        %v3185 = vcvt.s32.f32 %v3153
        %v3186 = vcvt.s32.f32 %v3154
        %v3187 = vcvt.s32.f32 %v3155
        %v3188 = vcvt.s32.f32 %v3156
        %v3189 = vcvt.s32.f32 %v3157
        %v3190 = vadd.f32 %v3030, %v3158
        %v3191 = vadd.f32 %v3031, %v3159
        %v3192 = vadd.f32 %v3032, %v3160
        %v3193 = vadd.f32 %v3033, %v3161
        %v3194 = vadd.f32 %v3034, %v3162
        %v3195 = vadd.f32 %v3035, %v3163
        %v3196 = vadd.f32 %v3036, %v3164
        %v3197 = vadd.f32 %v3037, %v3165
        %v3198 = vadd.f32 %v3038, %v3166
        %v3199 = vadd.f32 %v3039, %v3167
        %v3200 = vadd.f32 %v3040, %v3168
        %v3201 = vadd.f32 %v3041, %v3169
        %v3202 = vadd.f32 %v3042, %v3170
        %v3203 = vadd.f32 %v3043, %v3171
        %v3204 = vadd.f32 %v3044, %v3172
        %v3205 = vadd.f32 %v3045, %v3173
        %v3206 = vadd.f32 %v3046, %v3174
        %v3207 = vadd.f32 %v3047, %v3175
        %v3208 = vadd.f32 %v3048, %v3176
        %v3209 = vadd.f32 %v3049, %v3177
        %v3210 = vadd.f32 %v3050, %v3178
        %v3211 = vadd.f32 %v3051, %v3179
        %v3212 = vadd.f32 %v3052, %v3180
        %v3213 = vadd.f32 %v3053, %v3181
        %v3214 = vadd.f32 %v3054, %v3182
        %v3215 = vadd.f32 %v3055, %v3183
        %v3216 = vadd.f32 %v3056, %v3184
        %v3217 = vadd.f32 %v3057, %v3185
        %v3218 = vadd.f32 %v3058, %v3186
        %v3219 = vadd.f32 %v3059, %v3187
        %v3220 = vadd.f32 %v3060, %v3188
        %v3221 = vadd.f32 %v3061, %v3189
        %v3222 = vadd.f32 %v3062, %v791
        %v3223 = vadd.f32 %v3063, %v793
        %v3224 = vadd.f32 %v3064, %v795
        %v3225 = vadd.f32 %v3065, %v797
        %v3226 = vadd.f32 %v3066, %v801
        %v3227 = vadd.f32 %v3067, %v803
        %v3228 = vadd.f32 %v3068, %v805
        %v3229 = vadd.f32 %v3069, %v807
        %v3230 = vadd.f32 %v3070, %v811
        %v3231 = vadd.f32 %v3071, %v813
        %v3232 = vadd.f32 %v3072, %v815
        %v3233 = vadd.f32 %v3073, %v817
        %v3234 = vadd.f32 %v3074, %v821
        %v3235 = vadd.f32 %v3075, %v823
        %v3236 = vadd.f32 %v3076, %v825
        %v3237 = vadd.f32 %v3077, %v827
        %v3238 = vadd.f32 %v3078, %v831
        %v3239 = vadd.f32 %v3079, %v833
        %v3240 = vadd.f32 %v3080, %v835
        %v3241 = vadd.f32 %v3081, %v837
        %v3242 = vadd.f32 %v3082, %v841
        %v3243 = vadd.f32 %v3083, %v843
        %v3244 = vadd.f32 %v3084, %v845
        %v3245 = vadd.f32 %v3085, %v847
        %v3246 = vadd.f32 %v3086, %v851
        %v3247 = vadd.f32 %v3087, %v853
        %v3248 = vadd.f32 %v3088, %v855
        %v3249 = vadd.f32 %v3089, %v857
        %v3250 = vadd.f32 %v3090, %v861
        %v3251 = vadd.f32 %v3091, %v863
        %v3252 = vadd.f32 %v3092, %v865
        %v3253 = vadd.f32 %v3093, %v867
        %vm3254 = vcmp.lt.f32.partialorder %v3222, 1.0
        %vm3255 = vcmp.lt.f32.partialorder %v3223, 1.0
        %vm3256 = vcmp.lt.f32.partialorder %v3224, 1.0
        %vm3257 = vcmp.lt.f32.partialorder %v3225, 1.0
        %vm3258 = vcmp.lt.f32.partialorder %v3226, 1.0
        %vm3259 = vcmp.lt.f32.partialorder %v3227, 1.0
        %vm3260 = vcmp.lt.f32.partialorder %v3228, 1.0
        %vm3261 = vcmp.lt.f32.partialorder %v3229, 1.0
        %vm3262 = vcmp.lt.f32.partialorder %v3230, 1.0
        %vm3263 = vcmp.lt.f32.partialorder %v3231, 1.0
        %vm3264 = vcmp.lt.f32.partialorder %v3232, 1.0
        %vm3265 = vcmp.lt.f32.partialorder %v3233, 1.0
        %vm3266 = vcmp.lt.f32.partialorder %v3234, 1.0
        %vm3267 = vcmp.lt.f32.partialorder %v3235, 1.0
        %vm3268 = vcmp.lt.f32.partialorder %v3236, 1.0
        %vm3269 = vcmp.lt.f32.partialorder %v3237, 1.0
        %vm3270 = vcmp.lt.f32.partialorder %v3238, 1.0
        %vm3271 = vcmp.lt.f32.partialorder %v3239, 1.0
        %vm3272 = vcmp.lt.f32.partialorder %v3240, 1.0
        %vm3273 = vcmp.lt.f32.partialorder %v3241, 1.0
        %vm3274 = vcmp.lt.f32.partialorder %v3242, 1.0
        %vm3275 = vcmp.lt.f32.partialorder %v3243, 1.0
        %vm3276 = vcmp.lt.f32.partialorder %v3244, 1.0
        %vm3277 = vcmp.lt.f32.partialorder %v3245, 1.0
        %vm3278 = vcmp.lt.f32.partialorder %v3246, 1.0
        %vm3279 = vcmp.lt.f32.partialorder %v3247, 1.0
        %vm3280 = vcmp.lt.f32.partialorder %v3248, 1.0
        %vm3281 = vcmp.lt.f32.partialorder %v3249, 1.0
        %vm3282 = vcmp.lt.f32.partialorder %v3250, 1.0
        %vm3283 = vcmp.lt.f32.partialorder %v3251, 1.0
        %vm3284 = vcmp.lt.f32.partialorder %v3252, 1.0
        %vm3285 = vcmp.lt.f32.partialorder %v3253, 1.0
        %v3286 = vsel %vm3254, 1, 0
        %v3287 = vsel %vm3255, 1, 0
        %v3288 = vsel %vm3256, 1, 0
        %v3289 = vsel %vm3257, 1, 0
        %v3290 = vsel %vm3258, 1, 0
        %v3291 = vsel %vm3259, 1, 0
        %v3292 = vsel %vm3260, 1, 0
        %v3293 = vsel %vm3261, 1, 0
        %v3294 = vsel %vm3262, 1, 0
        %v3295 = vsel %vm3263, 1, 0
        %v3296 = vsel %vm3264, 1, 0
        %v3297 = vsel %vm3265, 1, 0
        %v3298 = vsel %vm3266, 1, 0
        %v3299 = vsel %vm3267, 1, 0
        %v3300 = vsel %vm3268, 1, 0
        %v3301 = vsel %vm3269, 1, 0
        %v3302 = vsel %vm3270, 1, 0
        %v3303 = vsel %vm3271, 1, 0
        %v3304 = vsel %vm3272, 1, 0
        %v3305 = vsel %vm3273, 1, 0
        %v3306 = vsel %vm3274, 1, 0
        %v3307 = vsel %vm3275, 1, 0
        %v3308 = vsel %vm3276, 1, 0
        %v3309 = vsel %vm3277, 1, 0
        %v3310 = vsel %vm3278, 1, 0
        %v3311 = vsel %vm3279, 1, 0
        %v3312 = vsel %vm3280, 1, 0
        %v3313 = vsel %vm3281, 1, 0
        %v3314 = vsel %vm3282, 1, 0
        %v3315 = vsel %vm3283, 1, 0
        %v3316 = vsel %vm3284, 1, 0
        %v3317 = vsel %vm3285, 1, 0
        %v3318 = vcvt.s32.f32 %v3286
        %v3319 = vcvt.s32.f32 %v3287
        %v3320 = vcvt.s32.f32 %v3288
        %v3321 = vcvt.s32.f32 %v3289
        %v3322 = vcvt.s32.f32 %v3290
        %v3323 = vcvt.s32.f32 %v3291
        %v3324 = vcvt.s32.f32 %v3292
        %v3325 = vcvt.s32.f32 %v3293
        %v3326 = vcvt.s32.f32 %v3294
        %v3327 = vcvt.s32.f32 %v3295
        %v3328 = vcvt.s32.f32 %v3296
        %v3329 = vcvt.s32.f32 %v3297
        %v3330 = vcvt.s32.f32 %v3298
        %v3331 = vcvt.s32.f32 %v3299
        %v3332 = vcvt.s32.f32 %v3300
        %v3333 = vcvt.s32.f32 %v3301
        %v3334 = vcvt.s32.f32 %v3302
        %v3335 = vcvt.s32.f32 %v3303
        %v3336 = vcvt.s32.f32 %v3304
        %v3337 = vcvt.s32.f32 %v3305
        %v3338 = vcvt.s32.f32 %v3306
        %v3339 = vcvt.s32.f32 %v3307
        %v3340 = vcvt.s32.f32 %v3308
        %v3341 = vcvt.s32.f32 %v3309
        %v3342 = vcvt.s32.f32 %v3310
        %v3343 = vcvt.s32.f32 %v3311
        %v3344 = vcvt.s32.f32 %v3312
        %v3345 = vcvt.s32.f32 %v3313
        %v3346 = vcvt.s32.f32 %v3314
        %v3347 = vcvt.s32.f32 %v3315
        %v3348 = vcvt.s32.f32 %v3316
        %v3349 = vcvt.s32.f32 %v3317
        %v3350 = vadd.f32 %v3190, %v3318
        %v3351 = vadd.f32 %v3191, %v3319
        %v3352 = vadd.f32 %v3192, %v3320
        %v3353 = vadd.f32 %v3193, %v3321
        %v3354 = vadd.f32 %v3194, %v3322
        %v3355 = vadd.f32 %v3195, %v3323
        %v3356 = vadd.f32 %v3196, %v3324
        %v3357 = vadd.f32 %v3197, %v3325
        %v3358 = vadd.f32 %v3198, %v3326
        %v3359 = vadd.f32 %v3199, %v3327
        %v3360 = vadd.f32 %v3200, %v3328
        %v3361 = vadd.f32 %v3201, %v3329
        %v3362 = vadd.f32 %v3202, %v3330
        %v3363 = vadd.f32 %v3203, %v3331
        %v3364 = vadd.f32 %v3204, %v3332
        %v3365 = vadd.f32 %v3205, %v3333
        %v3366 = vadd.f32 %v3206, %v3334
        %v3367 = vadd.f32 %v3207, %v3335
        %v3368 = vadd.f32 %v3208, %v3336
        %v3369 = vadd.f32 %v3209, %v3337
        %v3370 = vadd.f32 %v3210, %v3338
        %v3371 = vadd.f32 %v3211, %v3339
        %v3372 = vadd.f32 %v3212, %v3340
        %v3373 = vadd.f32 %v3213, %v3341
        %v3374 = vadd.f32 %v3214, %v3342
        %v3375 = vadd.f32 %v3215, %v3343
        %v3376 = vadd.f32 %v3216, %v3344
        %v3377 = vadd.f32 %v3217, %v3345
        %v3378 = vadd.f32 %v3218, %v3346
        %v3379 = vadd.f32 %v3219, %v3347
        %v3380 = vadd.f32 %v3220, %v3348
        %v3381 = vadd.f32 %v3221, %v3349
        %v3382 = vadd.f32 %v3222, %v791
        %v3383 = vadd.f32 %v3223, %v793
        %v3384 = vadd.f32 %v3224, %v795
        %v3385 = vadd.f32 %v3225, %v797
        %v3386 = vadd.f32 %v3226, %v801
        %v3387 = vadd.f32 %v3227, %v803
        %v3388 = vadd.f32 %v3228, %v805
        %v3389 = vadd.f32 %v3229, %v807
        %v3390 = vadd.f32 %v3230, %v811
        %v3391 = vadd.f32 %v3231, %v813
        %v3392 = vadd.f32 %v3232, %v815
        %v3393 = vadd.f32 %v3233, %v817
        %v3394 = vadd.f32 %v3234, %v821
        %v3395 = vadd.f32 %v3235, %v823
        %v3396 = vadd.f32 %v3236, %v825
        %v3397 = vadd.f32 %v3237, %v827
        %v3398 = vadd.f32 %v3238, %v831
        %v3399 = vadd.f32 %v3239, %v833
        %v3400 = vadd.f32 %v3240, %v835
        %v3401 = vadd.f32 %v3241, %v837
        %v3402 = vadd.f32 %v3242, %v841
        %v3403 = vadd.f32 %v3243, %v843
        %v3404 = vadd.f32 %v3244, %v845
        %v3405 = vadd.f32 %v3245, %v847
        %v3406 = vadd.f32 %v3246, %v851
        %v3407 = vadd.f32 %v3247, %v853
        %v3408 = vadd.f32 %v3248, %v855
        %v3409 = vadd.f32 %v3249, %v857
        %v3410 = vadd.f32 %v3250, %v861
        %v3411 = vadd.f32 %v3251, %v863
        %v3412 = vadd.f32 %v3252, %v865
        %v3413 = vadd.f32 %v3253, %v867
        %vm3414 = vcmp.lt.f32.partialorder %v3382, 1.0
        %vm3415 = vcmp.lt.f32.partialorder %v3383, 1.0
        %vm3416 = vcmp.lt.f32.partialorder %v3384, 1.0
        %vm3417 = vcmp.lt.f32.partialorder %v3385, 1.0
        %vm3418 = vcmp.lt.f32.partialorder %v3386, 1.0
        %vm3419 = vcmp.lt.f32.partialorder %v3387, 1.0
        %vm3420 = vcmp.lt.f32.partialorder %v3388, 1.0
        %vm3421 = vcmp.lt.f32.partialorder %v3389, 1.0
        %vm3422 = vcmp.lt.f32.partialorder %v3390, 1.0
        %vm3423 = vcmp.lt.f32.partialorder %v3391, 1.0
        %vm3424 = vcmp.lt.f32.partialorder %v3392, 1.0
        %vm3425 = vcmp.lt.f32.partialorder %v3393, 1.0
        %vm3426 = vcmp.lt.f32.partialorder %v3394, 1.0
        %vm3427 = vcmp.lt.f32.partialorder %v3395, 1.0
        %vm3428 = vcmp.lt.f32.partialorder %v3396, 1.0
        %vm3429 = vcmp.lt.f32.partialorder %v3397, 1.0
        %vm3430 = vcmp.lt.f32.partialorder %v3398, 1.0
        %vm3431 = vcmp.lt.f32.partialorder %v3399, 1.0
        %vm3432 = vcmp.lt.f32.partialorder %v3400, 1.0
        %vm3433 = vcmp.lt.f32.partialorder %v3401, 1.0
        %vm3434 = vcmp.lt.f32.partialorder %v3402, 1.0
        %vm3435 = vcmp.lt.f32.partialorder %v3403, 1.0
        %vm3436 = vcmp.lt.f32.partialorder %v3404, 1.0
        %vm3437 = vcmp.lt.f32.partialorder %v3405, 1.0
        %vm3438 = vcmp.lt.f32.partialorder %v3406, 1.0
        %vm3439 = vcmp.lt.f32.partialorder %v3407, 1.0
        %vm3440 = vcmp.lt.f32.partialorder %v3408, 1.0
        %vm3441 = vcmp.lt.f32.partialorder %v3409, 1.0
        %vm3442 = vcmp.lt.f32.partialorder %v3410, 1.0
        %vm3443 = vcmp.lt.f32.partialorder %v3411, 1.0
        %vm3444 = vcmp.lt.f32.partialorder %v3412, 1.0
        %vm3445 = vcmp.lt.f32.partialorder %v3413, 1.0
        %v3446 = vsel %vm3414, 1, 0
        %v3447 = vsel %vm3415, 1, 0
        %v3448 = vsel %vm3416, 1, 0
        %v3449 = vsel %vm3417, 1, 0
        %v3450 = vsel %vm3418, 1, 0
        %v3451 = vsel %vm3419, 1, 0
        %v3452 = vsel %vm3420, 1, 0
        %v3453 = vsel %vm3421, 1, 0
        %v3454 = vsel %vm3422, 1, 0
        %v3455 = vsel %vm3423, 1, 0
        %v3456 = vsel %vm3424, 1, 0
        %v3457 = vsel %vm3425, 1, 0
        %v3458 = vsel %vm3426, 1, 0
        %v3459 = vsel %vm3427, 1, 0
        %v3460 = vsel %vm3428, 1, 0
        %v3461 = vsel %vm3429, 1, 0
        %v3462 = vsel %vm3430, 1, 0
        %v3463 = vsel %vm3431, 1, 0
        %v3464 = vsel %vm3432, 1, 0
        %v3465 = vsel %vm3433, 1, 0
        %v3466 = vsel %vm3434, 1, 0
        %v3467 = vsel %vm3435, 1, 0
        %v3468 = vsel %vm3436, 1, 0
        %v3469 = vsel %vm3437, 1, 0
        %v3470 = vsel %vm3438, 1, 0
        %v3471 = vsel %vm3439, 1, 0
        %v3472 = vsel %vm3440, 1, 0
        %v3473 = vsel %vm3441, 1, 0
        %v3474 = vsel %vm3442, 1, 0
        %v3475 = vsel %vm3443, 1, 0
        %v3476 = vsel %vm3444, 1, 0
        %v3477 = vsel %vm3445, 1, 0
        %v3478 = vcvt.s32.f32 %v3446
        %v3479 = vcvt.s32.f32 %v3447
        %v3480 = vcvt.s32.f32 %v3448
        %v3481 = vcvt.s32.f32 %v3449
        %v3482 = vcvt.s32.f32 %v3450
        %v3483 = vcvt.s32.f32 %v3451
        %v3484 = vcvt.s32.f32 %v3452
        %v3485 = vcvt.s32.f32 %v3453
        %v3486 = vcvt.s32.f32 %v3454
        %v3487 = vcvt.s32.f32 %v3455
        %v3488 = vcvt.s32.f32 %v3456
        %v3489 = vcvt.s32.f32 %v3457
        %v3490 = vcvt.s32.f32 %v3458
        %v3491 = vcvt.s32.f32 %v3459
        %v3492 = vcvt.s32.f32 %v3460
        %v3493 = vcvt.s32.f32 %v3461
        %v3494 = vcvt.s32.f32 %v3462
        %v3495 = vcvt.s32.f32 %v3463
        %v3496 = vcvt.s32.f32 %v3464
        %v3497 = vcvt.s32.f32 %v3465
        %v3498 = vcvt.s32.f32 %v3466
        %v3499 = vcvt.s32.f32 %v3467
        %v3500 = vcvt.s32.f32 %v3468
        %v3501 = vcvt.s32.f32 %v3469
        %v3502 = vcvt.s32.f32 %v3470
        %v3503 = vcvt.s32.f32 %v3471
        %v3504 = vcvt.s32.f32 %v3472
        %v3505 = vcvt.s32.f32 %v3473
        %v3506 = vcvt.s32.f32 %v3474
        %v3507 = vcvt.s32.f32 %v3475
        %v3508 = vcvt.s32.f32 %v3476
        %v3509 = vcvt.s32.f32 %v3477
        %v3510 = vadd.f32 %v3350, %v3478
        %v3511 = vadd.f32 %v3351, %v3479
        %v3512 = vadd.f32 %v3352, %v3480
        %v3513 = vadd.f32 %v3353, %v3481
        %v3514 = vadd.f32 %v3354, %v3482
        %v3515 = vadd.f32 %v3355, %v3483
        %v3516 = vadd.f32 %v3356, %v3484
        %v3517 = vadd.f32 %v3357, %v3485
        %v3518 = vadd.f32 %v3358, %v3486
        %v3519 = vadd.f32 %v3359, %v3487
        %v3520 = vadd.f32 %v3360, %v3488
        %v3521 = vadd.f32 %v3361, %v3489
        %v3522 = vadd.f32 %v3362, %v3490
        %v3523 = vadd.f32 %v3363, %v3491
        %v3524 = vadd.f32 %v3364, %v3492
        %v3525 = vadd.f32 %v3365, %v3493
        %v3526 = vadd.f32 %v3366, %v3494
        %v3527 = vadd.f32 %v3367, %v3495
        %v3528 = vadd.f32 %v3368, %v3496
        %v3529 = vadd.f32 %v3369, %v3497
        %v3530 = vadd.f32 %v3370, %v3498
        %v3531 = vadd.f32 %v3371, %v3499
        %v3532 = vadd.f32 %v3372, %v3500
        %v3533 = vadd.f32 %v3373, %v3501
        %v3534 = vadd.f32 %v3374, %v3502
        %v3535 = vadd.f32 %v3375, %v3503
        %v3536 = vadd.f32 %v3376, %v3504
        %v3537 = vadd.f32 %v3377, %v3505
        %v3538 = vadd.f32 %v3378, %v3506
        %v3539 = vadd.f32 %v3379, %v3507
        %v3540 = vadd.f32 %v3380, %v3508
        %v3541 = vadd.f32 %v3381, %v3509
        %v3542 = vadd.f32 %v3382, %v791
        %v3543 = vadd.f32 %v3383, %v793
        %v3544 = vadd.f32 %v3384, %v795
        %v3545 = vadd.f32 %v3385, %v797
        %v3546 = vadd.f32 %v3386, %v801
        %v3547 = vadd.f32 %v3387, %v803
        %v3548 = vadd.f32 %v3388, %v805
        %v3549 = vadd.f32 %v3389, %v807
        %v3550 = vadd.f32 %v3390, %v811
        %v3551 = vadd.f32 %v3391, %v813
        %v3552 = vadd.f32 %v3392, %v815
        %v3553 = vadd.f32 %v3393, %v817
        %v3554 = vadd.f32 %v3394, %v821
        %v3555 = vadd.f32 %v3395, %v823
        %v3556 = vadd.f32 %v3396, %v825
        %v3557 = vadd.f32 %v3397, %v827
        %v3558 = vadd.f32 %v3398, %v831
        %v3559 = vadd.f32 %v3399, %v833
        %v3560 = vadd.f32 %v3400, %v835
        %v3561 = vadd.f32 %v3401, %v837
        %v3562 = vadd.f32 %v3402, %v841
        %v3563 = vadd.f32 %v3403, %v843
        %v3564 = vadd.f32 %v3404, %v845
        %v3565 = vadd.f32 %v3405, %v847
        %v3566 = vadd.f32 %v3406, %v851
        %v3567 = vadd.f32 %v3407, %v853
        %v3568 = vadd.f32 %v3408, %v855
        %v3569 = vadd.f32 %v3409, %v857
        %v3570 = vadd.f32 %v3410, %v861
        %v3571 = vadd.f32 %v3411, %v863
        %v3572 = vadd.f32 %v3412, %v865
        %v3573 = vadd.f32 %v3413, %v867
        %vm3574 = vcmp.lt.f32.partialorder %v3542, 1.0
        %vm3575 = vcmp.lt.f32.partialorder %v3543, 1.0
        %vm3576 = vcmp.lt.f32.partialorder %v3544, 1.0
        %vm3577 = vcmp.lt.f32.partialorder %v3545, 1.0
        %vm3578 = vcmp.lt.f32.partialorder %v3546, 1.0
        %vm3579 = vcmp.lt.f32.partialorder %v3547, 1.0
        %vm3580 = vcmp.lt.f32.partialorder %v3548, 1.0
        %vm3581 = vcmp.lt.f32.partialorder %v3549, 1.0
        %vm3582 = vcmp.lt.f32.partialorder %v3550, 1.0
        %vm3583 = vcmp.lt.f32.partialorder %v3551, 1.0
        %vm3584 = vcmp.lt.f32.partialorder %v3552, 1.0
        %vm3585 = vcmp.lt.f32.partialorder %v3553, 1.0
        %vm3586 = vcmp.lt.f32.partialorder %v3554, 1.0
        %vm3587 = vcmp.lt.f32.partialorder %v3555, 1.0
        %vm3588 = vcmp.lt.f32.partialorder %v3556, 1.0
        %vm3589 = vcmp.lt.f32.partialorder %v3557, 1.0
        %vm3590 = vcmp.lt.f32.partialorder %v3558, 1.0
        %vm3591 = vcmp.lt.f32.partialorder %v3559, 1.0
        %vm3592 = vcmp.lt.f32.partialorder %v3560, 1.0
        %vm3593 = vcmp.lt.f32.partialorder %v3561, 1.0
        %vm3594 = vcmp.lt.f32.partialorder %v3562, 1.0
        %vm3595 = vcmp.lt.f32.partialorder %v3563, 1.0
        %vm3596 = vcmp.lt.f32.partialorder %v3564, 1.0
        %vm3597 = vcmp.lt.f32.partialorder %v3565, 1.0
        %vm3598 = vcmp.lt.f32.partialorder %v3566, 1.0
        %vm3599 = vcmp.lt.f32.partialorder %v3567, 1.0
        %vm3600 = vcmp.lt.f32.partialorder %v3568, 1.0
        %vm3601 = vcmp.lt.f32.partialorder %v3569, 1.0
        %vm3602 = vcmp.lt.f32.partialorder %v3570, 1.0
        %vm3603 = vcmp.lt.f32.partialorder %v3571, 1.0
        %vm3604 = vcmp.lt.f32.partialorder %v3572, 1.0
        %vm3605 = vcmp.lt.f32.partialorder %v3573, 1.0
        %v3606 = vsel %vm3574, 1, 0
        %v3607 = vsel %vm3575, 1, 0
        %v3608 = vsel %vm3576, 1, 0
        %v3609 = vsel %vm3577, 1, 0
        %v3610 = vsel %vm3578, 1, 0
        %v3611 = vsel %vm3579, 1, 0
        %v3612 = vsel %vm3580, 1, 0
        %v3613 = vsel %vm3581, 1, 0
        %v3614 = vsel %vm3582, 1, 0
        %v3615 = vsel %vm3583, 1, 0
        %v3616 = vsel %vm3584, 1, 0
        %v3617 = vsel %vm3585, 1, 0
        %v3618 = vsel %vm3586, 1, 0
        %v3619 = vsel %vm3587, 1, 0
        %v3620 = vsel %vm3588, 1, 0
        %v3621 = vsel %vm3589, 1, 0
        %v3622 = vsel %vm3590, 1, 0
        %v3623 = vsel %vm3591, 1, 0
        %v3624 = vsel %vm3592, 1, 0
        %v3625 = vsel %vm3593, 1, 0
        %v3626 = vsel %vm3594, 1, 0
        %v3627 = vsel %vm3595, 1, 0
        %v3628 = vsel %vm3596, 1, 0
        %v3629 = vsel %vm3597, 1, 0
        %v3630 = vsel %vm3598, 1, 0
        %v3631 = vsel %vm3599, 1, 0
        %v3632 = vsel %vm3600, 1, 0
        %v3633 = vsel %vm3601, 1, 0
        %v3634 = vsel %vm3602, 1, 0
        %v3635 = vsel %vm3603, 1, 0
        %v3636 = vsel %vm3604, 1, 0
        %v3637 = vsel %vm3605, 1, 0
        %v3638 = vcvt.s32.f32 %v3606
        %v3639 = vcvt.s32.f32 %v3607
        %v3640 = vcvt.s32.f32 %v3608
        %v3641 = vcvt.s32.f32 %v3609
        %v3642 = vcvt.s32.f32 %v3610
        %v3643 = vcvt.s32.f32 %v3611
        %v3644 = vcvt.s32.f32 %v3612
        %v3645 = vcvt.s32.f32 %v3613
        %v3646 = vcvt.s32.f32 %v3614
        %v3647 = vcvt.s32.f32 %v3615
        %v3648 = vcvt.s32.f32 %v3616
        %v3649 = vcvt.s32.f32 %v3617
        %v3650 = vcvt.s32.f32 %v3618
        %v3651 = vcvt.s32.f32 %v3619
        %v3652 = vcvt.s32.f32 %v3620
        %v3653 = vcvt.s32.f32 %v3621
        %v3654 = vcvt.s32.f32 %v3622
        %v3655 = vcvt.s32.f32 %v3623
        %v3656 = vcvt.s32.f32 %v3624
        %v3657 = vcvt.s32.f32 %v3625
        %v3658 = vcvt.s32.f32 %v3626
        %v3659 = vcvt.s32.f32 %v3627
        %v3660 = vcvt.s32.f32 %v3628
        %v3661 = vcvt.s32.f32 %v3629
        %v3662 = vcvt.s32.f32 %v3630
        %v3663 = vcvt.s32.f32 %v3631
        %v3664 = vcvt.s32.f32 %v3632
        %v3665 = vcvt.s32.f32 %v3633
        %v3666 = vcvt.s32.f32 %v3634
        %v3667 = vcvt.s32.f32 %v3635
        %v3668 = vcvt.s32.f32 %v3636
        %v3669 = vcvt.s32.f32 %v3637
        %v3670 = vadd.f32 %v3510, %v3638
        %v3671 = vadd.f32 %v3511, %v3639
        %v3672 = vadd.f32 %v3512, %v3640
        %v3673 = vadd.f32 %v3513, %v3641
        %v3674 = vadd.f32 %v3514, %v3642
        %v3675 = vadd.f32 %v3515, %v3643
        %v3676 = vadd.f32 %v3516, %v3644
        %v3677 = vadd.f32 %v3517, %v3645
        %v3678 = vadd.f32 %v3518, %v3646
        %v3679 = vadd.f32 %v3519, %v3647
        %v3680 = vadd.f32 %v3520, %v3648
        %v3681 = vadd.f32 %v3521, %v3649
        %v3682 = vadd.f32 %v3522, %v3650
        %v3683 = vadd.f32 %v3523, %v3651
        %v3684 = vadd.f32 %v3524, %v3652
        %v3685 = vadd.f32 %v3525, %v3653
        %v3686 = vadd.f32 %v3526, %v3654
        %v3687 = vadd.f32 %v3527, %v3655
        %v3688 = vadd.f32 %v3528, %v3656
        %v3689 = vadd.f32 %v3529, %v3657
        %v3690 = vadd.f32 %v3530, %v3658
        %v3691 = vadd.f32 %v3531, %v3659
        %v3692 = vadd.f32 %v3532, %v3660
        %v3693 = vadd.f32 %v3533, %v3661
        %v3694 = vadd.f32 %v3534, %v3662
        %v3695 = vadd.f32 %v3535, %v3663
        %v3696 = vadd.f32 %v3536, %v3664
        %v3697 = vadd.f32 %v3537, %v3665
        %v3698 = vadd.f32 %v3538, %v3666
        %v3699 = vadd.f32 %v3539, %v3667
        %v3700 = vadd.f32 %v3540, %v3668
        %v3701 = vadd.f32 %v3541, %v3669
        %v3702 = vadd.f32 %v3542, %v791
        %v3703 = vadd.f32 %v3543, %v793
        %v3704 = vadd.f32 %v3544, %v795
        %v3705 = vadd.f32 %v3545, %v797
        %v3706 = vadd.f32 %v3546, %v801
        %v3707 = vadd.f32 %v3547, %v803
        %v3708 = vadd.f32 %v3548, %v805
        %v3709 = vadd.f32 %v3549, %v807
        %v3710 = vadd.f32 %v3550, %v811
        %v3711 = vadd.f32 %v3551, %v813
        %v3712 = vadd.f32 %v3552, %v815
        %v3713 = vadd.f32 %v3553, %v817
        %v3714 = vadd.f32 %v3554, %v821
        %v3715 = vadd.f32 %v3555, %v823
        %v3716 = vadd.f32 %v3556, %v825
        %v3717 = vadd.f32 %v3557, %v827
        %v3718 = vadd.f32 %v3558, %v831
        %v3719 = vadd.f32 %v3559, %v833
        %v3720 = vadd.f32 %v3560, %v835
        %v3721 = vadd.f32 %v3561, %v837
        %v3722 = vadd.f32 %v3562, %v841
        %v3723 = vadd.f32 %v3563, %v843
        %v3724 = vadd.f32 %v3564, %v845
        %v3725 = vadd.f32 %v3565, %v847
        %v3726 = vadd.f32 %v3566, %v851
        %v3727 = vadd.f32 %v3567, %v853
        %v3728 = vadd.f32 %v3568, %v855
        %v3729 = vadd.f32 %v3569, %v857
        %v3730 = vadd.f32 %v3570, %v861
        %v3731 = vadd.f32 %v3571, %v863
        %v3732 = vadd.f32 %v3572, %v865
        %v3733 = vadd.f32 %v3573, %v867
        %vm3734 = vcmp.lt.f32.partialorder %v3702, 1.0
        %vm3735 = vcmp.lt.f32.partialorder %v3703, 1.0
        %vm3736 = vcmp.lt.f32.partialorder %v3704, 1.0
        %vm3737 = vcmp.lt.f32.partialorder %v3705, 1.0
        %vm3738 = vcmp.lt.f32.partialorder %v3706, 1.0
        %vm3739 = vcmp.lt.f32.partialorder %v3707, 1.0
        %vm3740 = vcmp.lt.f32.partialorder %v3708, 1.0
        %vm3741 = vcmp.lt.f32.partialorder %v3709, 1.0
        %vm3742 = vcmp.lt.f32.partialorder %v3710, 1.0
        %vm3743 = vcmp.lt.f32.partialorder %v3711, 1.0
        %vm3744 = vcmp.lt.f32.partialorder %v3712, 1.0
        %vm3745 = vcmp.lt.f32.partialorder %v3713, 1.0
        %vm3746 = vcmp.lt.f32.partialorder %v3714, 1.0
        %vm3747 = vcmp.lt.f32.partialorder %v3715, 1.0
        %vm3748 = vcmp.lt.f32.partialorder %v3716, 1.0
        %vm3749 = vcmp.lt.f32.partialorder %v3717, 1.0
        %vm3750 = vcmp.lt.f32.partialorder %v3718, 1.0
        %vm3751 = vcmp.lt.f32.partialorder %v3719, 1.0
        %vm3752 = vcmp.lt.f32.partialorder %v3720, 1.0
        %vm3753 = vcmp.lt.f32.partialorder %v3721, 1.0
        %vm3754 = vcmp.lt.f32.partialorder %v3722, 1.0
        %vm3755 = vcmp.lt.f32.partialorder %v3723, 1.0
        %vm3756 = vcmp.lt.f32.partialorder %v3724, 1.0
        %vm3757 = vcmp.lt.f32.partialorder %v3725, 1.0
        %vm3758 = vcmp.lt.f32.partialorder %v3726, 1.0
        %vm3759 = vcmp.lt.f32.partialorder %v3727, 1.0
        %vm3760 = vcmp.lt.f32.partialorder %v3728, 1.0
        %vm3761 = vcmp.lt.f32.partialorder %v3729, 1.0
        %vm3762 = vcmp.lt.f32.partialorder %v3730, 1.0
        %vm3763 = vcmp.lt.f32.partialorder %v3731, 1.0
        %vm3764 = vcmp.lt.f32.partialorder %v3732, 1.0
        %vm3765 = vcmp.lt.f32.partialorder %v3733, 1.0
        %v3766 = vsel %vm3734, 1, 0
        %v3767 = vsel %vm3735, 1, 0
        %v3768 = vsel %vm3736, 1, 0
        %v3769 = vsel %vm3737, 1, 0
        %v3770 = vsel %vm3738, 1, 0
        %v3771 = vsel %vm3739, 1, 0
        %v3772 = vsel %vm3740, 1, 0
        %v3773 = vsel %vm3741, 1, 0
        %v3774 = vsel %vm3742, 1, 0
        %v3775 = vsel %vm3743, 1, 0
        %v3776 = vsel %vm3744, 1, 0
        %v3777 = vsel %vm3745, 1, 0
        %v3778 = vsel %vm3746, 1, 0
        %v3779 = vsel %vm3747, 1, 0
        %v3780 = vsel %vm3748, 1, 0
        %v3781 = vsel %vm3749, 1, 0
        %v3782 = vsel %vm3750, 1, 0
        %v3783 = vsel %vm3751, 1, 0
        %v3784 = vsel %vm3752, 1, 0
        %v3785 = vsel %vm3753, 1, 0
        %v3786 = vsel %vm3754, 1, 0
        %v3787 = vsel %vm3755, 1, 0
        %v3788 = vsel %vm3756, 1, 0
        %v3789 = vsel %vm3757, 1, 0
        %v3790 = vsel %vm3758, 1, 0
        %v3791 = vsel %vm3759, 1, 0
        %v3792 = vsel %vm3760, 1, 0
        %v3793 = vsel %vm3761, 1, 0
        %v3794 = vsel %vm3762, 1, 0
        %v3795 = vsel %vm3763, 1, 0
        %v3796 = vsel %vm3764, 1, 0
        %v3797 = vsel %vm3765, 1, 0
        %v3798 = vcvt.s32.f32 %v3766
        %v3799 = vcvt.s32.f32 %v3767
        %v3800 = vcvt.s32.f32 %v3768
        %v3801 = vcvt.s32.f32 %v3769
        %v3802 = vcvt.s32.f32 %v3770
        %v3803 = vcvt.s32.f32 %v3771
        %v3804 = vcvt.s32.f32 %v3772
        %v3805 = vcvt.s32.f32 %v3773
        %v3806 = vcvt.s32.f32 %v3774
        %v3807 = vcvt.s32.f32 %v3775
        %v3808 = vcvt.s32.f32 %v3776
        %v3809 = vcvt.s32.f32 %v3777
        %v3810 = vcvt.s32.f32 %v3778
        %v3811 = vcvt.s32.f32 %v3779
        %v3812 = vcvt.s32.f32 %v3780
        %v3813 = vcvt.s32.f32 %v3781
        %v3814 = vcvt.s32.f32 %v3782
        %v3815 = vcvt.s32.f32 %v3783
        %v3816 = vcvt.s32.f32 %v3784
        %v3817 = vcvt.s32.f32 %v3785
        %v3818 = vcvt.s32.f32 %v3786
        %v3819 = vcvt.s32.f32 %v3787
        %v3820 = vcvt.s32.f32 %v3788
        %v3821 = vcvt.s32.f32 %v3789
        %v3822 = vcvt.s32.f32 %v3790
        %v3823 = vcvt.s32.f32 %v3791
        %v3824 = vcvt.s32.f32 %v3792
        %v3825 = vcvt.s32.f32 %v3793
        %v3826 = vcvt.s32.f32 %v3794
        %v3827 = vcvt.s32.f32 %v3795
        %v3828 = vcvt.s32.f32 %v3796
        %v3829 = vcvt.s32.f32 %v3797
        %v3830 = vadd.f32 %v3670, %v3798
        %v3831 = vadd.f32 %v3671, %v3799
        %v3832 = vadd.f32 %v3672, %v3800
        %v3833 = vadd.f32 %v3673, %v3801
        %v3834 = vadd.f32 %v3674, %v3802
        %v3835 = vadd.f32 %v3675, %v3803
        %v3836 = vadd.f32 %v3676, %v3804
        %v3837 = vadd.f32 %v3677, %v3805
        %v3838 = vadd.f32 %v3678, %v3806
        %v3839 = vadd.f32 %v3679, %v3807
        %v3840 = vadd.f32 %v3680, %v3808
        %v3841 = vadd.f32 %v3681, %v3809
        %v3842 = vadd.f32 %v3682, %v3810
        %v3843 = vadd.f32 %v3683, %v3811
        %v3844 = vadd.f32 %v3684, %v3812
        %v3845 = vadd.f32 %v3685, %v3813
        %v3846 = vadd.f32 %v3686, %v3814
        %v3847 = vadd.f32 %v3687, %v3815
        %v3848 = vadd.f32 %v3688, %v3816
        %v3849 = vadd.f32 %v3689, %v3817
        %v3850 = vadd.f32 %v3690, %v3818
        %v3851 = vadd.f32 %v3691, %v3819
        %v3852 = vadd.f32 %v3692, %v3820
        %v3853 = vadd.f32 %v3693, %v3821
        %v3854 = vadd.f32 %v3694, %v3822
        %v3855 = vadd.f32 %v3695, %v3823
        %v3856 = vadd.f32 %v3696, %v3824
        %v3857 = vadd.f32 %v3697, %v3825
        %v3858 = vadd.f32 %v3698, %v3826
        %v3859 = vadd.f32 %v3699, %v3827
        %v3860 = vadd.f32 %v3700, %v3828
        %v3861 = vadd.f32 %v3701, %v3829
        %v3862 = vadd.f32 %v3702, %v791
        %v3863 = vadd.f32 %v3703, %v793
        %v3864 = vadd.f32 %v3704, %v795
        %v3865 = vadd.f32 %v3705, %v797
        %v3866 = vadd.f32 %v3706, %v801
        %v3867 = vadd.f32 %v3707, %v803
        %v3868 = vadd.f32 %v3708, %v805
        %v3869 = vadd.f32 %v3709, %v807
        %v3870 = vadd.f32 %v3710, %v811
        %v3871 = vadd.f32 %v3711, %v813
        %v3872 = vadd.f32 %v3712, %v815
        %v3873 = vadd.f32 %v3713, %v817
        %v3874 = vadd.f32 %v3714, %v821
        %v3875 = vadd.f32 %v3715, %v823
        %v3876 = vadd.f32 %v3716, %v825
        %v3877 = vadd.f32 %v3717, %v827
        %v3878 = vadd.f32 %v3718, %v831
        %v3879 = vadd.f32 %v3719, %v833
        %v3880 = vadd.f32 %v3720, %v835
        %v3881 = vadd.f32 %v3721, %v837
        %v3882 = vadd.f32 %v3722, %v841
        %v3883 = vadd.f32 %v3723, %v843
        %v3884 = vadd.f32 %v3724, %v845
        %v3885 = vadd.f32 %v3725, %v847
        %v3886 = vadd.f32 %v3726, %v851
        %v3887 = vadd.f32 %v3727, %v853
        %v3888 = vadd.f32 %v3728, %v855
        %v3889 = vadd.f32 %v3729, %v857
        %v3890 = vadd.f32 %v3730, %v861
        %v3891 = vadd.f32 %v3731, %v863
        %v3892 = vadd.f32 %v3732, %v865
        %v3893 = vadd.f32 %v3733, %v867
        %vm3894 = vcmp.lt.f32.partialorder %v3862, 1.0
        %vm3895 = vcmp.lt.f32.partialorder %v3863, 1.0
        %vm3896 = vcmp.lt.f32.partialorder %v3864, 1.0
        %vm3897 = vcmp.lt.f32.partialorder %v3865, 1.0
        %vm3898 = vcmp.lt.f32.partialorder %v3866, 1.0
        %vm3899 = vcmp.lt.f32.partialorder %v3867, 1.0
        %vm3900 = vcmp.lt.f32.partialorder %v3868, 1.0
        %vm3901 = vcmp.lt.f32.partialorder %v3869, 1.0
        %vm3902 = vcmp.lt.f32.partialorder %v3870, 1.0
        %vm3903 = vcmp.lt.f32.partialorder %v3871, 1.0
        %vm3904 = vcmp.lt.f32.partialorder %v3872, 1.0
        %vm3905 = vcmp.lt.f32.partialorder %v3873, 1.0
        %vm3906 = vcmp.lt.f32.partialorder %v3874, 1.0
        %vm3907 = vcmp.lt.f32.partialorder %v3875, 1.0
        %vm3908 = vcmp.lt.f32.partialorder %v3876, 1.0
        %vm3909 = vcmp.lt.f32.partialorder %v3877, 1.0
        %vm3910 = vcmp.lt.f32.partialorder %v3878, 1.0
        %vm3911 = vcmp.lt.f32.partialorder %v3879, 1.0
        %vm3912 = vcmp.lt.f32.partialorder %v3880, 1.0
        %vm3913 = vcmp.lt.f32.partialorder %v3881, 1.0
        %vm3914 = vcmp.lt.f32.partialorder %v3882, 1.0
        %vm3915 = vcmp.lt.f32.partialorder %v3883, 1.0
        %vm3916 = vcmp.lt.f32.partialorder %v3884, 1.0
        %vm3917 = vcmp.lt.f32.partialorder %v3885, 1.0
        %vm3918 = vcmp.lt.f32.partialorder %v3886, 1.0
        %vm3919 = vcmp.lt.f32.partialorder %v3887, 1.0
        %vm3920 = vcmp.lt.f32.partialorder %v3888, 1.0
        %vm3921 = vcmp.lt.f32.partialorder %v3889, 1.0
        %vm3922 = vcmp.lt.f32.partialorder %v3890, 1.0
        %vm3923 = vcmp.lt.f32.partialorder %v3891, 1.0
        %vm3924 = vcmp.lt.f32.partialorder %v3892, 1.0
        %vm3925 = vcmp.lt.f32.partialorder %v3893, 1.0
        %v3926 = vsel %vm3894, 1, 0
        %v3927 = vsel %vm3895, 1, 0
        %v3928 = vsel %vm3896, 1, 0
        %v3929 = vsel %vm3897, 1, 0
        %v3930 = vsel %vm3898, 1, 0
        %v3931 = vsel %vm3899, 1, 0
        %v3932 = vsel %vm3900, 1, 0
        %v3933 = vsel %vm3901, 1, 0
        %v3934 = vsel %vm3902, 1, 0
        %v3935 = vsel %vm3903, 1, 0
        %v3936 = vsel %vm3904, 1, 0
        %v3937 = vsel %vm3905, 1, 0
        %v3938 = vsel %vm3906, 1, 0
        %v3939 = vsel %vm3907, 1, 0
        %v3940 = vsel %vm3908, 1, 0
        %v3941 = vsel %vm3909, 1, 0
        %v3942 = vsel %vm3910, 1, 0
        %v3943 = vsel %vm3911, 1, 0
        %v3944 = vsel %vm3912, 1, 0
        %v3945 = vsel %vm3913, 1, 0
        %v3946 = vsel %vm3914, 1, 0
        %v3947 = vsel %vm3915, 1, 0
        %v3948 = vsel %vm3916, 1, 0
        %v3949 = vsel %vm3917, 1, 0
        %v3950 = vsel %vm3918, 1, 0
        %v3951 = vsel %vm3919, 1, 0
        %v3952 = vsel %vm3920, 1, 0
        %v3953 = vsel %vm3921, 1, 0
        %v3954 = vsel %vm3922, 1, 0
        %v3955 = vsel %vm3923, 1, 0
        %v3956 = vsel %vm3924, 1, 0
        %v3957 = vsel %vm3925, 1, 0
        %v3958 = vcvt.s32.f32 %v3926
        %v3959 = vcvt.s32.f32 %v3927
        %v3960 = vcvt.s32.f32 %v3928
        %v3961 = vcvt.s32.f32 %v3929
        %v3962 = vcvt.s32.f32 %v3930
        %v3963 = vcvt.s32.f32 %v3931
        %v3964 = vcvt.s32.f32 %v3932
        %v3965 = vcvt.s32.f32 %v3933
        %v3966 = vcvt.s32.f32 %v3934
        %v3967 = vcvt.s32.f32 %v3935
        %v3968 = vcvt.s32.f32 %v3936
        %v3969 = vcvt.s32.f32 %v3937
        %v3970 = vcvt.s32.f32 %v3938
        %v3971 = vcvt.s32.f32 %v3939
        %v3972 = vcvt.s32.f32 %v3940
        %v3973 = vcvt.s32.f32 %v3941
        %v3974 = vcvt.s32.f32 %v3942
        %v3975 = vcvt.s32.f32 %v3943
        %v3976 = vcvt.s32.f32 %v3944
        %v3977 = vcvt.s32.f32 %v3945
        %v3978 = vcvt.s32.f32 %v3946
        %v3979 = vcvt.s32.f32 %v3947
        %v3980 = vcvt.s32.f32 %v3948
        %v3981 = vcvt.s32.f32 %v3949
        %v3982 = vcvt.s32.f32 %v3950
        %v3983 = vcvt.s32.f32 %v3951
        %v3984 = vcvt.s32.f32 %v3952
        %v3985 = vcvt.s32.f32 %v3953
        %v3986 = vcvt.s32.f32 %v3954
        %v3987 = vcvt.s32.f32 %v3955
        %v3988 = vcvt.s32.f32 %v3956
        %v3989 = vcvt.s32.f32 %v3957
        %v3990 = vadd.f32 %v3830, %v3958
        %v3991 = vadd.f32 %v3831, %v3959
        %v3992 = vadd.f32 %v3832, %v3960
        %v3993 = vadd.f32 %v3833, %v3961
        %v3994 = vadd.f32 %v3834, %v3962
        %v3995 = vadd.f32 %v3835, %v3963
        %v3996 = vadd.f32 %v3836, %v3964
        %v3997 = vadd.f32 %v3837, %v3965
        %v3998 = vadd.f32 %v3838, %v3966
        %v3999 = vadd.f32 %v3839, %v3967
        %v4000 = vadd.f32 %v3840, %v3968
        %v4001 = vadd.f32 %v3841, %v3969
        %v4002 = vadd.f32 %v3842, %v3970
        %v4003 = vadd.f32 %v3843, %v3971
        %v4004 = vadd.f32 %v3844, %v3972
        %v4005 = vadd.f32 %v3845, %v3973
        %v4006 = vadd.f32 %v3846, %v3974
        %v4007 = vadd.f32 %v3847, %v3975
        %v4008 = vadd.f32 %v3848, %v3976
        %v4009 = vadd.f32 %v3849, %v3977
        %v4010 = vadd.f32 %v3850, %v3978
        %v4011 = vadd.f32 %v3851, %v3979
        %v4012 = vadd.f32 %v3852, %v3980
        %v4013 = vadd.f32 %v3853, %v3981
        %v4014 = vadd.f32 %v3854, %v3982
        %v4015 = vadd.f32 %v3855, %v3983
        %v4016 = vadd.f32 %v3856, %v3984
        %v4017 = vadd.f32 %v3857, %v3985
        %v4018 = vadd.f32 %v3858, %v3986
        %v4019 = vadd.f32 %v3859, %v3987
        %v4020 = vadd.f32 %v3860, %v3988
        %v4021 = vadd.f32 %v3861, %v3989
        %v4022 = vadd.f32 %v3862, %v791
        %v4023 = vadd.f32 %v3863, %v793
        %v4024 = vadd.f32 %v3864, %v795
        %v4025 = vadd.f32 %v3865, %v797
        %v4026 = vadd.f32 %v3866, %v801
        %v4027 = vadd.f32 %v3867, %v803
        %v4028 = vadd.f32 %v3868, %v805
        %v4029 = vadd.f32 %v3869, %v807
        %v4030 = vadd.f32 %v3870, %v811
        %v4031 = vadd.f32 %v3871, %v813
        %v4032 = vadd.f32 %v3872, %v815
        %v4033 = vadd.f32 %v3873, %v817
        %v4034 = vadd.f32 %v3874, %v821
        %v4035 = vadd.f32 %v3875, %v823
        %v4036 = vadd.f32 %v3876, %v825
        %v4037 = vadd.f32 %v3877, %v827
        %v4038 = vadd.f32 %v3878, %v831
        %v4039 = vadd.f32 %v3879, %v833
        %v4040 = vadd.f32 %v3880, %v835
        %v4041 = vadd.f32 %v3881, %v837
        %v4042 = vadd.f32 %v3882, %v841
        %v4043 = vadd.f32 %v3883, %v843
        %v4044 = vadd.f32 %v3884, %v845
        %v4045 = vadd.f32 %v3885, %v847
        %v4046 = vadd.f32 %v3886, %v851
        %v4047 = vadd.f32 %v3887, %v853
        %v4048 = vadd.f32 %v3888, %v855
        %v4049 = vadd.f32 %v3889, %v857
        %v4050 = vadd.f32 %v3890, %v861
        %v4051 = vadd.f32 %v3891, %v863
        %v4052 = vadd.f32 %v3892, %v865
        %v4053 = vadd.f32 %v3893, %v867
        %vm4054 = vcmp.lt.f32.partialorder %v4022, 1.0
        %vm4055 = vcmp.lt.f32.partialorder %v4023, 1.0
        %vm4056 = vcmp.lt.f32.partialorder %v4024, 1.0
        %vm4057 = vcmp.lt.f32.partialorder %v4025, 1.0
        %vm4058 = vcmp.lt.f32.partialorder %v4026, 1.0
        %vm4059 = vcmp.lt.f32.partialorder %v4027, 1.0
        %vm4060 = vcmp.lt.f32.partialorder %v4028, 1.0
        %vm4061 = vcmp.lt.f32.partialorder %v4029, 1.0
        %vm4062 = vcmp.lt.f32.partialorder %v4030, 1.0
        %vm4063 = vcmp.lt.f32.partialorder %v4031, 1.0
        %vm4064 = vcmp.lt.f32.partialorder %v4032, 1.0
        %vm4065 = vcmp.lt.f32.partialorder %v4033, 1.0
        %vm4066 = vcmp.lt.f32.partialorder %v4034, 1.0
        %vm4067 = vcmp.lt.f32.partialorder %v4035, 1.0
        %vm4068 = vcmp.lt.f32.partialorder %v4036, 1.0
        %vm4069 = vcmp.lt.f32.partialorder %v4037, 1.0
        %vm4070 = vcmp.lt.f32.partialorder %v4038, 1.0
        %vm4071 = vcmp.lt.f32.partialorder %v4039, 1.0
        %vm4072 = vcmp.lt.f32.partialorder %v4040, 1.0
        %vm4073 = vcmp.lt.f32.partialorder %v4041, 1.0
        %vm4074 = vcmp.lt.f32.partialorder %v4042, 1.0
        %vm4075 = vcmp.lt.f32.partialorder %v4043, 1.0
        %vm4076 = vcmp.lt.f32.partialorder %v4044, 1.0
        %vm4077 = vcmp.lt.f32.partialorder %v4045, 1.0
        %vm4078 = vcmp.lt.f32.partialorder %v4046, 1.0
        %vm4079 = vcmp.lt.f32.partialorder %v4047, 1.0
        %vm4080 = vcmp.lt.f32.partialorder %v4048, 1.0
        %vm4081 = vcmp.lt.f32.partialorder %v4049, 1.0
        %vm4082 = vcmp.lt.f32.partialorder %v4050, 1.0
        %vm4083 = vcmp.lt.f32.partialorder %v4051, 1.0
        %vm4084 = vcmp.lt.f32.partialorder %v4052, 1.0
        %vm4085 = vcmp.lt.f32.partialorder %v4053, 1.0
        %v4086 = vsel %vm4054, 1, 0
        %v4087 = vsel %vm4055, 1, 0
        %v4088 = vsel %vm4056, 1, 0
        %v4089 = vsel %vm4057, 1, 0
        %v4090 = vsel %vm4058, 1, 0
        %v4091 = vsel %vm4059, 1, 0
        %v4092 = vsel %vm4060, 1, 0
        %v4093 = vsel %vm4061, 1, 0
        %v4094 = vsel %vm4062, 1, 0
        %v4095 = vsel %vm4063, 1, 0
        %v4096 = vsel %vm4064, 1, 0
        %v4097 = vsel %vm4065, 1, 0
        %v4098 = vsel %vm4066, 1, 0
        %v4099 = vsel %vm4067, 1, 0
        %v4100 = vsel %vm4068, 1, 0
        %v4101 = vsel %vm4069, 1, 0
        %v4102 = vsel %vm4070, 1, 0
        %v4103 = vsel %vm4071, 1, 0
        %v4104 = vsel %vm4072, 1, 0
        %v4105 = vsel %vm4073, 1, 0
        %v4106 = vsel %vm4074, 1, 0
        %v4107 = vsel %vm4075, 1, 0
        %v4108 = vsel %vm4076, 1, 0
        %v4109 = vsel %vm4077, 1, 0
        %v4110 = vsel %vm4078, 1, 0
        %v4111 = vsel %vm4079, 1, 0
        %v4112 = vsel %vm4080, 1, 0
        %v4113 = vsel %vm4081, 1, 0
        %v4114 = vsel %vm4082, 1, 0
        %v4115 = vsel %vm4083, 1, 0
        %v4116 = vsel %vm4084, 1, 0
        %v4117 = vsel %vm4085, 1, 0
        %v4118 = vcvt.s32.f32 %v4086
        %v4119 = vcvt.s32.f32 %v4087
        %v4120 = vcvt.s32.f32 %v4088
        %v4121 = vcvt.s32.f32 %v4089
        %v4122 = vcvt.s32.f32 %v4090
        %v4123 = vcvt.s32.f32 %v4091
        %v4124 = vcvt.s32.f32 %v4092
        %v4125 = vcvt.s32.f32 %v4093
        %v4126 = vcvt.s32.f32 %v4094
        %v4127 = vcvt.s32.f32 %v4095
        %v4128 = vcvt.s32.f32 %v4096
        %v4129 = vcvt.s32.f32 %v4097
        %v4130 = vcvt.s32.f32 %v4098
        %v4131 = vcvt.s32.f32 %v4099
        %v4132 = vcvt.s32.f32 %v4100
        %v4133 = vcvt.s32.f32 %v4101
        %v4134 = vcvt.s32.f32 %v4102
        %v4135 = vcvt.s32.f32 %v4103
        %v4136 = vcvt.s32.f32 %v4104
        %v4137 = vcvt.s32.f32 %v4105
        %v4138 = vcvt.s32.f32 %v4106
        %v4139 = vcvt.s32.f32 %v4107
        %v4140 = vcvt.s32.f32 %v4108
        %v4141 = vcvt.s32.f32 %v4109
        %v4142 = vcvt.s32.f32 %v4110
        %v4143 = vcvt.s32.f32 %v4111
        %v4144 = vcvt.s32.f32 %v4112
        %v4145 = vcvt.s32.f32 %v4113
        %v4146 = vcvt.s32.f32 %v4114
        %v4147 = vcvt.s32.f32 %v4115
        %v4148 = vcvt.s32.f32 %v4116
        %v4149 = vcvt.s32.f32 %v4117
        %v4150 = vadd.f32 %v3990, %v4118
        %v4151 = vadd.f32 %v3991, %v4119
        %v4152 = vadd.f32 %v3992, %v4120
        %v4153 = vadd.f32 %v3993, %v4121
        %v4154 = vadd.f32 %v3994, %v4122
        %v4155 = vadd.f32 %v3995, %v4123
        %v4156 = vadd.f32 %v3996, %v4124
        %v4157 = vadd.f32 %v3997, %v4125
        %v4158 = vadd.f32 %v3998, %v4126
        %v4159 = vadd.f32 %v3999, %v4127
        %v4160 = vadd.f32 %v4000, %v4128
        %v4161 = vadd.f32 %v4001, %v4129
        %v4162 = vadd.f32 %v4002, %v4130
        %v4163 = vadd.f32 %v4003, %v4131
        %v4164 = vadd.f32 %v4004, %v4132
        %v4165 = vadd.f32 %v4005, %v4133
        %v4166 = vadd.f32 %v4006, %v4134
        %v4167 = vadd.f32 %v4007, %v4135
        %v4168 = vadd.f32 %v4008, %v4136
        %v4169 = vadd.f32 %v4009, %v4137
        %v4170 = vadd.f32 %v4010, %v4138
        %v4171 = vadd.f32 %v4011, %v4139
        %v4172 = vadd.f32 %v4012, %v4140
        %v4173 = vadd.f32 %v4013, %v4141
        %v4174 = vadd.f32 %v4014, %v4142
        %v4175 = vadd.f32 %v4015, %v4143
        %v4176 = vadd.f32 %v4016, %v4144
        %v4177 = vadd.f32 %v4017, %v4145
        %v4178 = vadd.f32 %v4018, %v4146
        %v4179 = vadd.f32 %v4019, %v4147
        %v4180 = vadd.f32 %v4020, %v4148
        %v4181 = vadd.f32 %v4021, %v4149
        %v4182 = vadd.f32 %v4022, %v791
        %v4183 = vadd.f32 %v4023, %v793
        %v4184 = vadd.f32 %v4024, %v795
        %v4185 = vadd.f32 %v4025, %v797
        %v4186 = vadd.f32 %v4026, %v801
        %v4187 = vadd.f32 %v4027, %v803
        %v4188 = vadd.f32 %v4028, %v805
        %v4189 = vadd.f32 %v4029, %v807
        %v4190 = vadd.f32 %v4030, %v811
        %v4191 = vadd.f32 %v4031, %v813
        %v4192 = vadd.f32 %v4032, %v815
        %v4193 = vadd.f32 %v4033, %v817
        %v4194 = vadd.f32 %v4034, %v821
        %v4195 = vadd.f32 %v4035, %v823
        %v4196 = vadd.f32 %v4036, %v825
        %v4197 = vadd.f32 %v4037, %v827
        %v4198 = vadd.f32 %v4038, %v831
        %v4199 = vadd.f32 %v4039, %v833
        %v4200 = vadd.f32 %v4040, %v835
        %v4201 = vadd.f32 %v4041, %v837
        %v4202 = vadd.f32 %v4042, %v841
        %v4203 = vadd.f32 %v4043, %v843
        %v4204 = vadd.f32 %v4044, %v845
        %v4205 = vadd.f32 %v4045, %v847
        %v4206 = vadd.f32 %v4046, %v851
        %v4207 = vadd.f32 %v4047, %v853
        %v4208 = vadd.f32 %v4048, %v855
        %v4209 = vadd.f32 %v4049, %v857
        %v4210 = vadd.f32 %v4050, %v861
        %v4211 = vadd.f32 %v4051, %v863
        %v4212 = vadd.f32 %v4052, %v865
        %v4213 = vadd.f32 %v4053, %v867
        %vm4214 = vcmp.lt.f32.partialorder %v4182, 1.0
        %vm4215 = vcmp.lt.f32.partialorder %v4183, 1.0
        %vm4216 = vcmp.lt.f32.partialorder %v4184, 1.0
        %vm4217 = vcmp.lt.f32.partialorder %v4185, 1.0
        %vm4218 = vcmp.lt.f32.partialorder %v4186, 1.0
        %vm4219 = vcmp.lt.f32.partialorder %v4187, 1.0
        %vm4220 = vcmp.lt.f32.partialorder %v4188, 1.0
        %vm4221 = vcmp.lt.f32.partialorder %v4189, 1.0
        %vm4222 = vcmp.lt.f32.partialorder %v4190, 1.0
        %vm4223 = vcmp.lt.f32.partialorder %v4191, 1.0
        %vm4224 = vcmp.lt.f32.partialorder %v4192, 1.0
        %vm4225 = vcmp.lt.f32.partialorder %v4193, 1.0
        %vm4226 = vcmp.lt.f32.partialorder %v4194, 1.0
        %vm4227 = vcmp.lt.f32.partialorder %v4195, 1.0
        %vm4228 = vcmp.lt.f32.partialorder %v4196, 1.0
        %vm4229 = vcmp.lt.f32.partialorder %v4197, 1.0
        %vm4230 = vcmp.lt.f32.partialorder %v4198, 1.0
        %vm4231 = vcmp.lt.f32.partialorder %v4199, 1.0
        %vm4232 = vcmp.lt.f32.partialorder %v4200, 1.0
        %vm4233 = vcmp.lt.f32.partialorder %v4201, 1.0
        %vm4234 = vcmp.lt.f32.partialorder %v4202, 1.0
        %vm4235 = vcmp.lt.f32.partialorder %v4203, 1.0
        %vm4236 = vcmp.lt.f32.partialorder %v4204, 1.0
        %vm4237 = vcmp.lt.f32.partialorder %v4205, 1.0
        %vm4238 = vcmp.lt.f32.partialorder %v4206, 1.0
        %vm4239 = vcmp.lt.f32.partialorder %v4207, 1.0
        %vm4240 = vcmp.lt.f32.partialorder %v4208, 1.0
        %vm4241 = vcmp.lt.f32.partialorder %v4209, 1.0
        %vm4242 = vcmp.lt.f32.partialorder %v4210, 1.0
        %vm4243 = vcmp.lt.f32.partialorder %v4211, 1.0
        %vm4244 = vcmp.lt.f32.partialorder %v4212, 1.0
        %vm4245 = vcmp.lt.f32.partialorder %v4213, 1.0
        %v4246 = vsel %vm4214, 1, 0
        %v4247 = vsel %vm4215, 1, 0
        %v4248 = vsel %vm4216, 1, 0
        %v4249 = vsel %vm4217, 1, 0
        %v4250 = vsel %vm4218, 1, 0
        %v4251 = vsel %vm4219, 1, 0
        %v4252 = vsel %vm4220, 1, 0
        %v4253 = vsel %vm4221, 1, 0
        %v4254 = vsel %vm4222, 1, 0
        %v4255 = vsel %vm4223, 1, 0
        %v4256 = vsel %vm4224, 1, 0
        %v4257 = vsel %vm4225, 1, 0
        %v4258 = vsel %vm4226, 1, 0
        %v4259 = vsel %vm4227, 1, 0
        %v4260 = vsel %vm4228, 1, 0
        %v4261 = vsel %vm4229, 1, 0
        %v4262 = vsel %vm4230, 1, 0
        %v4263 = vsel %vm4231, 1, 0
        %v4264 = vsel %vm4232, 1, 0
        %v4265 = vsel %vm4233, 1, 0
        %v4266 = vsel %vm4234, 1, 0
        %v4267 = vsel %vm4235, 1, 0
        %v4268 = vsel %vm4236, 1, 0
        %v4269 = vsel %vm4237, 1, 0
        %v4270 = vsel %vm4238, 1, 0
        %v4271 = vsel %vm4239, 1, 0
        %v4272 = vsel %vm4240, 1, 0
        %v4273 = vsel %vm4241, 1, 0
        %v4274 = vsel %vm4242, 1, 0
        %v4275 = vsel %vm4243, 1, 0
        %v4276 = vsel %vm4244, 1, 0
        %v4277 = vsel %vm4245, 1, 0
        %v4278 = vcvt.s32.f32 %v4246
        %v4279 = vcvt.s32.f32 %v4247
        %v4280 = vcvt.s32.f32 %v4248
        %v4281 = vcvt.s32.f32 %v4249
        %v4282 = vcvt.s32.f32 %v4250
        %v4283 = vcvt.s32.f32 %v4251
        %v4284 = vcvt.s32.f32 %v4252
        %v4285 = vcvt.s32.f32 %v4253
        %v4286 = vcvt.s32.f32 %v4254
        %v4287 = vcvt.s32.f32 %v4255
        %v4288 = vcvt.s32.f32 %v4256
        %v4289 = vcvt.s32.f32 %v4257
        %v4290 = vcvt.s32.f32 %v4258
        %v4291 = vcvt.s32.f32 %v4259
        %v4292 = vcvt.s32.f32 %v4260
        %v4293 = vcvt.s32.f32 %v4261
        %v4294 = vcvt.s32.f32 %v4262
        %v4295 = vcvt.s32.f32 %v4263
        %v4296 = vcvt.s32.f32 %v4264
        %v4297 = vcvt.s32.f32 %v4265
        %v4298 = vcvt.s32.f32 %v4266
        %v4299 = vcvt.s32.f32 %v4267
        %v4300 = vcvt.s32.f32 %v4268
        %v4301 = vcvt.s32.f32 %v4269
        %v4302 = vcvt.s32.f32 %v4270
        %v4303 = vcvt.s32.f32 %v4271
        %v4304 = vcvt.s32.f32 %v4272
        %v4305 = vcvt.s32.f32 %v4273
        %v4306 = vcvt.s32.f32 %v4274
        %v4307 = vcvt.s32.f32 %v4275
        %v4308 = vcvt.s32.f32 %v4276
        %v4309 = vcvt.s32.f32 %v4277
        %v4310 = vadd.f32 %v4150, %v4278
        %v4311 = vadd.f32 %v4151, %v4279
        %v4312 = vadd.f32 %v4152, %v4280
        %v4313 = vadd.f32 %v4153, %v4281
        %v4314 = vadd.f32 %v4154, %v4282
        %v4315 = vadd.f32 %v4155, %v4283
        %v4316 = vadd.f32 %v4156, %v4284
        %v4317 = vadd.f32 %v4157, %v4285
        %v4318 = vadd.f32 %v4158, %v4286
        %v4319 = vadd.f32 %v4159, %v4287
        %v4320 = vadd.f32 %v4160, %v4288
        %v4321 = vadd.f32 %v4161, %v4289
        %v4322 = vadd.f32 %v4162, %v4290
        %v4323 = vadd.f32 %v4163, %v4291
        %v4324 = vadd.f32 %v4164, %v4292
        %v4325 = vadd.f32 %v4165, %v4293
        %v4326 = vadd.f32 %v4166, %v4294
        %v4327 = vadd.f32 %v4167, %v4295
        %v4328 = vadd.f32 %v4168, %v4296
        %v4329 = vadd.f32 %v4169, %v4297
        %v4330 = vadd.f32 %v4170, %v4298
        %v4331 = vadd.f32 %v4171, %v4299
        %v4332 = vadd.f32 %v4172, %v4300
        %v4333 = vadd.f32 %v4173, %v4301
        %v4334 = vadd.f32 %v4174, %v4302
        %v4335 = vadd.f32 %v4175, %v4303
        %v4336 = vadd.f32 %v4176, %v4304
        %v4337 = vadd.f32 %v4177, %v4305
        %v4338 = vadd.f32 %v4178, %v4306
        %v4339 = vadd.f32 %v4179, %v4307
        %v4340 = vadd.f32 %v4180, %v4308
        %v4341 = vadd.f32 %v4181, %v4309
        %v4342 = vadd.f32 %v4310, 1.0
        %v4343 = vadd.f32 %v4311, 1.0
        %v4344 = vadd.f32 %v4312, 1.0
        %v4345 = vadd.f32 %v4313, 1.0
        %v4346 = vadd.f32 %v4314, 1.0
        %v4347 = vadd.f32 %v4315, 1.0
        %v4348 = vadd.f32 %v4316, 1.0
        %v4349 = vadd.f32 %v4317, 1.0
        %v4350 = vadd.f32 %v4318, 1.0
        %v4351 = vadd.f32 %v4319, 1.0
        %v4352 = vadd.f32 %v4320, 1.0
        %v4353 = vadd.f32 %v4321, 1.0
        %v4354 = vadd.f32 %v4322, 1.0
        %v4355 = vadd.f32 %v4323, 1.0
        %v4356 = vadd.f32 %v4324, 1.0
        %v4357 = vadd.f32 %v4325, 1.0
        %v4358 = vadd.f32 %v4326, 1.0
        %v4359 = vadd.f32 %v4327, 1.0
        %v4360 = vadd.f32 %v4328, 1.0
        %v4361 = vadd.f32 %v4329, 1.0
        %v4362 = vadd.f32 %v4330, 1.0
        %v4363 = vadd.f32 %v4331, 1.0
        %v4364 = vadd.f32 %v4332, 1.0
        %v4365 = vadd.f32 %v4333, 1.0
        %v4366 = vadd.f32 %v4334, 1.0
        %v4367 = vadd.f32 %v4335, 1.0
        %v4368 = vadd.f32 %v4336, 1.0
        %v4369 = vadd.f32 %v4337, 1.0
        %v4370 = vadd.f32 %v4338, 1.0
        %v4371 = vadd.f32 %v4339, 1.0
        %v4372 = vadd.f32 %v4340, 1.0
        %v4373 = vadd.f32 %v4341, 1.0
        %v4374 = vrcp.pop %v4342
        %v4375 = vmul.f32 10.0, %v4374
        %v4376 = vrcp.pop %v4343
        %v4377 = vmul.f32 10.0, %v4376
        %v4378 = vrcp.pop %v4344
        %v4379 = vmul.f32 10.0, %v4378
        %v4380 = vrcp.pop %v4345
        %v4381 = vmul.f32 10.0, %v4380
        %v4382 = vrcp.pop %v4346
        %v4383 = vmul.f32 10.0, %v4382
        %v4384 = vrcp.pop %v4347
        %v4385 = vmul.f32 10.0, %v4384
        %v4386 = vrcp.pop %v4348
        %v4387 = vmul.f32 10.0, %v4386
        %v4388 = vrcp.pop %v4349
        %v4389 = vmul.f32 10.0, %v4388
        %v4390 = vrcp.pop %v4350
        %v4391 = vmul.f32 10.0, %v4390
        %v4392 = vrcp.pop %v4351
        %v4393 = vmul.f32 10.0, %v4392
        %v4394 = vrcp.pop %v4352
        %v4395 = vmul.f32 10.0, %v4394
        %v4396 = vrcp.pop %v4353
        %v4397 = vmul.f32 10.0, %v4396
        %v4398 = vrcp.pop %v4354
        %v4399 = vmul.f32 10.0, %v4398
        %v4400 = vrcp.pop %v4355
        %v4401 = vmul.f32 10.0, %v4400
        %v4402 = vrcp.pop %v4356
        %v4403 = vmul.f32 10.0, %v4402
        %v4404 = vrcp.pop %v4357
        %v4405 = vmul.f32 10.0, %v4404
        %v4406 = vrcp.pop %v4358
        %v4407 = vmul.f32 10.0, %v4406
        %v4408 = vrcp.pop %v4359
        %v4409 = vmul.f32 10.0, %v4408
        %v4410 = vrcp.pop %v4360
        %v4411 = vmul.f32 10.0, %v4410
        %v4412 = vrcp.pop %v4361
        %v4413 = vmul.f32 10.0, %v4412
        %v4414 = vrcp.pop %v4362
        %v4415 = vmul.f32 10.0, %v4414
        %v4416 = vrcp.pop %v4363
        %v4417 = vmul.f32 10.0, %v4416
        %v4418 = vrcp.pop %v4364
        %v4419 = vmul.f32 10.0, %v4418
        %v4420 = vrcp.pop %v4365
        %v4421 = vmul.f32 10.0, %v4420
        %v4422 = vrcp.pop %v4366
        %v4423 = vmul.f32 10.0, %v4422
        %v4424 = vrcp.pop %v4367
        %v4425 = vmul.f32 10.0, %v4424
        %v4426 = vrcp.pop %v4368
        %v4427 = vmul.f32 10.0, %v4426
        %v4428 = vrcp.pop %v4369
        %v4429 = vmul.f32 10.0, %v4428
        %v4430 = vrcp.pop %v4370
        %v4431 = vmul.f32 10.0, %v4430
        %v4432 = vrcp.pop %v4371
        %v4433 = vmul.f32 10.0, %v4432
        %v4434 = vrcp.pop %v4372
        %v4435 = vmul.f32 10.0, %v4434
        %v4436 = vrcp.pop %v4373
        %v4437 = vmul.f32 10.0, %v4436
        %v4438 = vfloor.f32 %v4375
        %v4439 = vfloor.f32 %v4377
        %v4440 = vfloor.f32 %v4379
        %v4441 = vfloor.f32 %v4381
        %v4442 = vfloor.f32 %v4383
        %v4443 = vfloor.f32 %v4385
        %v4444 = vfloor.f32 %v4387
        %v4445 = vfloor.f32 %v4389
        %v4446 = vfloor.f32 %v4391
        %v4447 = vfloor.f32 %v4393
        %v4448 = vfloor.f32 %v4395
        %v4449 = vfloor.f32 %v4397
        %v4450 = vfloor.f32 %v4399
        %v4451 = vfloor.f32 %v4401
        %v4452 = vfloor.f32 %v4403
        %v4453 = vfloor.f32 %v4405
        %v4454 = vfloor.f32 %v4407
        %v4455 = vfloor.f32 %v4409
        %v4456 = vfloor.f32 %v4411
        %v4457 = vfloor.f32 %v4413
        %v4458 = vfloor.f32 %v4415
        %v4459 = vfloor.f32 %v4417
        %v4460 = vfloor.f32 %v4419
        %v4461 = vfloor.f32 %v4421
        %v4462 = vfloor.f32 %v4423
        %v4463 = vfloor.f32 %v4425
        %v4464 = vfloor.f32 %v4427
        %v4465 = vfloor.f32 %v4429
        %v4466 = vfloor.f32 %v4431
        %v4467 = vfloor.f32 %v4433
        %v4468 = vfloor.f32 %v4435
        %v4469 = vfloor.f32 %v4437
        %v4470 = vmul.f32 %v4438, 0.1
        %v4471 = vmul.f32 %v4439, 0.1
        %v4472 = vmul.f32 %v4440, 0.1
        %v4473 = vmul.f32 %v4441, 0.1
        %v4474 = vmul.f32 %v4442, 0.1
        %v4475 = vmul.f32 %v4443, 0.1
        %v4476 = vmul.f32 %v4444, 0.1
        %v4477 = vmul.f32 %v4445, 0.1
        %v4478 = vmul.f32 %v4446, 0.1
        %v4479 = vmul.f32 %v4447, 0.1
        %v4480 = vmul.f32 %v4448, 0.1
        %v4481 = vmul.f32 %v4449, 0.1
        %v4482 = vmul.f32 %v4450, 0.1
        %v4483 = vmul.f32 %v4451, 0.1
        %v4484 = vmul.f32 %v4452, 0.1
        %v4485 = vmul.f32 %v4453, 0.1
        %v4486 = vmul.f32 %v4454, 0.1
        %v4487 = vmul.f32 %v4455, 0.1
        %v4488 = vmul.f32 %v4456, 0.1
        %v4489 = vmul.f32 %v4457, 0.1
        %v4490 = vmul.f32 %v4458, 0.1
        %v4491 = vmul.f32 %v4459, 0.1
        %v4492 = vmul.f32 %v4460, 0.1
        %v4493 = vmul.f32 %v4461, 0.1
        %v4494 = vmul.f32 %v4462, 0.1
        %v4495 = vmul.f32 %v4463, 0.1
        %v4496 = vmul.f32 %v4464, 0.1
        %v4497 = vmul.f32 %v4465, 0.1
        %v4498 = vmul.f32 %v4466, 0.1
        %v4499 = vmul.f32 %v4467, 0.1
        %v4500 = vmul.f32 %v4468, 0.1
        %v4501 = vmul.f32 %v4469, 0.1
        %v4502 = vadd.f32 %v904, 0.0
        %v4503 = vadd.f32 %v906, 0.0
        %v4504 = vadd.f32 %v908, 0.0
        %v4505 = vadd.f32 %v910, 0.0
        %v4506 = vadd.f32 %v914, 0.0
        %v4507 = vadd.f32 %v916, 0.0
        %v4508 = vadd.f32 %v918, 0.0
        %v4509 = vadd.f32 %v920, 0.0
        %v4510 = vadd.f32 %v924, 0.0
        %v4511 = vadd.f32 %v926, 0.0
        %v4512 = vadd.f32 %v928, 0.0
        %v4513 = vadd.f32 %v930, 0.0
        %v4514 = vadd.f32 %v934, 0.0
        %v4515 = vadd.f32 %v936, 0.0
        %v4516 = vadd.f32 %v938, 0.0
        %v4517 = vadd.f32 %v940, 0.0
        %v4518 = vadd.f32 %v944, 0.0
        %v4519 = vadd.f32 %v946, 0.0
        %v4520 = vadd.f32 %v948, 0.0
        %v4521 = vadd.f32 %v950, 0.0
        %v4522 = vadd.f32 %v954, 0.0
        %v4523 = vadd.f32 %v956, 0.0
        %v4524 = vadd.f32 %v958, 0.0
        %v4525 = vadd.f32 %v960, 0.0
        %v4526 = vadd.f32 %v964, 0.0
        %v4527 = vadd.f32 %v966, 0.0
        %v4528 = vadd.f32 %v968, 0.0
        %v4529 = vadd.f32 %v970, 0.0
        %v4530 = vadd.f32 %v974, 0.0
        %v4531 = vadd.f32 %v976, 0.0
        %v4532 = vadd.f32 %v978, 0.0
        %v4533 = vadd.f32 %v980, 0.0
        %vm4534 = vcmp.lt.f32.partialorder %v4502, 1.0
        %vm4535 = vcmp.lt.f32.partialorder %v4503, 1.0
        %vm4536 = vcmp.lt.f32.partialorder %v4504, 1.0
        %vm4537 = vcmp.lt.f32.partialorder %v4505, 1.0
        %vm4538 = vcmp.lt.f32.partialorder %v4506, 1.0
        %vm4539 = vcmp.lt.f32.partialorder %v4507, 1.0
        %vm4540 = vcmp.lt.f32.partialorder %v4508, 1.0
        %vm4541 = vcmp.lt.f32.partialorder %v4509, 1.0
        %vm4542 = vcmp.lt.f32.partialorder %v4510, 1.0
        %vm4543 = vcmp.lt.f32.partialorder %v4511, 1.0
        %vm4544 = vcmp.lt.f32.partialorder %v4512, 1.0
        %vm4545 = vcmp.lt.f32.partialorder %v4513, 1.0
        %vm4546 = vcmp.lt.f32.partialorder %v4514, 1.0
        %vm4547 = vcmp.lt.f32.partialorder %v4515, 1.0
        %vm4548 = vcmp.lt.f32.partialorder %v4516, 1.0
        %vm4549 = vcmp.lt.f32.partialorder %v4517, 1.0
        %vm4550 = vcmp.lt.f32.partialorder %v4518, 1.0
        %vm4551 = vcmp.lt.f32.partialorder %v4519, 1.0
        %vm4552 = vcmp.lt.f32.partialorder %v4520, 1.0
        %vm4553 = vcmp.lt.f32.partialorder %v4521, 1.0
        %vm4554 = vcmp.lt.f32.partialorder %v4522, 1.0
        %vm4555 = vcmp.lt.f32.partialorder %v4523, 1.0
        %vm4556 = vcmp.lt.f32.partialorder %v4524, 1.0
        %vm4557 = vcmp.lt.f32.partialorder %v4525, 1.0
        %vm4558 = vcmp.lt.f32.partialorder %v4526, 1.0
        %vm4559 = vcmp.lt.f32.partialorder %v4527, 1.0
        %vm4560 = vcmp.lt.f32.partialorder %v4528, 1.0
        %vm4561 = vcmp.lt.f32.partialorder %v4529, 1.0
        %vm4562 = vcmp.lt.f32.partialorder %v4530, 1.0
        %vm4563 = vcmp.lt.f32.partialorder %v4531, 1.0
        %vm4564 = vcmp.lt.f32.partialorder %v4532, 1.0
        %vm4565 = vcmp.lt.f32.partialorder %v4533, 1.0
        %v4566 = vsel %vm4534, 1, 0
        %v4567 = vsel %vm4535, 1, 0
        %v4568 = vsel %vm4536, 1, 0
        %v4569 = vsel %vm4537, 1, 0
        %v4570 = vsel %vm4538, 1, 0
        %v4571 = vsel %vm4539, 1, 0
        %v4572 = vsel %vm4540, 1, 0
        %v4573 = vsel %vm4541, 1, 0
        %v4574 = vsel %vm4542, 1, 0
        %v4575 = vsel %vm4543, 1, 0
        %v4576 = vsel %vm4544, 1, 0
        %v4577 = vsel %vm4545, 1, 0
        %v4578 = vsel %vm4546, 1, 0
        %v4579 = vsel %vm4547, 1, 0
        %v4580 = vsel %vm4548, 1, 0
        %v4581 = vsel %vm4549, 1, 0
        %v4582 = vsel %vm4550, 1, 0
        %v4583 = vsel %vm4551, 1, 0
        %v4584 = vsel %vm4552, 1, 0
        %v4585 = vsel %vm4553, 1, 0
        %v4586 = vsel %vm4554, 1, 0
        %v4587 = vsel %vm4555, 1, 0
        %v4588 = vsel %vm4556, 1, 0
        %v4589 = vsel %vm4557, 1, 0
        %v4590 = vsel %vm4558, 1, 0
        %v4591 = vsel %vm4559, 1, 0
        %v4592 = vsel %vm4560, 1, 0
        %v4593 = vsel %vm4561, 1, 0
        %v4594 = vsel %vm4562, 1, 0
        %v4595 = vsel %vm4563, 1, 0
        %v4596 = vsel %vm4564, 1, 0
        %v4597 = vsel %vm4565, 1, 0
        %v4598 = vcvt.s32.f32 %v4566
        %v4599 = vcvt.s32.f32 %v4567
        %v4600 = vcvt.s32.f32 %v4568
        %v4601 = vcvt.s32.f32 %v4569
        %v4602 = vcvt.s32.f32 %v4570
        %v4603 = vcvt.s32.f32 %v4571
        %v4604 = vcvt.s32.f32 %v4572
        %v4605 = vcvt.s32.f32 %v4573
        %v4606 = vcvt.s32.f32 %v4574
        %v4607 = vcvt.s32.f32 %v4575
        %v4608 = vcvt.s32.f32 %v4576
        %v4609 = vcvt.s32.f32 %v4577
        %v4610 = vcvt.s32.f32 %v4578
        %v4611 = vcvt.s32.f32 %v4579
        %v4612 = vcvt.s32.f32 %v4580
        %v4613 = vcvt.s32.f32 %v4581
        %v4614 = vcvt.s32.f32 %v4582
        %v4615 = vcvt.s32.f32 %v4583
        %v4616 = vcvt.s32.f32 %v4584
        %v4617 = vcvt.s32.f32 %v4585
        %v4618 = vcvt.s32.f32 %v4586
        %v4619 = vcvt.s32.f32 %v4587
        %v4620 = vcvt.s32.f32 %v4588
        %v4621 = vcvt.s32.f32 %v4589
        %v4622 = vcvt.s32.f32 %v4590
        %v4623 = vcvt.s32.f32 %v4591
        %v4624 = vcvt.s32.f32 %v4592
        %v4625 = vcvt.s32.f32 %v4593
        %v4626 = vcvt.s32.f32 %v4594
        %v4627 = vcvt.s32.f32 %v4595
        %v4628 = vcvt.s32.f32 %v4596
        %v4629 = vcvt.s32.f32 %v4597
        %v4630 = vadd.f32 %v4598, 0.0
        %v4631 = vadd.f32 %v4599, 0.0
        %v4632 = vadd.f32 %v4600, 0.0
        %v4633 = vadd.f32 %v4601, 0.0
        %v4634 = vadd.f32 %v4602, 0.0
        %v4635 = vadd.f32 %v4603, 0.0
        %v4636 = vadd.f32 %v4604, 0.0
        %v4637 = vadd.f32 %v4605, 0.0
        %v4638 = vadd.f32 %v4606, 0.0
        %v4639 = vadd.f32 %v4607, 0.0
        %v4640 = vadd.f32 %v4608, 0.0
        %v4641 = vadd.f32 %v4609, 0.0
        %v4642 = vadd.f32 %v4610, 0.0
        %v4643 = vadd.f32 %v4611, 0.0
        %v4644 = vadd.f32 %v4612, 0.0
        %v4645 = vadd.f32 %v4613, 0.0
        %v4646 = vadd.f32 %v4614, 0.0
        %v4647 = vadd.f32 %v4615, 0.0
        %v4648 = vadd.f32 %v4616, 0.0
        %v4649 = vadd.f32 %v4617, 0.0
        %v4650 = vadd.f32 %v4618, 0.0
        %v4651 = vadd.f32 %v4619, 0.0
        %v4652 = vadd.f32 %v4620, 0.0
        %v4653 = vadd.f32 %v4621, 0.0
        %v4654 = vadd.f32 %v4622, 0.0
        %v4655 = vadd.f32 %v4623, 0.0
        %v4656 = vadd.f32 %v4624, 0.0
        %v4657 = vadd.f32 %v4625, 0.0
        %v4658 = vadd.f32 %v4626, 0.0
        %v4659 = vadd.f32 %v4627, 0.0
        %v4660 = vadd.f32 %v4628, 0.0
        %v4661 = vadd.f32 %v4629, 0.0
        %v4662 = vadd.f32 %v4502, %v904
        %v4663 = vadd.f32 %v4503, %v906
        %v4664 = vadd.f32 %v4504, %v908
        %v4665 = vadd.f32 %v4505, %v910
        %v4666 = vadd.f32 %v4506, %v914
        %v4667 = vadd.f32 %v4507, %v916
        %v4668 = vadd.f32 %v4508, %v918
        %v4669 = vadd.f32 %v4509, %v920
        %v4670 = vadd.f32 %v4510, %v924
        %v4671 = vadd.f32 %v4511, %v926
        %v4672 = vadd.f32 %v4512, %v928
        %v4673 = vadd.f32 %v4513, %v930
        %v4674 = vadd.f32 %v4514, %v934
        %v4675 = vadd.f32 %v4515, %v936
        %v4676 = vadd.f32 %v4516, %v938
        %v4677 = vadd.f32 %v4517, %v940
        %v4678 = vadd.f32 %v4518, %v944
        %v4679 = vadd.f32 %v4519, %v946
        %v4680 = vadd.f32 %v4520, %v948
        %v4681 = vadd.f32 %v4521, %v950
        %v4682 = vadd.f32 %v4522, %v954
        %v4683 = vadd.f32 %v4523, %v956
        %v4684 = vadd.f32 %v4524, %v958
        %v4685 = vadd.f32 %v4525, %v960
        %v4686 = vadd.f32 %v4526, %v964
        %v4687 = vadd.f32 %v4527, %v966
        %v4688 = vadd.f32 %v4528, %v968
        %v4689 = vadd.f32 %v4529, %v970
        %v4690 = vadd.f32 %v4530, %v974
        %v4691 = vadd.f32 %v4531, %v976
        %v4692 = vadd.f32 %v4532, %v978
        %v4693 = vadd.f32 %v4533, %v980
        %vm4694 = vcmp.lt.f32.partialorder %v4662, 1.0
        %vm4695 = vcmp.lt.f32.partialorder %v4663, 1.0
        %vm4696 = vcmp.lt.f32.partialorder %v4664, 1.0
        %vm4697 = vcmp.lt.f32.partialorder %v4665, 1.0
        %vm4698 = vcmp.lt.f32.partialorder %v4666, 1.0
        %vm4699 = vcmp.lt.f32.partialorder %v4667, 1.0
        %vm4700 = vcmp.lt.f32.partialorder %v4668, 1.0
        %vm4701 = vcmp.lt.f32.partialorder %v4669, 1.0
        %vm4702 = vcmp.lt.f32.partialorder %v4670, 1.0
        %vm4703 = vcmp.lt.f32.partialorder %v4671, 1.0
        %vm4704 = vcmp.lt.f32.partialorder %v4672, 1.0
        %vm4705 = vcmp.lt.f32.partialorder %v4673, 1.0
        %vm4706 = vcmp.lt.f32.partialorder %v4674, 1.0
        %vm4707 = vcmp.lt.f32.partialorder %v4675, 1.0
        %vm4708 = vcmp.lt.f32.partialorder %v4676, 1.0
        %vm4709 = vcmp.lt.f32.partialorder %v4677, 1.0
        %vm4710 = vcmp.lt.f32.partialorder %v4678, 1.0
        %vm4711 = vcmp.lt.f32.partialorder %v4679, 1.0
        %vm4712 = vcmp.lt.f32.partialorder %v4680, 1.0
        %vm4713 = vcmp.lt.f32.partialorder %v4681, 1.0
        %vm4714 = vcmp.lt.f32.partialorder %v4682, 1.0
        %vm4715 = vcmp.lt.f32.partialorder %v4683, 1.0
        %vm4716 = vcmp.lt.f32.partialorder %v4684, 1.0
        %vm4717 = vcmp.lt.f32.partialorder %v4685, 1.0
        %vm4718 = vcmp.lt.f32.partialorder %v4686, 1.0
        %vm4719 = vcmp.lt.f32.partialorder %v4687, 1.0
        %vm4720 = vcmp.lt.f32.partialorder %v4688, 1.0
        %vm4721 = vcmp.lt.f32.partialorder %v4689, 1.0
        %vm4722 = vcmp.lt.f32.partialorder %v4690, 1.0
        %vm4723 = vcmp.lt.f32.partialorder %v4691, 1.0
        %vm4724 = vcmp.lt.f32.partialorder %v4692, 1.0
        %vm4725 = vcmp.lt.f32.partialorder %v4693, 1.0
        %v4726 = vsel %vm4694, 1, 0
        %v4727 = vsel %vm4695, 1, 0
        %v4728 = vsel %vm4696, 1, 0
        %v4729 = vsel %vm4697, 1, 0
        %v4730 = vsel %vm4698, 1, 0
        %v4731 = vsel %vm4699, 1, 0
        %v4732 = vsel %vm4700, 1, 0
        %v4733 = vsel %vm4701, 1, 0
        %v4734 = vsel %vm4702, 1, 0
        %v4735 = vsel %vm4703, 1, 0
        %v4736 = vsel %vm4704, 1, 0
        %v4737 = vsel %vm4705, 1, 0
        %v4738 = vsel %vm4706, 1, 0
        %v4739 = vsel %vm4707, 1, 0
        %v4740 = vsel %vm4708, 1, 0
        %v4741 = vsel %vm4709, 1, 0
        %v4742 = vsel %vm4710, 1, 0
        %v4743 = vsel %vm4711, 1, 0
        %v4744 = vsel %vm4712, 1, 0
        %v4745 = vsel %vm4713, 1, 0
        %v4746 = vsel %vm4714, 1, 0
        %v4747 = vsel %vm4715, 1, 0
        %v4748 = vsel %vm4716, 1, 0
        %v4749 = vsel %vm4717, 1, 0
        %v4750 = vsel %vm4718, 1, 0
        %v4751 = vsel %vm4719, 1, 0
        %v4752 = vsel %vm4720, 1, 0
        %v4753 = vsel %vm4721, 1, 0
        %v4754 = vsel %vm4722, 1, 0
        %v4755 = vsel %vm4723, 1, 0
        %v4756 = vsel %vm4724, 1, 0
        %v4757 = vsel %vm4725, 1, 0
        %v4758 = vcvt.s32.f32 %v4726
        %v4759 = vcvt.s32.f32 %v4727
        %v4760 = vcvt.s32.f32 %v4728
        %v4761 = vcvt.s32.f32 %v4729
        %v4762 = vcvt.s32.f32 %v4730
        %v4763 = vcvt.s32.f32 %v4731
        %v4764 = vcvt.s32.f32 %v4732
        %v4765 = vcvt.s32.f32 %v4733
        %v4766 = vcvt.s32.f32 %v4734
        %v4767 = vcvt.s32.f32 %v4735
        %v4768 = vcvt.s32.f32 %v4736
        %v4769 = vcvt.s32.f32 %v4737
        %v4770 = vcvt.s32.f32 %v4738
        %v4771 = vcvt.s32.f32 %v4739
        %v4772 = vcvt.s32.f32 %v4740
        %v4773 = vcvt.s32.f32 %v4741
        %v4774 = vcvt.s32.f32 %v4742
        %v4775 = vcvt.s32.f32 %v4743
        %v4776 = vcvt.s32.f32 %v4744
        %v4777 = vcvt.s32.f32 %v4745
        %v4778 = vcvt.s32.f32 %v4746
        %v4779 = vcvt.s32.f32 %v4747
        %v4780 = vcvt.s32.f32 %v4748
        %v4781 = vcvt.s32.f32 %v4749
        %v4782 = vcvt.s32.f32 %v4750
        %v4783 = vcvt.s32.f32 %v4751
        %v4784 = vcvt.s32.f32 %v4752
        %v4785 = vcvt.s32.f32 %v4753
        %v4786 = vcvt.s32.f32 %v4754
        %v4787 = vcvt.s32.f32 %v4755
        %v4788 = vcvt.s32.f32 %v4756
        %v4789 = vcvt.s32.f32 %v4757
        %v4790 = vadd.f32 %v4630, %v4758
        %v4791 = vadd.f32 %v4631, %v4759
        %v4792 = vadd.f32 %v4632, %v4760
        %v4793 = vadd.f32 %v4633, %v4761
        %v4794 = vadd.f32 %v4634, %v4762
        %v4795 = vadd.f32 %v4635, %v4763
        %v4796 = vadd.f32 %v4636, %v4764
        %v4797 = vadd.f32 %v4637, %v4765
        %v4798 = vadd.f32 %v4638, %v4766
        %v4799 = vadd.f32 %v4639, %v4767
        %v4800 = vadd.f32 %v4640, %v4768
        %v4801 = vadd.f32 %v4641, %v4769
        %v4802 = vadd.f32 %v4642, %v4770
        %v4803 = vadd.f32 %v4643, %v4771
        %v4804 = vadd.f32 %v4644, %v4772
        %v4805 = vadd.f32 %v4645, %v4773
        %v4806 = vadd.f32 %v4646, %v4774
        %v4807 = vadd.f32 %v4647, %v4775
        %v4808 = vadd.f32 %v4648, %v4776
        %v4809 = vadd.f32 %v4649, %v4777
        %v4810 = vadd.f32 %v4650, %v4778
        %v4811 = vadd.f32 %v4651, %v4779
        %v4812 = vadd.f32 %v4652, %v4780
        %v4813 = vadd.f32 %v4653, %v4781
        %v4814 = vadd.f32 %v4654, %v4782
        %v4815 = vadd.f32 %v4655, %v4783
        %v4816 = vadd.f32 %v4656, %v4784
        %v4817 = vadd.f32 %v4657, %v4785
        %v4818 = vadd.f32 %v4658, %v4786
        %v4819 = vadd.f32 %v4659, %v4787
        %v4820 = vadd.f32 %v4660, %v4788
        %v4821 = vadd.f32 %v4661, %v4789
        %v4822 = vadd.f32 %v4662, %v904
        %v4823 = vadd.f32 %v4663, %v906
        %v4824 = vadd.f32 %v4664, %v908
        %v4825 = vadd.f32 %v4665, %v910
        %v4826 = vadd.f32 %v4666, %v914
        %v4827 = vadd.f32 %v4667, %v916
        %v4828 = vadd.f32 %v4668, %v918
        %v4829 = vadd.f32 %v4669, %v920
        %v4830 = vadd.f32 %v4670, %v924
        %v4831 = vadd.f32 %v4671, %v926
        %v4832 = vadd.f32 %v4672, %v928
        %v4833 = vadd.f32 %v4673, %v930
        %v4834 = vadd.f32 %v4674, %v934
        %v4835 = vadd.f32 %v4675, %v936
        %v4836 = vadd.f32 %v4676, %v938
        %v4837 = vadd.f32 %v4677, %v940
        %v4838 = vadd.f32 %v4678, %v944
        %v4839 = vadd.f32 %v4679, %v946
        %v4840 = vadd.f32 %v4680, %v948
        %v4841 = vadd.f32 %v4681, %v950
        %v4842 = vadd.f32 %v4682, %v954
        %v4843 = vadd.f32 %v4683, %v956
        %v4844 = vadd.f32 %v4684, %v958
        %v4845 = vadd.f32 %v4685, %v960
        %v4846 = vadd.f32 %v4686, %v964
        %v4847 = vadd.f32 %v4687, %v966
        %v4848 = vadd.f32 %v4688, %v968
        %v4849 = vadd.f32 %v4689, %v970
        %v4850 = vadd.f32 %v4690, %v974
        %v4851 = vadd.f32 %v4691, %v976
        %v4852 = vadd.f32 %v4692, %v978
        %v4853 = vadd.f32 %v4693, %v980
        %vm4854 = vcmp.lt.f32.partialorder %v4822, 1.0
        %vm4855 = vcmp.lt.f32.partialorder %v4823, 1.0
        %vm4856 = vcmp.lt.f32.partialorder %v4824, 1.0
        %vm4857 = vcmp.lt.f32.partialorder %v4825, 1.0
        %vm4858 = vcmp.lt.f32.partialorder %v4826, 1.0
        %vm4859 = vcmp.lt.f32.partialorder %v4827, 1.0
        %vm4860 = vcmp.lt.f32.partialorder %v4828, 1.0
        %vm4861 = vcmp.lt.f32.partialorder %v4829, 1.0
        %vm4862 = vcmp.lt.f32.partialorder %v4830, 1.0
        %vm4863 = vcmp.lt.f32.partialorder %v4831, 1.0
        %vm4864 = vcmp.lt.f32.partialorder %v4832, 1.0
        %vm4865 = vcmp.lt.f32.partialorder %v4833, 1.0
        %vm4866 = vcmp.lt.f32.partialorder %v4834, 1.0
        %vm4867 = vcmp.lt.f32.partialorder %v4835, 1.0
        %vm4868 = vcmp.lt.f32.partialorder %v4836, 1.0
        %vm4869 = vcmp.lt.f32.partialorder %v4837, 1.0
        %vm4870 = vcmp.lt.f32.partialorder %v4838, 1.0
        %vm4871 = vcmp.lt.f32.partialorder %v4839, 1.0
        %vm4872 = vcmp.lt.f32.partialorder %v4840, 1.0
        %vm4873 = vcmp.lt.f32.partialorder %v4841, 1.0
        %vm4874 = vcmp.lt.f32.partialorder %v4842, 1.0
        %vm4875 = vcmp.lt.f32.partialorder %v4843, 1.0
        %vm4876 = vcmp.lt.f32.partialorder %v4844, 1.0
        %vm4877 = vcmp.lt.f32.partialorder %v4845, 1.0
        %vm4878 = vcmp.lt.f32.partialorder %v4846, 1.0
        %vm4879 = vcmp.lt.f32.partialorder %v4847, 1.0
        %vm4880 = vcmp.lt.f32.partialorder %v4848, 1.0
        %vm4881 = vcmp.lt.f32.partialorder %v4849, 1.0
        %vm4882 = vcmp.lt.f32.partialorder %v4850, 1.0
        %vm4883 = vcmp.lt.f32.partialorder %v4851, 1.0
        %vm4884 = vcmp.lt.f32.partialorder %v4852, 1.0
        %vm4885 = vcmp.lt.f32.partialorder %v4853, 1.0
        %v4886 = vsel %vm4854, 1, 0
        %v4887 = vsel %vm4855, 1, 0
        %v4888 = vsel %vm4856, 1, 0
        %v4889 = vsel %vm4857, 1, 0
        %v4890 = vsel %vm4858, 1, 0
        %v4891 = vsel %vm4859, 1, 0
        %v4892 = vsel %vm4860, 1, 0
        %v4893 = vsel %vm4861, 1, 0
        %v4894 = vsel %vm4862, 1, 0
        %v4895 = vsel %vm4863, 1, 0
        %v4896 = vsel %vm4864, 1, 0
        %v4897 = vsel %vm4865, 1, 0
        %v4898 = vsel %vm4866, 1, 0
        %v4899 = vsel %vm4867, 1, 0
        %v4900 = vsel %vm4868, 1, 0
        %v4901 = vsel %vm4869, 1, 0
        %v4902 = vsel %vm4870, 1, 0
        %v4903 = vsel %vm4871, 1, 0
        %v4904 = vsel %vm4872, 1, 0
        %v4905 = vsel %vm4873, 1, 0
        %v4906 = vsel %vm4874, 1, 0
        %v4907 = vsel %vm4875, 1, 0
        %v4908 = vsel %vm4876, 1, 0
        %v4909 = vsel %vm4877, 1, 0
        %v4910 = vsel %vm4878, 1, 0
        %v4911 = vsel %vm4879, 1, 0
        %v4912 = vsel %vm4880, 1, 0
        %v4913 = vsel %vm4881, 1, 0
        %v4914 = vsel %vm4882, 1, 0
        %v4915 = vsel %vm4883, 1, 0
        %v4916 = vsel %vm4884, 1, 0
        %v4917 = vsel %vm4885, 1, 0
        %v4918 = vcvt.s32.f32 %v4886
        %v4919 = vcvt.s32.f32 %v4887
        %v4920 = vcvt.s32.f32 %v4888
        %v4921 = vcvt.s32.f32 %v4889
        %v4922 = vcvt.s32.f32 %v4890
        %v4923 = vcvt.s32.f32 %v4891
        %v4924 = vcvt.s32.f32 %v4892
        %v4925 = vcvt.s32.f32 %v4893
        %v4926 = vcvt.s32.f32 %v4894
        %v4927 = vcvt.s32.f32 %v4895
        %v4928 = vcvt.s32.f32 %v4896
        %v4929 = vcvt.s32.f32 %v4897
        %v4930 = vcvt.s32.f32 %v4898
        %v4931 = vcvt.s32.f32 %v4899
        %v4932 = vcvt.s32.f32 %v4900
        %v4933 = vcvt.s32.f32 %v4901
        %v4934 = vcvt.s32.f32 %v4902
        %v4935 = vcvt.s32.f32 %v4903
        %v4936 = vcvt.s32.f32 %v4904
        %v4937 = vcvt.s32.f32 %v4905
        %v4938 = vcvt.s32.f32 %v4906
        %v4939 = vcvt.s32.f32 %v4907
        %v4940 = vcvt.s32.f32 %v4908
        %v4941 = vcvt.s32.f32 %v4909
        %v4942 = vcvt.s32.f32 %v4910
        %v4943 = vcvt.s32.f32 %v4911
        %v4944 = vcvt.s32.f32 %v4912
        %v4945 = vcvt.s32.f32 %v4913
        %v4946 = vcvt.s32.f32 %v4914
        %v4947 = vcvt.s32.f32 %v4915
        %v4948 = vcvt.s32.f32 %v4916
        %v4949 = vcvt.s32.f32 %v4917
        %v4950 = vadd.f32 %v4790, %v4918
        %v4951 = vadd.f32 %v4791, %v4919
        %v4952 = vadd.f32 %v4792, %v4920
        %v4953 = vadd.f32 %v4793, %v4921
        %v4954 = vadd.f32 %v4794, %v4922
        %v4955 = vadd.f32 %v4795, %v4923
        %v4956 = vadd.f32 %v4796, %v4924
        %v4957 = vadd.f32 %v4797, %v4925
        %v4958 = vadd.f32 %v4798, %v4926
        %v4959 = vadd.f32 %v4799, %v4927
        %v4960 = vadd.f32 %v4800, %v4928
        %v4961 = vadd.f32 %v4801, %v4929
        %v4962 = vadd.f32 %v4802, %v4930
        %v4963 = vadd.f32 %v4803, %v4931
        %v4964 = vadd.f32 %v4804, %v4932
        %v4965 = vadd.f32 %v4805, %v4933
        %v4966 = vadd.f32 %v4806, %v4934
        %v4967 = vadd.f32 %v4807, %v4935
        %v4968 = vadd.f32 %v4808, %v4936
        %v4969 = vadd.f32 %v4809, %v4937
        %v4970 = vadd.f32 %v4810, %v4938
        %v4971 = vadd.f32 %v4811, %v4939
        %v4972 = vadd.f32 %v4812, %v4940
        %v4973 = vadd.f32 %v4813, %v4941
        %v4974 = vadd.f32 %v4814, %v4942
        %v4975 = vadd.f32 %v4815, %v4943
        %v4976 = vadd.f32 %v4816, %v4944
        %v4977 = vadd.f32 %v4817, %v4945
        %v4978 = vadd.f32 %v4818, %v4946
        %v4979 = vadd.f32 %v4819, %v4947
        %v4980 = vadd.f32 %v4820, %v4948
        %v4981 = vadd.f32 %v4821, %v4949
        %v4982 = vadd.f32 %v4822, %v904
        %v4983 = vadd.f32 %v4823, %v906
        %v4984 = vadd.f32 %v4824, %v908
        %v4985 = vadd.f32 %v4825, %v910
        %v4986 = vadd.f32 %v4826, %v914
        %v4987 = vadd.f32 %v4827, %v916
        %v4988 = vadd.f32 %v4828, %v918
        %v4989 = vadd.f32 %v4829, %v920
        %v4990 = vadd.f32 %v4830, %v924
        %v4991 = vadd.f32 %v4831, %v926
        %v4992 = vadd.f32 %v4832, %v928
        %v4993 = vadd.f32 %v4833, %v930
        %v4994 = vadd.f32 %v4834, %v934
        %v4995 = vadd.f32 %v4835, %v936
        %v4996 = vadd.f32 %v4836, %v938
        %v4997 = vadd.f32 %v4837, %v940
        %v4998 = vadd.f32 %v4838, %v944
        %v4999 = vadd.f32 %v4839, %v946
        %v5000 = vadd.f32 %v4840, %v948
        %v5001 = vadd.f32 %v4841, %v950
        %v5002 = vadd.f32 %v4842, %v954
        %v5003 = vadd.f32 %v4843, %v956
        %v5004 = vadd.f32 %v4844, %v958
        %v5005 = vadd.f32 %v4845, %v960
        %v5006 = vadd.f32 %v4846, %v964
        %v5007 = vadd.f32 %v4847, %v966
        %v5008 = vadd.f32 %v4848, %v968
        %v5009 = vadd.f32 %v4849, %v970
        %v5010 = vadd.f32 %v4850, %v974
        %v5011 = vadd.f32 %v4851, %v976
        %v5012 = vadd.f32 %v4852, %v978
        %v5013 = vadd.f32 %v4853, %v980
        %vm5014 = vcmp.lt.f32.partialorder %v4982, 1.0
        %vm5015 = vcmp.lt.f32.partialorder %v4983, 1.0
        %vm5016 = vcmp.lt.f32.partialorder %v4984, 1.0
        %vm5017 = vcmp.lt.f32.partialorder %v4985, 1.0
        %vm5018 = vcmp.lt.f32.partialorder %v4986, 1.0
        %vm5019 = vcmp.lt.f32.partialorder %v4987, 1.0
        %vm5020 = vcmp.lt.f32.partialorder %v4988, 1.0
        %vm5021 = vcmp.lt.f32.partialorder %v4989, 1.0
        %vm5022 = vcmp.lt.f32.partialorder %v4990, 1.0
        %vm5023 = vcmp.lt.f32.partialorder %v4991, 1.0
        %vm5024 = vcmp.lt.f32.partialorder %v4992, 1.0
        %vm5025 = vcmp.lt.f32.partialorder %v4993, 1.0
        %vm5026 = vcmp.lt.f32.partialorder %v4994, 1.0
        %vm5027 = vcmp.lt.f32.partialorder %v4995, 1.0
        %vm5028 = vcmp.lt.f32.partialorder %v4996, 1.0
        %vm5029 = vcmp.lt.f32.partialorder %v4997, 1.0
        %vm5030 = vcmp.lt.f32.partialorder %v4998, 1.0
        %vm5031 = vcmp.lt.f32.partialorder %v4999, 1.0
        %vm5032 = vcmp.lt.f32.partialorder %v5000, 1.0
        %vm5033 = vcmp.lt.f32.partialorder %v5001, 1.0
        %vm5034 = vcmp.lt.f32.partialorder %v5002, 1.0
        %vm5035 = vcmp.lt.f32.partialorder %v5003, 1.0
        %vm5036 = vcmp.lt.f32.partialorder %v5004, 1.0
        %vm5037 = vcmp.lt.f32.partialorder %v5005, 1.0
        %vm5038 = vcmp.lt.f32.partialorder %v5006, 1.0
        %vm5039 = vcmp.lt.f32.partialorder %v5007, 1.0
        %vm5040 = vcmp.lt.f32.partialorder %v5008, 1.0
        %vm5041 = vcmp.lt.f32.partialorder %v5009, 1.0
        %vm5042 = vcmp.lt.f32.partialorder %v5010, 1.0
        %vm5043 = vcmp.lt.f32.partialorder %v5011, 1.0
        %vm5044 = vcmp.lt.f32.partialorder %v5012, 1.0
        %vm5045 = vcmp.lt.f32.partialorder %v5013, 1.0
        %v5046 = vsel %vm5014, 1, 0
        %v5047 = vsel %vm5015, 1, 0
        %v5048 = vsel %vm5016, 1, 0
        %v5049 = vsel %vm5017, 1, 0
        %v5050 = vsel %vm5018, 1, 0
        %v5051 = vsel %vm5019, 1, 0
        %v5052 = vsel %vm5020, 1, 0
        %v5053 = vsel %vm5021, 1, 0
        %v5054 = vsel %vm5022, 1, 0
        %v5055 = vsel %vm5023, 1, 0
        %v5056 = vsel %vm5024, 1, 0
        %v5057 = vsel %vm5025, 1, 0
        %v5058 = vsel %vm5026, 1, 0
        %v5059 = vsel %vm5027, 1, 0
        %v5060 = vsel %vm5028, 1, 0
        %v5061 = vsel %vm5029, 1, 0
        %v5062 = vsel %vm5030, 1, 0
        %v5063 = vsel %vm5031, 1, 0
        %v5064 = vsel %vm5032, 1, 0
        %v5065 = vsel %vm5033, 1, 0
        %v5066 = vsel %vm5034, 1, 0
        %v5067 = vsel %vm5035, 1, 0
        %v5068 = vsel %vm5036, 1, 0
        %v5069 = vsel %vm5037, 1, 0
        %v5070 = vsel %vm5038, 1, 0
        %v5071 = vsel %vm5039, 1, 0
        %v5072 = vsel %vm5040, 1, 0
        %v5073 = vsel %vm5041, 1, 0
        %v5074 = vsel %vm5042, 1, 0
        %v5075 = vsel %vm5043, 1, 0
        %v5076 = vsel %vm5044, 1, 0
        %v5077 = vsel %vm5045, 1, 0
        %v5078 = vcvt.s32.f32 %v5046
        %v5079 = vcvt.s32.f32 %v5047
        %v5080 = vcvt.s32.f32 %v5048
        %v5081 = vcvt.s32.f32 %v5049
        %v5082 = vcvt.s32.f32 %v5050
        %v5083 = vcvt.s32.f32 %v5051
        %v5084 = vcvt.s32.f32 %v5052
        %v5085 = vcvt.s32.f32 %v5053
        %v5086 = vcvt.s32.f32 %v5054
        %v5087 = vcvt.s32.f32 %v5055
        %v5088 = vcvt.s32.f32 %v5056
        %v5089 = vcvt.s32.f32 %v5057
        %v5090 = vcvt.s32.f32 %v5058
        %v5091 = vcvt.s32.f32 %v5059
        %v5092 = vcvt.s32.f32 %v5060
        %v5093 = vcvt.s32.f32 %v5061
        %v5094 = vcvt.s32.f32 %v5062
        %v5095 = vcvt.s32.f32 %v5063
        %v5096 = vcvt.s32.f32 %v5064
        %v5097 = vcvt.s32.f32 %v5065
        %v5098 = vcvt.s32.f32 %v5066
        %v5099 = vcvt.s32.f32 %v5067
        %v5100 = vcvt.s32.f32 %v5068
        %v5101 = vcvt.s32.f32 %v5069
        %v5102 = vcvt.s32.f32 %v5070
        %v5103 = vcvt.s32.f32 %v5071
        %v5104 = vcvt.s32.f32 %v5072
        %v5105 = vcvt.s32.f32 %v5073
        %v5106 = vcvt.s32.f32 %v5074
        %v5107 = vcvt.s32.f32 %v5075
        %v5108 = vcvt.s32.f32 %v5076
        %v5109 = vcvt.s32.f32 %v5077
        %v5110 = vadd.f32 %v4950, %v5078
        %v5111 = vadd.f32 %v4951, %v5079
        %v5112 = vadd.f32 %v4952, %v5080
        %v5113 = vadd.f32 %v4953, %v5081
        %v5114 = vadd.f32 %v4954, %v5082
        %v5115 = vadd.f32 %v4955, %v5083
        %v5116 = vadd.f32 %v4956, %v5084
        %v5117 = vadd.f32 %v4957, %v5085
        %v5118 = vadd.f32 %v4958, %v5086
        %v5119 = vadd.f32 %v4959, %v5087
        %v5120 = vadd.f32 %v4960, %v5088
        %v5121 = vadd.f32 %v4961, %v5089
        %v5122 = vadd.f32 %v4962, %v5090
        %v5123 = vadd.f32 %v4963, %v5091
        %v5124 = vadd.f32 %v4964, %v5092
        %v5125 = vadd.f32 %v4965, %v5093
        %v5126 = vadd.f32 %v4966, %v5094
        %v5127 = vadd.f32 %v4967, %v5095
        %v5128 = vadd.f32 %v4968, %v5096
        %v5129 = vadd.f32 %v4969, %v5097
        %v5130 = vadd.f32 %v4970, %v5098
        %v5131 = vadd.f32 %v4971, %v5099
        %v5132 = vadd.f32 %v4972, %v5100
        %v5133 = vadd.f32 %v4973, %v5101
        %v5134 = vadd.f32 %v4974, %v5102
        %v5135 = vadd.f32 %v4975, %v5103
        %v5136 = vadd.f32 %v4976, %v5104
        %v5137 = vadd.f32 %v4977, %v5105
        %v5138 = vadd.f32 %v4978, %v5106
        %v5139 = vadd.f32 %v4979, %v5107
        %v5140 = vadd.f32 %v4980, %v5108
        %v5141 = vadd.f32 %v4981, %v5109
        %v5142 = vadd.f32 %v4982, %v904
        %v5143 = vadd.f32 %v4983, %v906
        %v5144 = vadd.f32 %v4984, %v908
        %v5145 = vadd.f32 %v4985, %v910
        %v5146 = vadd.f32 %v4986, %v914
        %v5147 = vadd.f32 %v4987, %v916
        %v5148 = vadd.f32 %v4988, %v918
        %v5149 = vadd.f32 %v4989, %v920
        %v5150 = vadd.f32 %v4990, %v924
        %v5151 = vadd.f32 %v4991, %v926
        %v5152 = vadd.f32 %v4992, %v928
        %v5153 = vadd.f32 %v4993, %v930
        %v5154 = vadd.f32 %v4994, %v934
        %v5155 = vadd.f32 %v4995, %v936
        %v5156 = vadd.f32 %v4996, %v938
        %v5157 = vadd.f32 %v4997, %v940
        %v5158 = vadd.f32 %v4998, %v944
        %v5159 = vadd.f32 %v4999, %v946
        %v5160 = vadd.f32 %v5000, %v948
        %v5161 = vadd.f32 %v5001, %v950
        %v5162 = vadd.f32 %v5002, %v954
        %v5163 = vadd.f32 %v5003, %v956
        %v5164 = vadd.f32 %v5004, %v958
        %v5165 = vadd.f32 %v5005, %v960
        %v5166 = vadd.f32 %v5006, %v964
        %v5167 = vadd.f32 %v5007, %v966
        %v5168 = vadd.f32 %v5008, %v968
        %v5169 = vadd.f32 %v5009, %v970
        %v5170 = vadd.f32 %v5010, %v974
        %v5171 = vadd.f32 %v5011, %v976
        %v5172 = vadd.f32 %v5012, %v978
        %v5173 = vadd.f32 %v5013, %v980
        %vm5174 = vcmp.lt.f32.partialorder %v5142, 1.0
        %vm5175 = vcmp.lt.f32.partialorder %v5143, 1.0
        %vm5176 = vcmp.lt.f32.partialorder %v5144, 1.0
        %vm5177 = vcmp.lt.f32.partialorder %v5145, 1.0
        %vm5178 = vcmp.lt.f32.partialorder %v5146, 1.0
        %vm5179 = vcmp.lt.f32.partialorder %v5147, 1.0
        %vm5180 = vcmp.lt.f32.partialorder %v5148, 1.0
        %vm5181 = vcmp.lt.f32.partialorder %v5149, 1.0
        %vm5182 = vcmp.lt.f32.partialorder %v5150, 1.0
        %vm5183 = vcmp.lt.f32.partialorder %v5151, 1.0
        %vm5184 = vcmp.lt.f32.partialorder %v5152, 1.0
        %vm5185 = vcmp.lt.f32.partialorder %v5153, 1.0
        %vm5186 = vcmp.lt.f32.partialorder %v5154, 1.0
        %vm5187 = vcmp.lt.f32.partialorder %v5155, 1.0
        %vm5188 = vcmp.lt.f32.partialorder %v5156, 1.0
        %vm5189 = vcmp.lt.f32.partialorder %v5157, 1.0
        %vm5190 = vcmp.lt.f32.partialorder %v5158, 1.0
        %vm5191 = vcmp.lt.f32.partialorder %v5159, 1.0
        %vm5192 = vcmp.lt.f32.partialorder %v5160, 1.0
        %vm5193 = vcmp.lt.f32.partialorder %v5161, 1.0
        %vm5194 = vcmp.lt.f32.partialorder %v5162, 1.0
        %vm5195 = vcmp.lt.f32.partialorder %v5163, 1.0
        %vm5196 = vcmp.lt.f32.partialorder %v5164, 1.0
        %vm5197 = vcmp.lt.f32.partialorder %v5165, 1.0
        %vm5198 = vcmp.lt.f32.partialorder %v5166, 1.0
        %vm5199 = vcmp.lt.f32.partialorder %v5167, 1.0
        %vm5200 = vcmp.lt.f32.partialorder %v5168, 1.0
        %vm5201 = vcmp.lt.f32.partialorder %v5169, 1.0
        %vm5202 = vcmp.lt.f32.partialorder %v5170, 1.0
        %vm5203 = vcmp.lt.f32.partialorder %v5171, 1.0
        %vm5204 = vcmp.lt.f32.partialorder %v5172, 1.0
        %vm5205 = vcmp.lt.f32.partialorder %v5173, 1.0
        %v5206 = vsel %vm5174, 1, 0
        %v5207 = vsel %vm5175, 1, 0
        %v5208 = vsel %vm5176, 1, 0
        %v5209 = vsel %vm5177, 1, 0
        %v5210 = vsel %vm5178, 1, 0
        %v5211 = vsel %vm5179, 1, 0
        %v5212 = vsel %vm5180, 1, 0
        %v5213 = vsel %vm5181, 1, 0
        %v5214 = vsel %vm5182, 1, 0
        %v5215 = vsel %vm5183, 1, 0
        %v5216 = vsel %vm5184, 1, 0
        %v5217 = vsel %vm5185, 1, 0
        %v5218 = vsel %vm5186, 1, 0
        %v5219 = vsel %vm5187, 1, 0
        %v5220 = vsel %vm5188, 1, 0
        %v5221 = vsel %vm5189, 1, 0
        %v5222 = vsel %vm5190, 1, 0
        %v5223 = vsel %vm5191, 1, 0
        %v5224 = vsel %vm5192, 1, 0
        %v5225 = vsel %vm5193, 1, 0
        %v5226 = vsel %vm5194, 1, 0
        %v5227 = vsel %vm5195, 1, 0
        %v5228 = vsel %vm5196, 1, 0
        %v5229 = vsel %vm5197, 1, 0
        %v5230 = vsel %vm5198, 1, 0
        %v5231 = vsel %vm5199, 1, 0
        %v5232 = vsel %vm5200, 1, 0
        %v5233 = vsel %vm5201, 1, 0
        %v5234 = vsel %vm5202, 1, 0
        %v5235 = vsel %vm5203, 1, 0
        %v5236 = vsel %vm5204, 1, 0
        %v5237 = vsel %vm5205, 1, 0
        %v5238 = vcvt.s32.f32 %v5206
        %v5239 = vcvt.s32.f32 %v5207
        %v5240 = vcvt.s32.f32 %v5208
        %v5241 = vcvt.s32.f32 %v5209
        %v5242 = vcvt.s32.f32 %v5210
        %v5243 = vcvt.s32.f32 %v5211
        %v5244 = vcvt.s32.f32 %v5212
        %v5245 = vcvt.s32.f32 %v5213
        %v5246 = vcvt.s32.f32 %v5214
        %v5247 = vcvt.s32.f32 %v5215
        %v5248 = vcvt.s32.f32 %v5216
        %v5249 = vcvt.s32.f32 %v5217
        %v5250 = vcvt.s32.f32 %v5218
        %v5251 = vcvt.s32.f32 %v5219
        %v5252 = vcvt.s32.f32 %v5220
        %v5253 = vcvt.s32.f32 %v5221
        %v5254 = vcvt.s32.f32 %v5222
        %v5255 = vcvt.s32.f32 %v5223
        %v5256 = vcvt.s32.f32 %v5224
        %v5257 = vcvt.s32.f32 %v5225
        %v5258 = vcvt.s32.f32 %v5226
        %v5259 = vcvt.s32.f32 %v5227
        %v5260 = vcvt.s32.f32 %v5228
        %v5261 = vcvt.s32.f32 %v5229
        %v5262 = vcvt.s32.f32 %v5230
        %v5263 = vcvt.s32.f32 %v5231
        %v5264 = vcvt.s32.f32 %v5232
        %v5265 = vcvt.s32.f32 %v5233
        %v5266 = vcvt.s32.f32 %v5234
        %v5267 = vcvt.s32.f32 %v5235
        %v5268 = vcvt.s32.f32 %v5236
        %v5269 = vcvt.s32.f32 %v5237
        %v5270 = vadd.f32 %v5110, %v5238
        %v5271 = vadd.f32 %v5111, %v5239
        %v5272 = vadd.f32 %v5112, %v5240
        %v5273 = vadd.f32 %v5113, %v5241
        %v5274 = vadd.f32 %v5114, %v5242
        %v5275 = vadd.f32 %v5115, %v5243
        %v5276 = vadd.f32 %v5116, %v5244
        %v5277 = vadd.f32 %v5117, %v5245
        %v5278 = vadd.f32 %v5118, %v5246
        %v5279 = vadd.f32 %v5119, %v5247
        %v5280 = vadd.f32 %v5120, %v5248
        %v5281 = vadd.f32 %v5121, %v5249
        %v5282 = vadd.f32 %v5122, %v5250
        %v5283 = vadd.f32 %v5123, %v5251
        %v5284 = vadd.f32 %v5124, %v5252
        %v5285 = vadd.f32 %v5125, %v5253
        %v5286 = vadd.f32 %v5126, %v5254
        %v5287 = vadd.f32 %v5127, %v5255
        %v5288 = vadd.f32 %v5128, %v5256
        %v5289 = vadd.f32 %v5129, %v5257
        %v5290 = vadd.f32 %v5130, %v5258
        %v5291 = vadd.f32 %v5131, %v5259
        %v5292 = vadd.f32 %v5132, %v5260
        %v5293 = vadd.f32 %v5133, %v5261
        %v5294 = vadd.f32 %v5134, %v5262
        %v5295 = vadd.f32 %v5135, %v5263
        %v5296 = vadd.f32 %v5136, %v5264
        %v5297 = vadd.f32 %v5137, %v5265
        %v5298 = vadd.f32 %v5138, %v5266
        %v5299 = vadd.f32 %v5139, %v5267
        %v5300 = vadd.f32 %v5140, %v5268
        %v5301 = vadd.f32 %v5141, %v5269
        %v5302 = vadd.f32 %v5142, %v904
        %v5303 = vadd.f32 %v5143, %v906
        %v5304 = vadd.f32 %v5144, %v908
        %v5305 = vadd.f32 %v5145, %v910
        %v5306 = vadd.f32 %v5146, %v914
        %v5307 = vadd.f32 %v5147, %v916
        %v5308 = vadd.f32 %v5148, %v918
        %v5309 = vadd.f32 %v5149, %v920
        %v5310 = vadd.f32 %v5150, %v924
        %v5311 = vadd.f32 %v5151, %v926
        %v5312 = vadd.f32 %v5152, %v928
        %v5313 = vadd.f32 %v5153, %v930
        %v5314 = vadd.f32 %v5154, %v934
        %v5315 = vadd.f32 %v5155, %v936
        %v5316 = vadd.f32 %v5156, %v938
        %v5317 = vadd.f32 %v5157, %v940
        %v5318 = vadd.f32 %v5158, %v944
        %v5319 = vadd.f32 %v5159, %v946
        %v5320 = vadd.f32 %v5160, %v948
        %v5321 = vadd.f32 %v5161, %v950
        %v5322 = vadd.f32 %v5162, %v954
        %v5323 = vadd.f32 %v5163, %v956
        %v5324 = vadd.f32 %v5164, %v958
        %v5325 = vadd.f32 %v5165, %v960
        %v5326 = vadd.f32 %v5166, %v964
        %v5327 = vadd.f32 %v5167, %v966
        %v5328 = vadd.f32 %v5168, %v968
        %v5329 = vadd.f32 %v5169, %v970
        %v5330 = vadd.f32 %v5170, %v974
        %v5331 = vadd.f32 %v5171, %v976
        %v5332 = vadd.f32 %v5172, %v978
        %v5333 = vadd.f32 %v5173, %v980
        %vm5334 = vcmp.lt.f32.partialorder %v5302, 1.0
        %vm5335 = vcmp.lt.f32.partialorder %v5303, 1.0
        %vm5336 = vcmp.lt.f32.partialorder %v5304, 1.0
        %vm5337 = vcmp.lt.f32.partialorder %v5305, 1.0
        %vm5338 = vcmp.lt.f32.partialorder %v5306, 1.0
        %vm5339 = vcmp.lt.f32.partialorder %v5307, 1.0
        %vm5340 = vcmp.lt.f32.partialorder %v5308, 1.0
        %vm5341 = vcmp.lt.f32.partialorder %v5309, 1.0
        %vm5342 = vcmp.lt.f32.partialorder %v5310, 1.0
        %vm5343 = vcmp.lt.f32.partialorder %v5311, 1.0
        %vm5344 = vcmp.lt.f32.partialorder %v5312, 1.0
        %vm5345 = vcmp.lt.f32.partialorder %v5313, 1.0
        %vm5346 = vcmp.lt.f32.partialorder %v5314, 1.0
        %vm5347 = vcmp.lt.f32.partialorder %v5315, 1.0
        %vm5348 = vcmp.lt.f32.partialorder %v5316, 1.0
        %vm5349 = vcmp.lt.f32.partialorder %v5317, 1.0
        %vm5350 = vcmp.lt.f32.partialorder %v5318, 1.0
        %vm5351 = vcmp.lt.f32.partialorder %v5319, 1.0
        %vm5352 = vcmp.lt.f32.partialorder %v5320, 1.0
        %vm5353 = vcmp.lt.f32.partialorder %v5321, 1.0
        %vm5354 = vcmp.lt.f32.partialorder %v5322, 1.0
        %vm5355 = vcmp.lt.f32.partialorder %v5323, 1.0
        %vm5356 = vcmp.lt.f32.partialorder %v5324, 1.0
        %vm5357 = vcmp.lt.f32.partialorder %v5325, 1.0
        %vm5358 = vcmp.lt.f32.partialorder %v5326, 1.0
        %vm5359 = vcmp.lt.f32.partialorder %v5327, 1.0
        %vm5360 = vcmp.lt.f32.partialorder %v5328, 1.0
        %vm5361 = vcmp.lt.f32.partialorder %v5329, 1.0
        %vm5362 = vcmp.lt.f32.partialorder %v5330, 1.0
        %vm5363 = vcmp.lt.f32.partialorder %v5331, 1.0
        %vm5364 = vcmp.lt.f32.partialorder %v5332, 1.0
        %vm5365 = vcmp.lt.f32.partialorder %v5333, 1.0
        %v5366 = vsel %vm5334, 1, 0
        %v5367 = vsel %vm5335, 1, 0
        %v5368 = vsel %vm5336, 1, 0
        %v5369 = vsel %vm5337, 1, 0
        %v5370 = vsel %vm5338, 1, 0
        %v5371 = vsel %vm5339, 1, 0
        %v5372 = vsel %vm5340, 1, 0
        %v5373 = vsel %vm5341, 1, 0
        %v5374 = vsel %vm5342, 1, 0
        %v5375 = vsel %vm5343, 1, 0
        %v5376 = vsel %vm5344, 1, 0
        %v5377 = vsel %vm5345, 1, 0
        %v5378 = vsel %vm5346, 1, 0
        %v5379 = vsel %vm5347, 1, 0
        %v5380 = vsel %vm5348, 1, 0
        %v5381 = vsel %vm5349, 1, 0
        %v5382 = vsel %vm5350, 1, 0
        %v5383 = vsel %vm5351, 1, 0
        %v5384 = vsel %vm5352, 1, 0
        %v5385 = vsel %vm5353, 1, 0
        %v5386 = vsel %vm5354, 1, 0
        %v5387 = vsel %vm5355, 1, 0
        %v5388 = vsel %vm5356, 1, 0
        %v5389 = vsel %vm5357, 1, 0
        %v5390 = vsel %vm5358, 1, 0
        %v5391 = vsel %vm5359, 1, 0
        %v5392 = vsel %vm5360, 1, 0
        %v5393 = vsel %vm5361, 1, 0
        %v5394 = vsel %vm5362, 1, 0
        %v5395 = vsel %vm5363, 1, 0
        %v5396 = vsel %vm5364, 1, 0
        %v5397 = vsel %vm5365, 1, 0
        %v5398 = vcvt.s32.f32 %v5366
        %v5399 = vcvt.s32.f32 %v5367
        %v5400 = vcvt.s32.f32 %v5368
        %v5401 = vcvt.s32.f32 %v5369
        %v5402 = vcvt.s32.f32 %v5370
        %v5403 = vcvt.s32.f32 %v5371
        %v5404 = vcvt.s32.f32 %v5372
        %v5405 = vcvt.s32.f32 %v5373
        %v5406 = vcvt.s32.f32 %v5374
        %v5407 = vcvt.s32.f32 %v5375
        %v5408 = vcvt.s32.f32 %v5376
        %v5409 = vcvt.s32.f32 %v5377
        %v5410 = vcvt.s32.f32 %v5378
        %v5411 = vcvt.s32.f32 %v5379
        %v5412 = vcvt.s32.f32 %v5380
        %v5413 = vcvt.s32.f32 %v5381
        %v5414 = vcvt.s32.f32 %v5382
        %v5415 = vcvt.s32.f32 %v5383
        %v5416 = vcvt.s32.f32 %v5384
        %v5417 = vcvt.s32.f32 %v5385
        %v5418 = vcvt.s32.f32 %v5386
        %v5419 = vcvt.s32.f32 %v5387
        %v5420 = vcvt.s32.f32 %v5388
        %v5421 = vcvt.s32.f32 %v5389
        %v5422 = vcvt.s32.f32 %v5390
        %v5423 = vcvt.s32.f32 %v5391
        %v5424 = vcvt.s32.f32 %v5392
        %v5425 = vcvt.s32.f32 %v5393
        %v5426 = vcvt.s32.f32 %v5394
        %v5427 = vcvt.s32.f32 %v5395
        %v5428 = vcvt.s32.f32 %v5396
        %v5429 = vcvt.s32.f32 %v5397
        %v5430 = vadd.f32 %v5270, %v5398
        %v5431 = vadd.f32 %v5271, %v5399
        %v5432 = vadd.f32 %v5272, %v5400
        %v5433 = vadd.f32 %v5273, %v5401
        %v5434 = vadd.f32 %v5274, %v5402
        %v5435 = vadd.f32 %v5275, %v5403
        %v5436 = vadd.f32 %v5276, %v5404
        %v5437 = vadd.f32 %v5277, %v5405
        %v5438 = vadd.f32 %v5278, %v5406
        %v5439 = vadd.f32 %v5279, %v5407
        %v5440 = vadd.f32 %v5280, %v5408
        %v5441 = vadd.f32 %v5281, %v5409
        %v5442 = vadd.f32 %v5282, %v5410
        %v5443 = vadd.f32 %v5283, %v5411
        %v5444 = vadd.f32 %v5284, %v5412
        %v5445 = vadd.f32 %v5285, %v5413
        %v5446 = vadd.f32 %v5286, %v5414
        %v5447 = vadd.f32 %v5287, %v5415
        %v5448 = vadd.f32 %v5288, %v5416
        %v5449 = vadd.f32 %v5289, %v5417
        %v5450 = vadd.f32 %v5290, %v5418
        %v5451 = vadd.f32 %v5291, %v5419
        %v5452 = vadd.f32 %v5292, %v5420
        %v5453 = vadd.f32 %v5293, %v5421
        %v5454 = vadd.f32 %v5294, %v5422
        %v5455 = vadd.f32 %v5295, %v5423
        %v5456 = vadd.f32 %v5296, %v5424
        %v5457 = vadd.f32 %v5297, %v5425
        %v5458 = vadd.f32 %v5298, %v5426
        %v5459 = vadd.f32 %v5299, %v5427
        %v5460 = vadd.f32 %v5300, %v5428
        %v5461 = vadd.f32 %v5301, %v5429
        %v5462 = vadd.f32 %v5302, %v904
        %v5463 = vadd.f32 %v5303, %v906
        %v5464 = vadd.f32 %v5304, %v908
        %v5465 = vadd.f32 %v5305, %v910
        %v5466 = vadd.f32 %v5306, %v914
        %v5467 = vadd.f32 %v5307, %v916
        %v5468 = vadd.f32 %v5308, %v918
        %v5469 = vadd.f32 %v5309, %v920
        %v5470 = vadd.f32 %v5310, %v924
        %v5471 = vadd.f32 %v5311, %v926
        %v5472 = vadd.f32 %v5312, %v928
        %v5473 = vadd.f32 %v5313, %v930
        %v5474 = vadd.f32 %v5314, %v934
        %v5475 = vadd.f32 %v5315, %v936
        %v5476 = vadd.f32 %v5316, %v938
        %v5477 = vadd.f32 %v5317, %v940
        %v5478 = vadd.f32 %v5318, %v944
        %v5479 = vadd.f32 %v5319, %v946
        %v5480 = vadd.f32 %v5320, %v948
        %v5481 = vadd.f32 %v5321, %v950
        %v5482 = vadd.f32 %v5322, %v954
        %v5483 = vadd.f32 %v5323, %v956
        %v5484 = vadd.f32 %v5324, %v958
        %v5485 = vadd.f32 %v5325, %v960
        %v5486 = vadd.f32 %v5326, %v964
        %v5487 = vadd.f32 %v5327, %v966
        %v5488 = vadd.f32 %v5328, %v968
        %v5489 = vadd.f32 %v5329, %v970
        %v5490 = vadd.f32 %v5330, %v974
        %v5491 = vadd.f32 %v5331, %v976
        %v5492 = vadd.f32 %v5332, %v978
        %v5493 = vadd.f32 %v5333, %v980
        %vm5494 = vcmp.lt.f32.partialorder %v5462, 1.0
        %vm5495 = vcmp.lt.f32.partialorder %v5463, 1.0
        %vm5496 = vcmp.lt.f32.partialorder %v5464, 1.0
        %vm5497 = vcmp.lt.f32.partialorder %v5465, 1.0
        %vm5498 = vcmp.lt.f32.partialorder %v5466, 1.0
        %vm5499 = vcmp.lt.f32.partialorder %v5467, 1.0
        %vm5500 = vcmp.lt.f32.partialorder %v5468, 1.0
        %vm5501 = vcmp.lt.f32.partialorder %v5469, 1.0
        %vm5502 = vcmp.lt.f32.partialorder %v5470, 1.0
        %vm5503 = vcmp.lt.f32.partialorder %v5471, 1.0
        %vm5504 = vcmp.lt.f32.partialorder %v5472, 1.0
        %vm5505 = vcmp.lt.f32.partialorder %v5473, 1.0
        %vm5506 = vcmp.lt.f32.partialorder %v5474, 1.0
        %vm5507 = vcmp.lt.f32.partialorder %v5475, 1.0
        %vm5508 = vcmp.lt.f32.partialorder %v5476, 1.0
        %vm5509 = vcmp.lt.f32.partialorder %v5477, 1.0
        %vm5510 = vcmp.lt.f32.partialorder %v5478, 1.0
        %vm5511 = vcmp.lt.f32.partialorder %v5479, 1.0
        %vm5512 = vcmp.lt.f32.partialorder %v5480, 1.0
        %vm5513 = vcmp.lt.f32.partialorder %v5481, 1.0
        %vm5514 = vcmp.lt.f32.partialorder %v5482, 1.0
        %vm5515 = vcmp.lt.f32.partialorder %v5483, 1.0
        %vm5516 = vcmp.lt.f32.partialorder %v5484, 1.0
        %vm5517 = vcmp.lt.f32.partialorder %v5485, 1.0
        %vm5518 = vcmp.lt.f32.partialorder %v5486, 1.0
        %vm5519 = vcmp.lt.f32.partialorder %v5487, 1.0
        %vm5520 = vcmp.lt.f32.partialorder %v5488, 1.0
        %vm5521 = vcmp.lt.f32.partialorder %v5489, 1.0
        %vm5522 = vcmp.lt.f32.partialorder %v5490, 1.0
        %vm5523 = vcmp.lt.f32.partialorder %v5491, 1.0
        %vm5524 = vcmp.lt.f32.partialorder %v5492, 1.0
        %vm5525 = vcmp.lt.f32.partialorder %v5493, 1.0
        %v5526 = vsel %vm5494, 1, 0
        %v5527 = vsel %vm5495, 1, 0
        %v5528 = vsel %vm5496, 1, 0
        %v5529 = vsel %vm5497, 1, 0
        %v5530 = vsel %vm5498, 1, 0
        %v5531 = vsel %vm5499, 1, 0
        %v5532 = vsel %vm5500, 1, 0
        %v5533 = vsel %vm5501, 1, 0
        %v5534 = vsel %vm5502, 1, 0
        %v5535 = vsel %vm5503, 1, 0
        %v5536 = vsel %vm5504, 1, 0
        %v5537 = vsel %vm5505, 1, 0
        %v5538 = vsel %vm5506, 1, 0
        %v5539 = vsel %vm5507, 1, 0
        %v5540 = vsel %vm5508, 1, 0
        %v5541 = vsel %vm5509, 1, 0
        %v5542 = vsel %vm5510, 1, 0
        %v5543 = vsel %vm5511, 1, 0
        %v5544 = vsel %vm5512, 1, 0
        %v5545 = vsel %vm5513, 1, 0
        %v5546 = vsel %vm5514, 1, 0
        %v5547 = vsel %vm5515, 1, 0
        %v5548 = vsel %vm5516, 1, 0
        %v5549 = vsel %vm5517, 1, 0
        %v5550 = vsel %vm5518, 1, 0
        %v5551 = vsel %vm5519, 1, 0
        %v5552 = vsel %vm5520, 1, 0
        %v5553 = vsel %vm5521, 1, 0
        %v5554 = vsel %vm5522, 1, 0
        %v5555 = vsel %vm5523, 1, 0
        %v5556 = vsel %vm5524, 1, 0
        %v5557 = vsel %vm5525, 1, 0
        %v5558 = vcvt.s32.f32 %v5526
        %v5559 = vcvt.s32.f32 %v5527
        %v5560 = vcvt.s32.f32 %v5528
        %v5561 = vcvt.s32.f32 %v5529
        %v5562 = vcvt.s32.f32 %v5530
        %v5563 = vcvt.s32.f32 %v5531
        %v5564 = vcvt.s32.f32 %v5532
        %v5565 = vcvt.s32.f32 %v5533
        %v5566 = vcvt.s32.f32 %v5534
        %v5567 = vcvt.s32.f32 %v5535
        %v5568 = vcvt.s32.f32 %v5536
        %v5569 = vcvt.s32.f32 %v5537
        %v5570 = vcvt.s32.f32 %v5538
        %v5571 = vcvt.s32.f32 %v5539
        %v5572 = vcvt.s32.f32 %v5540
        %v5573 = vcvt.s32.f32 %v5541
        %v5574 = vcvt.s32.f32 %v5542
        %v5575 = vcvt.s32.f32 %v5543
        %v5576 = vcvt.s32.f32 %v5544
        %v5577 = vcvt.s32.f32 %v5545
        %v5578 = vcvt.s32.f32 %v5546
        %v5579 = vcvt.s32.f32 %v5547
        %v5580 = vcvt.s32.f32 %v5548
        %v5581 = vcvt.s32.f32 %v5549
        %v5582 = vcvt.s32.f32 %v5550
        %v5583 = vcvt.s32.f32 %v5551
        %v5584 = vcvt.s32.f32 %v5552
        %v5585 = vcvt.s32.f32 %v5553
        %v5586 = vcvt.s32.f32 %v5554
        %v5587 = vcvt.s32.f32 %v5555
        %v5588 = vcvt.s32.f32 %v5556
        %v5589 = vcvt.s32.f32 %v5557
        %v5590 = vadd.f32 %v5430, %v5558
        %v5591 = vadd.f32 %v5431, %v5559
        %v5592 = vadd.f32 %v5432, %v5560
        %v5593 = vadd.f32 %v5433, %v5561
        %v5594 = vadd.f32 %v5434, %v5562
        %v5595 = vadd.f32 %v5435, %v5563
        %v5596 = vadd.f32 %v5436, %v5564
        %v5597 = vadd.f32 %v5437, %v5565
        %v5598 = vadd.f32 %v5438, %v5566
        %v5599 = vadd.f32 %v5439, %v5567
        %v5600 = vadd.f32 %v5440, %v5568
        %v5601 = vadd.f32 %v5441, %v5569
        %v5602 = vadd.f32 %v5442, %v5570
        %v5603 = vadd.f32 %v5443, %v5571
        %v5604 = vadd.f32 %v5444, %v5572
        %v5605 = vadd.f32 %v5445, %v5573
        %v5606 = vadd.f32 %v5446, %v5574
        %v5607 = vadd.f32 %v5447, %v5575
        %v5608 = vadd.f32 %v5448, %v5576
        %v5609 = vadd.f32 %v5449, %v5577
        %v5610 = vadd.f32 %v5450, %v5578
        %v5611 = vadd.f32 %v5451, %v5579
        %v5612 = vadd.f32 %v5452, %v5580
        %v5613 = vadd.f32 %v5453, %v5581
        %v5614 = vadd.f32 %v5454, %v5582
        %v5615 = vadd.f32 %v5455, %v5583
        %v5616 = vadd.f32 %v5456, %v5584
        %v5617 = vadd.f32 %v5457, %v5585
        %v5618 = vadd.f32 %v5458, %v5586
        %v5619 = vadd.f32 %v5459, %v5587
        %v5620 = vadd.f32 %v5460, %v5588
        %v5621 = vadd.f32 %v5461, %v5589
        %v5622 = vadd.f32 %v5462, %v904
        %v5623 = vadd.f32 %v5463, %v906
        %v5624 = vadd.f32 %v5464, %v908
        %v5625 = vadd.f32 %v5465, %v910
        %v5626 = vadd.f32 %v5466, %v914
        %v5627 = vadd.f32 %v5467, %v916
        %v5628 = vadd.f32 %v5468, %v918
        %v5629 = vadd.f32 %v5469, %v920
        %v5630 = vadd.f32 %v5470, %v924
        %v5631 = vadd.f32 %v5471, %v926
        %v5632 = vadd.f32 %v5472, %v928
        %v5633 = vadd.f32 %v5473, %v930
        %v5634 = vadd.f32 %v5474, %v934
        %v5635 = vadd.f32 %v5475, %v936
        %v5636 = vadd.f32 %v5476, %v938
        %v5637 = vadd.f32 %v5477, %v940
        %v5638 = vadd.f32 %v5478, %v944
        %v5639 = vadd.f32 %v5479, %v946
        %v5640 = vadd.f32 %v5480, %v948
        %v5641 = vadd.f32 %v5481, %v950
        %v5642 = vadd.f32 %v5482, %v954
        %v5643 = vadd.f32 %v5483, %v956
        %v5644 = vadd.f32 %v5484, %v958
        %v5645 = vadd.f32 %v5485, %v960
        %v5646 = vadd.f32 %v5486, %v964
        %v5647 = vadd.f32 %v5487, %v966
        %v5648 = vadd.f32 %v5488, %v968
        %v5649 = vadd.f32 %v5489, %v970
        %v5650 = vadd.f32 %v5490, %v974
        %v5651 = vadd.f32 %v5491, %v976
        %v5652 = vadd.f32 %v5492, %v978
        %v5653 = vadd.f32 %v5493, %v980
        %vm5654 = vcmp.lt.f32.partialorder %v5622, 1.0
        %vm5655 = vcmp.lt.f32.partialorder %v5623, 1.0
        %vm5656 = vcmp.lt.f32.partialorder %v5624, 1.0
        %vm5657 = vcmp.lt.f32.partialorder %v5625, 1.0
        %vm5658 = vcmp.lt.f32.partialorder %v5626, 1.0
        %vm5659 = vcmp.lt.f32.partialorder %v5627, 1.0
        %vm5660 = vcmp.lt.f32.partialorder %v5628, 1.0
        %vm5661 = vcmp.lt.f32.partialorder %v5629, 1.0
        %vm5662 = vcmp.lt.f32.partialorder %v5630, 1.0
        %vm5663 = vcmp.lt.f32.partialorder %v5631, 1.0
        %vm5664 = vcmp.lt.f32.partialorder %v5632, 1.0
        %vm5665 = vcmp.lt.f32.partialorder %v5633, 1.0
        %vm5666 = vcmp.lt.f32.partialorder %v5634, 1.0
        %vm5667 = vcmp.lt.f32.partialorder %v5635, 1.0
        %vm5668 = vcmp.lt.f32.partialorder %v5636, 1.0
        %vm5669 = vcmp.lt.f32.partialorder %v5637, 1.0
        %vm5670 = vcmp.lt.f32.partialorder %v5638, 1.0
        %vm5671 = vcmp.lt.f32.partialorder %v5639, 1.0
        %vm5672 = vcmp.lt.f32.partialorder %v5640, 1.0
        %vm5673 = vcmp.lt.f32.partialorder %v5641, 1.0
        %vm5674 = vcmp.lt.f32.partialorder %v5642, 1.0
        %vm5675 = vcmp.lt.f32.partialorder %v5643, 1.0
        %vm5676 = vcmp.lt.f32.partialorder %v5644, 1.0
        %vm5677 = vcmp.lt.f32.partialorder %v5645, 1.0
        %vm5678 = vcmp.lt.f32.partialorder %v5646, 1.0
        %vm5679 = vcmp.lt.f32.partialorder %v5647, 1.0
        %vm5680 = vcmp.lt.f32.partialorder %v5648, 1.0
        %vm5681 = vcmp.lt.f32.partialorder %v5649, 1.0
        %vm5682 = vcmp.lt.f32.partialorder %v5650, 1.0
        %vm5683 = vcmp.lt.f32.partialorder %v5651, 1.0
        %vm5684 = vcmp.lt.f32.partialorder %v5652, 1.0
        %vm5685 = vcmp.lt.f32.partialorder %v5653, 1.0
        %v5686 = vsel %vm5654, 1, 0
        %v5687 = vsel %vm5655, 1, 0
        %v5688 = vsel %vm5656, 1, 0
        %v5689 = vsel %vm5657, 1, 0
        %v5690 = vsel %vm5658, 1, 0
        %v5691 = vsel %vm5659, 1, 0
        %v5692 = vsel %vm5660, 1, 0
        %v5693 = vsel %vm5661, 1, 0
        %v5694 = vsel %vm5662, 1, 0
        %v5695 = vsel %vm5663, 1, 0
        %v5696 = vsel %vm5664, 1, 0
        %v5697 = vsel %vm5665, 1, 0
        %v5698 = vsel %vm5666, 1, 0
        %v5699 = vsel %vm5667, 1, 0
        %v5700 = vsel %vm5668, 1, 0
        %v5701 = vsel %vm5669, 1, 0
        %v5702 = vsel %vm5670, 1, 0
        %v5703 = vsel %vm5671, 1, 0
        %v5704 = vsel %vm5672, 1, 0
        %v5705 = vsel %vm5673, 1, 0
        %v5706 = vsel %vm5674, 1, 0
        %v5707 = vsel %vm5675, 1, 0
        %v5708 = vsel %vm5676, 1, 0
        %v5709 = vsel %vm5677, 1, 0
        %v5710 = vsel %vm5678, 1, 0
        %v5711 = vsel %vm5679, 1, 0
        %v5712 = vsel %vm5680, 1, 0
        %v5713 = vsel %vm5681, 1, 0
        %v5714 = vsel %vm5682, 1, 0
        %v5715 = vsel %vm5683, 1, 0
        %v5716 = vsel %vm5684, 1, 0
        %v5717 = vsel %vm5685, 1, 0
        %v5718 = vcvt.s32.f32 %v5686
        %v5719 = vcvt.s32.f32 %v5687
        %v5720 = vcvt.s32.f32 %v5688
        %v5721 = vcvt.s32.f32 %v5689
        %v5722 = vcvt.s32.f32 %v5690
        %v5723 = vcvt.s32.f32 %v5691
        %v5724 = vcvt.s32.f32 %v5692
        %v5725 = vcvt.s32.f32 %v5693
        %v5726 = vcvt.s32.f32 %v5694
        %v5727 = vcvt.s32.f32 %v5695
        %v5728 = vcvt.s32.f32 %v5696
        %v5729 = vcvt.s32.f32 %v5697
        %v5730 = vcvt.s32.f32 %v5698
        %v5731 = vcvt.s32.f32 %v5699
        %v5732 = vcvt.s32.f32 %v5700
        %v5733 = vcvt.s32.f32 %v5701
        %v5734 = vcvt.s32.f32 %v5702
        %v5735 = vcvt.s32.f32 %v5703
        %v5736 = vcvt.s32.f32 %v5704
        %v5737 = vcvt.s32.f32 %v5705
        %v5738 = vcvt.s32.f32 %v5706
        %v5739 = vcvt.s32.f32 %v5707
        %v5740 = vcvt.s32.f32 %v5708
        %v5741 = vcvt.s32.f32 %v5709
        %v5742 = vcvt.s32.f32 %v5710
        %v5743 = vcvt.s32.f32 %v5711
        %v5744 = vcvt.s32.f32 %v5712
        %v5745 = vcvt.s32.f32 %v5713
        %v5746 = vcvt.s32.f32 %v5714
        %v5747 = vcvt.s32.f32 %v5715
        %v5748 = vcvt.s32.f32 %v5716
        %v5749 = vcvt.s32.f32 %v5717
        %v5750 = vadd.f32 %v5590, %v5718
        %v5751 = vadd.f32 %v5591, %v5719
        %v5752 = vadd.f32 %v5592, %v5720
        %v5753 = vadd.f32 %v5593, %v5721
        %v5754 = vadd.f32 %v5594, %v5722
        %v5755 = vadd.f32 %v5595, %v5723
        %v5756 = vadd.f32 %v5596, %v5724
        %v5757 = vadd.f32 %v5597, %v5725
        %v5758 = vadd.f32 %v5598, %v5726
        %v5759 = vadd.f32 %v5599, %v5727
        %v5760 = vadd.f32 %v5600, %v5728
        %v5761 = vadd.f32 %v5601, %v5729
        %v5762 = vadd.f32 %v5602, %v5730
        %v5763 = vadd.f32 %v5603, %v5731
        %v5764 = vadd.f32 %v5604, %v5732
        %v5765 = vadd.f32 %v5605, %v5733
        %v5766 = vadd.f32 %v5606, %v5734
        %v5767 = vadd.f32 %v5607, %v5735
        %v5768 = vadd.f32 %v5608, %v5736
        %v5769 = vadd.f32 %v5609, %v5737
        %v5770 = vadd.f32 %v5610, %v5738
        %v5771 = vadd.f32 %v5611, %v5739
        %v5772 = vadd.f32 %v5612, %v5740
        %v5773 = vadd.f32 %v5613, %v5741
        %v5774 = vadd.f32 %v5614, %v5742
        %v5775 = vadd.f32 %v5615, %v5743
        %v5776 = vadd.f32 %v5616, %v5744
        %v5777 = vadd.f32 %v5617, %v5745
        %v5778 = vadd.f32 %v5618, %v5746
        %v5779 = vadd.f32 %v5619, %v5747
        %v5780 = vadd.f32 %v5620, %v5748
        %v5781 = vadd.f32 %v5621, %v5749
        %v5782 = vadd.f32 %v5622, %v904
        %v5783 = vadd.f32 %v5623, %v906
        %v5784 = vadd.f32 %v5624, %v908
        %v5785 = vadd.f32 %v5625, %v910
        %v5786 = vadd.f32 %v5626, %v914
        %v5787 = vadd.f32 %v5627, %v916
        %v5788 = vadd.f32 %v5628, %v918
        %v5789 = vadd.f32 %v5629, %v920
        %v5790 = vadd.f32 %v5630, %v924
        %v5791 = vadd.f32 %v5631, %v926
        %v5792 = vadd.f32 %v5632, %v928
        %v5793 = vadd.f32 %v5633, %v930
        %v5794 = vadd.f32 %v5634, %v934
        %v5795 = vadd.f32 %v5635, %v936
        %v5796 = vadd.f32 %v5636, %v938
        %v5797 = vadd.f32 %v5637, %v940
        %v5798 = vadd.f32 %v5638, %v944
        %v5799 = vadd.f32 %v5639, %v946
        %v5800 = vadd.f32 %v5640, %v948
        %v5801 = vadd.f32 %v5641, %v950
        %v5802 = vadd.f32 %v5642, %v954
        %v5803 = vadd.f32 %v5643, %v956
        %v5804 = vadd.f32 %v5644, %v958
        %v5805 = vadd.f32 %v5645, %v960
        %v5806 = vadd.f32 %v5646, %v964
        %v5807 = vadd.f32 %v5647, %v966
        %v5808 = vadd.f32 %v5648, %v968
        %v5809 = vadd.f32 %v5649, %v970
        %v5810 = vadd.f32 %v5650, %v974
        %v5811 = vadd.f32 %v5651, %v976
        %v5812 = vadd.f32 %v5652, %v978
        %v5813 = vadd.f32 %v5653, %v980
        %vm5814 = vcmp.lt.f32.partialorder %v5782, 1.0
        %vm5815 = vcmp.lt.f32.partialorder %v5783, 1.0
        %vm5816 = vcmp.lt.f32.partialorder %v5784, 1.0
        %vm5817 = vcmp.lt.f32.partialorder %v5785, 1.0
        %vm5818 = vcmp.lt.f32.partialorder %v5786, 1.0
        %vm5819 = vcmp.lt.f32.partialorder %v5787, 1.0
        %vm5820 = vcmp.lt.f32.partialorder %v5788, 1.0
        %vm5821 = vcmp.lt.f32.partialorder %v5789, 1.0
        %vm5822 = vcmp.lt.f32.partialorder %v5790, 1.0
        %vm5823 = vcmp.lt.f32.partialorder %v5791, 1.0
        %vm5824 = vcmp.lt.f32.partialorder %v5792, 1.0
        %vm5825 = vcmp.lt.f32.partialorder %v5793, 1.0
        %vm5826 = vcmp.lt.f32.partialorder %v5794, 1.0
        %vm5827 = vcmp.lt.f32.partialorder %v5795, 1.0
        %vm5828 = vcmp.lt.f32.partialorder %v5796, 1.0
        %vm5829 = vcmp.lt.f32.partialorder %v5797, 1.0
        %vm5830 = vcmp.lt.f32.partialorder %v5798, 1.0
        %vm5831 = vcmp.lt.f32.partialorder %v5799, 1.0
        %vm5832 = vcmp.lt.f32.partialorder %v5800, 1.0
        %vm5833 = vcmp.lt.f32.partialorder %v5801, 1.0
        %vm5834 = vcmp.lt.f32.partialorder %v5802, 1.0
        %vm5835 = vcmp.lt.f32.partialorder %v5803, 1.0
        %vm5836 = vcmp.lt.f32.partialorder %v5804, 1.0
        %vm5837 = vcmp.lt.f32.partialorder %v5805, 1.0
        %vm5838 = vcmp.lt.f32.partialorder %v5806, 1.0
        %vm5839 = vcmp.lt.f32.partialorder %v5807, 1.0
        %vm5840 = vcmp.lt.f32.partialorder %v5808, 1.0
        %vm5841 = vcmp.lt.f32.partialorder %v5809, 1.0
        %vm5842 = vcmp.lt.f32.partialorder %v5810, 1.0
        %vm5843 = vcmp.lt.f32.partialorder %v5811, 1.0
        %vm5844 = vcmp.lt.f32.partialorder %v5812, 1.0
        %vm5845 = vcmp.lt.f32.partialorder %v5813, 1.0
        %v5846 = vsel %vm5814, 1, 0
        %v5847 = vsel %vm5815, 1, 0
        %v5848 = vsel %vm5816, 1, 0
        %v5849 = vsel %vm5817, 1, 0
        %v5850 = vsel %vm5818, 1, 0
        %v5851 = vsel %vm5819, 1, 0
        %v5852 = vsel %vm5820, 1, 0
        %v5853 = vsel %vm5821, 1, 0
        %v5854 = vsel %vm5822, 1, 0
        %v5855 = vsel %vm5823, 1, 0
        %v5856 = vsel %vm5824, 1, 0
        %v5857 = vsel %vm5825, 1, 0
        %v5858 = vsel %vm5826, 1, 0
        %v5859 = vsel %vm5827, 1, 0
        %v5860 = vsel %vm5828, 1, 0
        %v5861 = vsel %vm5829, 1, 0
        %v5862 = vsel %vm5830, 1, 0
        %v5863 = vsel %vm5831, 1, 0
        %v5864 = vsel %vm5832, 1, 0
        %v5865 = vsel %vm5833, 1, 0
        %v5866 = vsel %vm5834, 1, 0
        %v5867 = vsel %vm5835, 1, 0
        %v5868 = vsel %vm5836, 1, 0
        %v5869 = vsel %vm5837, 1, 0
        %v5870 = vsel %vm5838, 1, 0
        %v5871 = vsel %vm5839, 1, 0
        %v5872 = vsel %vm5840, 1, 0
        %v5873 = vsel %vm5841, 1, 0
        %v5874 = vsel %vm5842, 1, 0
        %v5875 = vsel %vm5843, 1, 0
        %v5876 = vsel %vm5844, 1, 0
        %v5877 = vsel %vm5845, 1, 0
        %v5878 = vcvt.s32.f32 %v5846
        %v5879 = vcvt.s32.f32 %v5847
        %v5880 = vcvt.s32.f32 %v5848
        %v5881 = vcvt.s32.f32 %v5849
        %v5882 = vcvt.s32.f32 %v5850
        %v5883 = vcvt.s32.f32 %v5851
        %v5884 = vcvt.s32.f32 %v5852
        %v5885 = vcvt.s32.f32 %v5853
        %v5886 = vcvt.s32.f32 %v5854
        %v5887 = vcvt.s32.f32 %v5855
        %v5888 = vcvt.s32.f32 %v5856
        %v5889 = vcvt.s32.f32 %v5857
        %v5890 = vcvt.s32.f32 %v5858
        %v5891 = vcvt.s32.f32 %v5859
        %v5892 = vcvt.s32.f32 %v5860
        %v5893 = vcvt.s32.f32 %v5861
        %v5894 = vcvt.s32.f32 %v5862
        %v5895 = vcvt.s32.f32 %v5863
        %v5896 = vcvt.s32.f32 %v5864
        %v5897 = vcvt.s32.f32 %v5865
        %v5898 = vcvt.s32.f32 %v5866
        %v5899 = vcvt.s32.f32 %v5867
        %v5900 = vcvt.s32.f32 %v5868
        %v5901 = vcvt.s32.f32 %v5869
        %v5902 = vcvt.s32.f32 %v5870
        %v5903 = vcvt.s32.f32 %v5871
        %v5904 = vcvt.s32.f32 %v5872
        %v5905 = vcvt.s32.f32 %v5873
        %v5906 = vcvt.s32.f32 %v5874
        %v5907 = vcvt.s32.f32 %v5875
        %v5908 = vcvt.s32.f32 %v5876
        %v5909 = vcvt.s32.f32 %v5877
        %v5910 = vadd.f32 %v5750, %v5878
        %v5911 = vadd.f32 %v5751, %v5879
        %v5912 = vadd.f32 %v5752, %v5880
        %v5913 = vadd.f32 %v5753, %v5881
        %v5914 = vadd.f32 %v5754, %v5882
        %v5915 = vadd.f32 %v5755, %v5883
        %v5916 = vadd.f32 %v5756, %v5884
        %v5917 = vadd.f32 %v5757, %v5885
        %v5918 = vadd.f32 %v5758, %v5886
        %v5919 = vadd.f32 %v5759, %v5887
        %v5920 = vadd.f32 %v5760, %v5888
        %v5921 = vadd.f32 %v5761, %v5889
        %v5922 = vadd.f32 %v5762, %v5890
        %v5923 = vadd.f32 %v5763, %v5891
        %v5924 = vadd.f32 %v5764, %v5892
        %v5925 = vadd.f32 %v5765, %v5893
        %v5926 = vadd.f32 %v5766, %v5894
        %v5927 = vadd.f32 %v5767, %v5895
        %v5928 = vadd.f32 %v5768, %v5896
        %v5929 = vadd.f32 %v5769, %v5897
        %v5930 = vadd.f32 %v5770, %v5898
        %v5931 = vadd.f32 %v5771, %v5899
        %v5932 = vadd.f32 %v5772, %v5900
        %v5933 = vadd.f32 %v5773, %v5901
        %v5934 = vadd.f32 %v5774, %v5902
        %v5935 = vadd.f32 %v5775, %v5903
        %v5936 = vadd.f32 %v5776, %v5904
        %v5937 = vadd.f32 %v5777, %v5905
        %v5938 = vadd.f32 %v5778, %v5906
        %v5939 = vadd.f32 %v5779, %v5907
        %v5940 = vadd.f32 %v5780, %v5908
        %v5941 = vadd.f32 %v5781, %v5909
        %v5942 = vadd.f32 %v5782, %v904
        %v5943 = vadd.f32 %v5783, %v906
        %v5944 = vadd.f32 %v5784, %v908
        %v5945 = vadd.f32 %v5785, %v910
        %v5946 = vadd.f32 %v5786, %v914
        %v5947 = vadd.f32 %v5787, %v916
        %v5948 = vadd.f32 %v5788, %v918
        %v5949 = vadd.f32 %v5789, %v920
        %v5950 = vadd.f32 %v5790, %v924
        %v5951 = vadd.f32 %v5791, %v926
        %v5952 = vadd.f32 %v5792, %v928
        %v5953 = vadd.f32 %v5793, %v930
        %v5954 = vadd.f32 %v5794, %v934
        %v5955 = vadd.f32 %v5795, %v936
        %v5956 = vadd.f32 %v5796, %v938
        %v5957 = vadd.f32 %v5797, %v940
        %v5958 = vadd.f32 %v5798, %v944
        %v5959 = vadd.f32 %v5799, %v946
        %v5960 = vadd.f32 %v5800, %v948
        %v5961 = vadd.f32 %v5801, %v950
        %v5962 = vadd.f32 %v5802, %v954
        %v5963 = vadd.f32 %v5803, %v956
        %v5964 = vadd.f32 %v5804, %v958
        %v5965 = vadd.f32 %v5805, %v960
        %v5966 = vadd.f32 %v5806, %v964
        %v5967 = vadd.f32 %v5807, %v966
        %v5968 = vadd.f32 %v5808, %v968
        %v5969 = vadd.f32 %v5809, %v970
        %v5970 = vadd.f32 %v5810, %v974
        %v5971 = vadd.f32 %v5811, %v976
        %v5972 = vadd.f32 %v5812, %v978
        %v5973 = vadd.f32 %v5813, %v980
        %vm5974 = vcmp.lt.f32.partialorder %v5942, 1.0
        %vm5975 = vcmp.lt.f32.partialorder %v5943, 1.0
        %vm5976 = vcmp.lt.f32.partialorder %v5944, 1.0
        %vm5977 = vcmp.lt.f32.partialorder %v5945, 1.0
        %vm5978 = vcmp.lt.f32.partialorder %v5946, 1.0
        %vm5979 = vcmp.lt.f32.partialorder %v5947, 1.0
        %vm5980 = vcmp.lt.f32.partialorder %v5948, 1.0
        %vm5981 = vcmp.lt.f32.partialorder %v5949, 1.0
        %vm5982 = vcmp.lt.f32.partialorder %v5950, 1.0
        %vm5983 = vcmp.lt.f32.partialorder %v5951, 1.0
        %vm5984 = vcmp.lt.f32.partialorder %v5952, 1.0
        %vm5985 = vcmp.lt.f32.partialorder %v5953, 1.0
        %vm5986 = vcmp.lt.f32.partialorder %v5954, 1.0
        %vm5987 = vcmp.lt.f32.partialorder %v5955, 1.0
        %vm5988 = vcmp.lt.f32.partialorder %v5956, 1.0
        %vm5989 = vcmp.lt.f32.partialorder %v5957, 1.0
        %vm5990 = vcmp.lt.f32.partialorder %v5958, 1.0
        %vm5991 = vcmp.lt.f32.partialorder %v5959, 1.0
        %vm5992 = vcmp.lt.f32.partialorder %v5960, 1.0
        %vm5993 = vcmp.lt.f32.partialorder %v5961, 1.0
        %vm5994 = vcmp.lt.f32.partialorder %v5962, 1.0
        %vm5995 = vcmp.lt.f32.partialorder %v5963, 1.0
        %vm5996 = vcmp.lt.f32.partialorder %v5964, 1.0
        %vm5997 = vcmp.lt.f32.partialorder %v5965, 1.0
        %vm5998 = vcmp.lt.f32.partialorder %v5966, 1.0
        %vm5999 = vcmp.lt.f32.partialorder %v5967, 1.0
        %vm6000 = vcmp.lt.f32.partialorder %v5968, 1.0
        %vm6001 = vcmp.lt.f32.partialorder %v5969, 1.0
        %vm6002 = vcmp.lt.f32.partialorder %v5970, 1.0
        %vm6003 = vcmp.lt.f32.partialorder %v5971, 1.0
        %vm6004 = vcmp.lt.f32.partialorder %v5972, 1.0
        %vm6005 = vcmp.lt.f32.partialorder %v5973, 1.0
        %v6006 = vsel %vm5974, 1, 0
        %v6007 = vsel %vm5975, 1, 0
        %v6008 = vsel %vm5976, 1, 0
        %v6009 = vsel %vm5977, 1, 0
        %v6010 = vsel %vm5978, 1, 0
        %v6011 = vsel %vm5979, 1, 0
        %v6012 = vsel %vm5980, 1, 0
        %v6013 = vsel %vm5981, 1, 0
        %v6014 = vsel %vm5982, 1, 0
        %v6015 = vsel %vm5983, 1, 0
        %v6016 = vsel %vm5984, 1, 0
        %v6017 = vsel %vm5985, 1, 0
        %v6018 = vsel %vm5986, 1, 0
        %v6019 = vsel %vm5987, 1, 0
        %v6020 = vsel %vm5988, 1, 0
        %v6021 = vsel %vm5989, 1, 0
        %v6022 = vsel %vm5990, 1, 0
        %v6023 = vsel %vm5991, 1, 0
        %v6024 = vsel %vm5992, 1, 0
        %v6025 = vsel %vm5993, 1, 0
        %v6026 = vsel %vm5994, 1, 0
        %v6027 = vsel %vm5995, 1, 0
        %v6028 = vsel %vm5996, 1, 0
        %v6029 = vsel %vm5997, 1, 0
        %v6030 = vsel %vm5998, 1, 0
        %v6031 = vsel %vm5999, 1, 0
        %v6032 = vsel %vm6000, 1, 0
        %v6033 = vsel %vm6001, 1, 0
        %v6034 = vsel %vm6002, 1, 0
        %v6035 = vsel %vm6003, 1, 0
        %v6036 = vsel %vm6004, 1, 0
        %v6037 = vsel %vm6005, 1, 0
        %v6038 = vcvt.s32.f32 %v6006
        %v6039 = vcvt.s32.f32 %v6007
        %v6040 = vcvt.s32.f32 %v6008
        %v6041 = vcvt.s32.f32 %v6009
        %v6042 = vcvt.s32.f32 %v6010
        %v6043 = vcvt.s32.f32 %v6011
        %v6044 = vcvt.s32.f32 %v6012
        %v6045 = vcvt.s32.f32 %v6013
        %v6046 = vcvt.s32.f32 %v6014
        %v6047 = vcvt.s32.f32 %v6015
        %v6048 = vcvt.s32.f32 %v6016
        %v6049 = vcvt.s32.f32 %v6017
        %v6050 = vcvt.s32.f32 %v6018
        %v6051 = vcvt.s32.f32 %v6019
        %v6052 = vcvt.s32.f32 %v6020
        %v6053 = vcvt.s32.f32 %v6021
        %v6054 = vcvt.s32.f32 %v6022
        %v6055 = vcvt.s32.f32 %v6023
        %v6056 = vcvt.s32.f32 %v6024
        %v6057 = vcvt.s32.f32 %v6025
        %v6058 = vcvt.s32.f32 %v6026
        %v6059 = vcvt.s32.f32 %v6027
        %v6060 = vcvt.s32.f32 %v6028
        %v6061 = vcvt.s32.f32 %v6029
        %v6062 = vcvt.s32.f32 %v6030
        %v6063 = vcvt.s32.f32 %v6031
        %v6064 = vcvt.s32.f32 %v6032
        %v6065 = vcvt.s32.f32 %v6033
        %v6066 = vcvt.s32.f32 %v6034
        %v6067 = vcvt.s32.f32 %v6035
        %v6068 = vcvt.s32.f32 %v6036
        %v6069 = vcvt.s32.f32 %v6037
        %v6070 = vadd.f32 %v5910, %v6038
        %v6071 = vadd.f32 %v5911, %v6039
        %v6072 = vadd.f32 %v5912, %v6040
        %v6073 = vadd.f32 %v5913, %v6041
        %v6074 = vadd.f32 %v5914, %v6042
        %v6075 = vadd.f32 %v5915, %v6043
        %v6076 = vadd.f32 %v5916, %v6044
        %v6077 = vadd.f32 %v5917, %v6045
        %v6078 = vadd.f32 %v5918, %v6046
        %v6079 = vadd.f32 %v5919, %v6047
        %v6080 = vadd.f32 %v5920, %v6048
        %v6081 = vadd.f32 %v5921, %v6049
        %v6082 = vadd.f32 %v5922, %v6050
        %v6083 = vadd.f32 %v5923, %v6051
        %v6084 = vadd.f32 %v5924, %v6052
        %v6085 = vadd.f32 %v5925, %v6053
        %v6086 = vadd.f32 %v5926, %v6054
        %v6087 = vadd.f32 %v5927, %v6055
        %v6088 = vadd.f32 %v5928, %v6056
        %v6089 = vadd.f32 %v5929, %v6057
        %v6090 = vadd.f32 %v5930, %v6058
        %v6091 = vadd.f32 %v5931, %v6059
        %v6092 = vadd.f32 %v5932, %v6060
        %v6093 = vadd.f32 %v5933, %v6061
        %v6094 = vadd.f32 %v5934, %v6062
        %v6095 = vadd.f32 %v5935, %v6063
        %v6096 = vadd.f32 %v5936, %v6064
        %v6097 = vadd.f32 %v5937, %v6065
        %v6098 = vadd.f32 %v5938, %v6066
        %v6099 = vadd.f32 %v5939, %v6067
        %v6100 = vadd.f32 %v5940, %v6068
        %v6101 = vadd.f32 %v5941, %v6069
        %v6102 = vadd.f32 %v6070, 1.0
        %v6103 = vadd.f32 %v6071, 1.0
        %v6104 = vadd.f32 %v6072, 1.0
        %v6105 = vadd.f32 %v6073, 1.0
        %v6106 = vadd.f32 %v6074, 1.0
        %v6107 = vadd.f32 %v6075, 1.0
        %v6108 = vadd.f32 %v6076, 1.0
        %v6109 = vadd.f32 %v6077, 1.0
        %v6110 = vadd.f32 %v6078, 1.0
        %v6111 = vadd.f32 %v6079, 1.0
        %v6112 = vadd.f32 %v6080, 1.0
        %v6113 = vadd.f32 %v6081, 1.0
        %v6114 = vadd.f32 %v6082, 1.0
        %v6115 = vadd.f32 %v6083, 1.0
        %v6116 = vadd.f32 %v6084, 1.0
        %v6117 = vadd.f32 %v6085, 1.0
        %v6118 = vadd.f32 %v6086, 1.0
        %v6119 = vadd.f32 %v6087, 1.0
        %v6120 = vadd.f32 %v6088, 1.0
        %v6121 = vadd.f32 %v6089, 1.0
        %v6122 = vadd.f32 %v6090, 1.0
        %v6123 = vadd.f32 %v6091, 1.0
        %v6124 = vadd.f32 %v6092, 1.0
        %v6125 = vadd.f32 %v6093, 1.0
        %v6126 = vadd.f32 %v6094, 1.0
        %v6127 = vadd.f32 %v6095, 1.0
        %v6128 = vadd.f32 %v6096, 1.0
        %v6129 = vadd.f32 %v6097, 1.0
        %v6130 = vadd.f32 %v6098, 1.0
        %v6131 = vadd.f32 %v6099, 1.0
        %v6132 = vadd.f32 %v6100, 1.0
        %v6133 = vadd.f32 %v6101, 1.0
        %v6134 = vrcp.pop %v6102
        %v6135 = vmul.f32 10.0, %v6134
        %v6136 = vrcp.pop %v6103
        %v6137 = vmul.f32 10.0, %v6136
        %v6138 = vrcp.pop %v6104
        %v6139 = vmul.f32 10.0, %v6138
        %v6140 = vrcp.pop %v6105
        %v6141 = vmul.f32 10.0, %v6140
        %v6142 = vrcp.pop %v6106
        %v6143 = vmul.f32 10.0, %v6142
        %v6144 = vrcp.pop %v6107
        %v6145 = vmul.f32 10.0, %v6144
        %v6146 = vrcp.pop %v6108
        %v6147 = vmul.f32 10.0, %v6146
        %v6148 = vrcp.pop %v6109
        %v6149 = vmul.f32 10.0, %v6148
        %v6150 = vrcp.pop %v6110
        %v6151 = vmul.f32 10.0, %v6150
        %v6152 = vrcp.pop %v6111
        %v6153 = vmul.f32 10.0, %v6152
        %v6154 = vrcp.pop %v6112
        %v6155 = vmul.f32 10.0, %v6154
        %v6156 = vrcp.pop %v6113
        %v6157 = vmul.f32 10.0, %v6156
        %v6158 = vrcp.pop %v6114
        %v6159 = vmul.f32 10.0, %v6158
        %v6160 = vrcp.pop %v6115
        %v6161 = vmul.f32 10.0, %v6160
        %v6162 = vrcp.pop %v6116
        %v6163 = vmul.f32 10.0, %v6162
        %v6164 = vrcp.pop %v6117
        %v6165 = vmul.f32 10.0, %v6164
        %v6166 = vrcp.pop %v6118
        %v6167 = vmul.f32 10.0, %v6166
        %v6168 = vrcp.pop %v6119
        %v6169 = vmul.f32 10.0, %v6168
        %v6170 = vrcp.pop %v6120
        %v6171 = vmul.f32 10.0, %v6170
        %v6172 = vrcp.pop %v6121
        %v6173 = vmul.f32 10.0, %v6172
        %v6174 = vrcp.pop %v6122
        %v6175 = vmul.f32 10.0, %v6174
        %v6176 = vrcp.pop %v6123
        %v6177 = vmul.f32 10.0, %v6176
        %v6178 = vrcp.pop %v6124
        %v6179 = vmul.f32 10.0, %v6178
        %v6180 = vrcp.pop %v6125
        %v6181 = vmul.f32 10.0, %v6180
        %v6182 = vrcp.pop %v6126
        %v6183 = vmul.f32 10.0, %v6182
        %v6184 = vrcp.pop %v6127
        %v6185 = vmul.f32 10.0, %v6184
        %v6186 = vrcp.pop %v6128
        %v6187 = vmul.f32 10.0, %v6186
        %v6188 = vrcp.pop %v6129
        %v6189 = vmul.f32 10.0, %v6188
        %v6190 = vrcp.pop %v6130
        %v6191 = vmul.f32 10.0, %v6190
        %v6192 = vrcp.pop %v6131
        %v6193 = vmul.f32 10.0, %v6192
        %v6194 = vrcp.pop %v6132
        %v6195 = vmul.f32 10.0, %v6194
        %v6196 = vrcp.pop %v6133
        %v6197 = vmul.f32 10.0, %v6196
        %v6198 = vfloor.f32 %v6135
        %v6199 = vfloor.f32 %v6137
        %v6200 = vfloor.f32 %v6139
        %v6201 = vfloor.f32 %v6141
        %v6202 = vfloor.f32 %v6143
        %v6203 = vfloor.f32 %v6145
        %v6204 = vfloor.f32 %v6147
        %v6205 = vfloor.f32 %v6149
        %v6206 = vfloor.f32 %v6151
        %v6207 = vfloor.f32 %v6153
        %v6208 = vfloor.f32 %v6155
        %v6209 = vfloor.f32 %v6157
        %v6210 = vfloor.f32 %v6159
        %v6211 = vfloor.f32 %v6161
        %v6212 = vfloor.f32 %v6163
        %v6213 = vfloor.f32 %v6165
        %v6214 = vfloor.f32 %v6167
        %v6215 = vfloor.f32 %v6169
        %v6216 = vfloor.f32 %v6171
        %v6217 = vfloor.f32 %v6173
        %v6218 = vfloor.f32 %v6175
        %v6219 = vfloor.f32 %v6177
        %v6220 = vfloor.f32 %v6179
        %v6221 = vfloor.f32 %v6181
        %v6222 = vfloor.f32 %v6183
        %v6223 = vfloor.f32 %v6185
        %v6224 = vfloor.f32 %v6187
        %v6225 = vfloor.f32 %v6189
        %v6226 = vfloor.f32 %v6191
        %v6227 = vfloor.f32 %v6193
        %v6228 = vfloor.f32 %v6195
        %v6229 = vfloor.f32 %v6197
        %v6230 = vmul.f32 %v6198, 0.1
        %v6231 = vmul.f32 %v6199, 0.1
        %v6232 = vmul.f32 %v6200, 0.1
        %v6233 = vmul.f32 %v6201, 0.1
        %v6234 = vmul.f32 %v6202, 0.1
        %v6235 = vmul.f32 %v6203, 0.1
        %v6236 = vmul.f32 %v6204, 0.1
        %v6237 = vmul.f32 %v6205, 0.1
        %v6238 = vmul.f32 %v6206, 0.1
        %v6239 = vmul.f32 %v6207, 0.1
        %v6240 = vmul.f32 %v6208, 0.1
        %v6241 = vmul.f32 %v6209, 0.1
        %v6242 = vmul.f32 %v6210, 0.1
        %v6243 = vmul.f32 %v6211, 0.1
        %v6244 = vmul.f32 %v6212, 0.1
        %v6245 = vmul.f32 %v6213, 0.1
        %v6246 = vmul.f32 %v6214, 0.1
        %v6247 = vmul.f32 %v6215, 0.1
        %v6248 = vmul.f32 %v6216, 0.1
        %v6249 = vmul.f32 %v6217, 0.1
        %v6250 = vmul.f32 %v6218, 0.1
        %v6251 = vmul.f32 %v6219, 0.1
        %v6252 = vmul.f32 %v6220, 0.1
        %v6253 = vmul.f32 %v6221, 0.1
        %v6254 = vmul.f32 %v6222, 0.1
        %v6255 = vmul.f32 %v6223, 0.1
        %v6256 = vmul.f32 %v6224, 0.1
        %v6257 = vmul.f32 %v6225, 0.1
        %v6258 = vmul.f32 %v6226, 0.1
        %v6259 = vmul.f32 %v6227, 0.1
        %v6260 = vmul.f32 %v6228, 0.1
        %v6261 = vmul.f32 %v6229, 0.1
        %v6262 = vsub.f32 %v4470, %v6230
        %v6263 = vsub.f32 %v4471, %v6231
        %v6264 = vsub.f32 %v4472, %v6232
        %v6265 = vsub.f32 %v4473, %v6233
        %v6266 = vsub.f32 %v4474, %v6234
        %v6267 = vsub.f32 %v4475, %v6235
        %v6268 = vsub.f32 %v4476, %v6236
        %v6269 = vsub.f32 %v4477, %v6237
        %v6270 = vsub.f32 %v4478, %v6238
        %v6271 = vsub.f32 %v4479, %v6239
        %v6272 = vsub.f32 %v4480, %v6240
        %v6273 = vsub.f32 %v4481, %v6241
        %v6274 = vsub.f32 %v4482, %v6242
        %v6275 = vsub.f32 %v4483, %v6243
        %v6276 = vsub.f32 %v4484, %v6244
        %v6277 = vsub.f32 %v4485, %v6245
        %v6278 = vsub.f32 %v4486, %v6246
        %v6279 = vsub.f32 %v4487, %v6247
        %v6280 = vsub.f32 %v4488, %v6248
        %v6281 = vsub.f32 %v4489, %v6249
        %v6282 = vsub.f32 %v4490, %v6250
        %v6283 = vsub.f32 %v4491, %v6251
        %v6284 = vsub.f32 %v4492, %v6252
        %v6285 = vsub.f32 %v4493, %v6253
        %v6286 = vsub.f32 %v4494, %v6254
        %v6287 = vsub.f32 %v4495, %v6255
        %v6288 = vsub.f32 %v4496, %v6256
        %v6289 = vsub.f32 %v4497, %v6257
        %v6290 = vsub.f32 %v4498, %v6258
        %v6291 = vsub.f32 %v4499, %v6259
        %v6292 = vsub.f32 %v4500, %v6260
        %v6293 = vsub.f32 %v4501, %v6261
        %v6294 = vmul.f32 %v2710, %v6262
        %v6295 = vmul.f32 %v2711, %v6263
        %v6296 = vmul.f32 %v2712, %v6264
        %v6297 = vmul.f32 %v2713, %v6265
        %v6298 = vmul.f32 %v2714, %v6266
        %v6299 = vmul.f32 %v2715, %v6267
        %v6300 = vmul.f32 %v2716, %v6268
        %v6301 = vmul.f32 %v2717, %v6269
        %v6302 = vmul.f32 %v2718, %v6270
        %v6303 = vmul.f32 %v2719, %v6271
        %v6304 = vmul.f32 %v2720, %v6272
        %v6305 = vmul.f32 %v2721, %v6273
        %v6306 = vmul.f32 %v2722, %v6274
        %v6307 = vmul.f32 %v2723, %v6275
        %v6308 = vmul.f32 %v2724, %v6276
        %v6309 = vmul.f32 %v2725, %v6277
        %v6310 = vmul.f32 %v2726, %v6278
        %v6311 = vmul.f32 %v2727, %v6279
        %v6312 = vmul.f32 %v2728, %v6280
        %v6313 = vmul.f32 %v2729, %v6281
        %v6314 = vmul.f32 %v2730, %v6282
        %v6315 = vmul.f32 %v2731, %v6283
        %v6316 = vmul.f32 %v2732, %v6284
        %v6317 = vmul.f32 %v2733, %v6285
        %v6318 = vmul.f32 %v2734, %v6286
        %v6319 = vmul.f32 %v2735, %v6287
        %v6320 = vmul.f32 %v2736, %v6288
        %v6321 = vmul.f32 %v2737, %v6289
        %v6322 = vmul.f32 %v2738, %v6290
        %v6323 = vmul.f32 %v2739, %v6291
        %v6324 = vmul.f32 %v2740, %v6292
        %v6325 = vmul.f32 %v2741, %v6293
        %v6326 = vld [vmem:[%s344] sm:$0xff]
        %v6327 = vld [vmem:[%s344 + $0x8] sm:$0xff]
        %v6328 = vld [vmem:[%s344 + $0x10] sm:$0xff]
        %v6329 = vld [vmem:[%s344 + $0x18] sm:$0xff]
        %v6330 = vld [vmem:[%s344 + $0x20] sm:$0xff]
        %v6331 = vld [vmem:[%s344 + $0x28] sm:$0xff]
        %v6332 = vld [vmem:[%s344 + $0x30] sm:$0xff]
        %v6333 = vld [vmem:[%s344 + $0x38] sm:$0xff]
        %v6334 = vld [vmem:[%s344 + $0x40] sm:$0xff]
        %v6335 = vld [vmem:[%s344 + $0x48] sm:$0xff]
        %v6336 = vld [vmem:[%s344 + $0x50] sm:$0xff]
        %v6337 = vld [vmem:[%s344 + $0x58] sm:$0xff]
        %v6338 = vld [vmem:[%s344 + $0x60] sm:$0xff]
        %v6339 = vld [vmem:[%s344 + $0x68] sm:$0xff]
        %v6340 = vld [vmem:[%s344 + $0x70] sm:$0xff]
        %v6341 = vld [vmem:[%s344 + $0x78] sm:$0xff]
        %v6342 = vpack.c.bf16 %v6296, %v6294
        %v6343 = vpack.c.bf16 %v6297, %v6295
        %v6344 = vpack.c.bf16 %v6300, %v6298
        %v6345 = vpack.c.bf16 %v6301, %v6299
        %v6346 = vpack.c.bf16 %v6304, %v6302
        %v6347 = vpack.c.bf16 %v6305, %v6303
        %v6348 = vpack.c.bf16 %v6308, %v6306
        %v6349 = vpack.c.bf16 %v6309, %v6307
        %v6350 = vpack.c.bf16 %v6312, %v6310
        %v6351 = vpack.c.bf16 %v6313, %v6311
        %v6352 = vpack.c.bf16 %v6316, %v6314
        %v6353 = vpack.c.bf16 %v6317, %v6315
        %v6354 = vpack.c.bf16 %v6320, %v6318
        %v6355 = vpack.c.bf16 %v6321, %v6319
        %v6356 = vpack.c.bf16 %v6324, %v6322
        %v6357 = vpack.c.bf16 %v6325, %v6323
        %v6358 = vld [vmem:[%s305] sm:$0xf]
        %v6359 = vld [vmem:[%s305 + $0x4] sm:$0xf]
        %v6360 = vld [vmem:[%s305 + $0x8] sm:$0xf]
        %v6361 = vld [vmem:[%s305 + $0xc] sm:$0xf]
        %v6362 = vld [vmem:[%s305 + $0x10] sm:$0xf]
        %v6363 = vld [vmem:[%s305 + $0x14] sm:$0xf]
        %v6364 = vld [vmem:[%s305 + $0x18] sm:$0xf]
        %v6365 = vld [vmem:[%s305 + $0x1c] sm:$0xf]
        %v6366 = vld [vmem:[%s305 + $0x20] sm:$0xf]
        %v6367 = vld [vmem:[%s305 + $0x24] sm:$0xf]
        %v6368 = vld [vmem:[%s305 + $0x28] sm:$0xf]
        %v6369 = vld [vmem:[%s305 + $0x2c] sm:$0xf]
        %v6370 = vld [vmem:[%s305 + $0x30] sm:$0xf]
        %v6371 = vld [vmem:[%s305 + $0x34] sm:$0xf]
        %v6372 = vld [vmem:[%s305 + $0x38] sm:$0xf]
        %v6373 = vld [vmem:[%s305 + $0x3c] sm:$0xf]
        %v6374 = vld [vmem:[%s305 + $0x40] sm:$0xf]
        %v6375 = vld [vmem:[%s305 + $0x44] sm:$0xf]
        %v6376 = vld [vmem:[%s305 + $0x48] sm:$0xf]
        %v6377 = vld [vmem:[%s305 + $0x4c] sm:$0xf]
        %v6378 = vld [vmem:[%s305 + $0x50] sm:$0xf]
        %v6379 = vld [vmem:[%s305 + $0x54] sm:$0xf]
        %v6380 = vld [vmem:[%s305 + $0x58] sm:$0xf]
        %v6381 = vld [vmem:[%s305 + $0x5c] sm:$0xf]
        %v6382 = vld [vmem:[%s305 + $0x60] sm:$0xf]
        %v6383 = vld [vmem:[%s305 + $0x64] sm:$0xf]
        %v6384 = vld [vmem:[%s305 + $0x68] sm:$0xf]
        %v6385 = vld [vmem:[%s305 + $0x6c] sm:$0xf]
        %v6386 = vld [vmem:[%s305 + $0x70] sm:$0xf]
        %v6387 = vld [vmem:[%s305 + $0x74] sm:$0xf]
        %v6388 = vld [vmem:[%s305 + $0x78] sm:$0xf]
        %v6389 = vld [vmem:[%s305 + $0x7c] sm:$0xf]
        %v6422 = vunpack.c.l.b16 %v6358
        %v6423 = vunpack.c.l.b16 %v6359
        %v6424 = vunpack.c.l.b16 %v6360
        %v6425 = vunpack.c.l.b16 %v6361
        %v6426 = vunpack.c.l.b16 %v6362
        %v6427 = vunpack.c.l.b16 %v6363
        %v6428 = vunpack.c.l.b16 %v6364
        %v6429 = vunpack.c.l.b16 %v6365
        %v6430 = vunpack.c.l.b16 %v6366
        %v6431 = vunpack.c.l.b16 %v6367
        %v6432 = vunpack.c.l.b16 %v6368
        %v6433 = vunpack.c.l.b16 %v6369
        %v6434 = vunpack.c.l.b16 %v6370
        %v6435 = vunpack.c.l.b16 %v6371
        %v6436 = vunpack.c.l.b16 %v6372
        %v6437 = vunpack.c.l.b16 %v6373
        %v6438 = vunpack.c.l.b16 %v6374
        %v6439 = vunpack.c.l.b16 %v6375
        %v6440 = vunpack.c.l.b16 %v6376
        %v6441 = vunpack.c.l.b16 %v6377
        %v6442 = vunpack.c.l.b16 %v6378
        %v6443 = vunpack.c.l.b16 %v6379
        %v6444 = vunpack.c.l.b16 %v6380
        %v6445 = vunpack.c.l.b16 %v6381
        %v6446 = vunpack.c.l.b16 %v6382
        %v6447 = vunpack.c.l.b16 %v6383
        %v6448 = vunpack.c.l.b16 %v6384
        %v6449 = vunpack.c.l.b16 %v6385
        %v6450 = vunpack.c.l.b16 %v6386
        %v6451 = vunpack.c.l.b16 %v6387
        %v6452 = vunpack.c.l.b16 %v6388
        %v6453 = vunpack.c.l.b16 %v6389
        %v6454 = vpack.c.b16 %v6423, %v6422
        %v6455 = vpack.c.b16 %v6425, %v6424
        %v6456 = vpack.c.b16 %v6427, %v6426
        %v6457 = vpack.c.b16 %v6429, %v6428
        %v6458 = vpack.c.b16 %v6431, %v6430
        %v6459 = vpack.c.b16 %v6433, %v6432
        %v6460 = vpack.c.b16 %v6435, %v6434
        %v6461 = vpack.c.b16 %v6437, %v6436
        %v6462 = vpack.c.b16 %v6439, %v6438
        %v6463 = vpack.c.b16 %v6441, %v6440
        %v6464 = vpack.c.b16 %v6443, %v6442
        %v6465 = vpack.c.b16 %v6445, %v6444
        %v6466 = vpack.c.b16 %v6447, %v6446
        %v6467 = vpack.c.b16 %v6449, %v6448
        %v6468 = vpack.c.b16 %v6451, %v6450
        %v6469 = vpack.c.b16 %v6453, %v6452
        %6486 = vmatprep.subr.bf16.mxu0 0
        %6487 = vmatpush1.bf16.msra.mxu0 %v6454
        %6488 = vmatprep.subr.bf16.mxu0 0
        %6489 = vmatpush1.bf16.msra.mxu0 %v6455
        %6490 = vmatprep.subr.bf16.mxu0 0
        %6491 = vmatpush1.bf16.msra.mxu0 %v6456
        %6492 = vmatprep.subr.bf16.mxu0 0
        %6493 = vmatpush1.bf16.msra.mxu0 %v6457
        %6494 = vmatprep.subr.bf16.mxu0 0
        %6495 = vmatpush1.bf16.msra.mxu0 %v6458
        %6496 = vmatprep.subr.bf16.mxu0 0
        %6497 = vmatpush1.bf16.msra.mxu0 %v6459
        %6498 = vmatprep.subr.bf16.mxu0 0
        %6499 = vmatpush1.bf16.msra.mxu0 %v6460
        %6500 = vmatprep.subr.bf16.mxu0 0
        %6501 = vmatpush1.bf16.msra.mxu0 %v6461
        %6502 = vmatprep.subr.bf16.mxu0 0
        %6503 = vmatpush1.bf16.msra.mxu0 %v6462
        %6504 = vmatprep.subr.bf16.mxu0 0
        %6505 = vmatpush1.bf16.msra.mxu0 %v6463
        %6506 = vmatprep.subr.bf16.mxu0 0
        %6507 = vmatpush1.bf16.msra.mxu0 %v6464
        %6508 = vmatprep.subr.bf16.mxu0 0
        %6509 = vmatpush1.bf16.msra.mxu0 %v6465
        %6510 = vmatprep.subr.bf16.mxu0 0
        %6511 = vmatpush1.bf16.msra.mxu0 %v6466
        %6512 = vmatprep.subr.bf16.mxu0 0
        %6513 = vmatpush1.bf16.msra.mxu0 %v6467
        %6514 = vmatprep.subr.bf16.mxu0 0
        %6515 = vmatpush1.bf16.msra.mxu0 %v6468
        %6516 = vmatprep.subr.bf16.mxu0 0
        %6517 = vmatpush1.bf16.msra.mxu0 %v6469
        %6518 = vmatprep.mubr.bf16.mxu0 %v6343
        %6519 = vmatmul.mubr.bf16.gmra.mrb[0].mxu0 %v6342
        %v6520 = vpop.f32.mrb[0].mxu0
        %v6521 = vadd.f32 0.0, %v6520
        %v6522 = vpop.f32.mrb[0].mxu0
        %v6523 = vpop.f32.mrb[0].mxu0
        %v6524 = vadd.f32 0.0, %v6523
        %v6525 = vpop.f32.mrb[0].mxu0
        %6526 = vmatprep.mubr.bf16.mxu0 %v6345
        %6527 = vmatmul.mubr.bf16.gmra.mrb[0].mxu0 %v6344
        %v6528 = vpop.f32.mrb[0].mxu0
        %v6529 = vadd.f32 0.0, %v6528
        %v6530 = vpop.f32.mrb[0].mxu0
        %v6531 = vpop.f32.mrb[0].mxu0
        %v6532 = vadd.f32 0.0, %v6531
        %v6533 = vpop.f32.mrb[0].mxu0
        %6534 = vmatprep.mubr.bf16.mxu0 %v6347
        %6535 = vmatmul.mubr.bf16.gmra.mrb[0].mxu0 %v6346
        %v6536 = vpop.f32.mrb[0].mxu0
        %v6537 = vadd.f32 0.0, %v6536
        %v6538 = vpop.f32.mrb[0].mxu0
        %v6539 = vpop.f32.mrb[0].mxu0
        %v6540 = vadd.f32 0.0, %v6539
        %v6541 = vpop.f32.mrb[0].mxu0
        %6542 = vmatprep.mubr.bf16.mxu0 %v6349
        %6543 = vmatmul.mubr.bf16.gmra.mrb[0].mxu0 %v6348
        %v6544 = vpop.f32.mrb[0].mxu0
        %v6545 = vadd.f32 0.0, %v6544
        %v6546 = vpop.f32.mrb[0].mxu0
        %v6547 = vpop.f32.mrb[0].mxu0
        %v6548 = vadd.f32 0.0, %v6547
        %v6549 = vpop.f32.mrb[0].mxu0
        %6550 = vmatprep.mubr.bf16.mxu0 %v6351
        %6551 = vmatmul.mubr.bf16.gmra.mrb[0].mxu0 %v6350
        %v6552 = vpop.f32.mrb[0].mxu0
        %v6553 = vadd.f32 0.0, %v6552
        %v6554 = vpop.f32.mrb[0].mxu0
        %v6555 = vpop.f32.mrb[0].mxu0
        %v6556 = vadd.f32 0.0, %v6555
        %v6557 = vpop.f32.mrb[0].mxu0
        %6558 = vmatprep.mubr.bf16.mxu0 %v6353
        %6559 = vmatmul.mubr.bf16.gmra.mrb[0].mxu0 %v6352
        %v6560 = vpop.f32.mrb[0].mxu0
        %v6561 = vadd.f32 0.0, %v6560
        %v6562 = vpop.f32.mrb[0].mxu0
        %v6563 = vpop.f32.mrb[0].mxu0
        %v6564 = vadd.f32 0.0, %v6563
        %v6565 = vpop.f32.mrb[0].mxu0
        %6566 = vmatprep.mubr.bf16.mxu0 %v6355
        %6567 = vmatmul.mubr.bf16.gmra.mrb[0].mxu0 %v6354
        %v6568 = vpop.f32.mrb[0].mxu0
        %v6569 = vadd.f32 0.0, %v6568
        %v6570 = vpop.f32.mrb[0].mxu0
        %v6571 = vpop.f32.mrb[0].mxu0
        %v6572 = vadd.f32 0.0, %v6571
        %v6573 = vpop.f32.mrb[0].mxu0
        %6574 = vmatprep.mubr.bf16.mxu0 %v6357
        %6575 = vmatmul.mubr.bf16.gmra.mrb[0].mxu0 %v6356
        %v6576 = vpop.f32.mrb[0].mxu0
        %v6577 = vadd.f32 0.0, %v6576
        %v6578 = vpop.f32.mrb[0].mxu0
        %v6579 = vpop.f32.mrb[0].mxu0
        %v6580 = vadd.f32 0.0, %v6579
        %v6581 = vpop.f32.mrb[0].mxu0
        %6582 = vdwg.mxu0
        %v6583 = vadd.f32 %v6326, %v6521
        %v6584 = vadd.f32 %v6327, %v6524
        %v6585 = vadd.f32 %v6328, %v6529
        %v6586 = vadd.f32 %v6329, %v6532
        %v6587 = vadd.f32 %v6330, %v6537
        %v6588 = vadd.f32 %v6331, %v6540
        %v6589 = vadd.f32 %v6332, %v6545
        %v6590 = vadd.f32 %v6333, %v6548
        %v6591 = vadd.f32 %v6334, %v6553
        %v6592 = vadd.f32 %v6335, %v6556
        %v6593 = vadd.f32 %v6336, %v6561
        %v6594 = vadd.f32 %v6337, %v6564
        %v6595 = vadd.f32 %v6338, %v6569
        %v6596 = vadd.f32 %v6339, %v6572
        %v6597 = vadd.f32 %v6340, %v6577
        %v6598 = vadd.f32 %v6341, %v6580
        %6599 = vst [vmem:[%s344] sm:$0xff] %v6583
        %6600 = vst [vmem:[%s344 + $0x8] sm:$0xff] %v6584
        %6601 = vst [vmem:[%s344 + $0x10] sm:$0xff] %v6585
        %6602 = vst [vmem:[%s344 + $0x18] sm:$0xff] %v6586
        %6603 = vst [vmem:[%s344 + $0x20] sm:$0xff] %v6587
        %6604 = vst [vmem:[%s344 + $0x28] sm:$0xff] %v6588
        %6605 = vst [vmem:[%s344 + $0x30] sm:$0xff] %v6589
        %6606 = vst [vmem:[%s344 + $0x38] sm:$0xff] %v6590
        %6607 = vst [vmem:[%s344 + $0x40] sm:$0xff] %v6591
        %6608 = vst [vmem:[%s344 + $0x48] sm:$0xff] %v6592
        %6609 = vst [vmem:[%s344 + $0x50] sm:$0xff] %v6593
        %6610 = vst [vmem:[%s344 + $0x58] sm:$0xff] %v6594
        %6611 = vst [vmem:[%s344 + $0x60] sm:$0xff] %v6595
        %6612 = vst [vmem:[%s344 + $0x68] sm:$0xff] %v6596
        %6613 = vst [vmem:[%s344 + $0x70] sm:$0xff] %v6597
        %6614 = vst [vmem:[%s344 + $0x78] sm:$0xff] %v6598
        %s6615 = sand.u32 %s151, 1
        %s6616 = scalar_lea.sflag [#allocation4], %s6615
        %s6617 = sand.u32 %s151, 1
        %s6618 = smul.addr %s6617, 128
        %s6619 = scalar_lea.vmem [#allocation10], %s6618
        // Predicated region
        $region57: #{tpu_custom_call.1} parent=35 // pred_check
          %p6620 = pneg %p161
        $region58: #{tpu_custom_call.1} parent=35 // pred_check_branch
          %6622 = sbr.rel (%p6620) target = $region60
        $region59: #{tpu_custom_call.1} parent=35 // pred_region
          %s6623 = smul.u32 16, %s31
          %s6625 = ssub.s32 2048, 2048
          %6626 = vsyncadd %s6616, %s6625
          %s6627 = smul.addr %s6623, 128
          %s6628 = scalar_lea.hbm %s4, %s6627
          %s6629 = sshll.u32 %s6619, 4
          %s6630 = int_to_ptr.vmem [resolvable:$true] %s6629
          %6635 = dma.vmem_to_hbm [thread:$0]  %s6630, 2048, %s6628, %s6616, 128, 128, 8
        $region60: #{tpu_custom_call.1} parent=35 // pred_fallthru
          _
      $region36: #{tpu_custom_call.1} parent=5 // pred_fallthru
        _
      %p6636 = scmp.le.s32.totalorder 2, %s22
      // Predicated region
      $region61: #{tpu_custom_call.1} parent=5 // pred_check
        %p6637 = pneg %p6636
      $region62: #{tpu_custom_call.1} parent=5 // pred_check_branch
        %6639 = sbr.rel (%p6637) target = $region64
      $region63: #{tpu_custom_call.1} parent=5 // pred_region
        %s6640 = ssub.s32 %s22, 2
        // Predicated region
        $region65: #{tpu_custom_call.1} parent=63 // pred_check
          %p6641 = pneg %p167
        $region66: #{tpu_custom_call.1} parent=63 // pred_check_branch
          %6643 = sbr.rel (%p6641) target = $region68
        $region67: #{tpu_custom_call.1} parent=63 // pred_region
          %s6644 = sand.u32 %s152, 1
          %s6645 = scalar_lea.sflag [#allocation4], %s6644
          %s6646 = sand.u32 %s152, 1
          %s6647 = smul.addr %s6646, 128
          %s6648 = scalar_lea.vmem [#allocation10], %s6647
          %6649 = dma.done %s6645, 2048
        $region68: #{tpu_custom_call.1} parent=63 // pred_fallthru
          _
      $region64: #{tpu_custom_call.1} parent=5 // pred_fallthru
        _
    $region6: #{tpu_custom_call.1} parent=1 // loop_footer
      %s26 = sadd.s32 1, %s22
    $region7: #{tpu_custom_call.1} parent=1 // loop_footer_branch
      %21 = sbr.rel target = $region3
    $region8: #{tpu_custom_call.1} parent=1 // loop_exit
      _
    %6650 = vsyncpa [#allocation3], 1
    %s6651 = scalar_lea.sflag [#allocation3], 1
    %6652 = vsyncpa %s6651, 1
    %6653 = vsyncpa [#allocation6], 1
    %s6654 = scalar_lea.sflag [#allocation6], 1
    %6655 = vsyncpa %s6654, 1
    %6656 = vsyncpa [#allocation9], 1
    %s6657 = scalar_lea.sflag [#allocation9], 1
    %6658 = vsyncpa %s6657, 1
    %6659 = vsyncpa [#allocation4], 1
    %s6660 = scalar_lea.sflag [#allocation4], 1
    %6661 = vsyncpa %s6660, 1

</llo_original>
